<compile_context>
chip_gen: v7x
topology: tpu7x:2x2x1
jax: 0.10.0
libtpu: 0.0.40
codegen_flags: <defaults>
</compile_context>

<pallas_src>
import numpy as np
import jax
import jax.numpy as jnp
from jax.experimental import pallas as pl
from jax.experimental.pallas import tpu as pltpu

EPS = 1e-6
GROUPS = 4


# ---------------------------------------------------------------------------
# Fused kernel body (channel-major, lane-dense)
# ---------------------------------------------------------------------------
def _fused_attn_up_block_kernel(H, W, C):
    N = H * W
    PAD = W + 1                       # widened-canvas end zone (covers all taps)
    f32 = jnp.float32

    def kernel(x_ref, t_ref,
               g1_ref, b1_ref, w1_ref, cb1_ref, wt_ref, bt_ref,
               g2_ref, b2_ref, w2_ref, cb2_ref,
               ga_ref, ba_ref,
               wq_ref, bq_ref, wk_ref, bk_ref, wv_ref, bv_ref, wo_ref, bo_ref,
               wu_ref, bu_ref, gmat_ref,
               o_ref,
               canvas_ref, patch_ref, vo_ref, attn_ref):

        gmat = gmat_ref[...]                           # (C, C) group-mean matrix

        def group_norm(v, gamma, beta):
            # v: (C, N); per-channel lane sums, group-aggregated with a tiny matmul
            s1 = jnp.sum(v, axis=1, keepdims=True)                      # (C, 1)
            mean = jnp.dot(gmat, s1, preferred_element_type=f32)        # (C, 1)
            xc = v - mean
            s2 = jnp.sum(xc * xc, axis=1, keepdims=True)
            var = jnp.dot(gmat, s2, preferred_element_type=f32)
            inv = jax.lax.rsqrt(var + EPS)
            return xc * (inv * gamma) + beta

        def silu(v):
            return v * jax.nn.sigmoid(v)

        # column masks implementing zero padding across row boundaries
        lane_x = jax.lax.broadcasted_iota(jnp.int32, (1, N), 1) % W
        cmask_l = (lane_x != 0).astype(f32)            # zero output col x == 0
        cmask_r = (lane_x != W - 1).astype(f32)        # zero output col x == W-1

        def conv3x3(h, w_ref_, bias):
            # h: (C, N).  Fill the widened flat canvas (end zones zero), build a
            # (9C, N) lane-dense patch from 9 static lane-offset slices, and do
            # one MXU matmul.  Row out-of-range taps fall in the zero end zones;
            # column wrap is killed by the lane masks.
            canvas_ref[:, 0:PAD] = jnp.zeros((C, PAD), f32)
            canvas_ref[:, PAD + N:2 * PAD + N] = jnp.zeros((C, PAD), f32)
            canvas_ref[:, PAD:PAD + N] = h
            for ky in range(3):
                for kx in range(3):
                    t = ky * 3 + kx
                    s = (ky - 1) * W + (kx - 1)
                    tap = canvas_ref[:, PAD + s:PAD + s + N]            # (C, N)
                    if kx == 0:
                        tap = tap * cmask_l
                    elif kx == 2:
                        tap = tap * cmask_r
                    patch_ref[C * t:C * (t + 1), :] = tap
            return jnp.dot(w_ref_[...], patch_ref[...],
                           preferred_element_type=f32) + bias           # (Co, N)

        # ---------------- resnet block ----------------
        h_in = x_ref[0].astype(f32)                    # (C, N) channel-major
        h = conv3x3(silu(group_norm(h_in, g1_ref[...], b1_ref[...])),
                    w1_ref, cb1_ref[...])
        # fused time-embedding projection: Wt^T @ SiLU(temb) + bt  -> (C, 1)
        te = jnp.dot(wt_ref[...], silu(t_ref[0].astype(f32)),
                     preferred_element_type=f32) + bt_ref[...]
        h = h + te
        h = conv3x3(silu(group_norm(h, g2_ref[...], b2_ref[...])),
                    w2_ref, cb2_ref[...])
        h = h + h_in                                   # skip_connection == Identity

        # ---------------- spatial attention (heads = C, head_dim = 1) ----------
        xn = group_norm(h, ga_ref[...], ba_ref[...])   # (C, N)
        q = jnp.dot(wq_ref[...], xn, preferred_element_type=f32) + bq_ref[...]
        v = jnp.dot(wv_ref[...], xn, preferred_element_type=f32) + bv_ref[...]
        # k in (N, C) orientation so each head's column is a static lane slice
        k = jax.lax.dot_general(xn, wk_ref[...],
                                dimension_numbers=(((0,), (0,)), ((), ())),
                                preferred_element_type=f32) + bk_ref[...]  # (N, C)
        kmax = jnp.max(k, axis=0, keepdims=True)       # (1, C)
        kmin = jnp.min(k, axis=0, keepdims=True)       # (1, C)

        vo_ref[1:2, :] = jnp.ones((1, N), f32)         # denominator row, set once
        for c in range(C):                             # static unroll over heads
            q_c = q[c:c + 1, :]                        # (1, N) lane-dense
            v_c = v[c:c + 1, :]                        # (1, N)
            k_c = k[:, c:c + 1]                        # (N, 1)
            # exact row-max of the outer-product scores (no (N,N) reduction)
            m = jnp.maximum(q_c * kmax[0:1, c:c + 1], q_c * kmin[0:1, c:c + 1])
            p = jnp.exp(k_c * q_c - m)                 # (N, N): key rows, query cols
            # fused P@V + softmax denominator in one MXU contraction
            vo_ref[0:1, :] = v_c
            od = jnp.dot(vo_ref[...], p, preferred_element_type=f32)   # (2, N)
            attn_ref[c:c + 1, :] = od[0:1, :] / od[1:2, :]
        h = jnp.dot(wo_ref[...], attn_ref[...],
                    preferred_element_type=f32) + bo_ref[...] + h      # residual

        # ------ nearest-2x upsample + 3x3 post conv as 4 phase convs ------
        out = conv3x3(h, wu_ref, bu_ref[...])          # (4C, N) phases stacked
        o_ref[0] = out.astype(o_ref.dtype)

    return kernel


# ---------------------------------------------------------------------------
# Public forward (NCHW in / NCHW out, like PyTorch)
# ---------------------------------------------------------------------------
def attn_up_block_forward(p, hidden_nchw, res_hidden_states_list, temb):
    B, _, H, W = hidden_nchw.shape
    C = p['r_conv1_w'].shape[-1]        # out_channels (== concat in_channels here)
    N = H * W
    T = temb.shape[-1]

    # NCHW is already channel-major: the (C, N) kernel layout is just a flat view.
    x_in = jnp.concatenate([hidden_nchw, res_hidden_states_list[-1]], axis=1)
    x_in = x_in.reshape(B, C, N).astype(jnp.float32)
    t_in = temb.reshape(B, T, 1).astype(jnp.float32)

    col = lambda a: a.reshape(-1, 1).astype(jnp.float32)
    row = lambda a: a.reshape(1, -1).astype(jnp.float32)

    def conv_w(w):                      # (3,3,Cin,Cout) -> (Cout, 9*Cin), tap-major
        return jnp.transpose(w, (3, 0, 1, 2)).reshape(w.shape[-1], -1) \
                  .astype(jnp.float32)

    # Fold nearest-2x upsample into the post conv: 4 parity phases over the
    # ORIGINAL grid with pre-combined weights (exactly equivalent to upsample+conv).
    wu_np = np.asarray(p['u_conv_w'], np.float32)      # (3, 3, C, C) HWIO
    wu = np.zeros((4 * C, 9 * C), np.float32)
    for a in range(2):
        for b in range(2):
            ph = a * 2 + b
            for ky in range(3):
                for kx in range(3):
                    dy = (a + ky - 1) // 2
                    dx = (b + kx - 1) // 2
                    t = (dy + 1) * 3 + (dx + 1)
                    wu[ph * C:(ph + 1) * C, t * C:(t + 1) * C] += wu_np[ky, kx].T
    bu = np.tile(np.asarray(p['u_conv_b'], np.float32), 4).reshape(-1, 1)

    cg = C // GROUPS
    gidx = np.arange(C) // cg
    gmat = ((gidx[:, None] == gidx[None, :]).astype(np.float32) / float(N * cg))

    args = [
        x_in, t_in,
        col(p['r_norm1_g']), col(p['r_norm1_b']),
        conv_w(p['r_conv1_w']), col(p['r_conv1_b']),
        p['r_temb_w'].T.astype(jnp.float32), col(p['r_temb_b']),
        col(p['r_norm2_g']), col(p['r_norm2_b']),
        conv_w(p['r_conv2_w']), col(p['r_conv2_b']),
        col(p['a_norm_g']), col(p['a_norm_b']),
        p['a_wq'].T.astype(jnp.float32), col(p['a_bq']),
        p['a_wk'].astype(jnp.float32), row(p['a_bk']),
        p['a_wv'].T.astype(jnp.float32), col(p['a_bv']),
        p['a_wo'].T.astype(jnp.float32), col(p['a_bo']),
        jnp.asarray(wu), jnp.asarray(bu), jnp.asarray(gmat),
    ]

    def _const(shape):
        nd = len(shape)
        return pl.BlockSpec(shape, lambda i, _nd=nd: (0,) * _nd)

    in_specs = [
        pl.BlockSpec((1, C, N), lambda i: (i, 0, 0)),
        pl.BlockSpec((1, T, 1), lambda i: (i, 0, 0)),
    ] + [_const(tuple(a.shape)) for a in args[2:]]

    out = pl.pallas_call(
        _fused_attn_up_block_kernel(H, W, C),
        out_shape=jax.ShapeDtypeStruct((B, 4 * C, N), jnp.float32),
        grid=(B,),
        in_specs=in_specs,
        out_specs=pl.BlockSpec((1, 4 * C, N), lambda i: (i, 0, 0)),
        scratch_shapes=[
            pltpu.VMEM((C, N + 2 * (W + 1)), jnp.float32),   # widened flat canvas
            pltpu.VMEM((9 * C, N), jnp.float32),             # im2col patch (9C, N)
            pltpu.VMEM((2, N), jnp.float32),                 # [v; 1] attention rows
            pltpu.VMEM((C, N), jnp.float32),                 # per-head attn output
        ],
        compiler_params=pltpu.CompilerParams(
            dimension_semantics=("parallel",)),
    )(*args)

    # Interleave the 4 parity phases back onto the 2x-upsampled NCHW grid
    # (tiny ~64 KB XLA permute; layout plumbing only).
    out = out.reshape(B, 2, 2, C, H, W)            # [b, a, bb, c, y, x]
    out = out.transpose(0, 3, 4, 1, 5, 2)          # [b, c, y, a, x, bb]
    return out.reshape(B, C, 2 * H, 2 * W)


# ---------------------------------------------------------------------------
# Pure-JAX reference (correctness check)
# ---------------------------------------------------------------------------
def _silu(x):
    return x * jax.nn.sigmoid(x)


def _ref_gn(x, g, b, groups, eps):
    B, H, W, C = x.shape
    xg = x.reshape(B, H, W, groups, C // groups)
    m = xg.mean(axis=(1, 2, 4), keepdims=True)
    v = ((xg - m) ** 2).mean(axis=(1, 2, 4), keepdims=True)
    xn = ((xg - m) / jnp.sqrt(v + eps)).reshape(B, H, W, C)
    return xn * g + b


def _ref_conv(x, w, b):
    y = jax.lax.conv_general_dilated(x, w, (1, 1), 'SAME',
                                     dimension_numbers=('NHWC', 'HWIO', 'NHWC'))
    return y + b


def ref_forward(p, hidden_nchw, res_list, temb):
    x = jnp.transpose(hidden_nchw, (0, 2, 3, 1))
    r = jnp.transpose(res_list[-1], (0, 2, 3, 1))
    h_in = jnp.concatenate([x, r], axis=-1)
    h = _silu(_ref_gn(h_in, p['r_norm1_g'], p['r_norm1_b'], GROUPS, EPS))
    h = _ref_conv(h, p['r_conv1_w'], p['r_conv1_b'])
    te = _silu(temb) @ p['r_temb_w'] + p['r_temb_b']
    h = h + te[:, None, None, :]
    h = _silu(_ref_gn(h, p['r_norm2_g'], p['r_norm2_b'], GROUPS, EPS))
    h = _ref_conv(h, p['r_conv2_w'], p['r_conv2_b']) + h_in
    res = h
    xn = _ref_gn(h, p['a_norm_g'], p['a_norm_b'], GROUPS, EPS)
    B, H, W, C = h.shape
    xf = xn.reshape(B, H * W, C)
    q = xf @ p['a_wq'] + p['a_bq']
    k = xf @ p['a_wk'] + p['a_bk']
    v = xf @ p['a_wv'] + p['a_bv']
    att = jnp.einsum('bxh,byh->bhxy', q, k)            # heads = C, head_dim = 1
    att = jax.nn.softmax(att, axis=-1)
    o = jnp.einsum('bhxy,byh->bxh', att, v)
    o = o @ p['a_wo'] + p['a_bo']
    h = o.reshape(B, H, W, C) + res
    h = jnp.repeat(jnp.repeat(h, 2, axis=1), 2, axis=2)
    h = _ref_conv(h, p['u_conv_w'], p['u_conv_b'])
    return jnp.transpose(h, (0, 3, 1, 2))


# ---------------------------------------------------------------------------
if __name__ == "__main__":
    B, IN_CH, PREV_CH, OUT_CH, T = 2, 4, 4, 8, 32
    H = W = 16
    C_RES_IN = PREV_CH + IN_CH  # 8

    key = jax.random.PRNGKey(0)
    keys = list(jax.random.split(key, 40))
    kit = iter(keys)

    def nrm(shape, scale=0.1):
        return (scale * jax.random.normal(next(kit), shape)).astype(jnp.float32)

    params = dict(
        # resnet block
        r_norm1_g=1.0 + nrm((C_RES_IN,)), r_norm1_b=nrm((C_RES_IN,)),
        r_conv1_w=nrm((3, 3, C_RES_IN, OUT_CH)), r_conv1_b=nrm((OUT_CH,)),
        r_temb_w=nrm((T, OUT_CH)), r_temb_b=nrm((OUT_CH,)),
        r_norm2_g=1.0 + nrm((OUT_CH,)), r_norm2_b=nrm((OUT_CH,)),
        r_conv2_w=nrm((3, 3, OUT_CH, OUT_CH)), r_conv2_b=nrm((OUT_CH,)),
        # spatial attention block
        a_norm_g=1.0 + nrm((OUT_CH,)), a_norm_b=nrm((OUT_CH,)),
        a_wq=nrm((OUT_CH, OUT_CH)), a_bq=nrm((OUT_CH,)),
        a_wk=nrm((OUT_CH, OUT_CH)), a_bk=nrm((OUT_CH,)),
        a_wv=nrm((OUT_CH, OUT_CH)), a_bv=nrm((OUT_CH,)),
        a_wo=nrm((OUT_CH, OUT_CH)), a_bo=nrm((OUT_CH,)),
        # upsampler post_conv
        u_conv_w=nrm((3, 3, OUT_CH, OUT_CH)), u_conv_b=nrm((OUT_CH,)),
    )

    hidden = jax.random.normal(next(kit), (B, PREV_CH, H, W), jnp.float32)
    res_skip = jax.random.normal(next(kit), (B, IN_CH, H, W), jnp.float32)
    temb = jax.random.normal(next(kit), (B, T), jnp.float32)

    out = attn_up_block_forward(params, hidden, [res_skip], temb)
    out = jax.block_until_ready(out)

    assert out.shape == (B, OUT_CH, 2 * H, 2 * W), out.shape
    ref = ref_forward(params, hidden, [res_skip], temb)
    np.testing.assert_allclose(np.asarray(out), np.asarray(ref), rtol=2e-3, atol=2e-3)
    print("KERNEL_OK")
</pallas_src>

<mosaic_0001>
module attributes {stable_mosaic.version = 11 : i64} {
  func.func @kernel(%arg0: i32, %arg1: memref<1x8x256xf32, #tpu.memory_space<vmem>>, %arg2: memref<1x32x1xf32, #tpu.memory_space<vmem>>, %arg3: memref<8x1xf32, #tpu.memory_space<vmem>>, %arg4: memref<8x1xf32, #tpu.memory_space<vmem>>, %arg5: memref<8x72xf32, #tpu.memory_space<vmem>>, %arg6: memref<8x1xf32, #tpu.memory_space<vmem>>, %arg7: memref<8x32xf32, #tpu.memory_space<vmem>>, %arg8: memref<8x1xf32, #tpu.memory_space<vmem>>, %arg9: memref<8x1xf32, #tpu.memory_space<vmem>>, %arg10: memref<8x1xf32, #tpu.memory_space<vmem>>, %arg11: memref<8x72xf32, #tpu.memory_space<vmem>>, %arg12: memref<8x1xf32, #tpu.memory_space<vmem>>, %arg13: memref<8x1xf32, #tpu.memory_space<vmem>>, %arg14: memref<8x1xf32, #tpu.memory_space<vmem>>, %arg15: memref<8x8xf32, #tpu.memory_space<vmem>>, %arg16: memref<8x1xf32, #tpu.memory_space<vmem>>, %arg17: memref<8x8xf32, #tpu.memory_space<vmem>>, %arg18: memref<1x8xf32, #tpu.memory_space<vmem>>, %arg19: memref<8x8xf32, #tpu.memory_space<vmem>>, %arg20: memref<8x1xf32, #tpu.memory_space<vmem>>, %arg21: memref<8x8xf32, #tpu.memory_space<vmem>>, %arg22: memref<8x1xf32, #tpu.memory_space<vmem>>, %arg23: memref<32x72xf32, #tpu.memory_space<vmem>>, %arg24: memref<32x1xf32, #tpu.memory_space<vmem>>, %arg25: memref<8x8xf32, #tpu.memory_space<vmem>>, %arg26: memref<1x32x256xf32, #tpu.memory_space<vmem>>, %arg27: memref<8x290xf32, #tpu.memory_space<vmem>>, %arg28: memref<72x256xf32, #tpu.memory_space<vmem>>, %arg29: memref<2x256xf32, #tpu.memory_space<vmem>>, %arg30: memref<8x256xf32, #tpu.memory_space<vmem>>) attributes {dimension_semantics = [#tpu.dimension_semantics<parallel>], iteration_bounds = array<i64: 2>, scalar_prefetch = 0 : i64, scratch_operands = 4 : i64, tpu.core_type = #tpu.core_type<tc>, window_params = [{transform_indices = @transform_0, window_bounds = array<i64: 1, 8, 256>}, {transform_indices = @transform_1, window_bounds = array<i64: 1, 32, 1>}, {pipeline_mode = #tpu.pipeline_mode<synchronous>, transform_indices = @transform_2, window_bounds = array<i64: 8, 1>}, {pipeline_mode = #tpu.pipeline_mode<synchronous>, transform_indices = @transform_3, window_bounds = array<i64: 8, 1>}, {pipeline_mode = #tpu.pipeline_mode<synchronous>, transform_indices = @transform_4, window_bounds = array<i64: 8, 72>}, {pipeline_mode = #tpu.pipeline_mode<synchronous>, transform_indices = @transform_5, window_bounds = array<i64: 8, 1>}, {pipeline_mode = #tpu.pipeline_mode<synchronous>, transform_indices = @transform_6, window_bounds = array<i64: 8, 32>}, {pipeline_mode = #tpu.pipeline_mode<synchronous>, transform_indices = @transform_7, window_bounds = array<i64: 8, 1>}, {pipeline_mode = #tpu.pipeline_mode<synchronous>, transform_indices = @transform_8, window_bounds = array<i64: 8, 1>}, {pipeline_mode = #tpu.pipeline_mode<synchronous>, transform_indices = @transform_9, window_bounds = array<i64: 8, 1>}, {pipeline_mode = #tpu.pipeline_mode<synchronous>, transform_indices = @transform_10, window_bounds = array<i64: 8, 72>}, {pipeline_mode = #tpu.pipeline_mode<synchronous>, transform_indices = @transform_11, window_bounds = array<i64: 8, 1>}, {pipeline_mode = #tpu.pipeline_mode<synchronous>, transform_indices = @transform_12, window_bounds = array<i64: 8, 1>}, {pipeline_mode = #tpu.pipeline_mode<synchronous>, transform_indices = @transform_13, window_bounds = array<i64: 8, 1>}, {pipeline_mode = #tpu.pipeline_mode<synchronous>, transform_indices = @transform_14, window_bounds = array<i64: 8, 8>}, {pipeline_mode = #tpu.pipeline_mode<synchronous>, transform_indices = @transform_15, window_bounds = array<i64: 8, 1>}, {pipeline_mode = #tpu.pipeline_mode<synchronous>, transform_indices = @transform_16, window_bounds = array<i64: 8, 8>}, {pipeline_mode = #tpu.pipeline_mode<synchronous>, transform_indices = @transform_17, window_bounds = array<i64: 1, 8>}, {pipeline_mode = #tpu.pipeline_mode<synchronous>, transform_indices = @transform_18, window_bounds = array<i64: 8, 8>}, {pipeline_mode = #tpu.pipeline_mode<synchronous>, transform_indices = @transform_19, window_bounds = array<i64: 8, 1>}, {pipeline_mode = #tpu.pipeline_mode<synchronous>, transform_indices = @transform_20, window_bounds = array<i64: 8, 8>}, {pipeline_mode = #tpu.pipeline_mode<synchronous>, transform_indices = @transform_21, window_bounds = array<i64: 8, 1>}, {pipeline_mode = #tpu.pipeline_mode<synchronous>, transform_indices = @transform_22, window_bounds = array<i64: 32, 72>}, {pipeline_mode = #tpu.pipeline_mode<synchronous>, transform_indices = @transform_23, window_bounds = array<i64: 32, 1>}, {pipeline_mode = #tpu.pipeline_mode<synchronous>, transform_indices = @transform_24, window_bounds = array<i64: 8, 8>}, {transform_indices = @transform_25, window_bounds = array<i64: 1, 32, 256>}]} {
    %c0 = arith.constant 0 : index
    %c0_0 = arith.constant 0 : index
    %0 = vector.load %arg25[%c0, %c0_0] : memref<8x8xf32, #tpu.memory_space<vmem>>, vector<8x8xf32>
    %1 = tpu.iota {dimensions = array<i32: 1>} : vector<1x256xi32>
    %c16_i32 = arith.constant 16 : i32
    %c0_i32 = arith.constant 0 : i32
    %2 = arith.cmpi eq, %c16_i32, %c0_i32 : i32
    %c1_i32 = arith.constant 1 : i32
    %3 = arith.select %2, %c1_i32, %c16_i32 : i32
    %4 = vector.broadcast %3 : i32 to vector<1x256xi32>
    %5 = arith.remsi %1, %4 : vector<1x256xi32>
    %c0_i32_1 = arith.constant 0 : i32
    %6 = vector.broadcast %c0_i32_1 : i32 to vector<1x256xi32>
    %7 = arith.cmpi ne, %5, %6 : vector<1x256xi32>
    %c0_i32_2 = arith.constant 0 : i32
    %8 = vector.broadcast %c0_i32_2 : i32 to vector<1x256xi32>
    %9 = arith.cmpi slt, %5, %8 : vector<1x256xi32>
    %c0_i32_3 = arith.constant 0 : i32
    %10 = arith.cmpi slt, %3, %c0_i32_3 : i32
    %11 = vector.broadcast %10 : i1 to vector<1x256xi1>
    %12 = vector.broadcast %11 : vector<1x256xi1> to vector<1x256xi1>
    %13 = arith.xori %9, %12 : vector<1x256xi1>
    %14 = arith.andi %13, %7 : vector<1x256xi1>
    %15 = vector.broadcast %3 : i32 to vector<1x256xi32>
    %16 = arith.addi %5, %15 : vector<1x256xi32>
    %17 = arith.select %14, %16, %5 : vector<1x256xi1>, vector<1x256xi32>
    %c0_i32_4 = arith.constant 0 : i32
    %18 = vector.broadcast %c0_i32_4 : i32 to vector<1x256xi32>
    %19 = arith.cmpi ne, %17, %18 : vector<1x256xi32>
    %20 = arith.extui %19 : vector<1x256xi1> to vector<1x256xi32>
    %21 = arith.sitofp %20 : vector<1x256xi32> to vector<1x256xf32>
    %c15_i32 = arith.constant 15 : i32
    %22 = vector.broadcast %c15_i32 : i32 to vector<1x256xi32>
    %23 = arith.cmpi ne, %17, %22 : vector<1x256xi32>
    %24 = arith.extui %23 : vector<1x256xi1> to vector<1x256xi32>
    %25 = arith.sitofp %24 : vector<1x256xi32> to vector<1x256xf32>
    %c0_5 = arith.constant 0 : index
    %c0_6 = arith.constant 0 : index
    %c0_7 = arith.constant 0 : index
    %26 = vector.load %arg1[%c0_5, %c0_6, %c0_7] : memref<1x8x256xf32, #tpu.memory_space<vmem>>, vector<1x8x256xf32>
    %27 = vector.shape_cast %26 : vector<1x8x256xf32> to vector<8x256xf32>
    %c0_8 = arith.constant 0 : index
    %c0_9 = arith.constant 0 : index
    %28 = vector.load %arg3[%c0_8, %c0_9] : memref<8x1xf32, #tpu.memory_space<vmem>>, vector<8x1xf32>
    %c0_10 = arith.constant 0 : index
    %c0_11 = arith.constant 0 : index
    %29 = vector.load %arg4[%c0_10, %c0_11] : memref<8x1xf32, #tpu.memory_space<vmem>>, vector<8x1xf32>
    %cst = arith.constant dense<0.000000e+00> : vector<8xf32>
    %30 = vector.multi_reduction <add>, %27, %cst [1] : vector<8x256xf32> to vector<8xf32>
    %31 = vector.shape_cast %30 : vector<8xf32> to vector<8x1xf32>
    %cst_12 = arith.constant dense<0.000000e+00> : vector<8x1xf32>
    %32 = tpu.matmul %0, %31, %cst_12 {dimension_numbers = #tpu.dot_dimension_numbers<[1], [0], [0], [1], [0, 0, 1, 1], [], []>} : vector<8x8xf32>, vector<8x1xf32>, vector<8x1xf32> -> vector<8x1xf32>
    %33 = vector.broadcast %32 : vector<8x1xf32> to vector<8x256xf32>
    %34 = arith.subf %27, %33 : vector<8x256xf32>
    %35 = arith.mulf %34, %34 : vector<8x256xf32>
    %cst_13 = arith.constant dense<0.000000e+00> : vector<8xf32>
    %36 = vector.multi_reduction <add>, %35, %cst_13 [1] : vector<8x256xf32> to vector<8xf32>
    %37 = vector.shape_cast %36 : vector<8xf32> to vector<8x1xf32>
    %cst_14 = arith.constant dense<0.000000e+00> : vector<8x1xf32>
    %38 = tpu.matmul %0, %37, %cst_14 {dimension_numbers = #tpu.dot_dimension_numbers<[1], [0], [0], [1], [0, 0, 1, 1], [], []>} : vector<8x8xf32>, vector<8x1xf32>, vector<8x1xf32> -> vector<8x1xf32>
    %cst_15 = arith.constant 9.99999997E-7 : f32
    %39 = vector.broadcast %cst_15 : f32 to vector<8x1xf32>
    %40 = arith.addf %38, %39 : vector<8x1xf32>
    %41 = math.rsqrt %40 : vector<8x1xf32>
    %42 = arith.mulf %41, %28 : vector<8x1xf32>
    %43 = vector.broadcast %42 : vector<8x1xf32> to vector<8x256xf32>
    %44 = arith.mulf %34, %43 : vector<8x256xf32>
    %45 = vector.broadcast %29 : vector<8x1xf32> to vector<8x256xf32>
    %46 = arith.addf %44, %45 : vector<8x256xf32>
    %47 = arith.negf %46 : vector<8x256xf32>
    %48 = math.exp %47 : vector<8x256xf32>
    %cst_16 = arith.constant 1.000000e+00 : f32
    %49 = vector.broadcast %cst_16 : f32 to vector<8x256xf32>
    %50 = arith.addf %49, %48 : vector<8x256xf32>
    %51 = arith.divf %49, %50 : vector<8x256xf32>
    %52 = arith.mulf %46, %51 : vector<8x256xf32>
    %c0_17 = arith.constant 0 : index
    %c0_18 = arith.constant 0 : index
    %53 = vector.load %arg6[%c0_17, %c0_18] : memref<8x1xf32, #tpu.memory_space<vmem>>, vector<8x1xf32>
    %cst_19 = arith.constant 0.000000e+00 : f32
    %54 = vector.broadcast %cst_19 : f32 to vector<8x17xf32>
    %c0_20 = arith.constant 0 : index
    %c0_21 = arith.constant 0 : index
    %55 = vector.load %arg27[%c0_20, %c0_21] : memref<8x290xf32, #tpu.memory_space<vmem>>, vector<8x17xf32>
    tpu.vector_store %arg27[%c0_20, %c0_21], %54 {strides = array<i32>} : memref<8x290xf32, #tpu.memory_space<vmem>>, vector<8x17xf32>,
    %cst_22 = arith.constant 0.000000e+00 : f32
    %56 = vector.broadcast %cst_22 : f32 to vector<8x17xf32>
    %c0_23 = arith.constant 0 : index
    %c273 = arith.constant 273 : index
    %57 = vector.load %arg27[%c0_23, %c273] : memref<8x290xf32, #tpu.memory_space<vmem>>, vector<8x17xf32>
    tpu.vector_store %arg27[%c0_23, %c273], %56 {strides = array<i32>} : memref<8x290xf32, #tpu.memory_space<vmem>>, vector<8x17xf32>,
    %c0_24 = arith.constant 0 : index
    %c17 = arith.constant 17 : index
    %58 = vector.load %arg27[%c0_24, %c17] : memref<8x290xf32, #tpu.memory_space<vmem>>, vector<8x256xf32>
    tpu.vector_store %arg27[%c0_24, %c17], %52 {strides = array<i32>} : memref<8x290xf32, #tpu.memory_space<vmem>>, vector<8x256xf32>,
    %c0_25 = arith.constant 0 : index
    %c0_26 = arith.constant 0 : index
    %59 = vector.load %arg27[%c0_25, %c0_26] : memref<8x290xf32, #tpu.memory_space<vmem>>, vector<8x256xf32>
    %60 = vector.broadcast %21 : vector<1x256xf32> to vector<8x256xf32>
    %61 = arith.mulf %59, %60 : vector<8x256xf32>
    %c0_27 = arith.constant 0 : index
    %c0_28 = arith.constant 0 : index
    %62 = vector.load %arg28[%c0_27, %c0_28] : memref<72x256xf32, #tpu.memory_space<vmem>>, vector<8x256xf32>
    tpu.vector_store %arg28[%c0_27, %c0_28], %61 {strides = array<i32>} : memref<72x256xf32, #tpu.memory_space<vmem>>, vector<8x256xf32>,
    %c0_29 = arith.constant 0 : index
    %c1 = arith.constant 1 : index
    %63 = vector.load %arg27[%c0_29, %c1] : memref<8x290xf32, #tpu.memory_space<vmem>>, vector<8x256xf32>
    %c8 = arith.constant 8 : index
    %c0_30 = arith.constant 0 : index
    %64 = vector.load %arg28[%c8, %c0_30] : memref<72x256xf32, #tpu.memory_space<vmem>>, vector<8x256xf32>
    tpu.vector_store %arg28[%c8, %c0_30], %63 {strides = array<i32>} : memref<72x256xf32, #tpu.memory_space<vmem>>, vector<8x256xf32>,
    %c0_31 = arith.constant 0 : index
    %c2 = arith.constant 2 : index
    %65 = vector.load %arg27[%c0_31, %c2] : memref<8x290xf32, #tpu.memory_space<vmem>>, vector<8x256xf32>
    %66 = vector.broadcast %25 : vector<1x256xf32> to vector<8x256xf32>
    %67 = arith.mulf %65, %66 : vector<8x256xf32>
    %c16 = arith.constant 16 : index
    %c0_32 = arith.constant 0 : index
    %68 = vector.load %arg28[%c16, %c0_32] : memref<72x256xf32, #tpu.memory_space<vmem>>, vector<8x256xf32>
    tpu.vector_store %arg28[%c16, %c0_32], %67 {strides = array<i32>} : memref<72x256xf32, #tpu.memory_space<vmem>>, vector<8x256xf32>,
    %c0_33 = arith.constant 0 : index
    %c16_34 = arith.constant 16 : index
    %69 = vector.load %arg27[%c0_33, %c16_34] : memref<8x290xf32, #tpu.memory_space<vmem>>, vector<8x256xf32>
    %70 = vector.broadcast %21 : vector<1x256xf32> to vector<8x256xf32>
    %71 = arith.mulf %69, %70 : vector<8x256xf32>
    %c24 = arith.constant 24 : index
    %c0_35 = arith.constant 0 : index
    %72 = vector.load %arg28[%c24, %c0_35] : memref<72x256xf32, #tpu.memory_space<vmem>>, vector<8x256xf32>
    tpu.vector_store %arg28[%c24, %c0_35], %71 {strides = array<i32>} : memref<72x256xf32, #tpu.memory_space<vmem>>, vector<8x256xf32>,
    %c0_36 = arith.constant 0 : index
    %c17_37 = arith.constant 17 : index
    %73 = vector.load %arg27[%c0_36, %c17_37] : memref<8x290xf32, #tpu.memory_space<vmem>>, vector<8x256xf32>
    %c32 = arith.constant 32 : index
    %c0_38 = arith.constant 0 : index
    %74 = vector.load %arg28[%c32, %c0_38] : memref<72x256xf32, #tpu.memory_space<vmem>>, vector<8x256xf32>
    tpu.vector_store %arg28[%c32, %c0_38], %73 {strides = array<i32>} : memref<72x256xf32, #tpu.memory_space<vmem>>, vector<8x256xf32>,
    %c0_39 = arith.constant 0 : index
    %c18 = arith.constant 18 : index
    %75 = vector.load %arg27[%c0_39, %c18] : memref<8x290xf32, #tpu.memory_space<vmem>>, vector<8x256xf32>
    %76 = vector.broadcast %25 : vector<1x256xf32> to vector<8x256xf32>
    %77 = arith.mulf %75, %76 : vector<8x256xf32>
    %c40 = arith.constant 40 : index
    %c0_40 = arith.constant 0 : index
    %78 = vector.load %arg28[%c40, %c0_40] : memref<72x256xf32, #tpu.memory_space<vmem>>, vector<8x256xf32>
    tpu.vector_store %arg28[%c40, %c0_40], %77 {strides = array<i32>} : memref<72x256xf32, #tpu.memory_space<vmem>>, vector<8x256xf32>,
    %c0_41 = arith.constant 0 : index
    %c32_42 = arith.constant 32 : index
    %79 = vector.load %arg27[%c0_41, %c32_42] : memref<8x290xf32, #tpu.memory_space<vmem>>, vector<8x256xf32>
    %80 = vector.broadcast %21 : vector<1x256xf32> to vector<8x256xf32>
    %81 = arith.mulf %79, %80 : vector<8x256xf32>
    %c48 = arith.constant 48 : index
    %c0_43 = arith.constant 0 : index
    %82 = vector.load %arg28[%c48, %c0_43] : memref<72x256xf32, #tpu.memory_space<vmem>>, vector<8x256xf32>
    tpu.vector_store %arg28[%c48, %c0_43], %81 {strides = array<i32>} : memref<72x256xf32, #tpu.memory_space<vmem>>, vector<8x256xf32>,
    %c0_44 = arith.constant 0 : index
    %c33 = arith.constant 33 : index
    %83 = vector.load %arg27[%c0_44, %c33] : memref<8x290xf32, #tpu.memory_space<vmem>>, vector<8x256xf32>
    %c56 = arith.constant 56 : index
    %c0_45 = arith.constant 0 : index
    %84 = vector.load %arg28[%c56, %c0_45] : memref<72x256xf32, #tpu.memory_space<vmem>>, vector<8x256xf32>
    tpu.vector_store %arg28[%c56, %c0_45], %83 {strides = array<i32>} : memref<72x256xf32, #tpu.memory_space<vmem>>, vector<8x256xf32>,
    %c0_46 = arith.constant 0 : index
    %c34 = arith.constant 34 : index
    %85 = vector.load %arg27[%c0_46, %c34] : memref<8x290xf32, #tpu.memory_space<vmem>>, vector<8x256xf32>
    %86 = vector.broadcast %25 : vector<1x256xf32> to vector<8x256xf32>
    %87 = arith.mulf %85, %86 : vector<8x256xf32>
    %c64 = arith.constant 64 : index
    %c0_47 = arith.constant 0 : index
    %88 = vector.load %arg28[%c64, %c0_47] : memref<72x256xf32, #tpu.memory_space<vmem>>, vector<8x256xf32>
    tpu.vector_store %arg28[%c64, %c0_47], %87 {strides = array<i32>} : memref<72x256xf32, #tpu.memory_space<vmem>>, vector<8x256xf32>,
    %c0_48 = arith.constant 0 : index
    %c0_49 = arith.constant 0 : index
    %89 = vector.load %arg5[%c0_48, %c0_49] : memref<8x72xf32, #tpu.memory_space<vmem>>, vector<8x72xf32>
    %c0_50 = arith.constant 0 : index
    %c0_51 = arith.constant 0 : index
    %90 = vector.load %arg28[%c0_50, %c0_51] : memref<72x256xf32, #tpu.memory_space<vmem>>, vector<72x256xf32>
    %cst_52 = arith.constant dense<0.000000e+00> : vector<8x256xf32>
    %91 = tpu.matmul %89, %90, %cst_52 {dimension_numbers = #tpu.dot_dimension_numbers<[1], [0], [0], [1], [0, 0, 1, 1], [], []>} : vector<8x72xf32>, vector<72x256xf32>, vector<8x256xf32> -> vector<8x256xf32>
    %92 = vector.broadcast %53 : vector<8x1xf32> to vector<8x256xf32>
    %93 = arith.addf %91, %92 : vector<8x256xf32>
    %c0_53 = arith.constant 0 : index
    %c0_54 = arith.constant 0 : index
    %94 = vector.load %arg7[%c0_53, %c0_54] : memref<8x32xf32, #tpu.memory_space<vmem>>, vector<8x32xf32>
    %c0_55 = arith.constant 0 : index
    %c0_56 = arith.constant 0 : index
    %c0_57 = arith.constant 0 : index
    %95 = vector.load %arg2[%c0_55, %c0_56, %c0_57] : memref<1x32x1xf32, #tpu.memory_space<vmem>>, vector<1x32x1xf32>
    %96 = vector.shape_cast %95 : vector<1x32x1xf32> to vector<32x1xf32>
    %97 = arith.negf %96 : vector<32x1xf32>
    %98 = math.exp %97 : vector<32x1xf32>
    %cst_58 = arith.constant 1.000000e+00 : f32
    %99 = vector.broadcast %cst_58 : f32 to vector<32x1xf32>
    %100 = arith.addf %99, %98 : vector<32x1xf32>
    %101 = arith.divf %99, %100 : vector<32x1xf32>
    %102 = arith.mulf %96, %101 : vector<32x1xf32>
    %cst_59 = arith.constant dense<0.000000e+00> : vector<8x1xf32>
    %103 = tpu.matmul %94, %102, %cst_59 {dimension_numbers = #tpu.dot_dimension_numbers<[1], [0], [0], [1], [0, 0, 1, 1], [], []>} : vector<8x32xf32>, vector<32x1xf32>, vector<8x1xf32> -> vector<8x1xf32>
    %c0_60 = arith.constant 0 : index
    %c0_61 = arith.constant 0 : index
    %104 = vector.load %arg8[%c0_60, %c0_61] : memref<8x1xf32, #tpu.memory_space<vmem>>, vector<8x1xf32>
    %105 = arith.addf %103, %104 : vector<8x1xf32>
    %106 = vector.broadcast %105 : vector<8x1xf32> to vector<8x256xf32>
    %107 = arith.addf %93, %106 : vector<8x256xf32>
    %c0_62 = arith.constant 0 : index
    %c0_63 = arith.constant 0 : index
    %108 = vector.load %arg9[%c0_62, %c0_63] : memref<8x1xf32, #tpu.memory_space<vmem>>, vector<8x1xf32>
    %c0_64 = arith.constant 0 : index
    %c0_65 = arith.constant 0 : index
    %109 = vector.load %arg10[%c0_64, %c0_65] : memref<8x1xf32, #tpu.memory_space<vmem>>, vector<8x1xf32>
    %cst_66 = arith.constant dense<0.000000e+00> : vector<8xf32>
    %110 = vector.multi_reduction <add>, %107, %cst_66 [1] : vector<8x256xf32> to vector<8xf32>
    %111 = vector.shape_cast %110 : vector<8xf32> to vector<8x1xf32>
    %cst_67 = arith.constant dense<0.000000e+00> : vector<8x1xf32>
    %112 = tpu.matmul %0, %111, %cst_67 {dimension_numbers = #tpu.dot_dimension_numbers<[1], [0], [0], [1], [0, 0, 1, 1], [], []>} : vector<8x8xf32>, vector<8x1xf32>, vector<8x1xf32> -> vector<8x1xf32>
    %113 = vector.broadcast %112 : vector<8x1xf32> to vector<8x256xf32>
    %114 = arith.subf %107, %113 : vector<8x256xf32>
    %115 = arith.mulf %114, %114 : vector<8x256xf32>
    %cst_68 = arith.constant dense<0.000000e+00> : vector<8xf32>
    %116 = vector.multi_reduction <add>, %115, %cst_68 [1] : vector<8x256xf32> to vector<8xf32>
    %117 = vector.shape_cast %116 : vector<8xf32> to vector<8x1xf32>
    %cst_69 = arith.constant dense<0.000000e+00> : vector<8x1xf32>
    %118 = tpu.matmul %0, %117, %cst_69 {dimension_numbers = #tpu.dot_dimension_numbers<[1], [0], [0], [1], [0, 0, 1, 1], [], []>} : vector<8x8xf32>, vector<8x1xf32>, vector<8x1xf32> -> vector<8x1xf32>
    %cst_70 = arith.constant 9.99999997E-7 : f32
    %119 = vector.broadcast %cst_70 : f32 to vector<8x1xf32>
    %120 = arith.addf %118, %119 : vector<8x1xf32>
    %121 = math.rsqrt %120 : vector<8x1xf32>
    %122 = arith.mulf %121, %108 : vector<8x1xf32>
    %123 = vector.broadcast %122 : vector<8x1xf32> to vector<8x256xf32>
    %124 = arith.mulf %114, %123 : vector<8x256xf32>
    %125 = vector.broadcast %109 : vector<8x1xf32> to vector<8x256xf32>
    %126 = arith.addf %124, %125 : vector<8x256xf32>
    %127 = arith.negf %126 : vector<8x256xf32>
    %128 = math.exp %127 : vector<8x256xf32>
    %cst_71 = arith.constant 1.000000e+00 : f32
    %129 = vector.broadcast %cst_71 : f32 to vector<8x256xf32>
    %130 = arith.addf %129, %128 : vector<8x256xf32>
    %131 = arith.divf %129, %130 : vector<8x256xf32>
    %132 = arith.mulf %126, %131 : vector<8x256xf32>
    %c0_72 = arith.constant 0 : index
    %c0_73 = arith.constant 0 : index
    %133 = vector.load %arg12[%c0_72, %c0_73] : memref<8x1xf32, #tpu.memory_space<vmem>>, vector<8x1xf32>
    %cst_74 = arith.constant 0.000000e+00 : f32
    %134 = vector.broadcast %cst_74 : f32 to vector<8x17xf32>
    %c0_75 = arith.constant 0 : index
    %c0_76 = arith.constant 0 : index
    %135 = vector.load %arg27[%c0_75, %c0_76] : memref<8x290xf32, #tpu.memory_space<vmem>>, vector<8x17xf32>
    tpu.vector_store %arg27[%c0_75, %c0_76], %134 {strides = array<i32>} : memref<8x290xf32, #tpu.memory_space<vmem>>, vector<8x17xf32>,
    %cst_77 = arith.constant 0.000000e+00 : f32
    %136 = vector.broadcast %cst_77 : f32 to vector<8x17xf32>
    %c0_78 = arith.constant 0 : index
    %c273_79 = arith.constant 273 : index
    %137 = vector.load %arg27[%c0_78, %c273_79] : memref<8x290xf32, #tpu.memory_space<vmem>>, vector<8x17xf32>
    tpu.vector_store %arg27[%c0_78, %c273_79], %136 {strides = array<i32>} : memref<8x290xf32, #tpu.memory_space<vmem>>, vector<8x17xf32>,
    %c0_80 = arith.constant 0 : index
    %c17_81 = arith.constant 17 : index
    %138 = vector.load %arg27[%c0_80, %c17_81] : memref<8x290xf32, #tpu.memory_space<vmem>>, vector<8x256xf32>
    tpu.vector_store %arg27[%c0_80, %c17_81], %132 {strides = array<i32>} : memref<8x290xf32, #tpu.memory_space<vmem>>, vector<8x256xf32>,
    %c0_82 = arith.constant 0 : index
    %c0_83 = arith.constant 0 : index
    %139 = vector.load %arg27[%c0_82, %c0_83] : memref<8x290xf32, #tpu.memory_space<vmem>>, vector<8x256xf32>
    %140 = vector.broadcast %21 : vector<1x256xf32> to vector<8x256xf32>
    %141 = arith.mulf %139, %140 : vector<8x256xf32>
    %c0_84 = arith.constant 0 : index
    %c0_85 = arith.constant 0 : index
    %142 = vector.load %arg28[%c0_84, %c0_85] : memref<72x256xf32, #tpu.memory_space<vmem>>, vector<8x256xf32>
    tpu.vector_store %arg28[%c0_84, %c0_85], %141 {strides = array<i32>} : memref<72x256xf32, #tpu.memory_space<vmem>>, vector<8x256xf32>,
    %c0_86 = arith.constant 0 : index
    %c1_87 = arith.constant 1 : index
    %143 = vector.load %arg27[%c0_86, %c1_87] : memref<8x290xf32, #tpu.memory_space<vmem>>, vector<8x256xf32>
    %c8_88 = arith.constant 8 : index
    %c0_89 = arith.constant 0 : index
    %144 = vector.load %arg28[%c8_88, %c0_89] : memref<72x256xf32, #tpu.memory_space<vmem>>, vector<8x256xf32>
    tpu.vector_store %arg28[%c8_88, %c0_89], %143 {strides = array<i32>} : memref<72x256xf32, #tpu.memory_space<vmem>>, vector<8x256xf32>,
    %c0_90 = arith.constant 0 : index
    %c2_91 = arith.constant 2 : index
    %145 = vector.load %arg27[%c0_90, %c2_91] : memref<8x290xf32, #tpu.memory_space<vmem>>, vector<8x256xf32>
    %146 = vector.broadcast %25 : vector<1x256xf32> to vector<8x256xf32>
    %147 = arith.mulf %145, %146 : vector<8x256xf32>
    %c16_92 = arith.constant 16 : index
    %c0_93 = arith.constant 0 : index
    %148 = vector.load %arg28[%c16_92, %c0_93] : memref<72x256xf32, #tpu.memory_space<vmem>>, vector<8x256xf32>
    tpu.vector_store %arg28[%c16_92, %c0_93], %147 {strides = array<i32>} : memref<72x256xf32, #tpu.memory_space<vmem>>, vector<8x256xf32>,
    %c0_94 = arith.constant 0 : index
    %c16_95 = arith.constant 16 : index
    %149 = vector.load %arg27[%c0_94, %c16_95] : memref<8x290xf32, #tpu.memory_space<vmem>>, vector<8x256xf32>
    %150 = vector.broadcast %21 : vector<1x256xf32> to vector<8x256xf32>
    %151 = arith.mulf %149, %150 : vector<8x256xf32>
    %c24_96 = arith.constant 24 : index
    %c0_97 = arith.constant 0 : index
    %152 = vector.load %arg28[%c24_96, %c0_97] : memref<72x256xf32, #tpu.memory_space<vmem>>, vector<8x256xf32>
    tpu.vector_store %arg28[%c24_96, %c0_97], %151 {strides = array<i32>} : memref<72x256xf32, #tpu.memory_space<vmem>>, vector<8x256xf32>,
    %c0_98 = arith.constant 0 : index
    %c17_99 = arith.constant 17 : index
    %153 = vector.load %arg27[%c0_98, %c17_99] : memref<8x290xf32, #tpu.memory_space<vmem>>, vector<8x256xf32>
    %c32_100 = arith.constant 32 : index
    %c0_101 = arith.constant 0 : index
    %154 = vector.load %arg28[%c32_100, %c0_101] : memref<72x256xf32, #tpu.memory_space<vmem>>, vector<8x256xf32>
    tpu.vector_store %arg28[%c32_100, %c0_101], %153 {strides = array<i32>} : memref<72x256xf32, #tpu.memory_space<vmem>>, vector<8x256xf32>,
    %c0_102 = arith.constant 0 : index
    %c18_103 = arith.constant 18 : index
    %155 = vector.load %arg27[%c0_102, %c18_103] : memref<8x290xf32, #tpu.memory_space<vmem>>, vector<8x256xf32>
    %156 = vector.broadcast %25 : vector<1x256xf32> to vector<8x256xf32>
    %157 = arith.mulf %155, %156 : vector<8x256xf32>
    %c40_104 = arith.constant 40 : index
    %c0_105 = arith.constant 0 : index
    %158 = vector.load %arg28[%c40_104, %c0_105] : memref<72x256xf32, #tpu.memory_space<vmem>>, vector<8x256xf32>
    tpu.vector_store %arg28[%c40_104, %c0_105], %157 {strides = array<i32>} : memref<72x256xf32, #tpu.memory_space<vmem>>, vector<8x256xf32>,
    %c0_106 = arith.constant 0 : index
    %c32_107 = arith.constant 32 : index
    %159 = vector.load %arg27[%c0_106, %c32_107] : memref<8x290xf32, #tpu.memory_space<vmem>>, vector<8x256xf32>
    %160 = vector.broadcast %21 : vector<1x256xf32> to vector<8x256xf32>
    %161 = arith.mulf %159, %160 : vector<8x256xf32>
    %c48_108 = arith.constant 48 : index
    %c0_109 = arith.constant 0 : index
    %162 = vector.load %arg28[%c48_108, %c0_109] : memref<72x256xf32, #tpu.memory_space<vmem>>, vector<8x256xf32>
    tpu.vector_store %arg28[%c48_108, %c0_109], %161 {strides = array<i32>} : memref<72x256xf32, #tpu.memory_space<vmem>>, vector<8x256xf32>,
    %c0_110 = arith.constant 0 : index
    %c33_111 = arith.constant 33 : index
    %163 = vector.load %arg27[%c0_110, %c33_111] : memref<8x290xf32, #tpu.memory_space<vmem>>, vector<8x256xf32>
    %c56_112 = arith.constant 56 : index
    %c0_113 = arith.constant 0 : index
    %164 = vector.load %arg28[%c56_112, %c0_113] : memref<72x256xf32, #tpu.memory_space<vmem>>, vector<8x256xf32>
    tpu.vector_store %arg28[%c56_112, %c0_113], %163 {strides = array<i32>} : memref<72x256xf32, #tpu.memory_space<vmem>>, vector<8x256xf32>,
    %c0_114 = arith.constant 0 : index
    %c34_115 = arith.constant 34 : index
    %165 = vector.load %arg27[%c0_114, %c34_115] : memref<8x290xf32, #tpu.memory_space<vmem>>, vector<8x256xf32>
    %166 = vector.broadcast %25 : vector<1x256xf32> to vector<8x256xf32>
    %167 = arith.mulf %165, %166 : vector<8x256xf32>
    %c64_116 = arith.constant 64 : index
    %c0_117 = arith.constant 0 : index
    %168 = vector.load %arg28[%c64_116, %c0_117] : memref<72x256xf32, #tpu.memory_space<vmem>>, vector<8x256xf32>
    tpu.vector_store %arg28[%c64_116, %c0_117], %167 {strides = array<i32>} : memref<72x256xf32, #tpu.memory_space<vmem>>, vector<8x256xf32>,
    %c0_118 = arith.constant 0 : index
    %c0_119 = arith.constant 0 : index
    %169 = vector.load %arg11[%c0_118, %c0_119] : memref<8x72xf32, #tpu.memory_space<vmem>>, vector<8x72xf32>
    %c0_120 = arith.constant 0 : index
    %c0_121 = arith.constant 0 : index
    %170 = vector.load %arg28[%c0_120, %c0_121] : memref<72x256xf32, #tpu.memory_space<vmem>>, vector<72x256xf32>
    %cst_122 = arith.constant dense<0.000000e+00> : vector<8x256xf32>
    %171 = tpu.matmul %169, %170, %cst_122 {dimension_numbers = #tpu.dot_dimension_numbers<[1], [0], [0], [1], [0, 0, 1, 1], [], []>} : vector<8x72xf32>, vector<72x256xf32>, vector<8x256xf32> -> vector<8x256xf32>
    %172 = vector.broadcast %133 : vector<8x1xf32> to vector<8x256xf32>
    %173 = arith.addf %171, %172 : vector<8x256xf32>
    %174 = arith.addf %173, %27 : vector<8x256xf32>
    %c0_123 = arith.constant 0 : index
    %c0_124 = arith.constant 0 : index
    %175 = vector.load %arg13[%c0_123, %c0_124] : memref<8x1xf32, #tpu.memory_space<vmem>>, vector<8x1xf32>
    %c0_125 = arith.constant 0 : index
    %c0_126 = arith.constant 0 : index
    %176 = vector.load %arg14[%c0_125, %c0_126] : memref<8x1xf32, #tpu.memory_space<vmem>>, vector<8x1xf32>
    %cst_127 = arith.constant dense<0.000000e+00> : vector<8xf32>
    %177 = vector.multi_reduction <add>, %174, %cst_127 [1] : vector<8x256xf32> to vector<8xf32>
    %178 = vector.shape_cast %177 : vector<8xf32> to vector<8x1xf32>
    %cst_128 = arith.constant dense<0.000000e+00> : vector<8x1xf32>
    %179 = tpu.matmul %0, %178, %cst_128 {dimension_numbers = #tpu.dot_dimension_numbers<[1], [0], [0], [1], [0, 0, 1, 1], [], []>} : vector<8x8xf32>, vector<8x1xf32>, vector<8x1xf32> -> vector<8x1xf32>
    %180 = vector.broadcast %179 : vector<8x1xf32> to vector<8x256xf32>
    %181 = arith.subf %174, %180 : vector<8x256xf32>
    %182 = arith.mulf %181, %181 : vector<8x256xf32>
    %cst_129 = arith.constant dense<0.000000e+00> : vector<8xf32>
    %183 = vector.multi_reduction <add>, %182, %cst_129 [1] : vector<8x256xf32> to vector<8xf32>
    %184 = vector.shape_cast %183 : vector<8xf32> to vector<8x1xf32>
    %cst_130 = arith.constant dense<0.000000e+00> : vector<8x1xf32>
    %185 = tpu.matmul %0, %184, %cst_130 {dimension_numbers = #tpu.dot_dimension_numbers<[1], [0], [0], [1], [0, 0, 1, 1], [], []>} : vector<8x8xf32>, vector<8x1xf32>, vector<8x1xf32> -> vector<8x1xf32>
    %cst_131 = arith.constant 9.99999997E-7 : f32
    %186 = vector.broadcast %cst_131 : f32 to vector<8x1xf32>
    %187 = arith.addf %185, %186 : vector<8x1xf32>
    %188 = math.rsqrt %187 : vector<8x1xf32>
    %189 = arith.mulf %188, %175 : vector<8x1xf32>
    %190 = vector.broadcast %189 : vector<8x1xf32> to vector<8x256xf32>
    %191 = arith.mulf %181, %190 : vector<8x256xf32>
    %192 = vector.broadcast %176 : vector<8x1xf32> to vector<8x256xf32>
    %193 = arith.addf %191, %192 : vector<8x256xf32>
    %c0_132 = arith.constant 0 : index
    %c0_133 = arith.constant 0 : index
    %194 = vector.load %arg15[%c0_132, %c0_133] : memref<8x8xf32, #tpu.memory_space<vmem>>, vector<8x8xf32>
    %cst_134 = arith.constant dense<0.000000e+00> : vector<8x256xf32>
    %195 = tpu.matmul %194, %193, %cst_134 {dimension_numbers = #tpu.dot_dimension_numbers<[1], [0], [0], [1], [0, 0, 1, 1], [], []>} : vector<8x8xf32>, vector<8x256xf32>, vector<8x256xf32> -> vector<8x256xf32>
    %c0_135 = arith.constant 0 : index
    %c0_136 = arith.constant 0 : index
    %196 = vector.load %arg16[%c0_135, %c0_136] : memref<8x1xf32, #tpu.memory_space<vmem>>, vector<8x1xf32>
    %197 = vector.broadcast %196 : vector<8x1xf32> to vector<8x256xf32>
    %198 = arith.addf %195, %197 : vector<8x256xf32>
    %c0_137 = arith.constant 0 : index
    %c0_138 = arith.constant 0 : index
    %199 = vector.load %arg19[%c0_137, %c0_138] : memref<8x8xf32, #tpu.memory_space<vmem>>, vector<8x8xf32>
    %cst_139 = arith.constant dense<0.000000e+00> : vector<8x256xf32>
    %200 = tpu.matmul %199, %193, %cst_139 {dimension_numbers = #tpu.dot_dimension_numbers<[1], [0], [0], [1], [0, 0, 1, 1], [], []>} : vector<8x8xf32>, vector<8x256xf32>, vector<8x256xf32> -> vector<8x256xf32>
    %c0_140 = arith.constant 0 : index
    %c0_141 = arith.constant 0 : index
    %201 = vector.load %arg20[%c0_140, %c0_141] : memref<8x1xf32, #tpu.memory_space<vmem>>, vector<8x1xf32>
    %202 = vector.broadcast %201 : vector<8x1xf32> to vector<8x256xf32>
    %203 = arith.addf %200, %202 : vector<8x256xf32>
    %c0_142 = arith.constant 0 : index
    %c0_143 = arith.constant 0 : index
    %204 = vector.load %arg17[%c0_142, %c0_143] : memref<8x8xf32, #tpu.memory_space<vmem>>, vector<8x8xf32>
    %cst_144 = arith.constant dense<0.000000e+00> : vector<256x8xf32>
    %205 = tpu.matmul %193, %204, %cst_144 {dimension_numbers = #tpu.dot_dimension_numbers<[0], [0], [1], [1], [0, 1, 1, 1], [], []>} : vector<8x256xf32>, vector<8x8xf32>, vector<256x8xf32> -> vector<256x8xf32>
    %c0_145 = arith.constant 0 : index
    %c0_146 = arith.constant 0 : index
    %206 = vector.load %arg18[%c0_145, %c0_146] : memref<1x8xf32, #tpu.memory_space<vmem>>, vector<1x8xf32>
    %207 = vector.broadcast %206 : vector<1x8xf32> to vector<256x8xf32>
    %208 = arith.addf %205, %207 : vector<256x8xf32>
    %cst_147 = arith.constant dense<0xFF800000> : vector<8xf32>
    %209 = vector.multi_reduction <maximumf>, %208, %cst_147 [0] : vector<256x8xf32> to vector<8xf32>
    %210 = vector.shape_cast %209 : vector<8xf32> to vector<1x8xf32>
    %cst_148 = arith.constant dense<0x7F800000> : vector<8xf32>
    %211 = vector.multi_reduction <minimumf>, %208, %cst_148 [0] : vector<256x8xf32> to vector<8xf32>
    %212 = vector.shape_cast %211 : vector<8xf32> to vector<1x8xf32>
    %cst_149 = arith.constant 1.000000e+00 : f32
    %213 = vector.broadcast %cst_149 : f32 to vector<1x256xf32>
    %c1_150 = arith.constant 1 : index
    %c0_151 = arith.constant 0 : index
    %214 = vector.load %arg29[%c1_150, %c0_151] : memref<2x256xf32, #tpu.memory_space<vmem>>, vector<1x256xf32>
    tpu.vector_store %arg29[%c1_150, %c0_151], %213 {strides = array<i32>} : memref<2x256xf32, #tpu.memory_space<vmem>>, vector<1x256xf32>,
    %215 = vector.extract_strided_slice %198 {offsets = [0, 0], sizes = [1, 256], strides = [1, 1]} : vector<8x256xf32> to vector<1x256xf32>
    %216 = vector.extract_strided_slice %203 {offsets = [0, 0], sizes = [1, 256], strides = [1, 1]} : vector<8x256xf32> to vector<1x256xf32>
    %217 = vector.extract_strided_slice %208 {offsets = [0, 0], sizes = [256, 1], strides = [1, 1]} : vector<256x8xf32> to vector<256x1xf32>
    %218 = vector.extract_strided_slice %210 {offsets = [0, 0], sizes = [1, 1], strides = [1, 1]} : vector<1x8xf32> to vector<1x1xf32>
    %219 = vector.broadcast %218 : vector<1x1xf32> to vector<1x256xf32>
    %220 = arith.mulf %215, %219 : vector<1x256xf32>
    %221 = vector.extract_strided_slice %212 {offsets = [0, 0], sizes = [1, 1], strides = [1, 1]} : vector<1x8xf32> to vector<1x1xf32>
    %222 = vector.broadcast %221 : vector<1x1xf32> to vector<1x256xf32>
    %223 = arith.mulf %215, %222 : vector<1x256xf32>
    %224 = arith.maximumf %220, %223 : vector<1x256xf32>
    %225 = vector.broadcast %217 : vector<256x1xf32> to vector<256x256xf32>
    %226 = vector.broadcast %215 : vector<1x256xf32> to vector<256x256xf32>
    %227 = arith.mulf %225, %226 : vector<256x256xf32>
    %228 = vector.broadcast %224 : vector<1x256xf32> to vector<256x256xf32>
    %229 = arith.subf %227, %228 : vector<256x256xf32>
    %230 = math.exp %229 : vector<256x256xf32>
    %c0_152 = arith.constant 0 : index
    %c0_153 = arith.constant 0 : index
    %231 = vector.load %arg29[%c0_152, %c0_153] : memref<2x256xf32, #tpu.memory_space<vmem>>, vector<1x256xf32>
    tpu.vector_store %arg29[%c0_152, %c0_153], %216 {strides = array<i32>} : memref<2x256xf32, #tpu.memory_space<vmem>>, vector<1x256xf32>,
    %c0_154 = arith.constant 0 : index
    %c0_155 = arith.constant 0 : index
    %232 = vector.load %arg29[%c0_154, %c0_155] : memref<2x256xf32, #tpu.memory_space<vmem>>, vector<2x256xf32>
    %cst_156 = arith.constant dense<0.000000e+00> : vector<2x256xf32>
    %233 = tpu.matmul %232, %230, %cst_156 {dimension_numbers = #tpu.dot_dimension_numbers<[1], [0], [0], [1], [0, 0, 1, 1], [], []>} : vector<2x256xf32>, vector<256x256xf32>, vector<2x256xf32> -> vector<2x256xf32>
    %234 = vector.extract_strided_slice %233 {offsets = [0, 0], sizes = [1, 256], strides = [1, 1]} : vector<2x256xf32> to vector<1x256xf32>
    %235 = vector.extract_strided_slice %233 {offsets = [1, 0], sizes = [1, 256], strides = [1, 1]} : vector<2x256xf32> to vector<1x256xf32>
    %236 = arith.divf %234, %235 : vector<1x256xf32>
    %c0_157 = arith.constant 0 : index
    %c0_158 = arith.constant 0 : index
    %237 = vector.load %arg30[%c0_157, %c0_158] : memref<8x256xf32, #tpu.memory_space<vmem>>, vector<1x256xf32>
    tpu.vector_store %arg30[%c0_157, %c0_158], %236 {strides = array<i32>} : memref<8x256xf32, #tpu.memory_space<vmem>>, vector<1x256xf32>,
    %238 = vector.extract_strided_slice %198 {offsets = [1, 0], sizes = [1, 256], strides = [1, 1]} : vector<8x256xf32> to vector<1x256xf32>
    %239 = vector.extract_strided_slice %203 {offsets = [1, 0], sizes = [1, 256], strides = [1, 1]} : vector<8x256xf32> to vector<1x256xf32>
    %240 = vector.extract_strided_slice %208 {offsets = [0, 1], sizes = [256, 1], strides = [1, 1]} : vector<256x8xf32> to vector<256x1xf32>
    %241 = vector.extract_strided_slice %210 {offsets = [0, 1], sizes = [1, 1], strides = [1, 1]} : vector<1x8xf32> to vector<1x1xf32>
    %242 = vector.broadcast %241 : vector<1x1xf32> to vector<1x256xf32>
    %243 = arith.mulf %238, %242 : vector<1x256xf32>
    %244 = vector.extract_strided_slice %212 {offsets = [0, 1], sizes = [1, 1], strides = [1, 1]} : vector<1x8xf32> to vector<1x1xf32>
    %245 = vector.broadcast %244 : vector<1x1xf32> to vector<1x256xf32>
    %246 = arith.mulf %238, %245 : vector<1x256xf32>
    %247 = arith.maximumf %243, %246 : vector<1x256xf32>
    %248 = vector.broadcast %240 : vector<256x1xf32> to vector<256x256xf32>
    %249 = vector.broadcast %238 : vector<1x256xf32> to vector<256x256xf32>
    %250 = arith.mulf %248, %249 : vector<256x256xf32>
    %251 = vector.broadcast %247 : vector<1x256xf32> to vector<256x256xf32>
    %252 = arith.subf %250, %251 : vector<256x256xf32>
    %253 = math.exp %252 : vector<256x256xf32>
    %c0_159 = arith.constant 0 : index
    %c0_160 = arith.constant 0 : index
    %254 = vector.load %arg29[%c0_159, %c0_160] : memref<2x256xf32, #tpu.memory_space<vmem>>, vector<1x256xf32>
    tpu.vector_store %arg29[%c0_159, %c0_160], %239 {strides = array<i32>} : memref<2x256xf32, #tpu.memory_space<vmem>>, vector<1x256xf32>,
    %c0_161 = arith.constant 0 : index
    %c0_162 = arith.constant 0 : index
    %255 = vector.load %arg29[%c0_161, %c0_162] : memref<2x256xf32, #tpu.memory_space<vmem>>, vector<2x256xf32>
    %cst_163 = arith.constant dense<0.000000e+00> : vector<2x256xf32>
    %256 = tpu.matmul %255, %253, %cst_163 {dimension_numbers = #tpu.dot_dimension_numbers<[1], [0], [0], [1], [0, 0, 1, 1], [], []>} : vector<2x256xf32>, vector<256x256xf32>, vector<2x256xf32> -> vector<2x256xf32>
    %257 = vector.extract_strided_slice %256 {offsets = [0, 0], sizes = [1, 256], strides = [1, 1]} : vector<2x256xf32> to vector<1x256xf32>
    %258 = vector.extract_strided_slice %256 {offsets = [1, 0], sizes = [1, 256], strides = [1, 1]} : vector<2x256xf32> to vector<1x256xf32>
    %259 = arith.divf %257, %258 : vector<1x256xf32>
    %c1_164 = arith.constant 1 : index
    %c0_165 = arith.constant 0 : index
    %260 = vector.load %arg30[%c1_164, %c0_165] : memref<8x256xf32, #tpu.memory_space<vmem>>, vector<1x256xf32>
    tpu.vector_store %arg30[%c1_164, %c0_165], %259 {strides = array<i32>} : memref<8x256xf32, #tpu.memory_space<vmem>>, vector<1x256xf32>,
    %261 = vector.extract_strided_slice %198 {offsets = [2, 0], sizes = [1, 256], strides = [1, 1]} : vector<8x256xf32> to vector<1x256xf32>
    %262 = vector.extract_strided_slice %203 {offsets = [2, 0], sizes = [1, 256], strides = [1, 1]} : vector<8x256xf32> to vector<1x256xf32>
    %263 = vector.extract_strided_slice %208 {offsets = [0, 2], sizes = [256, 1], strides = [1, 1]} : vector<256x8xf32> to vector<256x1xf32>
    %264 = vector.extract_strided_slice %210 {offsets = [0, 2], sizes = [1, 1], strides = [1, 1]} : vector<1x8xf32> to vector<1x1xf32>
    %265 = vector.broadcast %264 : vector<1x1xf32> to vector<1x256xf32>
    %266 = arith.mulf %261, %265 : vector<1x256xf32>
    %267 = vector.extract_strided_slice %212 {offsets = [0, 2], sizes = [1, 1], strides = [1, 1]} : vector<1x8xf32> to vector<1x1xf32>
    %268 = vector.broadcast %267 : vector<1x1xf32> to vector<1x256xf32>
    %269 = arith.mulf %261, %268 : vector<1x256xf32>
    %270 = arith.maximumf %266, %269 : vector<1x256xf32>
    %271 = vector.broadcast %263 : vector<256x1xf32> to vector<256x256xf32>
    %272 = vector.broadcast %261 : vector<1x256xf32> to vector<256x256xf32>
    %273 = arith.mulf %271, %272 : vector<256x256xf32>
    %274 = vector.broadcast %270 : vector<1x256xf32> to vector<256x256xf32>
    %275 = arith.subf %273, %274 : vector<256x256xf32>
    %276 = math.exp %275 : vector<256x256xf32>
    %c0_166 = arith.constant 0 : index
    %c0_167 = arith.constant 0 : index
    %277 = vector.load %arg29[%c0_166, %c0_167] : memref<2x256xf32, #tpu.memory_space<vmem>>, vector<1x256xf32>
    tpu.vector_store %arg29[%c0_166, %c0_167], %262 {strides = array<i32>} : memref<2x256xf32, #tpu.memory_space<vmem>>, vector<1x256xf32>,
    %c0_168 = arith.constant 0 : index
    %c0_169 = arith.constant 0 : index
    %278 = vector.load %arg29[%c0_168, %c0_169] : memref<2x256xf32, #tpu.memory_space<vmem>>, vector<2x256xf32>
    %cst_170 = arith.constant dense<0.000000e+00> : vector<2x256xf32>
    %279 = tpu.matmul %278, %276, %cst_170 {dimension_numbers = #tpu.dot_dimension_numbers<[1], [0], [0], [1], [0, 0, 1, 1], [], []>} : vector<2x256xf32>, vector<256x256xf32>, vector<2x256xf32> -> vector<2x256xf32>
    %280 = vector.extract_strided_slice %279 {offsets = [0, 0], sizes = [1, 256], strides = [1, 1]} : vector<2x256xf32> to vector<1x256xf32>
    %281 = vector.extract_strided_slice %279 {offsets = [1, 0], sizes = [1, 256], strides = [1, 1]} : vector<2x256xf32> to vector<1x256xf32>
    %282 = arith.divf %280, %281 : vector<1x256xf32>
    %c2_171 = arith.constant 2 : index
    %c0_172 = arith.constant 0 : index
    %283 = vector.load %arg30[%c2_171, %c0_172] : memref<8x256xf32, #tpu.memory_space<vmem>>, vector<1x256xf32>
    tpu.vector_store %arg30[%c2_171, %c0_172], %282 {strides = array<i32>} : memref<8x256xf32, #tpu.memory_space<vmem>>, vector<1x256xf32>,
    %284 = vector.extract_strided_slice %198 {offsets = [3, 0], sizes = [1, 256], strides = [1, 1]} : vector<8x256xf32> to vector<1x256xf32>
    %285 = vector.extract_strided_slice %203 {offsets = [3, 0], sizes = [1, 256], strides = [1, 1]} : vector<8x256xf32> to vector<1x256xf32>
    %286 = vector.extract_strided_slice %208 {offsets = [0, 3], sizes = [256, 1], strides = [1, 1]} : vector<256x8xf32> to vector<256x1xf32>
    %287 = vector.extract_strided_slice %210 {offsets = [0, 3], sizes = [1, 1], strides = [1, 1]} : vector<1x8xf32> to vector<1x1xf32>
    %288 = vector.broadcast %287 : vector<1x1xf32> to vector<1x256xf32>
    %289 = arith.mulf %284, %288 : vector<1x256xf32>
    %290 = vector.extract_strided_slice %212 {offsets = [0, 3], sizes = [1, 1], strides = [1, 1]} : vector<1x8xf32> to vector<1x1xf32>
    %291 = vector.broadcast %290 : vector<1x1xf32> to vector<1x256xf32>
    %292 = arith.mulf %284, %291 : vector<1x256xf32>
    %293 = arith.maximumf %289, %292 : vector<1x256xf32>
    %294 = vector.broadcast %286 : vector<256x1xf32> to vector<256x256xf32>
    %295 = vector.broadcast %284 : vector<1x256xf32> to vector<256x256xf32>
    %296 = arith.mulf %294, %295 : vector<256x256xf32>
    %297 = vector.broadcast %293 : vector<1x256xf32> to vector<256x256xf32>
    %298 = arith.subf %296, %297 : vector<256x256xf32>
    %299 = math.exp %298 : vector<256x256xf32>
    %c0_173 = arith.constant 0 : index
    %c0_174 = arith.constant 0 : index
    %300 = vector.load %arg29[%c0_173, %c0_174] : memref<2x256xf32, #tpu.memory_space<vmem>>, vector<1x256xf32>
    tpu.vector_store %arg29[%c0_173, %c0_174], %285 {strides = array<i32>} : memref<2x256xf32, #tpu.memory_space<vmem>>, vector<1x256xf32>,
    %c0_175 = arith.constant 0 : index
    %c0_176 = arith.constant 0 : index
    %301 = vector.load %arg29[%c0_175, %c0_176] : memref<2x256xf32, #tpu.memory_space<vmem>>, vector<2x256xf32>
    %cst_177 = arith.constant dense<0.000000e+00> : vector<2x256xf32>
    %302 = tpu.matmul %301, %299, %cst_177 {dimension_numbers = #tpu.dot_dimension_numbers<[1], [0], [0], [1], [0, 0, 1, 1], [], []>} : vector<2x256xf32>, vector<256x256xf32>, vector<2x256xf32> -> vector<2x256xf32>
    %303 = vector.extract_strided_slice %302 {offsets = [0, 0], sizes = [1, 256], strides = [1, 1]} : vector<2x256xf32> to vector<1x256xf32>
    %304 = vector.extract_strided_slice %302 {offsets = [1, 0], sizes = [1, 256], strides = [1, 1]} : vector<2x256xf32> to vector<1x256xf32>
    %305 = arith.divf %303, %304 : vector<1x256xf32>
    %c3 = arith.constant 3 : index
    %c0_178 = arith.constant 0 : index
    %306 = vector.load %arg30[%c3, %c0_178] : memref<8x256xf32, #tpu.memory_space<vmem>>, vector<1x256xf32>
    tpu.vector_store %arg30[%c3, %c0_178], %305 {strides = array<i32>} : memref<8x256xf32, #tpu.memory_space<vmem>>, vector<1x256xf32>,
    %307 = vector.extract_strided_slice %198 {offsets = [4, 0], sizes = [1, 256], strides = [1, 1]} : vector<8x256xf32> to vector<1x256xf32>
    %308 = vector.extract_strided_slice %203 {offsets = [4, 0], sizes = [1, 256], strides = [1, 1]} : vector<8x256xf32> to vector<1x256xf32>
    %309 = vector.extract_strided_slice %208 {offsets = [0, 4], sizes = [256, 1], strides = [1, 1]} : vector<256x8xf32> to vector<256x1xf32>
    %310 = vector.extract_strided_slice %210 {offsets = [0, 4], sizes = [1, 1], strides = [1, 1]} : vector<1x8xf32> to vector<1x1xf32>
    %311 = vector.broadcast %310 : vector<1x1xf32> to vector<1x256xf32>
    %312 = arith.mulf %307, %311 : vector<1x256xf32>
    %313 = vector.extract_strided_slice %212 {offsets = [0, 4], sizes = [1, 1], strides = [1, 1]} : vector<1x8xf32> to vector<1x1xf32>
    %314 = vector.broadcast %313 : vector<1x1xf32> to vector<1x256xf32>
    %315 = arith.mulf %307, %314 : vector<1x256xf32>
    %316 = arith.maximumf %312, %315 : vector<1x256xf32>
    %317 = vector.broadcast %309 : vector<256x1xf32> to vector<256x256xf32>
    %318 = vector.broadcast %307 : vector<1x256xf32> to vector<256x256xf32>
    %319 = arith.mulf %317, %318 : vector<256x256xf32>
    %320 = vector.broadcast %316 : vector<1x256xf32> to vector<256x256xf32>
    %321 = arith.subf %319, %320 : vector<256x256xf32>
    %322 = math.exp %321 : vector<256x256xf32>
    %c0_179 = arith.constant 0 : index
    %c0_180 = arith.constant 0 : index
    %323 = vector.load %arg29[%c0_179, %c0_180] : memref<2x256xf32, #tpu.memory_space<vmem>>, vector<1x256xf32>
    tpu.vector_store %arg29[%c0_179, %c0_180], %308 {strides = array<i32>} : memref<2x256xf32, #tpu.memory_space<vmem>>, vector<1x256xf32>,
    %c0_181 = arith.constant 0 : index
    %c0_182 = arith.constant 0 : index
    %324 = vector.load %arg29[%c0_181, %c0_182] : memref<2x256xf32, #tpu.memory_space<vmem>>, vector<2x256xf32>
    %cst_183 = arith.constant dense<0.000000e+00> : vector<2x256xf32>
    %325 = tpu.matmul %324, %322, %cst_183 {dimension_numbers = #tpu.dot_dimension_numbers<[1], [0], [0], [1], [0, 0, 1, 1], [], []>} : vector<2x256xf32>, vector<256x256xf32>, vector<2x256xf32> -> vector<2x256xf32>
    %326 = vector.extract_strided_slice %325 {offsets = [0, 0], sizes = [1, 256], strides = [1, 1]} : vector<2x256xf32> to vector<1x256xf32>
    %327 = vector.extract_strided_slice %325 {offsets = [1, 0], sizes = [1, 256], strides = [1, 1]} : vector<2x256xf32> to vector<1x256xf32>
    %328 = arith.divf %326, %327 : vector<1x256xf32>
    %c4 = arith.constant 4 : index
    %c0_184 = arith.constant 0 : index
    %329 = vector.load %arg30[%c4, %c0_184] : memref<8x256xf32, #tpu.memory_space<vmem>>, vector<1x256xf32>
    tpu.vector_store %arg30[%c4, %c0_184], %328 {strides = array<i32>} : memref<8x256xf32, #tpu.memory_space<vmem>>, vector<1x256xf32>,
    %330 = vector.extract_strided_slice %198 {offsets = [5, 0], sizes = [1, 256], strides = [1, 1]} : vector<8x256xf32> to vector<1x256xf32>
    %331 = vector.extract_strided_slice %203 {offsets = [5, 0], sizes = [1, 256], strides = [1, 1]} : vector<8x256xf32> to vector<1x256xf32>
    %332 = vector.extract_strided_slice %208 {offsets = [0, 5], sizes = [256, 1], strides = [1, 1]} : vector<256x8xf32> to vector<256x1xf32>
    %333 = vector.extract_strided_slice %210 {offsets = [0, 5], sizes = [1, 1], strides = [1, 1]} : vector<1x8xf32> to vector<1x1xf32>
    %334 = vector.broadcast %333 : vector<1x1xf32> to vector<1x256xf32>
    %335 = arith.mulf %330, %334 : vector<1x256xf32>
    %336 = vector.extract_strided_slice %212 {offsets = [0, 5], sizes = [1, 1], strides = [1, 1]} : vector<1x8xf32> to vector<1x1xf32>
    %337 = vector.broadcast %336 : vector<1x1xf32> to vector<1x256xf32>
    %338 = arith.mulf %330, %337 : vector<1x256xf32>
    %339 = arith.maximumf %335, %338 : vector<1x256xf32>
    %340 = vector.broadcast %332 : vector<256x1xf32> to vector<256x256xf32>
    %341 = vector.broadcast %330 : vector<1x256xf32> to vector<256x256xf32>
    %342 = arith.mulf %340, %341 : vector<256x256xf32>
    %343 = vector.broadcast %339 : vector<1x256xf32> to vector<256x256xf32>
    %344 = arith.subf %342, %343 : vector<256x256xf32>
    %345 = math.exp %344 : vector<256x256xf32>
    %c0_185 = arith.constant 0 : index
    %c0_186 = arith.constant 0 : index
    %346 = vector.load %arg29[%c0_185, %c0_186] : memref<2x256xf32, #tpu.memory_space<vmem>>, vector<1x256xf32>
    tpu.vector_store %arg29[%c0_185, %c0_186], %331 {strides = array<i32>} : memref<2x256xf32, #tpu.memory_space<vmem>>, vector<1x256xf32>,
    %c0_187 = arith.constant 0 : index
    %c0_188 = arith.constant 0 : index
    %347 = vector.load %arg29[%c0_187, %c0_188] : memref<2x256xf32, #tpu.memory_space<vmem>>, vector<2x256xf32>
    %cst_189 = arith.constant dense<0.000000e+00> : vector<2x256xf32>
    %348 = tpu.matmul %347, %345, %cst_189 {dimension_numbers = #tpu.dot_dimension_numbers<[1], [0], [0], [1], [0, 0, 1, 1], [], []>} : vector<2x256xf32>, vector<256x256xf32>, vector<2x256xf32> -> vector<2x256xf32>
    %349 = vector.extract_strided_slice %348 {offsets = [0, 0], sizes = [1, 256], strides = [1, 1]} : vector<2x256xf32> to vector<1x256xf32>
    %350 = vector.extract_strided_slice %348 {offsets = [1, 0], sizes = [1, 256], strides = [1, 1]} : vector<2x256xf32> to vector<1x256xf32>
    %351 = arith.divf %349, %350 : vector<1x256xf32>
    %c5 = arith.constant 5 : index
    %c0_190 = arith.constant 0 : index
    %352 = vector.load %arg30[%c5, %c0_190] : memref<8x256xf32, #tpu.memory_space<vmem>>, vector<1x256xf32>
    tpu.vector_store %arg30[%c5, %c0_190], %351 {strides = array<i32>} : memref<8x256xf32, #tpu.memory_space<vmem>>, vector<1x256xf32>,
    %353 = vector.extract_strided_slice %198 {offsets = [6, 0], sizes = [1, 256], strides = [1, 1]} : vector<8x256xf32> to vector<1x256xf32>
    %354 = vector.extract_strided_slice %203 {offsets = [6, 0], sizes = [1, 256], strides = [1, 1]} : vector<8x256xf32> to vector<1x256xf32>
    %355 = vector.extract_strided_slice %208 {offsets = [0, 6], sizes = [256, 1], strides = [1, 1]} : vector<256x8xf32> to vector<256x1xf32>
    %356 = vector.extract_strided_slice %210 {offsets = [0, 6], sizes = [1, 1], strides = [1, 1]} : vector<1x8xf32> to vector<1x1xf32>
    %357 = vector.broadcast %356 : vector<1x1xf32> to vector<1x256xf32>
    %358 = arith.mulf %353, %357 : vector<1x256xf32>
    %359 = vector.extract_strided_slice %212 {offsets = [0, 6], sizes = [1, 1], strides = [1, 1]} : vector<1x8xf32> to vector<1x1xf32>
    %360 = vector.broadcast %359 : vector<1x1xf32> to vector<1x256xf32>
    %361 = arith.mulf %353, %360 : vector<1x256xf32>
    %362 = arith.maximumf %358, %361 : vector<1x256xf32>
    %363 = vector.broadcast %355 : vector<256x1xf32> to vector<256x256xf32>
    %364 = vector.broadcast %353 : vector<1x256xf32> to vector<256x256xf32>
    %365 = arith.mulf %363, %364 : vector<256x256xf32>
    %366 = vector.broadcast %362 : vector<1x256xf32> to vector<256x256xf32>
    %367 = arith.subf %365, %366 : vector<256x256xf32>
    %368 = math.exp %367 : vector<256x256xf32>
    %c0_191 = arith.constant 0 : index
    %c0_192 = arith.constant 0 : index
    %369 = vector.load %arg29[%c0_191, %c0_192] : memref<2x256xf32, #tpu.memory_space<vmem>>, vector<1x256xf32>
    tpu.vector_store %arg29[%c0_191, %c0_192], %354 {strides = array<i32>} : memref<2x256xf32, #tpu.memory_space<vmem>>, vector<1x256xf32>,
    %c0_193 = arith.constant 0 : index
    %c0_194 = arith.constant 0 : index
    %370 = vector.load %arg29[%c0_193, %c0_194] : memref<2x256xf32, #tpu.memory_space<vmem>>, vector<2x256xf32>
    %cst_195 = arith.constant dense<0.000000e+00> : vector<2x256xf32>
    %371 = tpu.matmul %370, %368, %cst_195 {dimension_numbers = #tpu.dot_dimension_numbers<[1], [0], [0], [1], [0, 0, 1, 1], [], []>} : vector<2x256xf32>, vector<256x256xf32>, vector<2x256xf32> -> vector<2x256xf32>
    %372 = vector.extract_strided_slice %371 {offsets = [0, 0], sizes = [1, 256], strides = [1, 1]} : vector<2x256xf32> to vector<1x256xf32>
    %373 = vector.extract_strided_slice %371 {offsets = [1, 0], sizes = [1, 256], strides = [1, 1]} : vector<2x256xf32> to vector<1x256xf32>
    %374 = arith.divf %372, %373 : vector<1x256xf32>
    %c6 = arith.constant 6 : index
    %c0_196 = arith.constant 0 : index
    %375 = vector.load %arg30[%c6, %c0_196] : memref<8x256xf32, #tpu.memory_space<vmem>>, vector<1x256xf32>
    tpu.vector_store %arg30[%c6, %c0_196], %374 {strides = array<i32>} : memref<8x256xf32, #tpu.memory_space<vmem>>, vector<1x256xf32>,
    %376 = vector.extract_strided_slice %198 {offsets = [7, 0], sizes = [1, 256], strides = [1, 1]} : vector<8x256xf32> to vector<1x256xf32>
    %377 = vector.extract_strided_slice %203 {offsets = [7, 0], sizes = [1, 256], strides = [1, 1]} : vector<8x256xf32> to vector<1x256xf32>
    %378 = vector.extract_strided_slice %208 {offsets = [0, 7], sizes = [256, 1], strides = [1, 1]} : vector<256x8xf32> to vector<256x1xf32>
    %379 = vector.extract_strided_slice %210 {offsets = [0, 7], sizes = [1, 1], strides = [1, 1]} : vector<1x8xf32> to vector<1x1xf32>
    %380 = vector.broadcast %379 : vector<1x1xf32> to vector<1x256xf32>
    %381 = arith.mulf %376, %380 : vector<1x256xf32>
    %382 = vector.extract_strided_slice %212 {offsets = [0, 7], sizes = [1, 1], strides = [1, 1]} : vector<1x8xf32> to vector<1x1xf32>
    %383 = vector.broadcast %382 : vector<1x1xf32> to vector<1x256xf32>
    %384 = arith.mulf %376, %383 : vector<1x256xf32>
    %385 = arith.maximumf %381, %384 : vector<1x256xf32>
    %386 = vector.broadcast %378 : vector<256x1xf32> to vector<256x256xf32>
    %387 = vector.broadcast %376 : vector<1x256xf32> to vector<256x256xf32>
    %388 = arith.mulf %386, %387 : vector<256x256xf32>
    %389 = vector.broadcast %385 : vector<1x256xf32> to vector<256x256xf32>
    %390 = arith.subf %388, %389 : vector<256x256xf32>
    %391 = math.exp %390 : vector<256x256xf32>
    %c0_197 = arith.constant 0 : index
    %c0_198 = arith.constant 0 : index
    %392 = vector.load %arg29[%c0_197, %c0_198] : memref<2x256xf32, #tpu.memory_space<vmem>>, vector<1x256xf32>
    tpu.vector_store %arg29[%c0_197, %c0_198], %377 {strides = array<i32>} : memref<2x256xf32, #tpu.memory_space<vmem>>, vector<1x256xf32>,
    %c0_199 = arith.constant 0 : index
    %c0_200 = arith.constant 0 : index
    %393 = vector.load %arg29[%c0_199, %c0_200] : memref<2x256xf32, #tpu.memory_space<vmem>>, vector<2x256xf32>
    %cst_201 = arith.constant dense<0.000000e+00> : vector<2x256xf32>
    %394 = tpu.matmul %393, %391, %cst_201 {dimension_numbers = #tpu.dot_dimension_numbers<[1], [0], [0], [1], [0, 0, 1, 1], [], []>} : vector<2x256xf32>, vector<256x256xf32>, vector<2x256xf32> -> vector<2x256xf32>
    %395 = vector.extract_strided_slice %394 {offsets = [0, 0], sizes = [1, 256], strides = [1, 1]} : vector<2x256xf32> to vector<1x256xf32>
    %396 = vector.extract_strided_slice %394 {offsets = [1, 0], sizes = [1, 256], strides = [1, 1]} : vector<2x256xf32> to vector<1x256xf32>
    %397 = arith.divf %395, %396 : vector<1x256xf32>
    %c7 = arith.constant 7 : index
    %c0_202 = arith.constant 0 : index
    %398 = vector.load %arg30[%c7, %c0_202] : memref<8x256xf32, #tpu.memory_space<vmem>>, vector<1x256xf32>
    tpu.vector_store %arg30[%c7, %c0_202], %397 {strides = array<i32>} : memref<8x256xf32, #tpu.memory_space<vmem>>, vector<1x256xf32>,
    %c0_203 = arith.constant 0 : index
    %c0_204 = arith.constant 0 : index
    %399 = vector.load %arg21[%c0_203, %c0_204] : memref<8x8xf32, #tpu.memory_space<vmem>>, vector<8x8xf32>
    %c0_205 = arith.constant 0 : index
    %c0_206 = arith.constant 0 : index
    %400 = vector.load %arg30[%c0_205, %c0_206] : memref<8x256xf32, #tpu.memory_space<vmem>>, vector<8x256xf32>
    %cst_207 = arith.constant dense<0.000000e+00> : vector<8x256xf32>
    %401 = tpu.matmul %399, %400, %cst_207 {dimension_numbers = #tpu.dot_dimension_numbers<[1], [0], [0], [1], [0, 0, 1, 1], [], []>} : vector<8x8xf32>, vector<8x256xf32>, vector<8x256xf32> -> vector<8x256xf32>
    %c0_208 = arith.constant 0 : index
    %c0_209 = arith.constant 0 : index
    %402 = vector.load %arg22[%c0_208, %c0_209] : memref<8x1xf32, #tpu.memory_space<vmem>>, vector<8x1xf32>
    %403 = vector.broadcast %402 : vector<8x1xf32> to vector<8x256xf32>
    %404 = arith.addf %401, %403 : vector<8x256xf32>
    %405 = arith.addf %404, %174 : vector<8x256xf32>
    %c0_210 = arith.constant 0 : index
    %c0_211 = arith.constant 0 : index
    %406 = vector.load %arg24[%c0_210, %c0_211] : memref<32x1xf32, #tpu.memory_space<vmem>>, vector<32x1xf32>
    %cst_212 = arith.constant 0.000000e+00 : f32
    %407 = vector.broadcast %cst_212 : f32 to vector<8x17xf32>
    %c0_213 = arith.constant 0 : index
    %c0_214 = arith.constant 0 : index
    %408 = vector.load %arg27[%c0_213, %c0_214] : memref<8x290xf32, #tpu.memory_space<vmem>>, vector<8x17xf32>
    tpu.vector_store %arg27[%c0_213, %c0_214], %407 {strides = array<i32>} : memref<8x290xf32, #tpu.memory_space<vmem>>, vector<8x17xf32>,
    %cst_215 = arith.constant 0.000000e+00 : f32
    %409 = vector.broadcast %cst_215 : f32 to vector<8x17xf32>
    %c0_216 = arith.constant 0 : index
    %c273_217 = arith.constant 273 : index
    %410 = vector.load %arg27[%c0_216, %c273_217] : memref<8x290xf32, #tpu.memory_space<vmem>>, vector<8x17xf32>
    tpu.vector_store %arg27[%c0_216, %c273_217], %409 {strides = array<i32>} : memref<8x290xf32, #tpu.memory_space<vmem>>, vector<8x17xf32>,
    %c0_218 = arith.constant 0 : index
    %c17_219 = arith.constant 17 : index
    %411 = vector.load %arg27[%c0_218, %c17_219] : memref<8x290xf32, #tpu.memory_space<vmem>>, vector<8x256xf32>
    tpu.vector_store %arg27[%c0_218, %c17_219], %405 {strides = array<i32>} : memref<8x290xf32, #tpu.memory_space<vmem>>, vector<8x256xf32>,
    %c0_220 = arith.constant 0 : index
    %c0_221 = arith.constant 0 : index
    %412 = vector.load %arg27[%c0_220, %c0_221] : memref<8x290xf32, #tpu.memory_space<vmem>>, vector<8x256xf32>
    %413 = vector.broadcast %21 : vector<1x256xf32> to vector<8x256xf32>
    %414 = arith.mulf %412, %413 : vector<8x256xf32>
    %c0_222 = arith.constant 0 : index
    %c0_223 = arith.constant 0 : index
    %415 = vector.load %arg28[%c0_222, %c0_223] : memref<72x256xf32, #tpu.memory_space<vmem>>, vector<8x256xf32>
    tpu.vector_store %arg28[%c0_222, %c0_223], %414 {strides = array<i32>} : memref<72x256xf32, #tpu.memory_space<vmem>>, vector<8x256xf32>,
    %c0_224 = arith.constant 0 : index
    %c1_225 = arith.constant 1 : index
    %416 = vector.load %arg27[%c0_224, %c1_225] : memref<8x290xf32, #tpu.memory_space<vmem>>, vector<8x256xf32>
    %c8_226 = arith.constant 8 : index
    %c0_227 = arith.constant 0 : index
    %417 = vector.load %arg28[%c8_226, %c0_227] : memref<72x256xf32, #tpu.memory_space<vmem>>, vector<8x256xf32>
    tpu.vector_store %arg28[%c8_226, %c0_227], %416 {strides = array<i32>} : memref<72x256xf32, #tpu.memory_space<vmem>>, vector<8x256xf32>,
    %c0_228 = arith.constant 0 : index
    %c2_229 = arith.constant 2 : index
    %418 = vector.load %arg27[%c0_228, %c2_229] : memref<8x290xf32, #tpu.memory_space<vmem>>, vector<8x256xf32>
    %419 = vector.broadcast %25 : vector<1x256xf32> to vector<8x256xf32>
    %420 = arith.mulf %418, %419 : vector<8x256xf32>
    %c16_230 = arith.constant 16 : index
    %c0_231 = arith.constant 0 : index
    %421 = vector.load %arg28[%c16_230, %c0_231] : memref<72x256xf32, #tpu.memory_space<vmem>>, vector<8x256xf32>
    tpu.vector_store %arg28[%c16_230, %c0_231], %420 {strides = array<i32>} : memref<72x256xf32, #tpu.memory_space<vmem>>, vector<8x256xf32>,
    %c0_232 = arith.constant 0 : index
    %c16_233 = arith.constant 16 : index
    %422 = vector.load %arg27[%c0_232, %c16_233] : memref<8x290xf32, #tpu.memory_space<vmem>>, vector<8x256xf32>
    %423 = vector.broadcast %21 : vector<1x256xf32> to vector<8x256xf32>
    %424 = arith.mulf %422, %423 : vector<8x256xf32>
    %c24_234 = arith.constant 24 : index
    %c0_235 = arith.constant 0 : index
    %425 = vector.load %arg28[%c24_234, %c0_235] : memref<72x256xf32, #tpu.memory_space<vmem>>, vector<8x256xf32>
    tpu.vector_store %arg28[%c24_234, %c0_235], %424 {strides = array<i32>} : memref<72x256xf32, #tpu.memory_space<vmem>>, vector<8x256xf32>,
    %c0_236 = arith.constant 0 : index
    %c17_237 = arith.constant 17 : index
    %426 = vector.load %arg27[%c0_236, %c17_237] : memref<8x290xf32, #tpu.memory_space<vmem>>, vector<8x256xf32>
    %c32_238 = arith.constant 32 : index
    %c0_239 = arith.constant 0 : index
    %427 = vector.load %arg28[%c32_238, %c0_239] : memref<72x256xf32, #tpu.memory_space<vmem>>, vector<8x256xf32>
    tpu.vector_store %arg28[%c32_238, %c0_239], %426 {strides = array<i32>} : memref<72x256xf32, #tpu.memory_space<vmem>>, vector<8x256xf32>,
    %c0_240 = arith.constant 0 : index
    %c18_241 = arith.constant 18 : index
    %428 = vector.load %arg27[%c0_240, %c18_241] : memref<8x290xf32, #tpu.memory_space<vmem>>, vector<8x256xf32>
    %429 = vector.broadcast %25 : vector<1x256xf32> to vector<8x256xf32>
    %430 = arith.mulf %428, %429 : vector<8x256xf32>
    %c40_242 = arith.constant 40 : index
    %c0_243 = arith.constant 0 : index
    %431 = vector.load %arg28[%c40_242, %c0_243] : memref<72x256xf32, #tpu.memory_space<vmem>>, vector<8x256xf32>
    tpu.vector_store %arg28[%c40_242, %c0_243], %430 {strides = array<i32>} : memref<72x256xf32, #tpu.memory_space<vmem>>, vector<8x256xf32>,
    %c0_244 = arith.constant 0 : index
    %c32_245 = arith.constant 32 : index
    %432 = vector.load %arg27[%c0_244, %c32_245] : memref<8x290xf32, #tpu.memory_space<vmem>>, vector<8x256xf32>
    %433 = vector.broadcast %21 : vector<1x256xf32> to vector<8x256xf32>
    %434 = arith.mulf %432, %433 : vector<8x256xf32>
    %c48_246 = arith.constant 48 : index
    %c0_247 = arith.constant 0 : index
    %435 = vector.load %arg28[%c48_246, %c0_247] : memref<72x256xf32, #tpu.memory_space<vmem>>, vector<8x256xf32>
    tpu.vector_store %arg28[%c48_246, %c0_247], %434 {strides = array<i32>} : memref<72x256xf32, #tpu.memory_space<vmem>>, vector<8x256xf32>,
    %c0_248 = arith.constant 0 : index
    %c33_249 = arith.constant 33 : index
    %436 = vector.load %arg27[%c0_248, %c33_249] : memref<8x290xf32, #tpu.memory_space<vmem>>, vector<8x256xf32>
    %c56_250 = arith.constant 56 : index
    %c0_251 = arith.constant 0 : index
    %437 = vector.load %arg28[%c56_250, %c0_251] : memref<72x256xf32, #tpu.memory_space<vmem>>, vector<8x256xf32>
    tpu.vector_store %arg28[%c56_250, %c0_251], %436 {strides = array<i32>} : memref<72x256xf32, #tpu.memory_space<vmem>>, vector<8x256xf32>,
    %c0_252 = arith.constant 0 : index
    %c34_253 = arith.constant 34 : index
    %438 = vector.load %arg27[%c0_252, %c34_253] : memref<8x290xf32, #tpu.memory_space<vmem>>, vector<8x256xf32>
    %439 = vector.broadcast %25 : vector<1x256xf32> to vector<8x256xf32>
    %440 = arith.mulf %438, %439 : vector<8x256xf32>
    %c64_254 = arith.constant 64 : index
    %c0_255 = arith.constant 0 : index
    %441 = vector.load %arg28[%c64_254, %c0_255] : memref<72x256xf32, #tpu.memory_space<vmem>>, vector<8x256xf32>
    tpu.vector_store %arg28[%c64_254, %c0_255], %440 {strides = array<i32>} : memref<72x256xf32, #tpu.memory_space<vmem>>, vector<8x256xf32>,
    %c0_256 = arith.constant 0 : index
    %c0_257 = arith.constant 0 : index
    %442 = vector.load %arg23[%c0_256, %c0_257] : memref<32x72xf32, #tpu.memory_space<vmem>>, vector<32x72xf32>
    %c0_258 = arith.constant 0 : index
    %c0_259 = arith.constant 0 : index
    %443 = vector.load %arg28[%c0_258, %c0_259] : memref<72x256xf32, #tpu.memory_space<vmem>>, vector<72x256xf32>
    %cst_260 = arith.constant dense<0.000000e+00> : vector<32x256xf32>
    %444 = tpu.matmul %442, %443, %cst_260 {dimension_numbers = #tpu.dot_dimension_numbers<[1], [0], [0], [1], [0, 0, 1, 1], [], []>} : vector<32x72xf32>, vector<72x256xf32>, vector<32x256xf32> -> vector<32x256xf32>
    %445 = vector.broadcast %406 : vector<32x1xf32> to vector<32x256xf32>
    %446 = arith.addf %444, %445 : vector<32x256xf32>
    %c0_261 = arith.constant 0 : index
    %c0_262 = arith.constant 0 : index
    %c0_263 = arith.constant 0 : index
    %447 = vector.load %arg26[%c0_261, %c0_262, %c0_263] : memref<1x32x256xf32, #tpu.memory_space<vmem>>, vector<1x32x256xf32>
    %448 = vector.shape_cast %447 : vector<1x32x256xf32> to vector<32x256xf32>
    %449 = vector.shape_cast %446 : vector<32x256xf32> to vector<1x32x256xf32>
    tpu.vector_store %arg26[%c0_261, %c0_262, %c0_263], %449 {strides = array<i32>} : memref<1x32x256xf32, #tpu.memory_space<vmem>>, vector<1x32x256xf32>,
    return
  }
  func.func @transform_0(%arg0: i32) -> (i32, i32, i32) {
    %c0_i32 = arith.constant 0 : i32
    %c0_i32_0 = arith.constant 0 : i32
    %c0_i32_1 = arith.constant 0 : i32
    return %arg0, %c0_i32, %c0_i32_0 : i32, i32, i32
  }
  func.func @transform_1(%arg0: i32) -> (i32, i32, i32) {
    %c0_i32 = arith.constant 0 : i32
    %c0_i32_0 = arith.constant 0 : i32
    %c0_i32_1 = arith.constant 0 : i32
    return %arg0, %c0_i32, %c0_i32_0 : i32, i32, i32
  }
  func.func @transform_2(%arg0: i32) -> (i32, i32) {
    %c0_i32 = arith.constant 0 : i32
    %c0_i32_0 = arith.constant 0 : i32
    %c0_i32_1 = arith.constant 0 : i32
    return %c0_i32, %c0_i32_0 : i32, i32
  }
  func.func @transform_3(%arg0: i32) -> (i32, i32) {
    %c0_i32 = arith.constant 0 : i32
    %c0_i32_0 = arith.constant 0 : i32
    %c0_i32_1 = arith.constant 0 : i32
    return %c0_i32, %c0_i32_0 : i32, i32
  }
  func.func @transform_4(%arg0: i32) -> (i32, i32) {
    %c0_i32 = arith.constant 0 : i32
    %c0_i32_0 = arith.constant 0 : i32
    %c0_i32_1 = arith.constant 0 : i32
    return %c0_i32, %c0_i32_0 : i32, i32
  }
  func.func @transform_5(%arg0: i32) -> (i32, i32) {
    %c0_i32 = arith.constant 0 : i32
    %c0_i32_0 = arith.constant 0 : i32
    %c0_i32_1 = arith.constant 0 : i32
    return %c0_i32, %c0_i32_0 : i32, i32
  }
  func.func @transform_6(%arg0: i32) -> (i32, i32) {
    %c0_i32 = arith.constant 0 : i32
    %c0_i32_0 = arith.constant 0 : i32
    %c0_i32_1 = arith.constant 0 : i32
    return %c0_i32, %c0_i32_0 : i32, i32
  }
  func.func @transform_7(%arg0: i32) -> (i32, i32) {
    %c0_i32 = arith.constant 0 : i32
    %c0_i32_0 = arith.constant 0 : i32
    %c0_i32_1 = arith.constant 0 : i32
    return %c0_i32, %c0_i32_0 : i32, i32
  }
  func.func @transform_8(%arg0: i32) -> (i32, i32) {
    %c0_i32 = arith.constant 0 : i32
    %c0_i32_0 = arith.constant 0 : i32
    %c0_i32_1 = arith.constant 0 : i32
    return %c0_i32, %c0_i32_0 : i32, i32
  }
  func.func @transform_9(%arg0: i32) -> (i32, i32) {
    %c0_i32 = arith.constant 0 : i32
    %c0_i32_0 = arith.constant 0 : i32
    %c0_i32_1 = arith.constant 0 : i32
    return %c0_i32, %c0_i32_0 : i32, i32
  }
  func.func @transform_10(%arg0: i32) -> (i32, i32) {
    %c0_i32 = arith.constant 0 : i32
    %c0_i32_0 = arith.constant 0 : i32
    %c0_i32_1 = arith.constant 0 : i32
    return %c0_i32, %c0_i32_0 : i32, i32
  }
  func.func @transform_11(%arg0: i32) -> (i32, i32) {
    %c0_i32 = arith.constant 0 : i32
    %c0_i32_0 = arith.constant 0 : i32
    %c0_i32_1 = arith.constant 0 : i32
    return %c0_i32, %c0_i32_0 : i32, i32
  }
  func.func @transform_12(%arg0: i32) -> (i32, i32) {
    %c0_i32 = arith.constant 0 : i32
    %c0_i32_0 = arith.constant 0 : i32
    %c0_i32_1 = arith.constant 0 : i32
    return %c0_i32, %c0_i32_0 : i32, i32
  }
  func.func @transform_13(%arg0: i32) -> (i32, i32) {
    %c0_i32 = arith.constant 0 : i32
    %c0_i32_0 = arith.constant 0 : i32
    %c0_i32_1 = arith.constant 0 : i32
    return %c0_i32, %c0_i32_0 : i32, i32
  }
  func.func @transform_14(%arg0: i32) -> (i32, i32) {
    %c0_i32 = arith.constant 0 : i32
    %c0_i32_0 = arith.constant 0 : i32
    %c0_i32_1 = arith.constant 0 : i32
    return %c0_i32, %c0_i32_0 : i32, i32
  }
  func.func @transform_15(%arg0: i32) -> (i32, i32) {
    %c0_i32 = arith.constant 0 : i32
    %c0_i32_0 = arith.constant 0 : i32
    %c0_i32_1 = arith.constant 0 : i32
    return %c0_i32, %c0_i32_0 : i32, i32
  }
  func.func @transform_16(%arg0: i32) -> (i32, i32) {
    %c0_i32 = arith.constant 0 : i32
    %c0_i32_0 = arith.constant 0 : i32
    %c0_i32_1 = arith.constant 0 : i32
    return %c0_i32, %c0_i32_0 : i32, i32
  }
  func.func @transform_17(%arg0: i32) -> (i32, i32) {
    %c0_i32 = arith.constant 0 : i32
    %c0_i32_0 = arith.constant 0 : i32
    %c0_i32_1 = arith.constant 0 : i32
    return %c0_i32, %c0_i32_0 : i32, i32
  }
  func.func @transform_18(%arg0: i32) -> (i32, i32) {
    %c0_i32 = arith.constant 0 : i32
    %c0_i32_0 = arith.constant 0 : i32
    %c0_i32_1 = arith.constant 0 : i32
    return %c0_i32, %c0_i32_0 : i32, i32
  }
  func.func @transform_19(%arg0: i32) -> (i32, i32) {
    %c0_i32 = arith.constant 0 : i32
    %c0_i32_0 = arith.constant 0 : i32
    %c0_i32_1 = arith.constant 0 : i32
    return %c0_i32, %c0_i32_0 : i32, i32
  }
  func.func @transform_20(%arg0: i32) -> (i32, i32) {
    %c0_i32 = arith.constant 0 : i32
    %c0_i32_0 = arith.constant 0 : i32
    %c0_i32_1 = arith.constant 0 : i32
    return %c0_i32, %c0_i32_0 : i32, i32
  }
  func.func @transform_21(%arg0: i32) -> (i32, i32) {
    %c0_i32 = arith.constant 0 : i32
    %c0_i32_0 = arith.constant 0 : i32
    %c0_i32_1 = arith.constant 0 : i32
    return %c0_i32, %c0_i32_0 : i32, i32
  }
  func.func @transform_22(%arg0: i32) -> (i32, i32) {
    %c0_i32 = arith.constant 0 : i32
    %c0_i32_0 = arith.constant 0 : i32
    %c0_i32_1 = arith.constant 0 : i32
    return %c0_i32, %c0_i32_0 : i32, i32
  }
  func.func @transform_23(%arg0: i32) -> (i32, i32) {
    %c0_i32 = arith.constant 0 : i32
    %c0_i32_0 = arith.constant 0 : i32
    %c0_i32_1 = arith.constant 0 : i32
    return %c0_i32, %c0_i32_0 : i32, i32
  }
  func.func @transform_24(%arg0: i32) -> (i32, i32) {
    %c0_i32 = arith.constant 0 : i32
    %c0_i32_0 = arith.constant 0 : i32
    %c0_i32_1 = arith.constant 0 : i32
    return %c0_i32, %c0_i32_0 : i32, i32
  }
  func.func @transform_25(%arg0: i32) -> (i32, i32, i32) {
    %c0_i32 = arith.constant 0 : i32
    %c0_i32_0 = arith.constant 0 : i32
    %c0_i32_1 = arith.constant 0 : i32
    return %arg0, %c0_i32, %c0_i32_0 : i32, i32, i32
  }
}

</mosaic_0001>

<llo_original>
// kernel: tpu_custom_call.1
$region0: #{tpu_custom_call.1}
  #allocation0 [shape = 'u32[]', space=smem, size = 0x4, offset = 0x4, fixed_abs, tag = 'smem constant byte address 0x4 - core index']
  #allocation1 [shape = 'u32[144,128]{1,0:T(1,128)}', space=vmem, size = 0x12000, scoped, tag = 'internal scratch']
  #allocation2 [shape = 'f32[8,290]{1,0:T(8,128)}', space=vmem, size = 0x3000, scoped, tag = 'scratch operand']
  #allocation3 [shape = 'f32[72,256]{1,0:T(8,128)}', space=vmem, size = 0x12000, scoped, tag = 'scratch operand']
  #allocation4 [shape = 'f32[2,256]{1,0:T(2,128)}', space=vmem, size = 0x800, scoped, tag = 'scratch operand']
  #allocation5 [shape = 'f32[8,256]{1,0:T(8,128)}', space=vmem, size = 0x2000, scoped, tag = 'scratch operand']
  %s0 = inlined_call_operand.vmem [shape: f32[2,8,256], index: 0, kind: input, shape index: {}]
  %s1 = inlined_call_operand.vmem [shape: f32[2,32,1], index: 1, kind: input, shape index: {}]
  %s2 = inlined_call_operand.vmem [shape: f32[8,1], index: 2, kind: input, shape index: {}]
  %s3 = inlined_call_operand.vmem [shape: f32[8,1], index: 3, kind: input, shape index: {}]
  %s4 = inlined_call_operand.vmem [shape: f32[8,72], index: 4, kind: input, shape index: {}]
  %s5 = inlined_call_operand.vmem [shape: f32[8,1], index: 5, kind: input, shape index: {}]
  %s6 = inlined_call_operand.vmem [shape: f32[8,32], index: 6, kind: input, shape index: {}]
  %s7 = inlined_call_operand.vmem [shape: f32[8,1], index: 7, kind: input, shape index: {}]
  %s8 = inlined_call_operand.vmem [shape: f32[8,1], index: 8, kind: input, shape index: {}]
  %s9 = inlined_call_operand.vmem [shape: f32[8,1], index: 9, kind: input, shape index: {}]
  %s10 = inlined_call_operand.vmem [shape: f32[8,72], index: 10, kind: input, shape index: {}]
  %s11 = inlined_call_operand.vmem [shape: f32[8,1], index: 11, kind: input, shape index: {}]
  %s12 = inlined_call_operand.vmem [shape: f32[8,1], index: 12, kind: input, shape index: {}]
  %s13 = inlined_call_operand.vmem [shape: f32[8,1], index: 13, kind: input, shape index: {}]
  %s14 = inlined_call_operand.vmem [shape: f32[8,8], index: 14, kind: input, shape index: {}]
  %s15 = inlined_call_operand.vmem [shape: f32[8,1], index: 15, kind: input, shape index: {}]
  %s16 = inlined_call_operand.vmem [shape: f32[8,8], index: 16, kind: input, shape index: {}]
  %s17 = inlined_call_operand.vmem [shape: f32[1,8], index: 17, kind: input, shape index: {}]
  %s18 = inlined_call_operand.vmem [shape: f32[8,8], index: 18, kind: input, shape index: {}]
  %s19 = inlined_call_operand.vmem [shape: f32[8,1], index: 19, kind: input, shape index: {}]
  %s20 = inlined_call_operand.vmem [shape: f32[8,8], index: 20, kind: input, shape index: {}]
  %s21 = inlined_call_operand.vmem [shape: f32[8,1], index: 21, kind: input, shape index: {}]
  %s22 = inlined_call_operand.vmem [shape: f32[32,72], index: 22, kind: input, shape index: {}]
  %s23 = inlined_call_operand.vmem [shape: f32[32,1], index: 23, kind: input, shape index: {}]
  %s24 = inlined_call_operand.vmem [shape: f32[8,8], index: 24, kind: input, shape index: {}]
  %s25 = inlined_call_operand.hbm [shape: f32[2,32,256], index: 25, kind: output, shape index: {}]
  %s26 = sld [smem:[#allocation0]]
  $region133: #{tpu_custom_call.1} parent=0
    _
  %s28 = ssub.s32 1, %s26
  %s29 = scalar_select 0, %s28, %s26
  $region1: #{tpu_custom_call.1} parent=0
    #allocation6 [shape = 'u8[65536]{0}', space=vmem, size = 0x10000, scoped, tag = 'output window, operand 0']
    #allocation7 [shape = 's32[2]{0}', space=sflag, size = 0x8, scoped, tag = 'scoped memory for tpu_custom_call.1']
    %30 = vsyncpa [#allocation7], 0
    %s31 = scalar_lea.sflag [#allocation7], 1
    %32 = vsyncpa %s31, 0
    loop: start=0, step=1, limit=4
    $region2: #{tpu_custom_call.1} parent=1 // loop_pre_header
      _
    $region3: #{tpu_custom_call.1} parent=1 // loop_header
      %s34 = sphi 0, %s38
      %p35 = scmp.ge.s32.totalorder %s34, 4
      %s44 = sphi 0, %s46
      %s47 = sphi 0, %s44
      %s48 = sphi 0, %s47
      %s64 = sphi 0, %s48
      %s70 = sphi 0, %s72
      %s73 = sphi 0, %s70
      %s74 = sphi 0, %s73
      %s90 = sphi 0, %s74
      %s94 = sphi 0, %s94
      %s96 = sphi 0, %s94
      %s97 = sphi 0, %s96
      %s111 = sphi 0, %s97
      %s115 = sphi 0, %s115
      %s117 = sphi 0, %s115
      %s118 = sphi 0, %s117
      %s132 = sphi 0, %s118
      %s136 = sphi 0, %s136
      %s138 = sphi 0, %s136
      %s139 = sphi 0, %s138
      %s153 = sphi 0, %s139
      %s157 = sphi 0, %s157
      %s159 = sphi 0, %s157
      %s160 = sphi 0, %s159
      %s174 = sphi 0, %s160
      %s178 = sphi 0, %s178
      %s180 = sphi 0, %s178
      %s181 = sphi 0, %s180
      %s195 = sphi 0, %s181
      %s199 = sphi 0, %s199
      %s201 = sphi 0, %s199
      %s202 = sphi 0, %s201
      %s216 = sphi 0, %s202
      %s220 = sphi 0, %s220
      %s222 = sphi 0, %s220
      %s223 = sphi 0, %s222
      %s237 = sphi 0, %s223
      %s241 = sphi 0, %s241
      %s243 = sphi 0, %s241
      %s244 = sphi 0, %s243
      %s258 = sphi 0, %s244
      %s262 = sphi 0, %s262
      %s264 = sphi 0, %s262
      %s265 = sphi 0, %s264
      %s279 = sphi 0, %s265
      %s283 = sphi 0, %s283
      %s285 = sphi 0, %s283
      %s286 = sphi 0, %s285
      %s300 = sphi 0, %s286
      %s304 = sphi 0, %s304
      %s306 = sphi 0, %s304
      %s307 = sphi 0, %s306
      %s321 = sphi 0, %s307
      %s325 = sphi 0, %s325
      %s327 = sphi 0, %s325
      %s328 = sphi 0, %s327
      %s342 = sphi 0, %s328
      %s346 = sphi 0, %s346
      %s348 = sphi 0, %s346
      %s349 = sphi 0, %s348
      %s363 = sphi 0, %s349
      %s367 = sphi 0, %s367
      %s369 = sphi 0, %s367
      %s370 = sphi 0, %s369
      %s384 = sphi 0, %s370
      %s388 = sphi 0, %s388
      %s390 = sphi 0, %s388
      %s391 = sphi 0, %s390
      %s405 = sphi 0, %s391
      %s409 = sphi 0, %s409
      %s411 = sphi 0, %s409
      %s412 = sphi 0, %s411
      %s426 = sphi 0, %s412
      %s430 = sphi 0, %s430
      %s432 = sphi 0, %s430
      %s433 = sphi 0, %s432
      %s447 = sphi 0, %s433
      %s451 = sphi 0, %s451
      %s453 = sphi 0, %s451
      %s454 = sphi 0, %s453
      %s468 = sphi 0, %s454
      %s472 = sphi 0, %s472
      %s474 = sphi 0, %s472
      %s475 = sphi 0, %s474
      %s489 = sphi 0, %s475
      %s493 = sphi 0, %s493
      %s495 = sphi 0, %s493
      %s496 = sphi 0, %s495
      %s510 = sphi 0, %s496
      %s514 = sphi 0, %s514
      %s516 = sphi 0, %s514
      %s517 = sphi 0, %s516
      %s531 = sphi 0, %s517
      %s535 = sphi 0, %s535
      %s537 = sphi 0, %s535
      %s538 = sphi 0, %s537
      %s552 = sphi 0, %s538
      %s556 = sphi 0, %s556
      %s558 = sphi 0, %s556
      %s559 = sphi 0, %s558
      %s573 = sphi 0, %s559
      %s579 = sphi 0, %s581
      %s582 = sphi 0, %s579
      %s583 = sphi 0, %s582
      %s599 = sphi 0, %s583
    $region4: #{tpu_custom_call.1} parent=1 // loop_header_branch
      %37 = sbr.rel (%p35) target = $region8
    $region5: #{tpu_custom_call.1} parent=1 // loop_body
      %s39 = ssub.s32 %s34, 1
      %s40 = ssub.s32 %s34, 2
      %s41 = sadd.s32 %s34, 1
      %s42 = ssub.s32 %s34, %s41
      %p43 = scmp.eq.s32.totalorder %s42, 0
      %s45 = sadd.s32 %s44, 1
      %s46 = scalar_select %p43, %s44, %s45
      %p49 = pneg %p43
      %p50 = scmp.eq.s32.totalorder %s34, 1
      %p51 = por %p49, %p50
      %p52 = scmp.ne.s32.totalorder %s44, %s47
      %p53 = scmp.eq.s32.totalorder %s34, 0
      %p54 = por %p52, %p53
      %p55 = scmp.ne.s32.totalorder %s44, %s47
      %p56 = scmp.eq.s32.totalorder %s39, 1
      %p57 = por %p55, %p56
      %p58 = scmp.ne.s32.totalorder %s47, %s48
      %p59 = scmp.eq.s32.totalorder %s39, 0
      %p60 = por %p58, %p59
      %p61 = scmp.ne.s32.totalorder %s47, %s48
      %p62 = scmp.eq.s32.totalorder %s40, 1
      %p63 = por %p61, %p62
      %p65 = scmp.ne.s32.totalorder %s48, %s64
      %p66 = scmp.eq.s32.totalorder %s40, 0
      %p67 = por %p65, %p66
      %s68 = ssub.s32 %s34, %s41
      %p69 = scmp.eq.s32.totalorder %s68, 0
      %s71 = sadd.s32 %s70, 1
      %s72 = scalar_select %p69, %s70, %s71
      %p75 = pneg %p69
      %p76 = scmp.eq.s32.totalorder %s34, 1
      %p77 = por %p75, %p76
      %p78 = scmp.ne.s32.totalorder %s70, %s73
      %p79 = scmp.eq.s32.totalorder %s34, 0
      %p80 = por %p78, %p79
      %p81 = scmp.ne.s32.totalorder %s70, %s73
      %p82 = scmp.eq.s32.totalorder %s39, 1
      %p83 = por %p81, %p82
      %p84 = scmp.ne.s32.totalorder %s73, %s74
      %p85 = scmp.eq.s32.totalorder %s39, 0
      %p86 = por %p84, %p85
      %p87 = scmp.ne.s32.totalorder %s73, %s74
      %p88 = scmp.eq.s32.totalorder %s40, 1
      %p89 = por %p87, %p88
      %p91 = scmp.ne.s32.totalorder %s74, %s90
      %p92 = scmp.eq.s32.totalorder %s40, 0
      %p93 = por %p91, %p92
      %s95 = sadd.s32 %s94, 1
      %p98 = scmp.eq.s32.totalorder %s34, 1
      %p99 = scmp.ne.s32.totalorder %s94, %s96
      %p100 = scmp.eq.s32.totalorder %s34, 0
      %p101 = por %p99, %p100
      %p102 = scmp.ne.s32.totalorder %s94, %s96
      %p103 = scmp.eq.s32.totalorder %s39, 1
      %p104 = por %p102, %p103
      %p105 = scmp.ne.s32.totalorder %s96, %s97
      %p106 = scmp.eq.s32.totalorder %s39, 0
      %p107 = por %p105, %p106
      %p108 = scmp.ne.s32.totalorder %s96, %s97
      %p109 = scmp.eq.s32.totalorder %s40, 1
      %p110 = por %p108, %p109
      %p112 = scmp.ne.s32.totalorder %s97, %s111
      %p113 = scmp.eq.s32.totalorder %s40, 0
      %p114 = por %p112, %p113
      %s116 = sadd.s32 %s115, 1
      %p119 = scmp.eq.s32.totalorder %s34, 1
      %p120 = scmp.ne.s32.totalorder %s115, %s117
      %p121 = scmp.eq.s32.totalorder %s34, 0
      %p122 = por %p120, %p121
      %p123 = scmp.ne.s32.totalorder %s115, %s117
      %p124 = scmp.eq.s32.totalorder %s39, 1
      %p125 = por %p123, %p124
      %p126 = scmp.ne.s32.totalorder %s117, %s118
      %p127 = scmp.eq.s32.totalorder %s39, 0
      %p128 = por %p126, %p127
      %p129 = scmp.ne.s32.totalorder %s117, %s118
      %p130 = scmp.eq.s32.totalorder %s40, 1
      %p131 = por %p129, %p130
      %p133 = scmp.ne.s32.totalorder %s118, %s132
      %p134 = scmp.eq.s32.totalorder %s40, 0
      %p135 = por %p133, %p134
      %s137 = sadd.s32 %s136, 1
      %p140 = scmp.eq.s32.totalorder %s34, 1
      %p141 = scmp.ne.s32.totalorder %s136, %s138
      %p142 = scmp.eq.s32.totalorder %s34, 0
      %p143 = por %p141, %p142
      %p144 = scmp.ne.s32.totalorder %s136, %s138
      %p145 = scmp.eq.s32.totalorder %s39, 1
      %p146 = por %p144, %p145
      %p147 = scmp.ne.s32.totalorder %s138, %s139
      %p148 = scmp.eq.s32.totalorder %s39, 0
      %p149 = por %p147, %p148
      %p150 = scmp.ne.s32.totalorder %s138, %s139
      %p151 = scmp.eq.s32.totalorder %s40, 1
      %p152 = por %p150, %p151
      %p154 = scmp.ne.s32.totalorder %s139, %s153
      %p155 = scmp.eq.s32.totalorder %s40, 0
      %p156 = por %p154, %p155
      %s158 = sadd.s32 %s157, 1
      %p161 = scmp.eq.s32.totalorder %s34, 1
      %p162 = scmp.ne.s32.totalorder %s157, %s159
      %p163 = scmp.eq.s32.totalorder %s34, 0
      %p164 = por %p162, %p163
      %p165 = scmp.ne.s32.totalorder %s157, %s159
      %p166 = scmp.eq.s32.totalorder %s39, 1
      %p167 = por %p165, %p166
      %p168 = scmp.ne.s32.totalorder %s159, %s160
      %p169 = scmp.eq.s32.totalorder %s39, 0
      %p170 = por %p168, %p169
      %p171 = scmp.ne.s32.totalorder %s159, %s160
      %p172 = scmp.eq.s32.totalorder %s40, 1
      %p173 = por %p171, %p172
      %p175 = scmp.ne.s32.totalorder %s160, %s174
      %p176 = scmp.eq.s32.totalorder %s40, 0
      %p177 = por %p175, %p176
      %s179 = sadd.s32 %s178, 1
      %p182 = scmp.eq.s32.totalorder %s34, 1
      %p183 = scmp.ne.s32.totalorder %s178, %s180
      %p184 = scmp.eq.s32.totalorder %s34, 0
      %p185 = por %p183, %p184
      %p186 = scmp.ne.s32.totalorder %s178, %s180
      %p187 = scmp.eq.s32.totalorder %s39, 1
      %p188 = por %p186, %p187
      %p189 = scmp.ne.s32.totalorder %s180, %s181
      %p190 = scmp.eq.s32.totalorder %s39, 0
      %p191 = por %p189, %p190
      %p192 = scmp.ne.s32.totalorder %s180, %s181
      %p193 = scmp.eq.s32.totalorder %s40, 1
      %p194 = por %p192, %p193
      %p196 = scmp.ne.s32.totalorder %s181, %s195
      %p197 = scmp.eq.s32.totalorder %s40, 0
      %p198 = por %p196, %p197
      %s200 = sadd.s32 %s199, 1
      %p203 = scmp.eq.s32.totalorder %s34, 1
      %p204 = scmp.ne.s32.totalorder %s199, %s201
      %p205 = scmp.eq.s32.totalorder %s34, 0
      %p206 = por %p204, %p205
      %p207 = scmp.ne.s32.totalorder %s199, %s201
      %p208 = scmp.eq.s32.totalorder %s39, 1
      %p209 = por %p207, %p208
      %p210 = scmp.ne.s32.totalorder %s201, %s202
      %p211 = scmp.eq.s32.totalorder %s39, 0
      %p212 = por %p210, %p211
      %p213 = scmp.ne.s32.totalorder %s201, %s202
      %p214 = scmp.eq.s32.totalorder %s40, 1
      %p215 = por %p213, %p214
      %p217 = scmp.ne.s32.totalorder %s202, %s216
      %p218 = scmp.eq.s32.totalorder %s40, 0
      %p219 = por %p217, %p218
      %s221 = sadd.s32 %s220, 1
      %p224 = scmp.eq.s32.totalorder %s34, 1
      %p225 = scmp.ne.s32.totalorder %s220, %s222
      %p226 = scmp.eq.s32.totalorder %s34, 0
      %p227 = por %p225, %p226
      %p228 = scmp.ne.s32.totalorder %s220, %s222
      %p229 = scmp.eq.s32.totalorder %s39, 1
      %p230 = por %p228, %p229
      %p231 = scmp.ne.s32.totalorder %s222, %s223
      %p232 = scmp.eq.s32.totalorder %s39, 0
      %p233 = por %p231, %p232
      %p234 = scmp.ne.s32.totalorder %s222, %s223
      %p235 = scmp.eq.s32.totalorder %s40, 1
      %p236 = por %p234, %p235
      %p238 = scmp.ne.s32.totalorder %s223, %s237
      %p239 = scmp.eq.s32.totalorder %s40, 0
      %p240 = por %p238, %p239
      %s242 = sadd.s32 %s241, 1
      %p245 = scmp.eq.s32.totalorder %s34, 1
      %p246 = scmp.ne.s32.totalorder %s241, %s243
      %p247 = scmp.eq.s32.totalorder %s34, 0
      %p248 = por %p246, %p247
      %p249 = scmp.ne.s32.totalorder %s241, %s243
      %p250 = scmp.eq.s32.totalorder %s39, 1
      %p251 = por %p249, %p250
      %p252 = scmp.ne.s32.totalorder %s243, %s244
      %p253 = scmp.eq.s32.totalorder %s39, 0
      %p254 = por %p252, %p253
      %p255 = scmp.ne.s32.totalorder %s243, %s244
      %p256 = scmp.eq.s32.totalorder %s40, 1
      %p257 = por %p255, %p256
      %p259 = scmp.ne.s32.totalorder %s244, %s258
      %p260 = scmp.eq.s32.totalorder %s40, 0
      %p261 = por %p259, %p260
      %s263 = sadd.s32 %s262, 1
      %p266 = scmp.eq.s32.totalorder %s34, 1
      %p267 = scmp.ne.s32.totalorder %s262, %s264
      %p268 = scmp.eq.s32.totalorder %s34, 0
      %p269 = por %p267, %p268
      %p270 = scmp.ne.s32.totalorder %s262, %s264
      %p271 = scmp.eq.s32.totalorder %s39, 1
      %p272 = por %p270, %p271
      %p273 = scmp.ne.s32.totalorder %s264, %s265
      %p274 = scmp.eq.s32.totalorder %s39, 0
      %p275 = por %p273, %p274
      %p276 = scmp.ne.s32.totalorder %s264, %s265
      %p277 = scmp.eq.s32.totalorder %s40, 1
      %p278 = por %p276, %p277
      %p280 = scmp.ne.s32.totalorder %s265, %s279
      %p281 = scmp.eq.s32.totalorder %s40, 0
      %p282 = por %p280, %p281
      %s284 = sadd.s32 %s283, 1
      %p287 = scmp.eq.s32.totalorder %s34, 1
      %p288 = scmp.ne.s32.totalorder %s283, %s285
      %p289 = scmp.eq.s32.totalorder %s34, 0
      %p290 = por %p288, %p289
      %p291 = scmp.ne.s32.totalorder %s283, %s285
      %p292 = scmp.eq.s32.totalorder %s39, 1
      %p293 = por %p291, %p292
      %p294 = scmp.ne.s32.totalorder %s285, %s286
      %p295 = scmp.eq.s32.totalorder %s39, 0
      %p296 = por %p294, %p295
      %p297 = scmp.ne.s32.totalorder %s285, %s286
      %p298 = scmp.eq.s32.totalorder %s40, 1
      %p299 = por %p297, %p298
      %p301 = scmp.ne.s32.totalorder %s286, %s300
      %p302 = scmp.eq.s32.totalorder %s40, 0
      %p303 = por %p301, %p302
      %s305 = sadd.s32 %s304, 1
      %p308 = scmp.eq.s32.totalorder %s34, 1
      %p309 = scmp.ne.s32.totalorder %s304, %s306
      %p310 = scmp.eq.s32.totalorder %s34, 0
      %p311 = por %p309, %p310
      %p312 = scmp.ne.s32.totalorder %s304, %s306
      %p313 = scmp.eq.s32.totalorder %s39, 1
      %p314 = por %p312, %p313
      %p315 = scmp.ne.s32.totalorder %s306, %s307
      %p316 = scmp.eq.s32.totalorder %s39, 0
      %p317 = por %p315, %p316
      %p318 = scmp.ne.s32.totalorder %s306, %s307
      %p319 = scmp.eq.s32.totalorder %s40, 1
      %p320 = por %p318, %p319
      %p322 = scmp.ne.s32.totalorder %s307, %s321
      %p323 = scmp.eq.s32.totalorder %s40, 0
      %p324 = por %p322, %p323
      %s326 = sadd.s32 %s325, 1
      %p329 = scmp.eq.s32.totalorder %s34, 1
      %p330 = scmp.ne.s32.totalorder %s325, %s327
      %p331 = scmp.eq.s32.totalorder %s34, 0
      %p332 = por %p330, %p331
      %p333 = scmp.ne.s32.totalorder %s325, %s327
      %p334 = scmp.eq.s32.totalorder %s39, 1
      %p335 = por %p333, %p334
      %p336 = scmp.ne.s32.totalorder %s327, %s328
      %p337 = scmp.eq.s32.totalorder %s39, 0
      %p338 = por %p336, %p337
      %p339 = scmp.ne.s32.totalorder %s327, %s328
      %p340 = scmp.eq.s32.totalorder %s40, 1
      %p341 = por %p339, %p340
      %p343 = scmp.ne.s32.totalorder %s328, %s342
      %p344 = scmp.eq.s32.totalorder %s40, 0
      %p345 = por %p343, %p344
      %s347 = sadd.s32 %s346, 1
      %p350 = scmp.eq.s32.totalorder %s34, 1
      %p351 = scmp.ne.s32.totalorder %s346, %s348
      %p352 = scmp.eq.s32.totalorder %s34, 0
      %p353 = por %p351, %p352
      %p354 = scmp.ne.s32.totalorder %s346, %s348
      %p355 = scmp.eq.s32.totalorder %s39, 1
      %p356 = por %p354, %p355
      %p357 = scmp.ne.s32.totalorder %s348, %s349
      %p358 = scmp.eq.s32.totalorder %s39, 0
      %p359 = por %p357, %p358
      %p360 = scmp.ne.s32.totalorder %s348, %s349
      %p361 = scmp.eq.s32.totalorder %s40, 1
      %p362 = por %p360, %p361
      %p364 = scmp.ne.s32.totalorder %s349, %s363
      %p365 = scmp.eq.s32.totalorder %s40, 0
      %p366 = por %p364, %p365
      %s368 = sadd.s32 %s367, 1
      %p371 = scmp.eq.s32.totalorder %s34, 1
      %p372 = scmp.ne.s32.totalorder %s367, %s369
      %p373 = scmp.eq.s32.totalorder %s34, 0
      %p374 = por %p372, %p373
      %p375 = scmp.ne.s32.totalorder %s367, %s369
      %p376 = scmp.eq.s32.totalorder %s39, 1
      %p377 = por %p375, %p376
      %p378 = scmp.ne.s32.totalorder %s369, %s370
      %p379 = scmp.eq.s32.totalorder %s39, 0
      %p380 = por %p378, %p379
      %p381 = scmp.ne.s32.totalorder %s369, %s370
      %p382 = scmp.eq.s32.totalorder %s40, 1
      %p383 = por %p381, %p382
      %p385 = scmp.ne.s32.totalorder %s370, %s384
      %p386 = scmp.eq.s32.totalorder %s40, 0
      %p387 = por %p385, %p386
      %s389 = sadd.s32 %s388, 1
      %p392 = scmp.eq.s32.totalorder %s34, 1
      %p393 = scmp.ne.s32.totalorder %s388, %s390
      %p394 = scmp.eq.s32.totalorder %s34, 0
      %p395 = por %p393, %p394
      %p396 = scmp.ne.s32.totalorder %s388, %s390
      %p397 = scmp.eq.s32.totalorder %s39, 1
      %p398 = por %p396, %p397
      %p399 = scmp.ne.s32.totalorder %s390, %s391
      %p400 = scmp.eq.s32.totalorder %s39, 0
      %p401 = por %p399, %p400
      %p402 = scmp.ne.s32.totalorder %s390, %s391
      %p403 = scmp.eq.s32.totalorder %s40, 1
      %p404 = por %p402, %p403
      %p406 = scmp.ne.s32.totalorder %s391, %s405
      %p407 = scmp.eq.s32.totalorder %s40, 0
      %p408 = por %p406, %p407
      %s410 = sadd.s32 %s409, 1
      %p413 = scmp.eq.s32.totalorder %s34, 1
      %p414 = scmp.ne.s32.totalorder %s409, %s411
      %p415 = scmp.eq.s32.totalorder %s34, 0
      %p416 = por %p414, %p415
      %p417 = scmp.ne.s32.totalorder %s409, %s411
      %p418 = scmp.eq.s32.totalorder %s39, 1
      %p419 = por %p417, %p418
      %p420 = scmp.ne.s32.totalorder %s411, %s412
      %p421 = scmp.eq.s32.totalorder %s39, 0
      %p422 = por %p420, %p421
      %p423 = scmp.ne.s32.totalorder %s411, %s412
      %p424 = scmp.eq.s32.totalorder %s40, 1
      %p425 = por %p423, %p424
      %p427 = scmp.ne.s32.totalorder %s412, %s426
      %p428 = scmp.eq.s32.totalorder %s40, 0
      %p429 = por %p427, %p428
      %s431 = sadd.s32 %s430, 1
      %p434 = scmp.eq.s32.totalorder %s34, 1
      %p435 = scmp.ne.s32.totalorder %s430, %s432
      %p436 = scmp.eq.s32.totalorder %s34, 0
      %p437 = por %p435, %p436
      %p438 = scmp.ne.s32.totalorder %s430, %s432
      %p439 = scmp.eq.s32.totalorder %s39, 1
      %p440 = por %p438, %p439
      %p441 = scmp.ne.s32.totalorder %s432, %s433
      %p442 = scmp.eq.s32.totalorder %s39, 0
      %p443 = por %p441, %p442
      %p444 = scmp.ne.s32.totalorder %s432, %s433
      %p445 = scmp.eq.s32.totalorder %s40, 1
      %p446 = por %p444, %p445
      %p448 = scmp.ne.s32.totalorder %s433, %s447
      %p449 = scmp.eq.s32.totalorder %s40, 0
      %p450 = por %p448, %p449
      %s452 = sadd.s32 %s451, 1
      %p455 = scmp.eq.s32.totalorder %s34, 1
      %p456 = scmp.ne.s32.totalorder %s451, %s453
      %p457 = scmp.eq.s32.totalorder %s34, 0
      %p458 = por %p456, %p457
      %p459 = scmp.ne.s32.totalorder %s451, %s453
      %p460 = scmp.eq.s32.totalorder %s39, 1
      %p461 = por %p459, %p460
      %p462 = scmp.ne.s32.totalorder %s453, %s454
      %p463 = scmp.eq.s32.totalorder %s39, 0
      %p464 = por %p462, %p463
      %p465 = scmp.ne.s32.totalorder %s453, %s454
      %p466 = scmp.eq.s32.totalorder %s40, 1
      %p467 = por %p465, %p466
      %p469 = scmp.ne.s32.totalorder %s454, %s468
      %p470 = scmp.eq.s32.totalorder %s40, 0
      %p471 = por %p469, %p470
      %s473 = sadd.s32 %s472, 1
      %p476 = scmp.eq.s32.totalorder %s34, 1
      %p477 = scmp.ne.s32.totalorder %s472, %s474
      %p478 = scmp.eq.s32.totalorder %s34, 0
      %p479 = por %p477, %p478
      %p480 = scmp.ne.s32.totalorder %s472, %s474
      %p481 = scmp.eq.s32.totalorder %s39, 1
      %p482 = por %p480, %p481
      %p483 = scmp.ne.s32.totalorder %s474, %s475
      %p484 = scmp.eq.s32.totalorder %s39, 0
      %p485 = por %p483, %p484
      %p486 = scmp.ne.s32.totalorder %s474, %s475
      %p487 = scmp.eq.s32.totalorder %s40, 1
      %p488 = por %p486, %p487
      %p490 = scmp.ne.s32.totalorder %s475, %s489
      %p491 = scmp.eq.s32.totalorder %s40, 0
      %p492 = por %p490, %p491
      %s494 = sadd.s32 %s493, 1
      %p497 = scmp.eq.s32.totalorder %s34, 1
      %p498 = scmp.ne.s32.totalorder %s493, %s495
      %p499 = scmp.eq.s32.totalorder %s34, 0
      %p500 = por %p498, %p499
      %p501 = scmp.ne.s32.totalorder %s493, %s495
      %p502 = scmp.eq.s32.totalorder %s39, 1
      %p503 = por %p501, %p502
      %p504 = scmp.ne.s32.totalorder %s495, %s496
      %p505 = scmp.eq.s32.totalorder %s39, 0
      %p506 = por %p504, %p505
      %p507 = scmp.ne.s32.totalorder %s495, %s496
      %p508 = scmp.eq.s32.totalorder %s40, 1
      %p509 = por %p507, %p508
      %p511 = scmp.ne.s32.totalorder %s496, %s510
      %p512 = scmp.eq.s32.totalorder %s40, 0
      %p513 = por %p511, %p512
      %s515 = sadd.s32 %s514, 1
      %p518 = scmp.eq.s32.totalorder %s34, 1
      %p519 = scmp.ne.s32.totalorder %s514, %s516
      %p520 = scmp.eq.s32.totalorder %s34, 0
      %p521 = por %p519, %p520
      %p522 = scmp.ne.s32.totalorder %s514, %s516
      %p523 = scmp.eq.s32.totalorder %s39, 1
      %p524 = por %p522, %p523
      %p525 = scmp.ne.s32.totalorder %s516, %s517
      %p526 = scmp.eq.s32.totalorder %s39, 0
      %p527 = por %p525, %p526
      %p528 = scmp.ne.s32.totalorder %s516, %s517
      %p529 = scmp.eq.s32.totalorder %s40, 1
      %p530 = por %p528, %p529
      %p532 = scmp.ne.s32.totalorder %s517, %s531
      %p533 = scmp.eq.s32.totalorder %s40, 0
      %p534 = por %p532, %p533
      %s536 = sadd.s32 %s535, 1
      %p539 = scmp.eq.s32.totalorder %s34, 1
      %p540 = scmp.ne.s32.totalorder %s535, %s537
      %p541 = scmp.eq.s32.totalorder %s34, 0
      %p542 = por %p540, %p541
      %p543 = scmp.ne.s32.totalorder %s535, %s537
      %p544 = scmp.eq.s32.totalorder %s39, 1
      %p545 = por %p543, %p544
      %p546 = scmp.ne.s32.totalorder %s537, %s538
      %p547 = scmp.eq.s32.totalorder %s39, 0
      %p548 = por %p546, %p547
      %p549 = scmp.ne.s32.totalorder %s537, %s538
      %p550 = scmp.eq.s32.totalorder %s40, 1
      %p551 = por %p549, %p550
      %p553 = scmp.ne.s32.totalorder %s538, %s552
      %p554 = scmp.eq.s32.totalorder %s40, 0
      %p555 = por %p553, %p554
      %s557 = sadd.s32 %s556, 1
      %p560 = scmp.eq.s32.totalorder %s34, 1
      %p561 = scmp.ne.s32.totalorder %s556, %s558
      %p562 = scmp.eq.s32.totalorder %s34, 0
      %p563 = por %p561, %p562
      %p564 = scmp.ne.s32.totalorder %s556, %s558
      %p565 = scmp.eq.s32.totalorder %s39, 1
      %p566 = por %p564, %p565
      %p567 = scmp.ne.s32.totalorder %s558, %s559
      %p568 = scmp.eq.s32.totalorder %s39, 0
      %p569 = por %p567, %p568
      %p570 = scmp.ne.s32.totalorder %s558, %s559
      %p571 = scmp.eq.s32.totalorder %s40, 1
      %p572 = por %p570, %p571
      %p574 = scmp.ne.s32.totalorder %s559, %s573
      %p575 = scmp.eq.s32.totalorder %s40, 0
      %p576 = por %p574, %p575
      %s577 = ssub.s32 %s34, %s41
      %p578 = scmp.eq.s32.totalorder %s577, 0
      %s580 = sadd.s32 %s579, 1
      %s581 = scalar_select %p578, %s579, %s580
      %p584 = pneg %p578
      %p585 = scmp.eq.s32.totalorder %s34, 1
      %p586 = por %p584, %p585
      %p587 = scmp.ne.s32.totalorder %s579, %s582
      %p588 = scmp.eq.s32.totalorder %s34, 0
      %p589 = por %p587, %p588
      %p590 = scmp.ne.s32.totalorder %s579, %s582
      %p591 = scmp.eq.s32.totalorder %s39, 1
      %p592 = por %p590, %p591
      %p593 = scmp.ne.s32.totalorder %s582, %s583
      %p594 = scmp.eq.s32.totalorder %s39, 0
      %p595 = por %p593, %p594
      %p596 = scmp.ne.s32.totalorder %s582, %s583
      %p597 = scmp.eq.s32.totalorder %s40, 1
      %p598 = por %p596, %p597
      %p600 = scmp.ne.s32.totalorder %s583, %s599
      %p601 = scmp.eq.s32.totalorder %s40, 0
      %p602 = por %p600, %p601
      %p603 = scmp.le.s32.totalorder 1, %s34
      %p604 = scmp.lt.s32.totalorder %s34, 3
      %p605 = pnand %p603, %p604
      %p606 = pneg %p605
      // Predicated region
      $region9: #{tpu_custom_call.1} parent=5 // pred_check
        _
      $region10: #{tpu_custom_call.1} parent=5 // pred_check_branch
        %608 = sbr.rel (%p605) target = $region12
      $region11: #{tpu_custom_call.1} parent=5 // pred_region
        %s609 = ssub.s32 %s34, 1
        // Predicated region
        $region13: #{tpu_custom_call.1} parent=11 // pred_check
          %p610 = pneg %p107
        $region14: #{tpu_custom_call.1} parent=11 // pred_check_branch
          %612 = sbr.rel (%p610) target = $region16
        $region15: #{tpu_custom_call.1} parent=11 // pred_region
          _
        $region16: #{tpu_custom_call.1} parent=11 // pred_fallthru
          _
        // Predicated region
        $region17: #{tpu_custom_call.1} parent=11 // pred_check
          %p613 = pneg %p128
        $region18: #{tpu_custom_call.1} parent=11 // pred_check_branch
          %615 = sbr.rel (%p613) target = $region20
        $region19: #{tpu_custom_call.1} parent=11 // pred_region
          _
        $region20: #{tpu_custom_call.1} parent=11 // pred_fallthru
          _
        // Predicated region
        $region21: #{tpu_custom_call.1} parent=11 // pred_check
          %p616 = pneg %p149
        $region22: #{tpu_custom_call.1} parent=11 // pred_check_branch
          %618 = sbr.rel (%p616) target = $region24
        $region23: #{tpu_custom_call.1} parent=11 // pred_region
          _
        $region24: #{tpu_custom_call.1} parent=11 // pred_fallthru
          _
        // Predicated region
        $region25: #{tpu_custom_call.1} parent=11 // pred_check
          %p619 = pneg %p170
        $region26: #{tpu_custom_call.1} parent=11 // pred_check_branch
          %621 = sbr.rel (%p619) target = $region28
        $region27: #{tpu_custom_call.1} parent=11 // pred_region
          _
        $region28: #{tpu_custom_call.1} parent=11 // pred_fallthru
          _
        // Predicated region
        $region29: #{tpu_custom_call.1} parent=11 // pred_check
          %p622 = pneg %p191
        $region30: #{tpu_custom_call.1} parent=11 // pred_check_branch
          %624 = sbr.rel (%p622) target = $region32
        $region31: #{tpu_custom_call.1} parent=11 // pred_region
          _
        $region32: #{tpu_custom_call.1} parent=11 // pred_fallthru
          _
        // Predicated region
        $region33: #{tpu_custom_call.1} parent=11 // pred_check
          %p625 = pneg %p212
        $region34: #{tpu_custom_call.1} parent=11 // pred_check_branch
          %627 = sbr.rel (%p625) target = $region36
        $region35: #{tpu_custom_call.1} parent=11 // pred_region
          _
        $region36: #{tpu_custom_call.1} parent=11 // pred_fallthru
          _
        // Predicated region
        $region37: #{tpu_custom_call.1} parent=11 // pred_check
          %p628 = pneg %p233
        $region38: #{tpu_custom_call.1} parent=11 // pred_check_branch
          %630 = sbr.rel (%p628) target = $region40
        $region39: #{tpu_custom_call.1} parent=11 // pred_region
          _
        $region40: #{tpu_custom_call.1} parent=11 // pred_fallthru
          _
        // Predicated region
        $region41: #{tpu_custom_call.1} parent=11 // pred_check
          %p631 = pneg %p254
        $region42: #{tpu_custom_call.1} parent=11 // pred_check_branch
          %633 = sbr.rel (%p631) target = $region44
        $region43: #{tpu_custom_call.1} parent=11 // pred_region
          _
        $region44: #{tpu_custom_call.1} parent=11 // pred_fallthru
          _
        // Predicated region
        $region45: #{tpu_custom_call.1} parent=11 // pred_check
          %p634 = pneg %p275
        $region46: #{tpu_custom_call.1} parent=11 // pred_check_branch
          %636 = sbr.rel (%p634) target = $region48
        $region47: #{tpu_custom_call.1} parent=11 // pred_region
          _
        $region48: #{tpu_custom_call.1} parent=11 // pred_fallthru
          _
        // Predicated region
        $region49: #{tpu_custom_call.1} parent=11 // pred_check
          %p637 = pneg %p296
        $region50: #{tpu_custom_call.1} parent=11 // pred_check_branch
          %639 = sbr.rel (%p637) target = $region52
        $region51: #{tpu_custom_call.1} parent=11 // pred_region
          _
        $region52: #{tpu_custom_call.1} parent=11 // pred_fallthru
          _
        // Predicated region
        $region53: #{tpu_custom_call.1} parent=11 // pred_check
          %p640 = pneg %p317
        $region54: #{tpu_custom_call.1} parent=11 // pred_check_branch
          %642 = sbr.rel (%p640) target = $region56
        $region55: #{tpu_custom_call.1} parent=11 // pred_region
          _
        $region56: #{tpu_custom_call.1} parent=11 // pred_fallthru
          _
        // Predicated region
        $region57: #{tpu_custom_call.1} parent=11 // pred_check
          %p643 = pneg %p338
        $region58: #{tpu_custom_call.1} parent=11 // pred_check_branch
          %645 = sbr.rel (%p643) target = $region60
        $region59: #{tpu_custom_call.1} parent=11 // pred_region
          _
        $region60: #{tpu_custom_call.1} parent=11 // pred_fallthru
          _
        // Predicated region
        $region61: #{tpu_custom_call.1} parent=11 // pred_check
          %p646 = pneg %p359
        $region62: #{tpu_custom_call.1} parent=11 // pred_check_branch
          %648 = sbr.rel (%p646) target = $region64
        $region63: #{tpu_custom_call.1} parent=11 // pred_region
          _
        $region64: #{tpu_custom_call.1} parent=11 // pred_fallthru
          _
        // Predicated region
        $region65: #{tpu_custom_call.1} parent=11 // pred_check
          %p649 = pneg %p380
        $region66: #{tpu_custom_call.1} parent=11 // pred_check_branch
          %651 = sbr.rel (%p649) target = $region68
        $region67: #{tpu_custom_call.1} parent=11 // pred_region
          _
        $region68: #{tpu_custom_call.1} parent=11 // pred_fallthru
          _
        // Predicated region
        $region69: #{tpu_custom_call.1} parent=11 // pred_check
          %p652 = pneg %p401
        $region70: #{tpu_custom_call.1} parent=11 // pred_check_branch
          %654 = sbr.rel (%p652) target = $region72
        $region71: #{tpu_custom_call.1} parent=11 // pred_region
          _
        $region72: #{tpu_custom_call.1} parent=11 // pred_fallthru
          _
        // Predicated region
        $region73: #{tpu_custom_call.1} parent=11 // pred_check
          %p655 = pneg %p422
        $region74: #{tpu_custom_call.1} parent=11 // pred_check_branch
          %657 = sbr.rel (%p655) target = $region76
        $region75: #{tpu_custom_call.1} parent=11 // pred_region
          _
        $region76: #{tpu_custom_call.1} parent=11 // pred_fallthru
          _
        // Predicated region
        $region77: #{tpu_custom_call.1} parent=11 // pred_check
          %p658 = pneg %p443
        $region78: #{tpu_custom_call.1} parent=11 // pred_check_branch
          %660 = sbr.rel (%p658) target = $region80
        $region79: #{tpu_custom_call.1} parent=11 // pred_region
          _
        $region80: #{tpu_custom_call.1} parent=11 // pred_fallthru
          _
        // Predicated region
        $region81: #{tpu_custom_call.1} parent=11 // pred_check
          %p661 = pneg %p464
        $region82: #{tpu_custom_call.1} parent=11 // pred_check_branch
          %663 = sbr.rel (%p661) target = $region84
        $region83: #{tpu_custom_call.1} parent=11 // pred_region
          _
        $region84: #{tpu_custom_call.1} parent=11 // pred_fallthru
          _
        // Predicated region
        $region85: #{tpu_custom_call.1} parent=11 // pred_check
          %p664 = pneg %p485
        $region86: #{tpu_custom_call.1} parent=11 // pred_check_branch
          %666 = sbr.rel (%p664) target = $region88
        $region87: #{tpu_custom_call.1} parent=11 // pred_region
          _
        $region88: #{tpu_custom_call.1} parent=11 // pred_fallthru
          _
        // Predicated region
        $region89: #{tpu_custom_call.1} parent=11 // pred_check
          %p667 = pneg %p506
        $region90: #{tpu_custom_call.1} parent=11 // pred_check_branch
          %669 = sbr.rel (%p667) target = $region92
        $region91: #{tpu_custom_call.1} parent=11 // pred_region
          _
        $region92: #{tpu_custom_call.1} parent=11 // pred_fallthru
          _
        // Predicated region
        $region93: #{tpu_custom_call.1} parent=11 // pred_check
          %p670 = pneg %p527
        $region94: #{tpu_custom_call.1} parent=11 // pred_check_branch
          %672 = sbr.rel (%p670) target = $region96
        $region95: #{tpu_custom_call.1} parent=11 // pred_region
          _
        $region96: #{tpu_custom_call.1} parent=11 // pred_fallthru
          _
        // Predicated region
        $region97: #{tpu_custom_call.1} parent=11 // pred_check
          %p673 = pneg %p548
        $region98: #{tpu_custom_call.1} parent=11 // pred_check_branch
          %675 = sbr.rel (%p673) target = $region100
        $region99: #{tpu_custom_call.1} parent=11 // pred_region
          _
        $region100: #{tpu_custom_call.1} parent=11 // pred_fallthru
          _
        // Predicated region
        $region101: #{tpu_custom_call.1} parent=11 // pred_check
          %p676 = pneg %p569
        $region102: #{tpu_custom_call.1} parent=11 // pred_check_branch
          %678 = sbr.rel (%p676) target = $region104
        $region103: #{tpu_custom_call.1} parent=11 // pred_region
          _
        $region104: #{tpu_custom_call.1} parent=11 // pred_fallthru
          _
      $region12: #{tpu_custom_call.1} parent=5 // pred_fallthru
        _
      %p679 = scmp.lt.s32.totalorder %s34, 2
      // Predicated region
      $region105: #{tpu_custom_call.1} parent=5 // pred_check
        %p680 = pneg %p679
      $region106: #{tpu_custom_call.1} parent=5 // pred_check_branch
        %682 = sbr.rel (%p680) target = $region108
      $region107: #{tpu_custom_call.1} parent=5 // pred_region
        // Predicated region
        $region109: #{tpu_custom_call.1} parent=107 // pred_check
          %p683 = pneg %p54
        $region110: #{tpu_custom_call.1} parent=107 // pred_check_branch
          %685 = sbr.rel (%p683) target = $region112
        $region111: #{tpu_custom_call.1} parent=107 // pred_region
          %p686 = scmp.lt.s32.totalorder %s34, 1
          %s687 = scalar_select %p686, %s34, 1
          %s688 = smul.addr %s687, 2
          %s689 = smul.addr %s688, 8
          %s690 = scalar_lea.vmem %s0, %s689
        $region112: #{tpu_custom_call.1} parent=107 // pred_fallthru
          _
        // Predicated region
        $region113: #{tpu_custom_call.1} parent=107 // pred_check
          %p691 = pneg %p80
        $region114: #{tpu_custom_call.1} parent=107 // pred_check_branch
          %693 = sbr.rel (%p691) target = $region116
        $region115: #{tpu_custom_call.1} parent=107 // pred_region
          %p694 = scmp.lt.s32.totalorder %s34, 1
          %s695 = scalar_select %p694, %s34, 1
          %s696 = smul.addr %s695, 4
          %s697 = smul.addr %s696, 8
          %s698 = scalar_lea.vmem %s1, %s697
        $region116: #{tpu_custom_call.1} parent=107 // pred_fallthru
          _
      $region108: #{tpu_custom_call.1} parent=5 // pred_fallthru
        _
      %p699 = scmp.le.s32.totalorder 1, %s34
      %p700 = scmp.lt.s32.totalorder %s34, 3
      %p701 = pnand %p699, %p700
      %p702 = pneg %p701
      // Predicated region
      $region117: #{tpu_custom_call.1} parent=5 // pred_check
        _
      $region118: #{tpu_custom_call.1} parent=5 // pred_check_branch
        %704 = sbr.rel (%p701) target = $region120
      $region119: #{tpu_custom_call.1} parent=5 // pred_region
        %s705 = ssub.s32 %s34, 1
        %p706 = scmp.lt.s32.totalorder %s39, 1
        %s707 = scalar_select %p706, %s39, 1
        %s708 = smul.addr %s707, 2
        %s709 = smul.addr %s708, 8
        %s710 = scalar_lea.vmem %s0, %s709
        %p711 = pneg %p60
        %p712 = pneg %p57
        %p713 = scmp.lt.s32.totalorder %s39, 1
        %s714 = scalar_select %p713, %s39, 1
        %s715 = smul.addr %s714, 4
        %s716 = smul.addr %s715, 8
        %s717 = scalar_lea.vmem %s1, %s716
        %p718 = pneg %p86
        %p719 = pneg %p83
        %p720 = pneg %p107
        %p721 = pneg %p104
        %p722 = pneg %p128
        %p723 = pneg %p125
        %p724 = pneg %p149
        %p725 = pneg %p146
        %p726 = pneg %p170
        %p727 = pneg %p167
        %p728 = pneg %p191
        %p729 = pneg %p188
        %p730 = pneg %p212
        %p731 = pneg %p209
        %p732 = pneg %p233
        %p733 = pneg %p230
        %p734 = pneg %p254
        %p735 = pneg %p251
        %p736 = pneg %p275
        %p737 = pneg %p272
        %p738 = pneg %p296
        %p739 = pneg %p293
        %p740 = pneg %p317
        %p741 = pneg %p314
        %p742 = pneg %p338
        %p743 = pneg %p335
        %p744 = pneg %p359
        %p745 = pneg %p356
        %p746 = pneg %p380
        %p747 = pneg %p377
        %p748 = pneg %p401
        %p749 = pneg %p398
        %p750 = pneg %p422
        %p751 = pneg %p419
        %p752 = pneg %p443
        %p753 = pneg %p440
        %p754 = pneg %p464
        %p755 = pneg %p461
        %p756 = pneg %p485
        %p757 = pneg %p482
        %p758 = pneg %p506
        %p759 = pneg %p503
        %p760 = pneg %p527
        %p761 = pneg %p524
        %p762 = pneg %p548
        %p763 = pneg %p545
        %p764 = pneg %p569
        %p765 = pneg %p566
        %p766 = pneg %p595
        %p767 = pneg %p592
        %s768 = sand.u32 %s582, 1
        %s769 = scalar_lea.sflag [#allocation7], %s768
        %s770 = sand.u32 %s582, 1
        %s771 = smul.addr %s770, 64
        %s772 = scalar_lea.vmem [#allocation6], %s771
        %p773 = scmp.lt.s32.totalorder %s39, 1
        %s774 = scalar_select %p773, %s39, 1
        %s775 = smul.addr %s774, 2
        %s776 = smul.addr %s775, 8
        %s777 = scalar_lea.vmem %s0, %s776
        %p778 = scmp.lt.s32.totalorder %s39, 1
        %s779 = scalar_select %p778, %s39, 1
        %s780 = smul.addr %s779, 4
        %s781 = smul.addr %s780, 8
        %s782 = scalar_lea.vmem %s1, %s781
        %v783 = vld [vmem:[%s24] sm:$0xff]
        %v784 = vlaneseq
        %v785 = vand.u32 %v784, 127
        %v786 = vadd.s32 %v785, 128
        %vm787 = vcmp.lt.s32.totalorder %v785, 0
        %v788 = vsub.s32 0, %v785
        %v789 = vsel %vm787, %v788, %v785
        %v790 = vshrl.u32 %v789, 4
        %v791 = vand.u32 %v789, 15
        %v792 = vsub.s32 0, %v791
        %v793 = vsel %vm787, %v792, %v791
        %vm794 = vcmp.lt.s32.totalorder %v786, 0
        %v795 = vsub.s32 0, %v786
        %v796 = vsel %vm794, %v795, %v786
        %v797 = vshrl.u32 %v796, 4
        %v798 = vand.u32 %v796, 15
        %v799 = vsub.s32 0, %v798
        %v800 = vsel %vm794, %v799, %v798
        %vm801 = vcmp.ne.s32.totalorder %v793, 0
        %vm802 = vcmp.ne.s32.totalorder %v800, 0
        %vm803 = vcmp.lt.s32.totalorder %v793, 0
        %vm804 = vcmp.lt.s32.totalorder %v800, 0
        %vm805 = vmand %vm803, %vm801
        %vm806 = vmand %vm804, %vm802
        %v807 = vadd.s32 %v793, 16
        %v808 = vadd.s32 %v800, 16
        %v809 = vsel %vm805, %v807, %v793
        %v810 = vsel %vm806, %v808, %v800
        %vm811 = vcmp.ne.s32.totalorder %v809, 0
        %vm812 = vcmp.ne.s32.totalorder %v810, 0
        %v813 = vsel %vm811, 1, 0
        %v814 = vsel %vm812, 1, 0
        %v815 = vcvt.s32.f32 %v813
        %v816 = vcvt.s32.f32 %v814
        %vm817 = vcmp.ne.s32.totalorder %v809, 15
        %vm818 = vcmp.ne.s32.totalorder %v810, 15
        %v819 = vsel %vm817, 1, 0
        %v820 = vsel %vm818, 1, 0
        %v821 = vcvt.s32.f32 %v819
        %v822 = vcvt.s32.f32 %v820
        %v823 = vld [vmem:[%s777] sm:$0xff]
        %v824 = vld [vmem:[%s777 + $0x8] sm:$0xff]
        %v825 = vld [vmem:[%s2] sm:$0xff]
        %v826 = vld [vmem:[%s3] sm:$0xff]
        %v827 = vadd.f32 %v823, %v824
        %828 = vadd.xlane.f32.xlu0 %v827
        %v829 = vpop.xlane.xlu0 %828
        %vm830 = vcmask 64512
        %v832 = vsel %vm830, %v783, 0
        %834 = vmatprep.subr.mxu0 0.0
        %835 = vmatpush1.msra.mxu0 %v829
        %836 = vmatprep.subr.mxu0 0.0
        %837 = vmatpush1.msra.mxu0 0.0
        %838 = vmatprep.subr.mxu0 0.0
        %839 = vmatpush1.msra.mxu0 0.0
        %840 = vmatprep.subr.mxu0 0.0
        %841 = vmatpush1.msra.mxu0 0.0
        %842 = vmatprep.subr.mxu0 0.0
        %843 = vmatpush1.msra.mxu0 0.0
        %844 = vmatprep.subr.mxu0 0.0
        %845 = vmatpush1.msra.mxu0 0.0
        %846 = vmatprep.subr.mxu0 0.0
        %847 = vmatpush1.msra.mxu0 0.0
        %848 = vmatprep.subr.mxu0 0.0
        %849 = vmatpush1.msra.mxu0 0.0
        %850 = vmatprep.subr.mxu0 0.0
        %851 = vmatpush1.msra.mxu0 0.0
        %852 = vmatprep.subr.mxu0 0.0
        %853 = vmatpush1.msra.mxu0 0.0
        %854 = vmatprep.subr.mxu0 0.0
        %855 = vmatpush1.msra.mxu0 0.0
        %856 = vmatprep.subr.mxu0 0.0
        %857 = vmatpush1.msra.mxu0 0.0
        %858 = vmatprep.subr.mxu0 0.0
        %859 = vmatpush1.msra.mxu0 0.0
        %860 = vmatprep.subr.mxu0 0.0
        %861 = vmatpush1.msra.mxu0 0.0
        %862 = vmatprep.subr.mxu0 0.0
        %863 = vmatpush1.msra.mxu0 0.0
        %864 = vmatprep.subr.mxu0 0.0
        %865 = vmatpush1.msra.mxu0 0.0
        %866 = vmatprep.subr.mxu0 0.0
        %867 = vmatpush1.msra.mxu0 0.0
        %868 = vmatprep.subr.mxu0 0.0
        %869 = vmatpush1.msra.mxu0 0.0
        %870 = vmatprep.subr.mxu0 0.0
        %871 = vmatpush1.msra.mxu0 0.0
        %872 = vmatprep.subr.mxu0 0.0
        %873 = vmatpush1.msra.mxu0 0.0
        %874 = vmatprep.subr.mxu0 0.0
        %875 = vmatpush1.msra.mxu0 0.0
        %876 = vmatprep.subr.mxu0 0.0
        %877 = vmatpush1.msra.mxu0 0.0
        %878 = vmatprep.subr.mxu0 0.0
        %879 = vmatpush1.msra.mxu0 0.0
        %880 = vmatprep.subr.mxu0 0.0
        %881 = vmatpush1.msra.mxu0 0.0
        %882 = vmatprep.subr.mxu0 0.0
        %883 = vmatpush1.msra.mxu0 0.0
        %884 = vmatprep.subr.mxu0 0.0
        %885 = vmatpush1.msra.mxu0 0.0
        %886 = vmatprep.subr.mxu0 0.0
        %887 = vmatpush1.msra.mxu0 0.0
        %888 = vmatprep.subr.mxu0 0.0
        %889 = vmatpush1.msra.mxu0 0.0
        %890 = vmatprep.subr.mxu0 0.0
        %891 = vmatpush1.msra.mxu0 0.0
        %892 = vmatprep.subr.mxu0 0.0
        %893 = vmatpush1.msra.mxu0 0.0
        %894 = vmatprep.subr.mxu0 0.0
        %895 = vmatpush1.msra.mxu0 0.0
        %896 = vmatprep.subr.mxu0 0.0
        %897 = vmatpush1.msra.mxu0 0.0
        %898 = vmatprep.mubr.f32.mxu0 0.0
        %899 = vmatmul.mubr.f32.gmra.mrb[0].mxu0 %v832
        %v900 = vpop.f32.mrb[0].mxu0
        %v901 = vadd.f32 0.0, %v900
        %v902 = vpop.f32.mrb[0].mxu0
        %903 = vdwg.mxu0
        %905 = vset.pattern.permute.xlu0 0
        %906 = vperm.xlu0 %905, %v901
        %v907 = vpop.permute.xlu0 %906
        %v909 = vsub.f32 %v823, %v907
        %v910 = vsub.f32 %v824, %v907
        %v911 = vmul.f32 %v909, %v909
        %v912 = vmul.f32 %v910, %v910
        %v913 = vadd.f32 %v911, %v912
        %914 = vadd.xlane.f32.xlu0 %v913
        %v915 = vpop.xlane.xlu0 %914
        %916 = vmatprep.subr.mxu0 0.0
        %917 = vmatpush1.msra.mxu0 %v915
        %918 = vmatprep.subr.mxu0 0.0
        %919 = vmatpush1.msra.mxu0 0.0
        %920 = vmatprep.subr.mxu0 0.0
        %921 = vmatpush1.msra.mxu0 0.0
        %922 = vmatprep.subr.mxu0 0.0
        %923 = vmatpush1.msra.mxu0 0.0
        %924 = vmatprep.subr.mxu0 0.0
        %925 = vmatpush1.msra.mxu0 0.0
        %926 = vmatprep.subr.mxu0 0.0
        %927 = vmatpush1.msra.mxu0 0.0
        %928 = vmatprep.subr.mxu0 0.0
        %929 = vmatpush1.msra.mxu0 0.0
        %930 = vmatprep.subr.mxu0 0.0
        %931 = vmatpush1.msra.mxu0 0.0
        %932 = vmatprep.subr.mxu0 0.0
        %933 = vmatpush1.msra.mxu0 0.0
        %934 = vmatprep.subr.mxu0 0.0
        %935 = vmatpush1.msra.mxu0 0.0
        %936 = vmatprep.subr.mxu0 0.0
        %937 = vmatpush1.msra.mxu0 0.0
        %938 = vmatprep.subr.mxu0 0.0
        %939 = vmatpush1.msra.mxu0 0.0
        %940 = vmatprep.subr.mxu0 0.0
        %941 = vmatpush1.msra.mxu0 0.0
        %942 = vmatprep.subr.mxu0 0.0
        %943 = vmatpush1.msra.mxu0 0.0
        %944 = vmatprep.subr.mxu0 0.0
        %945 = vmatpush1.msra.mxu0 0.0
        %946 = vmatprep.subr.mxu0 0.0
        %947 = vmatpush1.msra.mxu0 0.0
        %948 = vmatprep.subr.mxu0 0.0
        %949 = vmatpush1.msra.mxu0 0.0
        %950 = vmatprep.subr.mxu0 0.0
        %951 = vmatpush1.msra.mxu0 0.0
        %952 = vmatprep.subr.mxu0 0.0
        %953 = vmatpush1.msra.mxu0 0.0
        %954 = vmatprep.subr.mxu0 0.0
        %955 = vmatpush1.msra.mxu0 0.0
        %956 = vmatprep.subr.mxu0 0.0
        %957 = vmatpush1.msra.mxu0 0.0
        %958 = vmatprep.subr.mxu0 0.0
        %959 = vmatpush1.msra.mxu0 0.0
        %960 = vmatprep.subr.mxu0 0.0
        %961 = vmatpush1.msra.mxu0 0.0
        %962 = vmatprep.subr.mxu0 0.0
        %963 = vmatpush1.msra.mxu0 0.0
        %964 = vmatprep.subr.mxu0 0.0
        %965 = vmatpush1.msra.mxu0 0.0
        %966 = vmatprep.subr.mxu0 0.0
        %967 = vmatpush1.msra.mxu0 0.0
        %968 = vmatprep.subr.mxu0 0.0
        %969 = vmatpush1.msra.mxu0 0.0
        %970 = vmatprep.subr.mxu0 0.0
        %971 = vmatpush1.msra.mxu0 0.0
        %972 = vmatprep.subr.mxu0 0.0
        %973 = vmatpush1.msra.mxu0 0.0
        %974 = vmatprep.subr.mxu0 0.0
        %975 = vmatpush1.msra.mxu0 0.0
        %976 = vmatprep.subr.mxu0 0.0
        %977 = vmatpush1.msra.mxu0 0.0
        %978 = vmatprep.subr.mxu0 0.0
        %979 = vmatpush1.msra.mxu0 0.0
        %980 = vmatprep.mubr.f32.mxu0 0.0
        %981 = vmatmul.mubr.f32.gmra.mrb[0].mxu0 %v832
        %v982 = vpop.f32.mrb[0].mxu0
        %v983 = vadd.f32 1e-06, %v982
        %v984 = vpop.f32.mrb[0].mxu0
        %985 = vdwg.mxu0
        %v986 = vrsqrt.pop %v983
        %v987 = vmul.f32 %v986, %v825
        %989 = vset.pattern.permute.xlu0 0
        %990 = vperm.xlu0 %989, %v987
        %v991 = vpop.permute.xlu0 %990
        %v993 = vmul.f32 %v909, %v991
        %v994 = vmul.f32 %v910, %v991
        %996 = vset.pattern.permute.xlu0 0
        %997 = vperm.xlu0 %996, %v826
        %v998 = vpop.permute.xlu0 %997
        %v1000 = vadd.f32 %v993, %v998
        %v1001 = vadd.f32 %v994, %v998
        %v1002 = vxor.u32 %v1000, 2147483648
        %v1003 = vxor.u32 %v1001, 2147483648
        %v1004 = vmul.f32 %v1002, 1.442695
        %v1005 = vpow.pop %v1004
        %v1006 = vmul.f32 %v1003, 1.442695
        %v1007 = vpow.pop %v1006
        %v1008 = vadd.f32 %v1005, 1.0
        %v1009 = vadd.f32 %v1007, 1.0
        %v1010 = vrcp.pop %v1008
        %v1011 = vmul.f32 1.0, %v1010
        %v1012 = vrcp.pop %v1009
        %v1013 = vmul.f32 1.0, %v1012
        %v1014 = vmul.f32 %v1000, %v1011
        %v1015 = vmul.f32 %v1001, %v1013
        %v1016 = vld [vmem:[%s5] sm:$0xff]
        %vm1017 = vcmask 138240
        %1018 = vst.msk [vmem:[#allocation2] sm:$0xff] %vm1017, 0.0
        %vm1019 = vcmask 277640
        %1020 = vst.msk [vmem:[#allocation2 + $0x10] sm:$0xff] %vm1019, 0.0
        %1023 = vrot.lane.b32.xlu0 %v1014, 17
        %v1024 = vpop.permute.xlu0 %1023
        %1025 = vrot.lane.b32.xlu0 %v1015, 17
        %v1026 = vpop.permute.xlu0 %1025
        %v1027 = vsel %vm1017, %v1024, %v1026
        %vm1031 = vcmask 1047688
        %1032 = vst.msk [vmem:[#allocation2] sm:$0xff] %vm1031, %v1024
        %1033 = vst [vmem:[#allocation2 + $0x8] sm:$0xff] %v1027
        %1034 = vst.msk [vmem:[#allocation2 + $0x10] sm:$0xff] %vm1017, %v1026
        %v1035 = vld [vmem:[#allocation2] sm:$0xff]
        %v1036 = vld [vmem:[#allocation2 + $0x8] sm:$0xff]
        %v1037 = vmul.f32 %v1035, %v815
        %v1038 = vmul.f32 %v1036, %v816
        %1039 = vst [vmem:[#allocation3] sm:$0xff] %v1037
        %1040 = vst [vmem:[#allocation3 + $0x8] sm:$0xff] %v1038
        %v1041 = vld [vmem:[#allocation2] sm:$0xff]
        %v1042 = vld [vmem:[#allocation2 + $0x8] sm:$0xff]
        %v1043 = vld [vmem:[#allocation2 + $0x10] sm:$0xff]
        %1047 = vrot.lane.b32.xlu0 %v1041, 127
        %v1048 = vpop.permute.xlu0 %1047
        %1049 = vrot.lane.b32.xlu0 %v1042, 127
        %v1050 = vpop.permute.xlu0 %1049
        %1051 = vrot.lane.b32.xlu0 %v1043, 127
        %v1052 = vpop.permute.xlu0 %1051
        %vm1053 = vcmask 1039360
        %v1054 = vsel %vm1053, %v1048, %v1050
        %v1055 = vsel %vm1053, %v1050, %v1052
        %1058 = vst [vmem:[#allocation3 + $0x10] sm:$0xff] %v1054
        %1059 = vst [vmem:[#allocation3 + $0x18] sm:$0xff] %v1055
        %v1060 = vld [vmem:[#allocation2] sm:$0xff]
        %v1061 = vld [vmem:[#allocation2 + $0x8] sm:$0xff]
        %v1062 = vld [vmem:[#allocation2 + $0x10] sm:$0xff]
        %1065 = vrot.lane.b32.xlu0 %v821, 2
        %v1066 = vpop.permute.xlu0 %1065
        %1067 = vrot.lane.b32.xlu0 %v822, 2
        %v1068 = vpop.permute.xlu0 %1067
        %vm1069 = vcmask 15360
        %v1070 = vsel %vm1069, %v1066, %v1068
        %v1074 = vmul.f32 %v1060, %v1066
        %v1075 = vmul.f32 %v1061, %v1070
        %v1076 = vmul.f32 %v1062, %v1068
        %1080 = vrot.lane.b32.xlu0 %v1074, 126
        %v1081 = vpop.permute.xlu0 %1080
        %1082 = vrot.lane.b32.xlu0 %v1075, 126
        %v1083 = vpop.permute.xlu0 %1082
        %1084 = vrot.lane.b32.xlu0 %v1076, 126
        %v1085 = vpop.permute.xlu0 %1084
        %vm1086 = vcmask 1031168
        %v1087 = vsel %vm1086, %v1081, %v1083
        %v1088 = vsel %vm1086, %v1083, %v1085
        %1091 = vst [vmem:[#allocation3 + $0x20] sm:$0xff] %v1087
        %1092 = vst [vmem:[#allocation3 + $0x28] sm:$0xff] %v1088
        %v1093 = vld [vmem:[#allocation2] sm:$0xff]
        %v1094 = vld [vmem:[#allocation2 + $0x8] sm:$0xff]
        %v1095 = vld [vmem:[#allocation2 + $0x10] sm:$0xff]
        %1098 = vrot.lane.b32.xlu0 %v815, 16
        %v1099 = vpop.permute.xlu0 %1098
        %1100 = vrot.lane.b32.xlu0 %v816, 16
        %v1101 = vpop.permute.xlu0 %1100
        %vm1102 = vcmask 130048
        %v1103 = vsel %vm1102, %v1099, %v1101
        %v1107 = vmul.f32 %v1093, %v1099
        %v1108 = vmul.f32 %v1094, %v1103
        %v1109 = vmul.f32 %v1095, %v1101
        %1113 = vrot.lane.b32.xlu0 %v1107, 112
        %v1114 = vpop.permute.xlu0 %1113
        %1115 = vrot.lane.b32.xlu0 %v1108, 112
        %v1116 = vpop.permute.xlu0 %1115
        %1117 = vrot.lane.b32.xlu0 %v1109, 112
        %v1118 = vpop.permute.xlu0 %1117
        %vm1119 = vcmask 916480
        %v1120 = vsel %vm1119, %v1114, %v1116
        %v1121 = vsel %vm1119, %v1116, %v1118
        %1124 = vst [vmem:[#allocation3 + $0x30] sm:$0xff] %v1120
        %1125 = vst [vmem:[#allocation3 + $0x38] sm:$0xff] %v1121
        %v1126 = vld [vmem:[#allocation2] sm:$0xff]
        %v1127 = vld [vmem:[#allocation2 + $0x8] sm:$0xff]
        %v1128 = vld [vmem:[#allocation2 + $0x10] sm:$0xff]
        %1132 = vrot.lane.b32.xlu0 %v1126, 111
        %v1133 = vpop.permute.xlu0 %1132
        %1134 = vrot.lane.b32.xlu0 %v1127, 111
        %v1135 = vpop.permute.xlu0 %1134
        %1136 = vrot.lane.b32.xlu0 %v1128, 111
        %v1137 = vpop.permute.xlu0 %1136
        %vm1138 = vcmask 908288
        %v1139 = vsel %vm1138, %v1133, %v1135
        %v1140 = vsel %vm1138, %v1135, %v1137
        %1143 = vst [vmem:[#allocation3 + $0x40] sm:$0xff] %v1139
        %1144 = vst [vmem:[#allocation3 + $0x48] sm:$0xff] %v1140
        %v1145 = vld [vmem:[#allocation2] sm:$0xff]
        %v1146 = vld [vmem:[#allocation2 + $0x8] sm:$0xff]
        %v1147 = vld [vmem:[#allocation2 + $0x10] sm:$0xff]
        %1148 = vrot.lane.b32.xlu0 %v821, 18
        %v1149 = vpop.permute.xlu0 %1148
        %1150 = vrot.lane.b32.xlu0 %v822, 18
        %v1151 = vpop.permute.xlu0 %1150
        %vm1152 = vcmask 146432
        %v1153 = vsel %vm1152, %v1149, %v1151
        %v1157 = vmul.f32 %v1145, %v1149
        %v1158 = vmul.f32 %v1146, %v1153
        %v1159 = vmul.f32 %v1147, %v1151
        %1163 = vrot.lane.b32.xlu0 %v1157, 110
        %v1164 = vpop.permute.xlu0 %1163
        %1165 = vrot.lane.b32.xlu0 %v1158, 110
        %v1166 = vpop.permute.xlu0 %1165
        %1167 = vrot.lane.b32.xlu0 %v1159, 110
        %v1168 = vpop.permute.xlu0 %1167
        %vm1169 = vcmask 900096
        %v1170 = vsel %vm1169, %v1164, %v1166
        %v1171 = vsel %vm1169, %v1166, %v1168
        %1174 = vst [vmem:[#allocation3 + $0x50] sm:$0xff] %v1170
        %1175 = vst [vmem:[#allocation3 + $0x58] sm:$0xff] %v1171
        %v1176 = vld [vmem:[#allocation2] sm:$0xff]
        %v1177 = vld [vmem:[#allocation2 + $0x8] sm:$0xff]
        %v1178 = vld [vmem:[#allocation2 + $0x10] sm:$0xff]
        %1179 = vrot.lane.b32.xlu0 %v815, 32
        %v1180 = vpop.permute.xlu0 %1179
        %1181 = vrot.lane.b32.xlu0 %v816, 32
        %v1182 = vpop.permute.xlu0 %1181
        %vm1183 = vcmask 261120
        %v1184 = vsel %vm1183, %v1180, %v1182
        %v1188 = vmul.f32 %v1176, %v1180
        %v1189 = vmul.f32 %v1177, %v1184
        %v1190 = vmul.f32 %v1178, %v1182
        %1194 = vrot.lane.b32.xlu0 %v1188, 96
        %v1195 = vpop.permute.xlu0 %1194
        %1196 = vrot.lane.b32.xlu0 %v1189, 96
        %v1197 = vpop.permute.xlu0 %1196
        %1198 = vrot.lane.b32.xlu0 %v1190, 96
        %v1199 = vpop.permute.xlu0 %1198
        %vm1200 = vcmask 785408
        %v1201 = vsel %vm1200, %v1195, %v1197
        %v1202 = vsel %vm1200, %v1197, %v1199
        %1205 = vst [vmem:[#allocation3 + $0x60] sm:$0xff] %v1201
        %1206 = vst [vmem:[#allocation3 + $0x68] sm:$0xff] %v1202
        %v1207 = vld [vmem:[#allocation2] sm:$0xff]
        %v1208 = vld [vmem:[#allocation2 + $0x8] sm:$0xff]
        %v1209 = vld [vmem:[#allocation2 + $0x10] sm:$0xff]
        %1213 = vrot.lane.b32.xlu0 %v1207, 95
        %v1214 = vpop.permute.xlu0 %1213
        %1215 = vrot.lane.b32.xlu0 %v1208, 95
        %v1216 = vpop.permute.xlu0 %1215
        %1217 = vrot.lane.b32.xlu0 %v1209, 95
        %v1218 = vpop.permute.xlu0 %1217
        %vm1219 = vcmask 777216
        %v1220 = vsel %vm1219, %v1214, %v1216
        %v1221 = vsel %vm1219, %v1216, %v1218
        %1224 = vst [vmem:[#allocation3 + $0x70] sm:$0xff] %v1220
        %1225 = vst [vmem:[#allocation3 + $0x78] sm:$0xff] %v1221
        %v1226 = vld [vmem:[#allocation2] sm:$0xff]
        %v1227 = vld [vmem:[#allocation2 + $0x8] sm:$0xff]
        %v1228 = vld [vmem:[#allocation2 + $0x10] sm:$0xff]
        %1229 = vrot.lane.b32.xlu0 %v821, 34
        %v1230 = vpop.permute.xlu0 %1229
        %1231 = vrot.lane.b32.xlu0 %v822, 34
        %v1232 = vpop.permute.xlu0 %1231
        %vm1233 = vcmask 277504
        %v1234 = vsel %vm1233, %v1230, %v1232
        %v1238 = vmul.f32 %v1226, %v1230
        %v1239 = vmul.f32 %v1227, %v1234
        %v1240 = vmul.f32 %v1228, %v1232
        %1244 = vrot.lane.b32.xlu0 %v1238, 94
        %v1245 = vpop.permute.xlu0 %1244
        %1246 = vrot.lane.b32.xlu0 %v1239, 94
        %v1247 = vpop.permute.xlu0 %1246
        %1248 = vrot.lane.b32.xlu0 %v1240, 94
        %v1249 = vpop.permute.xlu0 %1248
        %vm1250 = vcmask 769024
        %v1251 = vsel %vm1250, %v1245, %v1247
        %v1252 = vsel %vm1250, %v1247, %v1249
        %1255 = vst [vmem:[#allocation3 + $0x80] sm:$0xff] %v1251
        %1256 = vst [vmem:[#allocation3 + $0x88] sm:$0xff] %v1252
        %v1257 = vld [vmem:[%s4] sm:$0xff]
        %v1258 = vld [vmem:[#allocation3] sm:$0xff]
        %v1259 = vld [vmem:[#allocation3 + $0x8] sm:$0xff]
        %v1260 = vld [vmem:[#allocation3 + $0x10] sm:$0xff]
        %v1261 = vld [vmem:[#allocation3 + $0x18] sm:$0xff]
        %v1262 = vld [vmem:[#allocation3 + $0x20] sm:$0xff]
        %v1263 = vld [vmem:[#allocation3 + $0x28] sm:$0xff]
        %v1264 = vld [vmem:[#allocation3 + $0x30] sm:$0xff]
        %v1265 = vld [vmem:[#allocation3 + $0x38] sm:$0xff]
        %v1266 = vld [vmem:[#allocation3 + $0x40] sm:$0xff]
        %v1267 = vld [vmem:[#allocation3 + $0x48] sm:$0xff]
        %v1268 = vld [vmem:[#allocation3 + $0x50] sm:$0xff]
        %v1269 = vld [vmem:[#allocation3 + $0x58] sm:$0xff]
        %v1270 = vld [vmem:[#allocation3 + $0x60] sm:$0xff]
        %v1271 = vld [vmem:[#allocation3 + $0x68] sm:$0xff]
        %v1272 = vld [vmem:[#allocation3 + $0x70] sm:$0xff]
        %v1273 = vld [vmem:[#allocation3 + $0x78] sm:$0xff]
        %v1274 = vld [vmem:[#allocation3 + $0x80] sm:$0xff]
        %v1275 = vld [vmem:[#allocation3 + $0x88] sm:$0xff]
        %1277 = vset.pattern.permute.xlu0 0
        %1278 = vperm.xlu0 %1277, %v1016
        %v1279 = vpop.permute.xlu0 %1278
        %vm1281 = vcmask 588800
        %v1283 = vsel %vm1281, %v1257, 0
        %1285 = vmatprep.subr.mxu0 %v1259
        %1286 = vmatpush1.msra.mxu0 %v1258
        %1287 = vmatprep.subr.mxu0 %v1261
        %1288 = vmatpush1.msra.mxu0 %v1260
        %1289 = vmatprep.subr.mxu0 %v1263
        %1290 = vmatpush1.msra.mxu0 %v1262
        %1291 = vmatprep.subr.mxu0 %v1265
        %1292 = vmatpush1.msra.mxu0 %v1264
        %1293 = vmatprep.subr.mxu0 %v1267
        %1294 = vmatpush1.msra.mxu0 %v1266
        %1295 = vmatprep.subr.mxu0 %v1269
        %1296 = vmatpush1.msra.mxu0 %v1268
        %1297 = vmatprep.subr.mxu0 %v1271
        %1298 = vmatpush1.msra.mxu0 %v1270
        %1299 = vmatprep.subr.mxu0 %v1273
        %1300 = vmatpush1.msra.mxu0 %v1272
        %1301 = vmatprep.subr.mxu0 %v1275
        %1302 = vmatpush1.msra.mxu0 %v1274
        %1303 = vmatprep.subr.mxu0 0.0
        %1304 = vmatpush1.msra.mxu0 0.0
        %1305 = vmatprep.subr.mxu0 0.0
        %1306 = vmatpush1.msra.mxu0 0.0
        %1307 = vmatprep.subr.mxu0 0.0
        %1308 = vmatpush1.msra.mxu0 0.0
        %1309 = vmatprep.subr.mxu0 0.0
        %1310 = vmatpush1.msra.mxu0 0.0
        %1311 = vmatprep.subr.mxu0 0.0
        %1312 = vmatpush1.msra.mxu0 0.0
        %1313 = vmatprep.subr.mxu0 0.0
        %1314 = vmatpush1.msra.mxu0 0.0
        %1315 = vmatprep.subr.mxu0 0.0
        %1316 = vmatpush1.msra.mxu0 0.0
        %1317 = vmatprep.subr.mxu0 0.0
        %1318 = vmatpush1.msra.mxu0 0.0
        %1319 = vmatprep.subr.mxu0 0.0
        %1320 = vmatpush1.msra.mxu0 0.0
        %1321 = vmatprep.subr.mxu0 0.0
        %1322 = vmatpush1.msra.mxu0 0.0
        %1323 = vmatprep.subr.mxu0 0.0
        %1324 = vmatpush1.msra.mxu0 0.0
        %1325 = vmatprep.subr.mxu0 0.0
        %1326 = vmatpush1.msra.mxu0 0.0
        %1327 = vmatprep.subr.mxu0 0.0
        %1328 = vmatpush1.msra.mxu0 0.0
        %1329 = vmatprep.subr.mxu0 0.0
        %1330 = vmatpush1.msra.mxu0 0.0
        %1331 = vmatprep.subr.mxu0 0.0
        %1332 = vmatpush1.msra.mxu0 0.0
        %1333 = vmatprep.subr.mxu0 0.0
        %1334 = vmatpush1.msra.mxu0 0.0
        %1335 = vmatprep.subr.mxu0 0.0
        %1336 = vmatpush1.msra.mxu0 0.0
        %1337 = vmatprep.subr.mxu0 0.0
        %1338 = vmatpush1.msra.mxu0 0.0
        %1339 = vmatprep.subr.mxu0 0.0
        %1340 = vmatpush1.msra.mxu0 0.0
        %1341 = vmatprep.subr.mxu0 0.0
        %1342 = vmatpush1.msra.mxu0 0.0
        %1343 = vmatprep.subr.mxu0 0.0
        %1344 = vmatpush1.msra.mxu0 0.0
        %1345 = vmatprep.subr.mxu0 0.0
        %1346 = vmatpush1.msra.mxu0 0.0
        %1347 = vmatprep.subr.mxu0 0.0
        %1348 = vmatpush1.msra.mxu0 0.0
        %1349 = vmatprep.mubr.f32.mxu0 0.0
        %1350 = vmatmul.mubr.f32.gmra.mrb[0].mxu0 %v1283
        %v1351 = vpop.f32.mrb[0].mxu0
        %v1352 = vadd.f32 %v1279, %v1351
        %v1353 = vpop.f32.mrb[0].mxu0
        %v1354 = vadd.f32 %v1279, %v1353
        %1355 = vdwg.mxu0
        %v1356 = vld [vmem:[%s6] sm:$0xff]
        %v1357 = vld [vmem:[%s782] sm:$0xff]
        %v1358 = vld [vmem:[%s782 + $0x8] sm:$0xff]
        %v1359 = vld [vmem:[%s782 + $0x10] sm:$0xff]
        %v1360 = vld [vmem:[%s782 + $0x18] sm:$0xff]
        %v1361 = vxor.u32 %v1357, 2147483648
        %v1362 = vxor.u32 %v1358, 2147483648
        %v1363 = vxor.u32 %v1359, 2147483648
        %v1364 = vxor.u32 %v1360, 2147483648
        %v1365 = vmul.f32 %v1361, 1.442695
        %v1366 = vpow.pop %v1365
        %v1367 = vmul.f32 %v1362, 1.442695
        %v1368 = vpow.pop %v1367
        %v1369 = vmul.f32 %v1363, 1.442695
        %v1370 = vpow.pop %v1369
        %v1371 = vmul.f32 %v1364, 1.442695
        %v1372 = vpow.pop %v1371
        %v1373 = vadd.f32 %v1366, 1.0
        %v1374 = vadd.f32 %v1368, 1.0
        %v1375 = vadd.f32 %v1370, 1.0
        %v1376 = vadd.f32 %v1372, 1.0
        %v1377 = vrcp.pop %v1373
        %v1378 = vmul.f32 1.0, %v1377
        %v1379 = vrcp.pop %v1374
        %v1380 = vmul.f32 1.0, %v1379
        %v1381 = vrcp.pop %v1375
        %v1382 = vmul.f32 1.0, %v1381
        %v1383 = vrcp.pop %v1376
        %v1384 = vmul.f32 1.0, %v1383
        %v1385 = vmul.f32 %v1357, %v1378
        %v1386 = vmul.f32 %v1358, %v1380
        %v1387 = vmul.f32 %v1359, %v1382
        %v1388 = vmul.f32 %v1360, %v1384
        %v1389 = vld [vmem:[%s7] sm:$0xff]
        %v1391 = vsel %vm1183, %v1356, 0
        %1393 = vmatprep.subr.mxu0 0.0
        %1394 = vmatpush1.msra.mxu0 %v1385
        %1395 = vmatprep.subr.mxu0 0.0
        %1396 = vmatpush1.msra.mxu0 %v1386
        %1397 = vmatprep.subr.mxu0 0.0
        %1398 = vmatpush1.msra.mxu0 %v1387
        %1399 = vmatprep.subr.mxu0 0.0
        %1400 = vmatpush1.msra.mxu0 %v1388
        %1401 = vmatprep.subr.mxu0 0.0
        %1402 = vmatpush1.msra.mxu0 0.0
        %1403 = vmatprep.subr.mxu0 0.0
        %1404 = vmatpush1.msra.mxu0 0.0
        %1405 = vmatprep.subr.mxu0 0.0
        %1406 = vmatpush1.msra.mxu0 0.0
        %1407 = vmatprep.subr.mxu0 0.0
        %1408 = vmatpush1.msra.mxu0 0.0
        %1409 = vmatprep.subr.mxu0 0.0
        %1410 = vmatpush1.msra.mxu0 0.0
        %1411 = vmatprep.subr.mxu0 0.0
        %1412 = vmatpush1.msra.mxu0 0.0
        %1413 = vmatprep.subr.mxu0 0.0
        %1414 = vmatpush1.msra.mxu0 0.0
        %1415 = vmatprep.subr.mxu0 0.0
        %1416 = vmatpush1.msra.mxu0 0.0
        %1417 = vmatprep.subr.mxu0 0.0
        %1418 = vmatpush1.msra.mxu0 0.0
        %1419 = vmatprep.subr.mxu0 0.0
        %1420 = vmatpush1.msra.mxu0 0.0
        %1421 = vmatprep.subr.mxu0 0.0
        %1422 = vmatpush1.msra.mxu0 0.0
        %1423 = vmatprep.subr.mxu0 0.0
        %1424 = vmatpush1.msra.mxu0 0.0
        %1425 = vmatprep.subr.mxu0 0.0
        %1426 = vmatpush1.msra.mxu0 0.0
        %1427 = vmatprep.subr.mxu0 0.0
        %1428 = vmatpush1.msra.mxu0 0.0
        %1429 = vmatprep.subr.mxu0 0.0
        %1430 = vmatpush1.msra.mxu0 0.0
        %1431 = vmatprep.subr.mxu0 0.0
        %1432 = vmatpush1.msra.mxu0 0.0
        %1433 = vmatprep.subr.mxu0 0.0
        %1434 = vmatpush1.msra.mxu0 0.0
        %1435 = vmatprep.subr.mxu0 0.0
        %1436 = vmatpush1.msra.mxu0 0.0
        %1437 = vmatprep.subr.mxu0 0.0
        %1438 = vmatpush1.msra.mxu0 0.0
        %1439 = vmatprep.subr.mxu0 0.0
        %1440 = vmatpush1.msra.mxu0 0.0
        %1441 = vmatprep.subr.mxu0 0.0
        %1442 = vmatpush1.msra.mxu0 0.0
        %1443 = vmatprep.subr.mxu0 0.0
        %1444 = vmatpush1.msra.mxu0 0.0
        %1445 = vmatprep.subr.mxu0 0.0
        %1446 = vmatpush1.msra.mxu0 0.0
        %1447 = vmatprep.subr.mxu0 0.0
        %1448 = vmatpush1.msra.mxu0 0.0
        %1449 = vmatprep.subr.mxu0 0.0
        %1450 = vmatpush1.msra.mxu0 0.0
        %1451 = vmatprep.subr.mxu0 0.0
        %1452 = vmatpush1.msra.mxu0 0.0
        %1453 = vmatprep.subr.mxu0 0.0
        %1454 = vmatpush1.msra.mxu0 0.0
        %1455 = vmatprep.subr.mxu0 0.0
        %1456 = vmatpush1.msra.mxu0 0.0
        %1457 = vmatprep.mubr.f32.mxu0 0.0
        %1458 = vmatmul.mubr.f32.gmra.mrb[0].mxu0 %v1391
        %v1459 = vpop.f32.mrb[0].mxu0
        %v1460 = vadd.f32 %v1389, %v1459
        %v1461 = vpop.f32.mrb[0].mxu0
        %1462 = vdwg.mxu0
        %1464 = vset.pattern.permute.xlu0 0
        %1465 = vperm.xlu0 %1464, %v1460
        %v1466 = vpop.permute.xlu0 %1465
        %v1468 = vadd.f32 %v1352, %v1466
        %v1469 = vadd.f32 %v1354, %v1466
        %v1470 = vld [vmem:[%s8] sm:$0xff]
        %v1471 = vld [vmem:[%s9] sm:$0xff]
        %v1472 = vadd.f32 %v1468, %v1469
        %1473 = vadd.xlane.f32.xlu0 %v1472
        %v1474 = vpop.xlane.xlu0 %1473
        %1475 = vmatprep.subr.mxu0 0.0
        %1476 = vmatpush1.msra.mxu0 %v1474
        %1477 = vmatprep.subr.mxu0 0.0
        %1478 = vmatpush1.msra.mxu0 0.0
        %1479 = vmatprep.subr.mxu0 0.0
        %1480 = vmatpush1.msra.mxu0 0.0
        %1481 = vmatprep.subr.mxu0 0.0
        %1482 = vmatpush1.msra.mxu0 0.0
        %1483 = vmatprep.subr.mxu0 0.0
        %1484 = vmatpush1.msra.mxu0 0.0
        %1485 = vmatprep.subr.mxu0 0.0
        %1486 = vmatpush1.msra.mxu0 0.0
        %1487 = vmatprep.subr.mxu0 0.0
        %1488 = vmatpush1.msra.mxu0 0.0
        %1489 = vmatprep.subr.mxu0 0.0
        %1490 = vmatpush1.msra.mxu0 0.0
        %1491 = vmatprep.subr.mxu0 0.0
        %1492 = vmatpush1.msra.mxu0 0.0
        %1493 = vmatprep.subr.mxu0 0.0
        %1494 = vmatpush1.msra.mxu0 0.0
        %1495 = vmatprep.subr.mxu0 0.0
        %1496 = vmatpush1.msra.mxu0 0.0
        %1497 = vmatprep.subr.mxu0 0.0
        %1498 = vmatpush1.msra.mxu0 0.0
        %1499 = vmatprep.subr.mxu0 0.0
        %1500 = vmatpush1.msra.mxu0 0.0
        %1501 = vmatprep.subr.mxu0 0.0
        %1502 = vmatpush1.msra.mxu0 0.0
        %1503 = vmatprep.subr.mxu0 0.0
        %1504 = vmatpush1.msra.mxu0 0.0
        %1505 = vmatprep.subr.mxu0 0.0
        %1506 = vmatpush1.msra.mxu0 0.0
        %1507 = vmatprep.subr.mxu0 0.0
        %1508 = vmatpush1.msra.mxu0 0.0
        %1509 = vmatprep.subr.mxu0 0.0
        %1510 = vmatpush1.msra.mxu0 0.0
        %1511 = vmatprep.subr.mxu0 0.0
        %1512 = vmatpush1.msra.mxu0 0.0
        %1513 = vmatprep.subr.mxu0 0.0
        %1514 = vmatpush1.msra.mxu0 0.0
        %1515 = vmatprep.subr.mxu0 0.0
        %1516 = vmatpush1.msra.mxu0 0.0
        %1517 = vmatprep.subr.mxu0 0.0
        %1518 = vmatpush1.msra.mxu0 0.0
        %1519 = vmatprep.subr.mxu0 0.0
        %1520 = vmatpush1.msra.mxu0 0.0
        %1521 = vmatprep.subr.mxu0 0.0
        %1522 = vmatpush1.msra.mxu0 0.0
        %1523 = vmatprep.subr.mxu0 0.0
        %1524 = vmatpush1.msra.mxu0 0.0
        %1525 = vmatprep.subr.mxu0 0.0
        %1526 = vmatpush1.msra.mxu0 0.0
        %1527 = vmatprep.subr.mxu0 0.0
        %1528 = vmatpush1.msra.mxu0 0.0
        %1529 = vmatprep.subr.mxu0 0.0
        %1530 = vmatpush1.msra.mxu0 0.0
        %1531 = vmatprep.subr.mxu0 0.0
        %1532 = vmatpush1.msra.mxu0 0.0
        %1533 = vmatprep.subr.mxu0 0.0
        %1534 = vmatpush1.msra.mxu0 0.0
        %1535 = vmatprep.subr.mxu0 0.0
        %1536 = vmatpush1.msra.mxu0 0.0
        %1537 = vmatprep.subr.mxu0 0.0
        %1538 = vmatpush1.msra.mxu0 0.0
        %1539 = vmatprep.mubr.f32.mxu0 0.0
        %1540 = vmatmul.mubr.f32.gmra.mrb[0].mxu0 %v832
        %v1541 = vpop.f32.mrb[0].mxu0
        %v1542 = vadd.f32 0.0, %v1541
        %v1543 = vpop.f32.mrb[0].mxu0
        %1544 = vdwg.mxu0
        %1546 = vset.pattern.permute.xlu0 0
        %1547 = vperm.xlu0 %1546, %v1542
        %v1548 = vpop.permute.xlu0 %1547
        %v1550 = vsub.f32 %v1468, %v1548
        %v1551 = vsub.f32 %v1469, %v1548
        %v1552 = vmul.f32 %v1550, %v1550
        %v1553 = vmul.f32 %v1551, %v1551
        %v1554 = vadd.f32 %v1552, %v1553
        %1555 = vadd.xlane.f32.xlu0 %v1554
        %v1556 = vpop.xlane.xlu0 %1555
        %1557 = vmatprep.subr.mxu0 0.0
        %1558 = vmatpush1.msra.mxu0 %v1556
        %1559 = vmatprep.subr.mxu0 0.0
        %1560 = vmatpush1.msra.mxu0 0.0
        %1561 = vmatprep.subr.mxu0 0.0
        %1562 = vmatpush1.msra.mxu0 0.0
        %1563 = vmatprep.subr.mxu0 0.0
        %1564 = vmatpush1.msra.mxu0 0.0
        %1565 = vmatprep.subr.mxu0 0.0
        %1566 = vmatpush1.msra.mxu0 0.0
        %1567 = vmatprep.subr.mxu0 0.0
        %1568 = vmatpush1.msra.mxu0 0.0
        %1569 = vmatprep.subr.mxu0 0.0
        %1570 = vmatpush1.msra.mxu0 0.0
        %1571 = vmatprep.subr.mxu0 0.0
        %1572 = vmatpush1.msra.mxu0 0.0
        %1573 = vmatprep.subr.mxu0 0.0
        %1574 = vmatpush1.msra.mxu0 0.0
        %1575 = vmatprep.subr.mxu0 0.0
        %1576 = vmatpush1.msra.mxu0 0.0
        %1577 = vmatprep.subr.mxu0 0.0
        %1578 = vmatpush1.msra.mxu0 0.0
        %1579 = vmatprep.subr.mxu0 0.0
        %1580 = vmatpush1.msra.mxu0 0.0
        %1581 = vmatprep.subr.mxu0 0.0
        %1582 = vmatpush1.msra.mxu0 0.0
        %1583 = vmatprep.subr.mxu0 0.0
        %1584 = vmatpush1.msra.mxu0 0.0
        %1585 = vmatprep.subr.mxu0 0.0
        %1586 = vmatpush1.msra.mxu0 0.0
        %1587 = vmatprep.subr.mxu0 0.0
        %1588 = vmatpush1.msra.mxu0 0.0
        %1589 = vmatprep.subr.mxu0 0.0
        %1590 = vmatpush1.msra.mxu0 0.0
        %1591 = vmatprep.subr.mxu0 0.0
        %1592 = vmatpush1.msra.mxu0 0.0
        %1593 = vmatprep.subr.mxu0 0.0
        %1594 = vmatpush1.msra.mxu0 0.0
        %1595 = vmatprep.subr.mxu0 0.0
        %1596 = vmatpush1.msra.mxu0 0.0
        %1597 = vmatprep.subr.mxu0 0.0
        %1598 = vmatpush1.msra.mxu0 0.0
        %1599 = vmatprep.subr.mxu0 0.0
        %1600 = vmatpush1.msra.mxu0 0.0
        %1601 = vmatprep.subr.mxu0 0.0
        %1602 = vmatpush1.msra.mxu0 0.0
        %1603 = vmatprep.subr.mxu0 0.0
        %1604 = vmatpush1.msra.mxu0 0.0
        %1605 = vmatprep.subr.mxu0 0.0
        %1606 = vmatpush1.msra.mxu0 0.0
        %1607 = vmatprep.subr.mxu0 0.0
        %1608 = vmatpush1.msra.mxu0 0.0
        %1609 = vmatprep.subr.mxu0 0.0
        %1610 = vmatpush1.msra.mxu0 0.0
        %1611 = vmatprep.subr.mxu0 0.0
        %1612 = vmatpush1.msra.mxu0 0.0
        %1613 = vmatprep.subr.mxu0 0.0
        %1614 = vmatpush1.msra.mxu0 0.0
        %1615 = vmatprep.subr.mxu0 0.0
        %1616 = vmatpush1.msra.mxu0 0.0
        %1617 = vmatprep.subr.mxu0 0.0
        %1618 = vmatpush1.msra.mxu0 0.0
        %1619 = vmatprep.subr.mxu0 0.0
        %1620 = vmatpush1.msra.mxu0 0.0
        %1621 = vmatprep.mubr.f32.mxu0 0.0
        %1622 = vmatmul.mubr.f32.gmra.mrb[0].mxu0 %v832
        %v1623 = vpop.f32.mrb[0].mxu0
        %v1624 = vadd.f32 1e-06, %v1623
        %v1625 = vpop.f32.mrb[0].mxu0
        %1626 = vdwg.mxu0
        %v1627 = vrsqrt.pop %v1624
        %v1628 = vmul.f32 %v1627, %v1470
        %1630 = vset.pattern.permute.xlu0 0
        %1631 = vperm.xlu0 %1630, %v1628
        %v1632 = vpop.permute.xlu0 %1631
        %v1634 = vmul.f32 %v1550, %v1632
        %v1635 = vmul.f32 %v1551, %v1632
        %1637 = vset.pattern.permute.xlu0 0
        %1638 = vperm.xlu0 %1637, %v1471
        %v1639 = vpop.permute.xlu0 %1638
        %v1641 = vadd.f32 %v1634, %v1639
        %v1642 = vadd.f32 %v1635, %v1639
        %v1643 = vxor.u32 %v1641, 2147483648
        %v1644 = vxor.u32 %v1642, 2147483648
        %v1645 = vmul.f32 %v1643, 1.442695
        %v1646 = vpow.pop %v1645
        %v1647 = vmul.f32 %v1644, 1.442695
        %v1648 = vpow.pop %v1647
        %v1649 = vadd.f32 %v1646, 1.0
        %v1650 = vadd.f32 %v1648, 1.0
        %v1651 = vrcp.pop %v1649
        %v1652 = vmul.f32 1.0, %v1651
        %v1653 = vrcp.pop %v1650
        %v1654 = vmul.f32 1.0, %v1653
        %v1655 = vmul.f32 %v1641, %v1652
        %v1656 = vmul.f32 %v1642, %v1654
        %v1657 = vld [vmem:[%s11] sm:$0xff]
        %1658 = vst.msk [vmem:[#allocation2] sm:$0xff] %vm1017, 0.0
        %1659 = vst.msk [vmem:[#allocation2 + $0x10] sm:$0xff] %vm1019, 0.0
        %1662 = vrot.lane.b32.xlu0 %v1655, 17
        %v1663 = vpop.permute.xlu0 %1662
        %1664 = vrot.lane.b32.xlu0 %v1656, 17
        %v1665 = vpop.permute.xlu0 %1664
        %v1666 = vsel %vm1017, %v1663, %v1665
        %1670 = vst.msk [vmem:[#allocation2] sm:$0xff] %vm1031, %v1663
        %1671 = vst [vmem:[#allocation2 + $0x8] sm:$0xff] %v1666
        %1672 = vst.msk [vmem:[#allocation2 + $0x10] sm:$0xff] %vm1017, %v1665
        %v1673 = vld [vmem:[#allocation2] sm:$0xff]
        %v1674 = vld [vmem:[#allocation2 + $0x8] sm:$0xff]
        %v1675 = vmul.f32 %v1673, %v815
        %v1676 = vmul.f32 %v1674, %v816
        %1677 = vst [vmem:[#allocation3] sm:$0xff] %v1675
        %1678 = vst [vmem:[#allocation3 + $0x8] sm:$0xff] %v1676
        %v1679 = vld [vmem:[#allocation2] sm:$0xff]
        %v1680 = vld [vmem:[#allocation2 + $0x8] sm:$0xff]
        %v1681 = vld [vmem:[#allocation2 + $0x10] sm:$0xff]
        %1685 = vrot.lane.b32.xlu0 %v1679, 127
        %v1686 = vpop.permute.xlu0 %1685
        %1687 = vrot.lane.b32.xlu0 %v1680, 127
        %v1688 = vpop.permute.xlu0 %1687
        %1689 = vrot.lane.b32.xlu0 %v1681, 127
        %v1690 = vpop.permute.xlu0 %1689
        %v1691 = vsel %vm1053, %v1686, %v1688
        %v1692 = vsel %vm1053, %v1688, %v1690
        %1695 = vst [vmem:[#allocation3 + $0x10] sm:$0xff] %v1691
        %1696 = vst [vmem:[#allocation3 + $0x18] sm:$0xff] %v1692
        %v1697 = vld [vmem:[#allocation2] sm:$0xff]
        %v1698 = vld [vmem:[#allocation2 + $0x8] sm:$0xff]
        %v1699 = vld [vmem:[#allocation2 + $0x10] sm:$0xff]
        %v1700 = vmul.f32 %v1697, %v1066
        %v1701 = vmul.f32 %v1698, %v1070
        %v1702 = vmul.f32 %v1699, %v1068
        %1706 = vrot.lane.b32.xlu0 %v1700, 126
        %v1707 = vpop.permute.xlu0 %1706
        %1708 = vrot.lane.b32.xlu0 %v1701, 126
        %v1709 = vpop.permute.xlu0 %1708
        %1710 = vrot.lane.b32.xlu0 %v1702, 126
        %v1711 = vpop.permute.xlu0 %1710
        %v1712 = vsel %vm1086, %v1707, %v1709
        %v1713 = vsel %vm1086, %v1709, %v1711
        %1716 = vst [vmem:[#allocation3 + $0x20] sm:$0xff] %v1712
        %1717 = vst [vmem:[#allocation3 + $0x28] sm:$0xff] %v1713
        %v1718 = vld [vmem:[#allocation2] sm:$0xff]
        %v1719 = vld [vmem:[#allocation2 + $0x8] sm:$0xff]
        %v1720 = vld [vmem:[#allocation2 + $0x10] sm:$0xff]
        %v1721 = vmul.f32 %v1718, %v1099
        %v1722 = vmul.f32 %v1719, %v1103
        %v1723 = vmul.f32 %v1720, %v1101
        %1727 = vrot.lane.b32.xlu0 %v1721, 112
        %v1728 = vpop.permute.xlu0 %1727
        %1729 = vrot.lane.b32.xlu0 %v1722, 112
        %v1730 = vpop.permute.xlu0 %1729
        %1731 = vrot.lane.b32.xlu0 %v1723, 112
        %v1732 = vpop.permute.xlu0 %1731
        %v1733 = vsel %vm1119, %v1728, %v1730
        %v1734 = vsel %vm1119, %v1730, %v1732
        %1737 = vst [vmem:[#allocation3 + $0x30] sm:$0xff] %v1733
        %1738 = vst [vmem:[#allocation3 + $0x38] sm:$0xff] %v1734
        %v1739 = vld [vmem:[#allocation2] sm:$0xff]
        %v1740 = vld [vmem:[#allocation2 + $0x8] sm:$0xff]
        %v1741 = vld [vmem:[#allocation2 + $0x10] sm:$0xff]
        %1745 = vrot.lane.b32.xlu0 %v1739, 111
        %v1746 = vpop.permute.xlu0 %1745
        %1747 = vrot.lane.b32.xlu0 %v1740, 111
        %v1748 = vpop.permute.xlu0 %1747
        %1749 = vrot.lane.b32.xlu0 %v1741, 111
        %v1750 = vpop.permute.xlu0 %1749
        %v1751 = vsel %vm1138, %v1746, %v1748
        %v1752 = vsel %vm1138, %v1748, %v1750
        %1755 = vst [vmem:[#allocation3 + $0x40] sm:$0xff] %v1751
        %1756 = vst [vmem:[#allocation3 + $0x48] sm:$0xff] %v1752
        %v1757 = vld [vmem:[#allocation2] sm:$0xff]
        %v1758 = vld [vmem:[#allocation2 + $0x8] sm:$0xff]
        %v1759 = vld [vmem:[#allocation2 + $0x10] sm:$0xff]
        %v1760 = vmul.f32 %v1757, %v1149
        %v1761 = vmul.f32 %v1758, %v1153
        %v1762 = vmul.f32 %v1759, %v1151
        %1766 = vrot.lane.b32.xlu0 %v1760, 110
        %v1767 = vpop.permute.xlu0 %1766
        %1768 = vrot.lane.b32.xlu0 %v1761, 110
        %v1769 = vpop.permute.xlu0 %1768
        %1770 = vrot.lane.b32.xlu0 %v1762, 110
        %v1771 = vpop.permute.xlu0 %1770
        %v1772 = vsel %vm1169, %v1767, %v1769
        %v1773 = vsel %vm1169, %v1769, %v1771
        %1776 = vst [vmem:[#allocation3 + $0x50] sm:$0xff] %v1772
        %1777 = vst [vmem:[#allocation3 + $0x58] sm:$0xff] %v1773
        %v1778 = vld [vmem:[#allocation2] sm:$0xff]
        %v1779 = vld [vmem:[#allocation2 + $0x8] sm:$0xff]
        %v1780 = vld [vmem:[#allocation2 + $0x10] sm:$0xff]
        %v1781 = vmul.f32 %v1778, %v1180
        %v1782 = vmul.f32 %v1779, %v1184
        %v1783 = vmul.f32 %v1780, %v1182
        %1787 = vrot.lane.b32.xlu0 %v1781, 96
        %v1788 = vpop.permute.xlu0 %1787
        %1789 = vrot.lane.b32.xlu0 %v1782, 96
        %v1790 = vpop.permute.xlu0 %1789
        %1791 = vrot.lane.b32.xlu0 %v1783, 96
        %v1792 = vpop.permute.xlu0 %1791
        %v1793 = vsel %vm1200, %v1788, %v1790
        %v1794 = vsel %vm1200, %v1790, %v1792
        %1797 = vst [vmem:[#allocation3 + $0x60] sm:$0xff] %v1793
        %1798 = vst [vmem:[#allocation3 + $0x68] sm:$0xff] %v1794
        %v1799 = vld [vmem:[#allocation2] sm:$0xff]
        %v1800 = vld [vmem:[#allocation2 + $0x8] sm:$0xff]
        %v1801 = vld [vmem:[#allocation2 + $0x10] sm:$0xff]
        %1805 = vrot.lane.b32.xlu0 %v1799, 95
        %v1806 = vpop.permute.xlu0 %1805
        %1807 = vrot.lane.b32.xlu0 %v1800, 95
        %v1808 = vpop.permute.xlu0 %1807
        %1809 = vrot.lane.b32.xlu0 %v1801, 95
        %v1810 = vpop.permute.xlu0 %1809
        %v1811 = vsel %vm1219, %v1806, %v1808
        %v1812 = vsel %vm1219, %v1808, %v1810
        %1815 = vst [vmem:[#allocation3 + $0x70] sm:$0xff] %v1811
        %1816 = vst [vmem:[#allocation3 + $0x78] sm:$0xff] %v1812
        %v1817 = vld [vmem:[#allocation2] sm:$0xff]
        %v1818 = vld [vmem:[#allocation2 + $0x8] sm:$0xff]
        %v1819 = vld [vmem:[#allocation2 + $0x10] sm:$0xff]
        %v1820 = vmul.f32 %v1817, %v1230
        %v1821 = vmul.f32 %v1818, %v1234
        %v1822 = vmul.f32 %v1819, %v1232
        %1826 = vrot.lane.b32.xlu0 %v1820, 94
        %v1827 = vpop.permute.xlu0 %1826
        %1828 = vrot.lane.b32.xlu0 %v1821, 94
        %v1829 = vpop.permute.xlu0 %1828
        %1830 = vrot.lane.b32.xlu0 %v1822, 94
        %v1831 = vpop.permute.xlu0 %1830
        %v1832 = vsel %vm1250, %v1827, %v1829
        %v1833 = vsel %vm1250, %v1829, %v1831
        %1836 = vst [vmem:[#allocation3 + $0x80] sm:$0xff] %v1832
        %1837 = vst [vmem:[#allocation3 + $0x88] sm:$0xff] %v1833
        %v1838 = vld [vmem:[%s10] sm:$0xff]
        %v1839 = vld [vmem:[#allocation3] sm:$0xff]
        %v1840 = vld [vmem:[#allocation3 + $0x8] sm:$0xff]
        %v1841 = vld [vmem:[#allocation3 + $0x10] sm:$0xff]
        %v1842 = vld [vmem:[#allocation3 + $0x18] sm:$0xff]
        %v1843 = vld [vmem:[#allocation3 + $0x20] sm:$0xff]
        %v1844 = vld [vmem:[#allocation3 + $0x28] sm:$0xff]
        %v1845 = vld [vmem:[#allocation3 + $0x30] sm:$0xff]
        %v1846 = vld [vmem:[#allocation3 + $0x38] sm:$0xff]
        %v1847 = vld [vmem:[#allocation3 + $0x40] sm:$0xff]
        %v1848 = vld [vmem:[#allocation3 + $0x48] sm:$0xff]
        %v1849 = vld [vmem:[#allocation3 + $0x50] sm:$0xff]
        %v1850 = vld [vmem:[#allocation3 + $0x58] sm:$0xff]
        %v1851 = vld [vmem:[#allocation3 + $0x60] sm:$0xff]
        %v1852 = vld [vmem:[#allocation3 + $0x68] sm:$0xff]
        %v1853 = vld [vmem:[#allocation3 + $0x70] sm:$0xff]
        %v1854 = vld [vmem:[#allocation3 + $0x78] sm:$0xff]
        %v1855 = vld [vmem:[#allocation3 + $0x80] sm:$0xff]
        %v1856 = vld [vmem:[#allocation3 + $0x88] sm:$0xff]
        %1858 = vset.pattern.permute.xlu0 0
        %1859 = vperm.xlu0 %1858, %v1657
        %v1860 = vpop.permute.xlu0 %1859
        %v1863 = vsel %vm1281, %v1838, 0
        %1865 = vmatprep.subr.mxu0 %v1840
        %1866 = vmatpush1.msra.mxu0 %v1839
        %1867 = vmatprep.subr.mxu0 %v1842
        %1868 = vmatpush1.msra.mxu0 %v1841
        %1869 = vmatprep.subr.mxu0 %v1844
        %1870 = vmatpush1.msra.mxu0 %v1843
        %1871 = vmatprep.subr.mxu0 %v1846
        %1872 = vmatpush1.msra.mxu0 %v1845
        %1873 = vmatprep.subr.mxu0 %v1848
        %1874 = vmatpush1.msra.mxu0 %v1847
        %1875 = vmatprep.subr.mxu0 %v1850
        %1876 = vmatpush1.msra.mxu0 %v1849
        %1877 = vmatprep.subr.mxu0 %v1852
        %1878 = vmatpush1.msra.mxu0 %v1851
        %1879 = vmatprep.subr.mxu0 %v1854
        %1880 = vmatpush1.msra.mxu0 %v1853
        %1881 = vmatprep.subr.mxu0 %v1856
        %1882 = vmatpush1.msra.mxu0 %v1855
        %1883 = vmatprep.subr.mxu0 0.0
        %1884 = vmatpush1.msra.mxu0 0.0
        %1885 = vmatprep.subr.mxu0 0.0
        %1886 = vmatpush1.msra.mxu0 0.0
        %1887 = vmatprep.subr.mxu0 0.0
        %1888 = vmatpush1.msra.mxu0 0.0
        %1889 = vmatprep.subr.mxu0 0.0
        %1890 = vmatpush1.msra.mxu0 0.0
        %1891 = vmatprep.subr.mxu0 0.0
        %1892 = vmatpush1.msra.mxu0 0.0
        %1893 = vmatprep.subr.mxu0 0.0
        %1894 = vmatpush1.msra.mxu0 0.0
        %1895 = vmatprep.subr.mxu0 0.0
        %1896 = vmatpush1.msra.mxu0 0.0
        %1897 = vmatprep.subr.mxu0 0.0
        %1898 = vmatpush1.msra.mxu0 0.0
        %1899 = vmatprep.subr.mxu0 0.0
        %1900 = vmatpush1.msra.mxu0 0.0
        %1901 = vmatprep.subr.mxu0 0.0
        %1902 = vmatpush1.msra.mxu0 0.0
        %1903 = vmatprep.subr.mxu0 0.0
        %1904 = vmatpush1.msra.mxu0 0.0
        %1905 = vmatprep.subr.mxu0 0.0
        %1906 = vmatpush1.msra.mxu0 0.0
        %1907 = vmatprep.subr.mxu0 0.0
        %1908 = vmatpush1.msra.mxu0 0.0
        %1909 = vmatprep.subr.mxu0 0.0
        %1910 = vmatpush1.msra.mxu0 0.0
        %1911 = vmatprep.subr.mxu0 0.0
        %1912 = vmatpush1.msra.mxu0 0.0
        %1913 = vmatprep.subr.mxu0 0.0
        %1914 = vmatpush1.msra.mxu0 0.0
        %1915 = vmatprep.subr.mxu0 0.0
        %1916 = vmatpush1.msra.mxu0 0.0
        %1917 = vmatprep.subr.mxu0 0.0
        %1918 = vmatpush1.msra.mxu0 0.0
        %1919 = vmatprep.subr.mxu0 0.0
        %1920 = vmatpush1.msra.mxu0 0.0
        %1921 = vmatprep.subr.mxu0 0.0
        %1922 = vmatpush1.msra.mxu0 0.0
        %1923 = vmatprep.subr.mxu0 0.0
        %1924 = vmatpush1.msra.mxu0 0.0
        %1925 = vmatprep.subr.mxu0 0.0
        %1926 = vmatpush1.msra.mxu0 0.0
        %1927 = vmatprep.subr.mxu0 0.0
        %1928 = vmatpush1.msra.mxu0 0.0
        %1929 = vmatprep.mubr.f32.mxu0 0.0
        %1930 = vmatmul.mubr.f32.gmra.mrb[0].mxu0 %v1863
        %v1931 = vpop.f32.mrb[0].mxu0
        %v1932 = vadd.f32 %v1860, %v1931
        %v1933 = vpop.f32.mrb[0].mxu0
        %v1934 = vadd.f32 %v1860, %v1933
        %1935 = vdwg.mxu0
        %v1936 = vadd.f32 %v1932, %v823
        %v1937 = vadd.f32 %v1934, %v824
        %v1938 = vld [vmem:[%s12] sm:$0xff]
        %v1939 = vld [vmem:[%s13] sm:$0xff]
        %v1940 = vadd.f32 %v1936, %v1937
        %1941 = vadd.xlane.f32.xlu0 %v1940
        %v1942 = vpop.xlane.xlu0 %1941
        %1943 = vmatprep.subr.mxu0 0.0
        %1944 = vmatpush1.msra.mxu0 %v1942
        %1945 = vmatprep.subr.mxu0 0.0
        %1946 = vmatpush1.msra.mxu0 0.0
        %1947 = vmatprep.subr.mxu0 0.0
        %1948 = vmatpush1.msra.mxu0 0.0
        %1949 = vmatprep.subr.mxu0 0.0
        %1950 = vmatpush1.msra.mxu0 0.0
        %1951 = vmatprep.subr.mxu0 0.0
        %1952 = vmatpush1.msra.mxu0 0.0
        %1953 = vmatprep.subr.mxu0 0.0
        %1954 = vmatpush1.msra.mxu0 0.0
        %1955 = vmatprep.subr.mxu0 0.0
        %1956 = vmatpush1.msra.mxu0 0.0
        %1957 = vmatprep.subr.mxu0 0.0
        %1958 = vmatpush1.msra.mxu0 0.0
        %1959 = vmatprep.subr.mxu0 0.0
        %1960 = vmatpush1.msra.mxu0 0.0
        %1961 = vmatprep.subr.mxu0 0.0
        %1962 = vmatpush1.msra.mxu0 0.0
        %1963 = vmatprep.subr.mxu0 0.0
        %1964 = vmatpush1.msra.mxu0 0.0
        %1965 = vmatprep.subr.mxu0 0.0
        %1966 = vmatpush1.msra.mxu0 0.0
        %1967 = vmatprep.subr.mxu0 0.0
        %1968 = vmatpush1.msra.mxu0 0.0
        %1969 = vmatprep.subr.mxu0 0.0
        %1970 = vmatpush1.msra.mxu0 0.0
        %1971 = vmatprep.subr.mxu0 0.0
        %1972 = vmatpush1.msra.mxu0 0.0
        %1973 = vmatprep.subr.mxu0 0.0
        %1974 = vmatpush1.msra.mxu0 0.0
        %1975 = vmatprep.subr.mxu0 0.0
        %1976 = vmatpush1.msra.mxu0 0.0
        %1977 = vmatprep.subr.mxu0 0.0
        %1978 = vmatpush1.msra.mxu0 0.0
        %1979 = vmatprep.subr.mxu0 0.0
        %1980 = vmatpush1.msra.mxu0 0.0
        %1981 = vmatprep.subr.mxu0 0.0
        %1982 = vmatpush1.msra.mxu0 0.0
        %1983 = vmatprep.subr.mxu0 0.0
        %1984 = vmatpush1.msra.mxu0 0.0
        %1985 = vmatprep.subr.mxu0 0.0
        %1986 = vmatpush1.msra.mxu0 0.0
        %1987 = vmatprep.subr.mxu0 0.0
        %1988 = vmatpush1.msra.mxu0 0.0
        %1989 = vmatprep.subr.mxu0 0.0
        %1990 = vmatpush1.msra.mxu0 0.0
        %1991 = vmatprep.subr.mxu0 0.0
        %1992 = vmatpush1.msra.mxu0 0.0
        %1993 = vmatprep.subr.mxu0 0.0
        %1994 = vmatpush1.msra.mxu0 0.0
        %1995 = vmatprep.subr.mxu0 0.0
        %1996 = vmatpush1.msra.mxu0 0.0
        %1997 = vmatprep.subr.mxu0 0.0
        %1998 = vmatpush1.msra.mxu0 0.0
        %1999 = vmatprep.subr.mxu0 0.0
        %2000 = vmatpush1.msra.mxu0 0.0
        %2001 = vmatprep.subr.mxu0 0.0
        %2002 = vmatpush1.msra.mxu0 0.0
        %2003 = vmatprep.subr.mxu0 0.0
        %2004 = vmatpush1.msra.mxu0 0.0
        %2005 = vmatprep.subr.mxu0 0.0
        %2006 = vmatpush1.msra.mxu0 0.0
        %2007 = vmatprep.mubr.f32.mxu0 0.0
        %2008 = vmatmul.mubr.f32.gmra.mrb[0].mxu0 %v832
        %v2009 = vpop.f32.mrb[0].mxu0
        %v2010 = vadd.f32 0.0, %v2009
        %v2011 = vpop.f32.mrb[0].mxu0
        %2012 = vdwg.mxu0
        %2014 = vset.pattern.permute.xlu0 0
        %2015 = vperm.xlu0 %2014, %v2010
        %v2016 = vpop.permute.xlu0 %2015
        %v2018 = vsub.f32 %v1936, %v2016
        %v2019 = vsub.f32 %v1937, %v2016
        %v2020 = vmul.f32 %v2018, %v2018
        %v2021 = vmul.f32 %v2019, %v2019
        %v2022 = vadd.f32 %v2020, %v2021
        %2023 = vadd.xlane.f32.xlu0 %v2022
        %v2024 = vpop.xlane.xlu0 %2023
        %2025 = vmatprep.subr.mxu0 0.0
        %2026 = vmatpush1.msra.mxu0 %v2024
        %2027 = vmatprep.subr.mxu0 0.0
        %2028 = vmatpush1.msra.mxu0 0.0
        %2029 = vmatprep.subr.mxu0 0.0
        %2030 = vmatpush1.msra.mxu0 0.0
        %2031 = vmatprep.subr.mxu0 0.0
        %2032 = vmatpush1.msra.mxu0 0.0
        %2033 = vmatprep.subr.mxu0 0.0
        %2034 = vmatpush1.msra.mxu0 0.0
        %2035 = vmatprep.subr.mxu0 0.0
        %2036 = vmatpush1.msra.mxu0 0.0
        %2037 = vmatprep.subr.mxu0 0.0
        %2038 = vmatpush1.msra.mxu0 0.0
        %2039 = vmatprep.subr.mxu0 0.0
        %2040 = vmatpush1.msra.mxu0 0.0
        %2041 = vmatprep.subr.mxu0 0.0
        %2042 = vmatpush1.msra.mxu0 0.0
        %2043 = vmatprep.subr.mxu0 0.0
        %2044 = vmatpush1.msra.mxu0 0.0
        %2045 = vmatprep.subr.mxu0 0.0
        %2046 = vmatpush1.msra.mxu0 0.0
        %2047 = vmatprep.subr.mxu0 0.0
        %2048 = vmatpush1.msra.mxu0 0.0
        %2049 = vmatprep.subr.mxu0 0.0
        %2050 = vmatpush1.msra.mxu0 0.0
        %2051 = vmatprep.subr.mxu0 0.0
        %2052 = vmatpush1.msra.mxu0 0.0
        %2053 = vmatprep.subr.mxu0 0.0
        %2054 = vmatpush1.msra.mxu0 0.0
        %2055 = vmatprep.subr.mxu0 0.0
        %2056 = vmatpush1.msra.mxu0 0.0
        %2057 = vmatprep.subr.mxu0 0.0
        %2058 = vmatpush1.msra.mxu0 0.0
        %2059 = vmatprep.subr.mxu0 0.0
        %2060 = vmatpush1.msra.mxu0 0.0
        %2061 = vmatprep.subr.mxu0 0.0
        %2062 = vmatpush1.msra.mxu0 0.0
        %2063 = vmatprep.subr.mxu0 0.0
        %2064 = vmatpush1.msra.mxu0 0.0
        %2065 = vmatprep.subr.mxu0 0.0
        %2066 = vmatpush1.msra.mxu0 0.0
        %2067 = vmatprep.subr.mxu0 0.0
        %2068 = vmatpush1.msra.mxu0 0.0
        %2069 = vmatprep.subr.mxu0 0.0
        %2070 = vmatpush1.msra.mxu0 0.0
        %2071 = vmatprep.subr.mxu0 0.0
        %2072 = vmatpush1.msra.mxu0 0.0
        %2073 = vmatprep.subr.mxu0 0.0
        %2074 = vmatpush1.msra.mxu0 0.0
        %2075 = vmatprep.subr.mxu0 0.0
        %2076 = vmatpush1.msra.mxu0 0.0
        %2077 = vmatprep.subr.mxu0 0.0
        %2078 = vmatpush1.msra.mxu0 0.0
        %2079 = vmatprep.subr.mxu0 0.0
        %2080 = vmatpush1.msra.mxu0 0.0
        %2081 = vmatprep.subr.mxu0 0.0
        %2082 = vmatpush1.msra.mxu0 0.0
        %2083 = vmatprep.subr.mxu0 0.0
        %2084 = vmatpush1.msra.mxu0 0.0
        %2085 = vmatprep.subr.mxu0 0.0
        %2086 = vmatpush1.msra.mxu0 0.0
        %2087 = vmatprep.subr.mxu0 0.0
        %2088 = vmatpush1.msra.mxu0 0.0
        %2089 = vmatprep.mubr.f32.mxu0 0.0
        %2090 = vmatmul.mubr.f32.gmra.mrb[0].mxu0 %v832
        %v2091 = vpop.f32.mrb[0].mxu0
        %v2092 = vadd.f32 1e-06, %v2091
        %v2093 = vpop.f32.mrb[0].mxu0
        %2094 = vdwg.mxu0
        %v2095 = vrsqrt.pop %v2092
        %v2096 = vmul.f32 %v2095, %v1938
        %2098 = vset.pattern.permute.xlu0 0
        %2099 = vperm.xlu0 %2098, %v2096
        %v2100 = vpop.permute.xlu0 %2099
        %v2102 = vmul.f32 %v2018, %v2100
        %v2103 = vmul.f32 %v2019, %v2100
        %2105 = vset.pattern.permute.xlu0 0
        %2106 = vperm.xlu0 %2105, %v1939
        %v2107 = vpop.permute.xlu0 %2106
        %v2109 = vadd.f32 %v2102, %v2107
        %v2110 = vadd.f32 %v2103, %v2107
        %v2111 = vld [vmem:[%s14] sm:$0xff]
        %v2112 = vld [vmem:[%s15] sm:$0xff]
        %2114 = vset.pattern.permute.xlu0 0
        %2115 = vperm.xlu0 %2114, %v2112
        %v2116 = vpop.permute.xlu0 %2115
        %v2119 = vsel %vm830, %v2111, 0
        %2121 = vmatprep.subr.mxu0 %v2110
        %2122 = vmatpush1.msra.mxu0 %v2109
        %2123 = vmatprep.subr.mxu0 0.0
        %2124 = vmatpush1.msra.mxu0 0.0
        %2125 = vmatprep.subr.mxu0 0.0
        %2126 = vmatpush1.msra.mxu0 0.0
        %2127 = vmatprep.subr.mxu0 0.0
        %2128 = vmatpush1.msra.mxu0 0.0
        %2129 = vmatprep.subr.mxu0 0.0
        %2130 = vmatpush1.msra.mxu0 0.0
        %2131 = vmatprep.subr.mxu0 0.0
        %2132 = vmatpush1.msra.mxu0 0.0
        %2133 = vmatprep.subr.mxu0 0.0
        %2134 = vmatpush1.msra.mxu0 0.0
        %2135 = vmatprep.subr.mxu0 0.0
        %2136 = vmatpush1.msra.mxu0 0.0
        %2137 = vmatprep.subr.mxu0 0.0
        %2138 = vmatpush1.msra.mxu0 0.0
        %2139 = vmatprep.subr.mxu0 0.0
        %2140 = vmatpush1.msra.mxu0 0.0
        %2141 = vmatprep.subr.mxu0 0.0
        %2142 = vmatpush1.msra.mxu0 0.0
        %2143 = vmatprep.subr.mxu0 0.0
        %2144 = vmatpush1.msra.mxu0 0.0
        %2145 = vmatprep.subr.mxu0 0.0
        %2146 = vmatpush1.msra.mxu0 0.0
        %2147 = vmatprep.subr.mxu0 0.0
        %2148 = vmatpush1.msra.mxu0 0.0
        %2149 = vmatprep.subr.mxu0 0.0
        %2150 = vmatpush1.msra.mxu0 0.0
        %2151 = vmatprep.subr.mxu0 0.0
        %2152 = vmatpush1.msra.mxu0 0.0
        %2153 = vmatprep.subr.mxu0 0.0
        %2154 = vmatpush1.msra.mxu0 0.0
        %2155 = vmatprep.subr.mxu0 0.0
        %2156 = vmatpush1.msra.mxu0 0.0
        %2157 = vmatprep.subr.mxu0 0.0
        %2158 = vmatpush1.msra.mxu0 0.0
        %2159 = vmatprep.subr.mxu0 0.0
        %2160 = vmatpush1.msra.mxu0 0.0
        %2161 = vmatprep.subr.mxu0 0.0
        %2162 = vmatpush1.msra.mxu0 0.0
        %2163 = vmatprep.subr.mxu0 0.0
        %2164 = vmatpush1.msra.mxu0 0.0
        %2165 = vmatprep.subr.mxu0 0.0
        %2166 = vmatpush1.msra.mxu0 0.0
        %2167 = vmatprep.subr.mxu0 0.0
        %2168 = vmatpush1.msra.mxu0 0.0
        %2169 = vmatprep.subr.mxu0 0.0
        %2170 = vmatpush1.msra.mxu0 0.0
        %2171 = vmatprep.subr.mxu0 0.0
        %2172 = vmatpush1.msra.mxu0 0.0
        %2173 = vmatprep.subr.mxu0 0.0
        %2174 = vmatpush1.msra.mxu0 0.0
        %2175 = vmatprep.subr.mxu0 0.0
        %2176 = vmatpush1.msra.mxu0 0.0
        %2177 = vmatprep.subr.mxu0 0.0
        %2178 = vmatpush1.msra.mxu0 0.0
        %2179 = vmatprep.subr.mxu0 0.0
        %2180 = vmatpush1.msra.mxu0 0.0
        %2181 = vmatprep.subr.mxu0 0.0
        %2182 = vmatpush1.msra.mxu0 0.0
        %2183 = vmatprep.subr.mxu0 0.0
        %2184 = vmatpush1.msra.mxu0 0.0
        %2185 = vmatprep.mubr.f32.mxu0 0.0
        %2186 = vmatmul.mubr.f32.gmra.mrb[0].mxu0 %v2119
        %v2187 = vpop.f32.mrb[0].mxu0
        %v2188 = vadd.f32 %v2116, %v2187
        %v2189 = vpop.f32.mrb[0].mxu0
        %v2190 = vadd.f32 %v2116, %v2189
        %2191 = vdwg.mxu0
        %v2192 = vld [vmem:[%s18] sm:$0xff]
        %v2193 = vld [vmem:[%s19] sm:$0xff]
        %2195 = vset.pattern.permute.xlu0 0
        %2196 = vperm.xlu0 %2195, %v2193
        %v2197 = vpop.permute.xlu0 %2196
        %v2200 = vsel %vm830, %v2192, 0
        %2202 = vmatprep.subr.mxu0 %v2110
        %2203 = vmatpush1.msra.mxu0 %v2109
        %2204 = vmatprep.subr.mxu0 0.0
        %2205 = vmatpush1.msra.mxu0 0.0
        %2206 = vmatprep.subr.mxu0 0.0
        %2207 = vmatpush1.msra.mxu0 0.0
        %2208 = vmatprep.subr.mxu0 0.0
        %2209 = vmatpush1.msra.mxu0 0.0
        %2210 = vmatprep.subr.mxu0 0.0
        %2211 = vmatpush1.msra.mxu0 0.0
        %2212 = vmatprep.subr.mxu0 0.0
        %2213 = vmatpush1.msra.mxu0 0.0
        %2214 = vmatprep.subr.mxu0 0.0
        %2215 = vmatpush1.msra.mxu0 0.0
        %2216 = vmatprep.subr.mxu0 0.0
        %2217 = vmatpush1.msra.mxu0 0.0
        %2218 = vmatprep.subr.mxu0 0.0
        %2219 = vmatpush1.msra.mxu0 0.0
        %2220 = vmatprep.subr.mxu0 0.0
        %2221 = vmatpush1.msra.mxu0 0.0
        %2222 = vmatprep.subr.mxu0 0.0
        %2223 = vmatpush1.msra.mxu0 0.0
        %2224 = vmatprep.subr.mxu0 0.0
        %2225 = vmatpush1.msra.mxu0 0.0
        %2226 = vmatprep.subr.mxu0 0.0
        %2227 = vmatpush1.msra.mxu0 0.0
        %2228 = vmatprep.subr.mxu0 0.0
        %2229 = vmatpush1.msra.mxu0 0.0
        %2230 = vmatprep.subr.mxu0 0.0
        %2231 = vmatpush1.msra.mxu0 0.0
        %2232 = vmatprep.subr.mxu0 0.0
        %2233 = vmatpush1.msra.mxu0 0.0
        %2234 = vmatprep.subr.mxu0 0.0
        %2235 = vmatpush1.msra.mxu0 0.0
        %2236 = vmatprep.subr.mxu0 0.0
        %2237 = vmatpush1.msra.mxu0 0.0
        %2238 = vmatprep.subr.mxu0 0.0
        %2239 = vmatpush1.msra.mxu0 0.0
        %2240 = vmatprep.subr.mxu0 0.0
        %2241 = vmatpush1.msra.mxu0 0.0
        %2242 = vmatprep.subr.mxu0 0.0
        %2243 = vmatpush1.msra.mxu0 0.0
        %2244 = vmatprep.subr.mxu0 0.0
        %2245 = vmatpush1.msra.mxu0 0.0
        %2246 = vmatprep.subr.mxu0 0.0
        %2247 = vmatpush1.msra.mxu0 0.0
        %2248 = vmatprep.subr.mxu0 0.0
        %2249 = vmatpush1.msra.mxu0 0.0
        %2250 = vmatprep.subr.mxu0 0.0
        %2251 = vmatpush1.msra.mxu0 0.0
        %2252 = vmatprep.subr.mxu0 0.0
        %2253 = vmatpush1.msra.mxu0 0.0
        %2254 = vmatprep.subr.mxu0 0.0
        %2255 = vmatpush1.msra.mxu0 0.0
        %2256 = vmatprep.subr.mxu0 0.0
        %2257 = vmatpush1.msra.mxu0 0.0
        %2258 = vmatprep.subr.mxu0 0.0
        %2259 = vmatpush1.msra.mxu0 0.0
        %2260 = vmatprep.subr.mxu0 0.0
        %2261 = vmatpush1.msra.mxu0 0.0
        %2262 = vmatprep.subr.mxu0 0.0
        %2263 = vmatpush1.msra.mxu0 0.0
        %2264 = vmatprep.subr.mxu0 0.0
        %2265 = vmatpush1.msra.mxu0 0.0
        %2266 = vmatprep.mubr.f32.mxu0 0.0
        %2267 = vmatmul.mubr.f32.gmra.mrb[0].mxu0 %v2200
        %v2268 = vpop.f32.mrb[0].mxu0
        %v2269 = vadd.f32 %v2197, %v2268
        %v2270 = vpop.f32.mrb[0].mxu0
        %v2271 = vadd.f32 %v2197, %v2270
        %2272 = vdwg.mxu0
        %v2273 = vld [vmem:[%s16] sm:$0xff]
        %v2274 = vld [vmem:[%s17] sm:$0x1]
        %v2276 = vlaneseq
        %v2277 = vshrl.u32 %v2276, 7
        %v2278 = vsub.s32 0, %v2277
        %v2279 = vrot.slane %v2274, %v2278
        %2281 = vxpose.xlu0.b32.start [1/16] %v2109, 128
        %2282 = vxpose.xlu0.b32.cont [2/16] 0.0, 128
        %2283 = vxpose.xlu0.b32.cont [3/16] 0.0, 128
        %2284 = vxpose.xlu0.b32.cont [4/16] 0.0, 128
        %2285 = vxpose.xlu0.b32.cont [5/16] 0.0, 128
        %2286 = vxpose.xlu0.b32.cont [6/16] 0.0, 128
        %2287 = vxpose.xlu0.b32.cont [7/16] 0.0, 128
        %2288 = vxpose.xlu0.b32.cont [8/16] 0.0, 128
        %2289 = vxpose.xlu0.b32.cont [9/16] 0.0, 128
        %2290 = vxpose.xlu0.b32.cont [10/16] 0.0, 128
        %2291 = vxpose.xlu0.b32.cont [11/16] 0.0, 128
        %2292 = vxpose.xlu0.b32.cont [12/16] 0.0, 128
        %2293 = vxpose.xlu0.b32.cont [13/16] 0.0, 128
        %2294 = vxpose.xlu0.b32.cont [14/16] 0.0, 128
        %2295 = vxpose.xlu0.b32.cont [15/16] 0.0, 128
        %2296 = vxpose.xlu0.b32.end [16/16] 0.0, 128
        %v2297 = vpop.trf.xlu0
        %v2298 = vpop.trf.xlu0
        %v2299 = vpop.trf.xlu0
        %v2300 = vpop.trf.xlu0
        %v2301 = vpop.trf.xlu0
        %v2302 = vpop.trf.xlu0
        %v2303 = vpop.trf.xlu0
        %v2304 = vpop.trf.xlu0
        %v2305 = vpop.trf.xlu0
        %v2306 = vpop.trf.xlu0
        %v2307 = vpop.trf.xlu0
        %v2308 = vpop.trf.xlu0
        %v2309 = vpop.trf.xlu0
        %v2310 = vpop.trf.xlu0
        %v2311 = vpop.trf.xlu0
        %v2312 = vpop.trf.xlu0
        %2313 = vxpose.xlu0.b32.start [1/16] %v2110, 128
        %2314 = vxpose.xlu0.b32.cont [2/16] 0.0, 128
        %2315 = vxpose.xlu0.b32.cont [3/16] 0.0, 128
        %2316 = vxpose.xlu0.b32.cont [4/16] 0.0, 128
        %2317 = vxpose.xlu0.b32.cont [5/16] 0.0, 128
        %2318 = vxpose.xlu0.b32.cont [6/16] 0.0, 128
        %2319 = vxpose.xlu0.b32.cont [7/16] 0.0, 128
        %2320 = vxpose.xlu0.b32.cont [8/16] 0.0, 128
        %2321 = vxpose.xlu0.b32.cont [9/16] 0.0, 128
        %2322 = vxpose.xlu0.b32.cont [10/16] 0.0, 128
        %2323 = vxpose.xlu0.b32.cont [11/16] 0.0, 128
        %2324 = vxpose.xlu0.b32.cont [12/16] 0.0, 128
        %2325 = vxpose.xlu0.b32.cont [13/16] 0.0, 128
        %2326 = vxpose.xlu0.b32.cont [14/16] 0.0, 128
        %2327 = vxpose.xlu0.b32.cont [15/16] 0.0, 128
        %2328 = vxpose.xlu0.b32.end [16/16] 0.0, 128
        %v2329 = vpop.trf.xlu0
        %v2330 = vpop.trf.xlu0
        %v2331 = vpop.trf.xlu0
        %v2332 = vpop.trf.xlu0
        %v2333 = vpop.trf.xlu0
        %v2334 = vpop.trf.xlu0
        %v2335 = vpop.trf.xlu0
        %v2336 = vpop.trf.xlu0
        %v2337 = vpop.trf.xlu0
        %v2338 = vpop.trf.xlu0
        %v2339 = vpop.trf.xlu0
        %v2340 = vpop.trf.xlu0
        %v2341 = vpop.trf.xlu0
        %v2342 = vpop.trf.xlu0
        %v2343 = vpop.trf.xlu0
        %v2344 = vpop.trf.xlu0
        %v2346 = vsel %vm830, %v2297, 0
        %v2349 = vsel %vm830, %v2298, 0
        %v2352 = vsel %vm830, %v2299, 0
        %v2355 = vsel %vm830, %v2300, 0
        %v2358 = vsel %vm830, %v2301, 0
        %v2361 = vsel %vm830, %v2302, 0
        %v2364 = vsel %vm830, %v2303, 0
        %v2367 = vsel %vm830, %v2304, 0
        %v2370 = vsel %vm830, %v2305, 0
        %v2373 = vsel %vm830, %v2306, 0
        %v2376 = vsel %vm830, %v2307, 0
        %v2379 = vsel %vm830, %v2308, 0
        %v2382 = vsel %vm830, %v2309, 0
        %v2385 = vsel %vm830, %v2310, 0
        %v2388 = vsel %vm830, %v2311, 0
        %v2391 = vsel %vm830, %v2312, 0
        %v2394 = vsel %vm830, %v2329, 0
        %v2397 = vsel %vm830, %v2330, 0
        %v2400 = vsel %vm830, %v2331, 0
        %v2403 = vsel %vm830, %v2332, 0
        %v2406 = vsel %vm830, %v2333, 0
        %v2409 = vsel %vm830, %v2334, 0
        %v2412 = vsel %vm830, %v2335, 0
        %v2415 = vsel %vm830, %v2336, 0
        %v2418 = vsel %vm830, %v2337, 0
        %v2421 = vsel %vm830, %v2338, 0
        %v2424 = vsel %vm830, %v2339, 0
        %v2427 = vsel %vm830, %v2340, 0
        %v2430 = vsel %vm830, %v2341, 0
        %v2433 = vsel %vm830, %v2342, 0
        %v2436 = vsel %vm830, %v2343, 0
        %v2439 = vsel %vm830, %v2344, 0
        %2441 = vmatprep.subr.mxu0 0.0
        %2442 = vmatpush1.msra.mxu0 %v2273
        %2443 = vmatprep.subr.mxu0 0.0
        %2444 = vmatpush1.msra.mxu0 0.0
        %2445 = vmatprep.subr.mxu0 0.0
        %2446 = vmatpush1.msra.mxu0 0.0
        %2447 = vmatprep.subr.mxu0 0.0
        %2448 = vmatpush1.msra.mxu0 0.0
        %2449 = vmatprep.subr.mxu0 0.0
        %2450 = vmatpush1.msra.mxu0 0.0
        %2451 = vmatprep.subr.mxu0 0.0
        %2452 = vmatpush1.msra.mxu0 0.0
        %2453 = vmatprep.subr.mxu0 0.0
        %2454 = vmatpush1.msra.mxu0 0.0
        %2455 = vmatprep.subr.mxu0 0.0
        %2456 = vmatpush1.msra.mxu0 0.0
        %2457 = vmatprep.subr.mxu0 0.0
        %2458 = vmatpush1.msra.mxu0 0.0
        %2459 = vmatprep.subr.mxu0 0.0
        %2460 = vmatpush1.msra.mxu0 0.0
        %2461 = vmatprep.subr.mxu0 0.0
        %2462 = vmatpush1.msra.mxu0 0.0
        %2463 = vmatprep.subr.mxu0 0.0
        %2464 = vmatpush1.msra.mxu0 0.0
        %2465 = vmatprep.subr.mxu0 0.0
        %2466 = vmatpush1.msra.mxu0 0.0
        %2467 = vmatprep.subr.mxu0 0.0
        %2468 = vmatpush1.msra.mxu0 0.0
        %2469 = vmatprep.subr.mxu0 0.0
        %2470 = vmatpush1.msra.mxu0 0.0
        %2471 = vmatprep.subr.mxu0 0.0
        %2472 = vmatpush1.msra.mxu0 0.0
        %2473 = vmatprep.subr.mxu0 0.0
        %2474 = vmatpush1.msra.mxu0 0.0
        %2475 = vmatprep.subr.mxu0 0.0
        %2476 = vmatpush1.msra.mxu0 0.0
        %2477 = vmatprep.subr.mxu0 0.0
        %2478 = vmatpush1.msra.mxu0 0.0
        %2479 = vmatprep.subr.mxu0 0.0
        %2480 = vmatpush1.msra.mxu0 0.0
        %2481 = vmatprep.subr.mxu0 0.0
        %2482 = vmatpush1.msra.mxu0 0.0
        %2483 = vmatprep.subr.mxu0 0.0
        %2484 = vmatpush1.msra.mxu0 0.0
        %2485 = vmatprep.subr.mxu0 0.0
        %2486 = vmatpush1.msra.mxu0 0.0
        %2487 = vmatprep.subr.mxu0 0.0
        %2488 = vmatpush1.msra.mxu0 0.0
        %2489 = vmatprep.subr.mxu0 0.0
        %2490 = vmatpush1.msra.mxu0 0.0
        %2491 = vmatprep.subr.mxu0 0.0
        %2492 = vmatpush1.msra.mxu0 0.0
        %2493 = vmatprep.subr.mxu0 0.0
        %2494 = vmatpush1.msra.mxu0 0.0
        %2495 = vmatprep.subr.mxu0 0.0
        %2496 = vmatpush1.msra.mxu0 0.0
        %2497 = vmatprep.subr.mxu0 0.0
        %2498 = vmatpush1.msra.mxu0 0.0
        %2499 = vmatprep.subr.mxu0 0.0
        %2500 = vmatpush1.msra.mxu0 0.0
        %2501 = vmatprep.subr.mxu0 0.0
        %2502 = vmatpush1.msra.mxu0 0.0
        %2503 = vmatprep.subr.mxu0 0.0
        %2504 = vmatpush1.msra.mxu0 0.0
        %2505 = vmatprep.mubr.f32.mxu0 0.0
        %2506 = vmatmul.mubr.f32.gmra.mrb[0].mxu0 %v2346
        %v2507 = vpop.f32.mrb[0].mxu0
        %v2508 = vadd.f32 %v2279, %v2507
        %v2509 = vpop.f32.mrb[0].mxu0
        %2510 = vmatprep.mubr.f32.mxu0 0.0
        %2511 = vmatmul.mubr.f32.gmra.mrb[0].mxu0 %v2349
        %v2512 = vpop.f32.mrb[0].mxu0
        %v2513 = vadd.f32 %v2279, %v2512
        %v2514 = vpop.f32.mrb[0].mxu0
        %2515 = vmatprep.mubr.f32.mxu0 0.0
        %2516 = vmatmul.mubr.f32.gmra.mrb[0].mxu0 %v2352
        %v2517 = vpop.f32.mrb[0].mxu0
        %v2518 = vadd.f32 %v2279, %v2517
        %v2519 = vpop.f32.mrb[0].mxu0
        %2520 = vmatprep.mubr.f32.mxu0 0.0
        %2521 = vmatmul.mubr.f32.gmra.mrb[0].mxu0 %v2355
        %v2522 = vpop.f32.mrb[0].mxu0
        %v2523 = vadd.f32 %v2279, %v2522
        %v2524 = vpop.f32.mrb[0].mxu0
        %2525 = vmatprep.mubr.f32.mxu0 0.0
        %2526 = vmatmul.mubr.f32.gmra.mrb[0].mxu0 %v2358
        %v2527 = vpop.f32.mrb[0].mxu0
        %v2528 = vadd.f32 %v2279, %v2527
        %v2529 = vpop.f32.mrb[0].mxu0
        %2530 = vmatprep.mubr.f32.mxu0 0.0
        %2531 = vmatmul.mubr.f32.gmra.mrb[0].mxu0 %v2361
        %v2532 = vpop.f32.mrb[0].mxu0
        %v2533 = vadd.f32 %v2279, %v2532
        %v2534 = vpop.f32.mrb[0].mxu0
        %2535 = vmatprep.mubr.f32.mxu0 0.0
        %2536 = vmatmul.mubr.f32.gmra.mrb[0].mxu0 %v2364
        %v2537 = vpop.f32.mrb[0].mxu0
        %v2538 = vadd.f32 %v2279, %v2537
        %v2539 = vpop.f32.mrb[0].mxu0
        %2540 = vmatprep.mubr.f32.mxu0 0.0
        %2541 = vmatmul.mubr.f32.gmra.mrb[0].mxu0 %v2367
        %v2542 = vpop.f32.mrb[0].mxu0
        %v2543 = vadd.f32 %v2279, %v2542
        %v2544 = vpop.f32.mrb[0].mxu0
        %2545 = vmatprep.mubr.f32.mxu0 0.0
        %2546 = vmatmul.mubr.f32.gmra.mrb[0].mxu0 %v2370
        %v2547 = vpop.f32.mrb[0].mxu0
        %v2548 = vadd.f32 %v2279, %v2547
        %v2549 = vpop.f32.mrb[0].mxu0
        %2550 = vmatprep.mubr.f32.mxu0 0.0
        %2551 = vmatmul.mubr.f32.gmra.mrb[0].mxu0 %v2373
        %v2552 = vpop.f32.mrb[0].mxu0
        %v2553 = vadd.f32 %v2279, %v2552
        %v2554 = vpop.f32.mrb[0].mxu0
        %2555 = vmatprep.mubr.f32.mxu0 0.0
        %2556 = vmatmul.mubr.f32.gmra.mrb[0].mxu0 %v2376
        %v2557 = vpop.f32.mrb[0].mxu0
        %v2558 = vadd.f32 %v2279, %v2557
        %v2559 = vpop.f32.mrb[0].mxu0
        %2560 = vmatprep.mubr.f32.mxu0 0.0
        %2561 = vmatmul.mubr.f32.gmra.mrb[0].mxu0 %v2379
        %v2562 = vpop.f32.mrb[0].mxu0
        %v2563 = vadd.f32 %v2279, %v2562
        %v2564 = vpop.f32.mrb[0].mxu0
        %2565 = vmatprep.mubr.f32.mxu0 0.0
        %2566 = vmatmul.mubr.f32.gmra.mrb[0].mxu0 %v2382
        %v2567 = vpop.f32.mrb[0].mxu0
        %v2568 = vadd.f32 %v2279, %v2567
        %v2569 = vpop.f32.mrb[0].mxu0
        %2570 = vmatprep.mubr.f32.mxu0 0.0
        %2571 = vmatmul.mubr.f32.gmra.mrb[0].mxu0 %v2385
        %v2572 = vpop.f32.mrb[0].mxu0
        %v2573 = vadd.f32 %v2279, %v2572
        %v2574 = vpop.f32.mrb[0].mxu0
        %2575 = vmatprep.mubr.f32.mxu0 0.0
        %2576 = vmatmul.mubr.f32.gmra.mrb[0].mxu0 %v2388
        %v2577 = vpop.f32.mrb[0].mxu0
        %v2578 = vadd.f32 %v2279, %v2577
        %v2579 = vpop.f32.mrb[0].mxu0
        %2580 = vmatprep.mubr.f32.mxu0 0.0
        %2581 = vmatmul.mubr.f32.gmra.mrb[0].mxu0 %v2391
        %v2582 = vpop.f32.mrb[0].mxu0
        %v2583 = vadd.f32 %v2279, %v2582
        %v2584 = vpop.f32.mrb[0].mxu0
        %2585 = vmatprep.mubr.f32.mxu0 0.0
        %2586 = vmatmul.mubr.f32.gmra.mrb[0].mxu0 %v2394
        %v2587 = vpop.f32.mrb[0].mxu0
        %v2588 = vadd.f32 %v2279, %v2587
        %v2589 = vpop.f32.mrb[0].mxu0
        %2590 = vmatprep.mubr.f32.mxu0 0.0
        %2591 = vmatmul.mubr.f32.gmra.mrb[0].mxu0 %v2397
        %v2592 = vpop.f32.mrb[0].mxu0
        %v2593 = vadd.f32 %v2279, %v2592
        %v2594 = vpop.f32.mrb[0].mxu0
        %2595 = vmatprep.mubr.f32.mxu0 0.0
        %2596 = vmatmul.mubr.f32.gmra.mrb[0].mxu0 %v2400
        %v2597 = vpop.f32.mrb[0].mxu0
        %v2598 = vadd.f32 %v2279, %v2597
        %v2599 = vpop.f32.mrb[0].mxu0
        %2600 = vmatprep.mubr.f32.mxu0 0.0
        %2601 = vmatmul.mubr.f32.gmra.mrb[0].mxu0 %v2403
        %v2602 = vpop.f32.mrb[0].mxu0
        %v2603 = vadd.f32 %v2279, %v2602
        %v2604 = vpop.f32.mrb[0].mxu0
        %2605 = vmatprep.mubr.f32.mxu0 0.0
        %2606 = vmatmul.mubr.f32.gmra.mrb[0].mxu0 %v2406
        %v2607 = vpop.f32.mrb[0].mxu0
        %v2608 = vadd.f32 %v2279, %v2607
        %v2609 = vpop.f32.mrb[0].mxu0
        %2610 = vmatprep.mubr.f32.mxu0 0.0
        %2611 = vmatmul.mubr.f32.gmra.mrb[0].mxu0 %v2409
        %v2612 = vpop.f32.mrb[0].mxu0
        %v2613 = vadd.f32 %v2279, %v2612
        %v2614 = vpop.f32.mrb[0].mxu0
        %2615 = vmatprep.mubr.f32.mxu0 0.0
        %2616 = vmatmul.mubr.f32.gmra.mrb[0].mxu0 %v2412
        %v2617 = vpop.f32.mrb[0].mxu0
        %v2618 = vadd.f32 %v2279, %v2617
        %v2619 = vpop.f32.mrb[0].mxu0
        %2620 = vmatprep.mubr.f32.mxu0 0.0
        %2621 = vmatmul.mubr.f32.gmra.mrb[0].mxu0 %v2415
        %v2622 = vpop.f32.mrb[0].mxu0
        %v2623 = vadd.f32 %v2279, %v2622
        %v2624 = vpop.f32.mrb[0].mxu0
        %2625 = vmatprep.mubr.f32.mxu0 0.0
        %2626 = vmatmul.mubr.f32.gmra.mrb[0].mxu0 %v2418
        %v2627 = vpop.f32.mrb[0].mxu0
        %v2628 = vadd.f32 %v2279, %v2627
        %v2629 = vpop.f32.mrb[0].mxu0
        %2630 = vmatprep.mubr.f32.mxu0 0.0
        %2631 = vmatmul.mubr.f32.gmra.mrb[0].mxu0 %v2421
        %v2632 = vpop.f32.mrb[0].mxu0
        %v2633 = vadd.f32 %v2279, %v2632
        %v2634 = vpop.f32.mrb[0].mxu0
        %2635 = vmatprep.mubr.f32.mxu0 0.0
        %2636 = vmatmul.mubr.f32.gmra.mrb[0].mxu0 %v2424
        %v2637 = vpop.f32.mrb[0].mxu0
        %v2638 = vadd.f32 %v2279, %v2637
        %v2639 = vpop.f32.mrb[0].mxu0
        %2640 = vmatprep.mubr.f32.mxu0 0.0
        %2641 = vmatmul.mubr.f32.gmra.mrb[0].mxu0 %v2427
        %v2642 = vpop.f32.mrb[0].mxu0
        %v2643 = vadd.f32 %v2279, %v2642
        %v2644 = vpop.f32.mrb[0].mxu0
        %2645 = vmatprep.mubr.f32.mxu0 0.0
        %2646 = vmatmul.mubr.f32.gmra.mrb[0].mxu0 %v2430
        %v2647 = vpop.f32.mrb[0].mxu0
        %v2648 = vadd.f32 %v2279, %v2647
        %v2649 = vpop.f32.mrb[0].mxu0
        %2650 = vmatprep.mubr.f32.mxu0 0.0
        %2651 = vmatmul.mubr.f32.gmra.mrb[0].mxu0 %v2433
        %v2652 = vpop.f32.mrb[0].mxu0
        %v2653 = vadd.f32 %v2279, %v2652
        %v2654 = vpop.f32.mrb[0].mxu0
        %2655 = vmatprep.mubr.f32.mxu0 0.0
        %2656 = vmatmul.mubr.f32.gmra.mrb[0].mxu0 %v2436
        %v2657 = vpop.f32.mrb[0].mxu0
        %v2658 = vadd.f32 %v2279, %v2657
        %v2659 = vpop.f32.mrb[0].mxu0
        %2660 = vmatprep.mubr.f32.mxu0 0.0
        %2661 = vmatmul.mubr.f32.gmra.mrb[0].mxu0 %v2439
        %v2662 = vpop.f32.mrb[0].mxu0
        %v2663 = vadd.f32 %v2279, %v2662
        %v2664 = vpop.f32.mrb[0].mxu0
        %2665 = vdwg.mxu0
        %v2666 = vsel %vm830, %v2508, -inf
        %v2667 = vsel %vm830, %v2513, -inf
        %v2668 = vsel %vm830, %v2518, -inf
        %v2669 = vsel %vm830, %v2523, -inf
        %v2670 = vsel %vm830, %v2528, -inf
        %v2671 = vmax.f32 %v2666, %v2670
        %v2672 = vsel %vm830, %v2533, -inf
        %v2673 = vmax.f32 %v2667, %v2672
        %v2674 = vsel %vm830, %v2538, -inf
        %v2675 = vmax.f32 %v2668, %v2674
        %v2676 = vsel %vm830, %v2543, -inf
        %v2677 = vmax.f32 %v2669, %v2676
        %v2678 = vsel %vm830, %v2548, -inf
        %v2679 = vmax.f32 %v2671, %v2678
        %v2680 = vsel %vm830, %v2553, -inf
        %v2681 = vmax.f32 %v2673, %v2680
        %v2682 = vsel %vm830, %v2558, -inf
        %v2683 = vmax.f32 %v2675, %v2682
        %v2684 = vsel %vm830, %v2563, -inf
        %v2685 = vmax.f32 %v2677, %v2684
        %v2686 = vsel %vm830, %v2568, -inf
        %v2687 = vmax.f32 %v2679, %v2686
        %v2688 = vsel %vm830, %v2573, -inf
        %v2689 = vmax.f32 %v2681, %v2688
        %v2690 = vsel %vm830, %v2578, -inf
        %v2691 = vmax.f32 %v2683, %v2690
        %v2692 = vsel %vm830, %v2583, -inf
        %v2693 = vmax.f32 %v2685, %v2692
        %v2694 = vsel %vm830, %v2588, -inf
        %v2695 = vmax.f32 %v2687, %v2694
        %v2696 = vsel %vm830, %v2593, -inf
        %v2697 = vmax.f32 %v2689, %v2696
        %v2698 = vsel %vm830, %v2598, -inf
        %v2699 = vmax.f32 %v2691, %v2698
        %v2700 = vsel %vm830, %v2603, -inf
        %v2701 = vmax.f32 %v2693, %v2700
        %v2702 = vsel %vm830, %v2608, -inf
        %v2703 = vmax.f32 %v2695, %v2702
        %v2704 = vsel %vm830, %v2613, -inf
        %v2705 = vmax.f32 %v2697, %v2704
        %v2706 = vsel %vm830, %v2618, -inf
        %v2707 = vmax.f32 %v2699, %v2706
        %v2708 = vsel %vm830, %v2623, -inf
        %v2709 = vmax.f32 %v2701, %v2708
        %v2710 = vsel %vm830, %v2628, -inf
        %v2711 = vmax.f32 %v2703, %v2710
        %v2712 = vsel %vm830, %v2633, -inf
        %v2713 = vmax.f32 %v2705, %v2712
        %v2714 = vsel %vm830, %v2638, -inf
        %v2715 = vmax.f32 %v2707, %v2714
        %v2716 = vsel %vm830, %v2643, -inf
        %v2717 = vmax.f32 %v2709, %v2716
        %v2718 = vsel %vm830, %v2648, -inf
        %v2719 = vmax.f32 %v2711, %v2718
        %v2720 = vsel %vm830, %v2653, -inf
        %v2721 = vmax.f32 %v2713, %v2720
        %v2722 = vsel %vm830, %v2658, -inf
        %v2723 = vmax.f32 %v2715, %v2722
        %v2724 = vsel %vm830, %v2663, -inf
        %v2725 = vmax.f32 %v2717, %v2724
        %v2726 = vmax.f32 %v2719, %v2721
        %v2727 = vmax.f32 %v2723, %v2725
        %v2728 = vmax.f32 %v2726, %v2727
        %v2729 = vrot.slane %v2728, 4
        %v2730 = vmax.f32 %v2728, %v2729
        %v2731 = vrot.slane %v2730, 2
        %v2732 = vmax.f32 %v2730, %v2731
        %v2733 = vrot.slane %v2732, 1
        %v2734 = vmax.f32 %v2732, %v2733
        %v2735 = vsel %vm830, %v2508, inf
        %v2736 = vsel %vm830, %v2513, inf
        %v2737 = vsel %vm830, %v2518, inf
        %v2738 = vsel %vm830, %v2523, inf
        %v2739 = vsel %vm830, %v2528, inf
        %v2740 = vmin.f32 %v2735, %v2739
        %v2741 = vsel %vm830, %v2533, inf
        %v2742 = vmin.f32 %v2736, %v2741
        %v2743 = vsel %vm830, %v2538, inf
        %v2744 = vmin.f32 %v2737, %v2743
        %v2745 = vsel %vm830, %v2543, inf
        %v2746 = vmin.f32 %v2738, %v2745
        %v2747 = vsel %vm830, %v2548, inf
        %v2748 = vmin.f32 %v2740, %v2747
        %v2749 = vsel %vm830, %v2553, inf
        %v2750 = vmin.f32 %v2742, %v2749
        %v2751 = vsel %vm830, %v2558, inf
        %v2752 = vmin.f32 %v2744, %v2751
        %v2753 = vsel %vm830, %v2563, inf
        %v2754 = vmin.f32 %v2746, %v2753
        %v2755 = vsel %vm830, %v2568, inf
        %v2756 = vmin.f32 %v2748, %v2755
        %v2757 = vsel %vm830, %v2573, inf
        %v2758 = vmin.f32 %v2750, %v2757
        %v2759 = vsel %vm830, %v2578, inf
        %v2760 = vmin.f32 %v2752, %v2759
        %v2761 = vsel %vm830, %v2583, inf
        %v2762 = vmin.f32 %v2754, %v2761
        %v2763 = vsel %vm830, %v2588, inf
        %v2764 = vmin.f32 %v2756, %v2763
        %v2765 = vsel %vm830, %v2593, inf
        %v2766 = vmin.f32 %v2758, %v2765
        %v2767 = vsel %vm830, %v2598, inf
        %v2768 = vmin.f32 %v2760, %v2767
        %v2769 = vsel %vm830, %v2603, inf
        %v2770 = vmin.f32 %v2762, %v2769
        %v2771 = vsel %vm830, %v2608, inf
        %v2772 = vmin.f32 %v2764, %v2771
        %v2773 = vsel %vm830, %v2613, inf
        %v2774 = vmin.f32 %v2766, %v2773
        %v2775 = vsel %vm830, %v2618, inf
        %v2776 = vmin.f32 %v2768, %v2775
        %v2777 = vsel %vm830, %v2623, inf
        %v2778 = vmin.f32 %v2770, %v2777
        %v2779 = vsel %vm830, %v2628, inf
        %v2780 = vmin.f32 %v2772, %v2779
        %v2781 = vsel %vm830, %v2633, inf
        %v2782 = vmin.f32 %v2774, %v2781
        %v2783 = vsel %vm830, %v2638, inf
        %v2784 = vmin.f32 %v2776, %v2783
        %v2785 = vsel %vm830, %v2643, inf
        %v2786 = vmin.f32 %v2778, %v2785
        %v2787 = vsel %vm830, %v2648, inf
        %v2788 = vmin.f32 %v2780, %v2787
        %v2789 = vsel %vm830, %v2653, inf
        %v2790 = vmin.f32 %v2782, %v2789
        %v2791 = vsel %vm830, %v2658, inf
        %v2792 = vmin.f32 %v2784, %v2791
        %v2793 = vsel %vm830, %v2663, inf
        %v2794 = vmin.f32 %v2786, %v2793
        %v2795 = vmin.f32 %v2788, %v2790
        %v2796 = vmin.f32 %v2792, %v2794
        %v2797 = vmin.f32 %v2795, %v2796
        %v2798 = vrot.slane %v2797, 4
        %v2799 = vmin.f32 %v2797, %v2798
        %v2800 = vrot.slane %v2799, 2
        %v2801 = vmin.f32 %v2799, %v2800
        %v2802 = vrot.slane %v2801, 1
        %v2803 = vmin.f32 %v2801, %v2802
        %v2804 = vlaneseq
        %vm2805 = vcmp.ge.s32.totalorder %v2804, 0
        %vm2806 = vcmp.lt.s32.totalorder %v2804, 256
        %vm2807 = vmand %vm2805, %vm2806
        %s2808 = scalar_lea.vmem [#allocation4], 1
        %2809 = vst.msk [vmem:[%s2808] ss:$2 sm:$0x3] %vm2807, 1.0
        %2811 = vset.pattern.permute.xlu0 0
        %2812 = vperm.xlu0 %2811, %v2734
        %v2813 = vpop.permute.xlu0 %2812
        %v2815 = vmul.f32 %v2188, %v2813
        %v2816 = vmul.f32 %v2190, %v2813
        %2818 = vset.pattern.permute.xlu0 0
        %2819 = vperm.xlu0 %2818, %v2803
        %v2820 = vpop.permute.xlu0 %2819
        %v2822 = vmul.f32 %v2188, %v2820
        %v2823 = vmul.f32 %v2190, %v2820
        %v2824 = vmax.f32 %v2815, %v2822
        %v2825 = vmax.f32 %v2816, %v2823
        %2827 = vset.pattern.permute.xlu0 0
        %2828 = vperm.xlu0 %2827, %v2508
        %v2829 = vpop.permute.xlu0 %2828
        %2832 = vset.pattern.permute.xlu0 0
        %2833 = vperm.xlu0 %2832, %v2513
        %v2834 = vpop.permute.xlu0 %2833
        %2837 = vset.pattern.permute.xlu0 0
        %2838 = vperm.xlu0 %2837, %v2518
        %v2839 = vpop.permute.xlu0 %2838
        %2842 = vset.pattern.permute.xlu0 0
        %2843 = vperm.xlu0 %2842, %v2523
        %v2844 = vpop.permute.xlu0 %2843
        %2847 = vset.pattern.permute.xlu0 0
        %2848 = vperm.xlu0 %2847, %v2528
        %v2849 = vpop.permute.xlu0 %2848
        %2852 = vset.pattern.permute.xlu0 0
        %2853 = vperm.xlu0 %2852, %v2533
        %v2854 = vpop.permute.xlu0 %2853
        %2857 = vset.pattern.permute.xlu0 0
        %2858 = vperm.xlu0 %2857, %v2538
        %v2859 = vpop.permute.xlu0 %2858
        %2862 = vset.pattern.permute.xlu0 0
        %2863 = vperm.xlu0 %2862, %v2543
        %v2864 = vpop.permute.xlu0 %2863
        %2867 = vset.pattern.permute.xlu0 0
        %2868 = vperm.xlu0 %2867, %v2548
        %v2869 = vpop.permute.xlu0 %2868
        %2872 = vset.pattern.permute.xlu0 0
        %2873 = vperm.xlu0 %2872, %v2553
        %v2874 = vpop.permute.xlu0 %2873
        %2877 = vset.pattern.permute.xlu0 0
        %2878 = vperm.xlu0 %2877, %v2558
        %v2879 = vpop.permute.xlu0 %2878
        %2882 = vset.pattern.permute.xlu0 0
        %2883 = vperm.xlu0 %2882, %v2563
        %v2884 = vpop.permute.xlu0 %2883
        %2887 = vset.pattern.permute.xlu0 0
        %2888 = vperm.xlu0 %2887, %v2568
        %v2889 = vpop.permute.xlu0 %2888
        %2892 = vset.pattern.permute.xlu0 0
        %2893 = vperm.xlu0 %2892, %v2573
        %v2894 = vpop.permute.xlu0 %2893
        %2897 = vset.pattern.permute.xlu0 0
        %2898 = vperm.xlu0 %2897, %v2578
        %v2899 = vpop.permute.xlu0 %2898
        %2902 = vset.pattern.permute.xlu0 0
        %2903 = vperm.xlu0 %2902, %v2583
        %v2904 = vpop.permute.xlu0 %2903
        %2907 = vset.pattern.permute.xlu0 0
        %2908 = vperm.xlu0 %2907, %v2588
        %v2909 = vpop.permute.xlu0 %2908
        %2912 = vset.pattern.permute.xlu0 0
        %2913 = vperm.xlu0 %2912, %v2593
        %v2914 = vpop.permute.xlu0 %2913
        %2917 = vset.pattern.permute.xlu0 0
        %2918 = vperm.xlu0 %2917, %v2598
        %v2919 = vpop.permute.xlu0 %2918
        %2922 = vset.pattern.permute.xlu0 0
        %2923 = vperm.xlu0 %2922, %v2603
        %v2924 = vpop.permute.xlu0 %2923
        %2927 = vset.pattern.permute.xlu0 0
        %2928 = vperm.xlu0 %2927, %v2608
        %v2929 = vpop.permute.xlu0 %2928
        %2932 = vset.pattern.permute.xlu0 0
        %2933 = vperm.xlu0 %2932, %v2613
        %v2934 = vpop.permute.xlu0 %2933
        %2937 = vset.pattern.permute.xlu0 0
        %2938 = vperm.xlu0 %2937, %v2618
        %v2939 = vpop.permute.xlu0 %2938
        %2942 = vset.pattern.permute.xlu0 0
        %2943 = vperm.xlu0 %2942, %v2623
        %v2944 = vpop.permute.xlu0 %2943
        %2947 = vset.pattern.permute.xlu0 0
        %2948 = vperm.xlu0 %2947, %v2628
        %v2949 = vpop.permute.xlu0 %2948
        %2952 = vset.pattern.permute.xlu0 0
        %2953 = vperm.xlu0 %2952, %v2633
        %v2954 = vpop.permute.xlu0 %2953
        %2957 = vset.pattern.permute.xlu0 0
        %2958 = vperm.xlu0 %2957, %v2638
        %v2959 = vpop.permute.xlu0 %2958
        %2962 = vset.pattern.permute.xlu0 0
        %2963 = vperm.xlu0 %2962, %v2643
        %v2964 = vpop.permute.xlu0 %2963
        %2967 = vset.pattern.permute.xlu0 0
        %2968 = vperm.xlu0 %2967, %v2648
        %v2969 = vpop.permute.xlu0 %2968
        %2972 = vset.pattern.permute.xlu0 0
        %2973 = vperm.xlu0 %2972, %v2653
        %v2974 = vpop.permute.xlu0 %2973
        %2977 = vset.pattern.permute.xlu0 0
        %2978 = vperm.xlu0 %2977, %v2658
        %v2979 = vpop.permute.xlu0 %2978
        %2982 = vset.pattern.permute.xlu0 0
        %2983 = vperm.xlu0 %2982, %v2663
        %v2984 = vpop.permute.xlu0 %2983
        %v2986 = vlaneseq
        %v2987 = vshrl.u32 %v2986, 7
        %v2988 = vsub.s32 0, %v2987
        %v2989 = vrot.slane %v2188, %v2988
        %v2990 = vlaneseq
        %v2991 = vshrl.u32 %v2990, 7
        %v2992 = vsub.s32 0, %v2991
        %v2993 = vrot.slane %v2190, %v2992
        %v2994 = vmul.f32 %v2829, %v2989
        %v2995 = vmul.f32 %v2829, %v2993
        %v2996 = vmul.f32 %v2834, %v2989
        %v2997 = vmul.f32 %v2834, %v2993
        %v2998 = vmul.f32 %v2839, %v2989
        %v2999 = vmul.f32 %v2839, %v2993
        %v3000 = vmul.f32 %v2844, %v2989
        %v3001 = vmul.f32 %v2844, %v2993
        %v3002 = vmul.f32 %v2849, %v2989
        %v3003 = vmul.f32 %v2849, %v2993
        %v3004 = vmul.f32 %v2854, %v2989
        %v3005 = vmul.f32 %v2854, %v2993
        %v3006 = vmul.f32 %v2859, %v2989
        %v3007 = vmul.f32 %v2859, %v2993
        %v3008 = vmul.f32 %v2864, %v2989
        %v3009 = vmul.f32 %v2864, %v2993
        %v3010 = vmul.f32 %v2869, %v2989
        %v3011 = vmul.f32 %v2869, %v2993
        %v3012 = vmul.f32 %v2874, %v2989
        %v3013 = vmul.f32 %v2874, %v2993
        %v3014 = vmul.f32 %v2879, %v2989
        %v3015 = vmul.f32 %v2879, %v2993
        %v3016 = vmul.f32 %v2884, %v2989
        %v3017 = vmul.f32 %v2884, %v2993
        %v3018 = vmul.f32 %v2889, %v2989
        %v3019 = vmul.f32 %v2889, %v2993
        %v3020 = vmul.f32 %v2894, %v2989
        %v3021 = vmul.f32 %v2894, %v2993
        %v3022 = vmul.f32 %v2899, %v2989
        %v3023 = vmul.f32 %v2899, %v2993
        %v3024 = vmul.f32 %v2904, %v2989
        %v3025 = vmul.f32 %v2904, %v2993
        %v3026 = vmul.f32 %v2909, %v2989
        %v3027 = vmul.f32 %v2909, %v2993
        %v3028 = vmul.f32 %v2914, %v2989
        %v3029 = vmul.f32 %v2914, %v2993
        %v3030 = vmul.f32 %v2919, %v2989
        %v3031 = vmul.f32 %v2919, %v2993
        %v3032 = vmul.f32 %v2924, %v2989
        %v3033 = vmul.f32 %v2924, %v2993
        %v3034 = vmul.f32 %v2929, %v2989
        %v3035 = vmul.f32 %v2929, %v2993
        %v3036 = vmul.f32 %v2934, %v2989
        %v3037 = vmul.f32 %v2934, %v2993
        %v3038 = vmul.f32 %v2939, %v2989
        %v3039 = vmul.f32 %v2939, %v2993
        %v3040 = vmul.f32 %v2944, %v2989
        %v3041 = vmul.f32 %v2944, %v2993
        %v3042 = vmul.f32 %v2949, %v2989
        %v3043 = vmul.f32 %v2949, %v2993
        %v3044 = vmul.f32 %v2954, %v2989
        %v3045 = vmul.f32 %v2954, %v2993
        %v3046 = vmul.f32 %v2959, %v2989
        %v3047 = vmul.f32 %v2959, %v2993
        %v3048 = vmul.f32 %v2964, %v2989
        %v3049 = vmul.f32 %v2964, %v2993
        %v3050 = vmul.f32 %v2969, %v2989
        %v3051 = vmul.f32 %v2969, %v2993
        %v3052 = vmul.f32 %v2974, %v2989
        %v3053 = vmul.f32 %v2974, %v2993
        %v3054 = vmul.f32 %v2979, %v2989
        %v3055 = vmul.f32 %v2979, %v2993
        %v3056 = vmul.f32 %v2984, %v2989
        %v3057 = vmul.f32 %v2984, %v2993
        %v3058 = vlaneseq
        %v3059 = vshrl.u32 %v3058, 7
        %v3060 = vsub.s32 0, %v3059
        %v3061 = vrot.slane %v2824, %v3060
        %v3062 = vlaneseq
        %v3063 = vshrl.u32 %v3062, 7
        %v3064 = vsub.s32 0, %v3063
        %v3065 = vrot.slane %v2825, %v3064
        %v3066 = vsub.f32 %v2994, %v3061
        %v3067 = vsub.f32 %v2995, %v3065
        %v3068 = vsub.f32 %v2996, %v3061
        %v3069 = vsub.f32 %v2997, %v3065
        %v3070 = vsub.f32 %v2998, %v3061
        %v3071 = vsub.f32 %v2999, %v3065
        %v3072 = vsub.f32 %v3000, %v3061
        %v3073 = vsub.f32 %v3001, %v3065
        %v3074 = vsub.f32 %v3002, %v3061
        %v3075 = vsub.f32 %v3003, %v3065
        %v3076 = vsub.f32 %v3004, %v3061
        %v3077 = vsub.f32 %v3005, %v3065
        %v3078 = vsub.f32 %v3006, %v3061
        %v3079 = vsub.f32 %v3007, %v3065
        %v3080 = vsub.f32 %v3008, %v3061
        %v3081 = vsub.f32 %v3009, %v3065
        %v3082 = vsub.f32 %v3010, %v3061
        %v3083 = vsub.f32 %v3011, %v3065
        %v3084 = vsub.f32 %v3012, %v3061
        %v3085 = vsub.f32 %v3013, %v3065
        %v3086 = vsub.f32 %v3014, %v3061
        %v3087 = vsub.f32 %v3015, %v3065
        %v3088 = vsub.f32 %v3016, %v3061
        %v3089 = vsub.f32 %v3017, %v3065
        %v3090 = vsub.f32 %v3018, %v3061
        %v3091 = vsub.f32 %v3019, %v3065
        %v3092 = vsub.f32 %v3020, %v3061
        %v3093 = vsub.f32 %v3021, %v3065
        %v3094 = vsub.f32 %v3022, %v3061
        %v3095 = vsub.f32 %v3023, %v3065
        %v3096 = vsub.f32 %v3024, %v3061
        %v3097 = vsub.f32 %v3025, %v3065
        %v3098 = vsub.f32 %v3026, %v3061
        %v3099 = vsub.f32 %v3027, %v3065
        %v3100 = vsub.f32 %v3028, %v3061
        %v3101 = vsub.f32 %v3029, %v3065
        %v3102 = vsub.f32 %v3030, %v3061
        %v3103 = vsub.f32 %v3031, %v3065
        %v3104 = vsub.f32 %v3032, %v3061
        %v3105 = vsub.f32 %v3033, %v3065
        %v3106 = vsub.f32 %v3034, %v3061
        %v3107 = vsub.f32 %v3035, %v3065
        %v3108 = vsub.f32 %v3036, %v3061
        %v3109 = vsub.f32 %v3037, %v3065
        %v3110 = vsub.f32 %v3038, %v3061
        %v3111 = vsub.f32 %v3039, %v3065
        %v3112 = vsub.f32 %v3040, %v3061
        %v3113 = vsub.f32 %v3041, %v3065
        %v3114 = vsub.f32 %v3042, %v3061
        %v3115 = vsub.f32 %v3043, %v3065
        %v3116 = vsub.f32 %v3044, %v3061
        %v3117 = vsub.f32 %v3045, %v3065
        %v3118 = vsub.f32 %v3046, %v3061
        %v3119 = vsub.f32 %v3047, %v3065
        %v3120 = vsub.f32 %v3048, %v3061
        %v3121 = vsub.f32 %v3049, %v3065
        %v3122 = vsub.f32 %v3050, %v3061
        %v3123 = vsub.f32 %v3051, %v3065
        %v3124 = vsub.f32 %v3052, %v3061
        %v3125 = vsub.f32 %v3053, %v3065
        %v3126 = vsub.f32 %v3054, %v3061
        %v3127 = vsub.f32 %v3055, %v3065
        %v3128 = vsub.f32 %v3056, %v3061
        %v3129 = vsub.f32 %v3057, %v3065
        %v3130 = vmul.f32 %v3066, 1.442695
        %v3131 = vpow.pop %v3130
        %v3132 = vmul.f32 %v3067, 1.442695
        %v3133 = vpow.pop %v3132
        %v3134 = vmul.f32 %v3068, 1.442695
        %v3135 = vpow.pop %v3134
        %v3136 = vmul.f32 %v3069, 1.442695
        %v3137 = vpow.pop %v3136
        %v3138 = vmul.f32 %v3070, 1.442695
        %v3139 = vpow.pop %v3138
        %v3140 = vmul.f32 %v3071, 1.442695
        %v3141 = vpow.pop %v3140
        %v3142 = vmul.f32 %v3072, 1.442695
        %v3143 = vpow.pop %v3142
        %v3144 = vmul.f32 %v3073, 1.442695
        %v3145 = vpow.pop %v3144
        %v3146 = vmul.f32 %v3074, 1.442695
        %v3147 = vpow.pop %v3146
        %v3148 = vmul.f32 %v3075, 1.442695
        %v3149 = vpow.pop %v3148
        %v3150 = vmul.f32 %v3076, 1.442695
        %v3151 = vpow.pop %v3150
        %v3152 = vmul.f32 %v3077, 1.442695
        %v3153 = vpow.pop %v3152
        %v3154 = vmul.f32 %v3078, 1.442695
        %v3155 = vpow.pop %v3154
        %v3156 = vmul.f32 %v3079, 1.442695
        %v3157 = vpow.pop %v3156
        %v3158 = vmul.f32 %v3080, 1.442695
        %v3159 = vpow.pop %v3158
        %v3160 = vmul.f32 %v3081, 1.442695
        %v3161 = vpow.pop %v3160
        %v3162 = vmul.f32 %v3082, 1.442695
        %v3163 = vpow.pop %v3162
        %v3164 = vmul.f32 %v3083, 1.442695
        %v3165 = vpow.pop %v3164
        %v3166 = vmul.f32 %v3084, 1.442695
        %v3167 = vpow.pop %v3166
        %v3168 = vmul.f32 %v3085, 1.442695
        %v3169 = vpow.pop %v3168
        %v3170 = vmul.f32 %v3086, 1.442695
        %v3171 = vpow.pop %v3170
        %v3172 = vmul.f32 %v3087, 1.442695
        %v3173 = vpow.pop %v3172
        %v3174 = vmul.f32 %v3088, 1.442695
        %v3175 = vpow.pop %v3174
        %v3176 = vmul.f32 %v3089, 1.442695
        %v3177 = vpow.pop %v3176
        %v3178 = vmul.f32 %v3090, 1.442695
        %v3179 = vpow.pop %v3178
        %v3180 = vmul.f32 %v3091, 1.442695
        %v3181 = vpow.pop %v3180
        %v3182 = vmul.f32 %v3092, 1.442695
        %v3183 = vpow.pop %v3182
        %v3184 = vmul.f32 %v3093, 1.442695
        %v3185 = vpow.pop %v3184
        %v3186 = vmul.f32 %v3094, 1.442695
        %v3187 = vpow.pop %v3186
        %v3188 = vmul.f32 %v3095, 1.442695
        %v3189 = vpow.pop %v3188
        %v3190 = vmul.f32 %v3096, 1.442695
        %v3191 = vpow.pop %v3190
        %v3192 = vmul.f32 %v3097, 1.442695
        %v3193 = vpow.pop %v3192
        %v3194 = vmul.f32 %v3098, 1.442695
        %v3195 = vpow.pop %v3194
        %v3196 = vmul.f32 %v3099, 1.442695
        %v3197 = vpow.pop %v3196
        %v3198 = vmul.f32 %v3100, 1.442695
        %v3199 = vpow.pop %v3198
        %v3200 = vmul.f32 %v3101, 1.442695
        %v3201 = vpow.pop %v3200
        %v3202 = vmul.f32 %v3102, 1.442695
        %v3203 = vpow.pop %v3202
        %v3204 = vmul.f32 %v3103, 1.442695
        %v3205 = vpow.pop %v3204
        %v3206 = vmul.f32 %v3104, 1.442695
        %v3207 = vpow.pop %v3206
        %v3208 = vmul.f32 %v3105, 1.442695
        %v3209 = vpow.pop %v3208
        %v3210 = vmul.f32 %v3106, 1.442695
        %v3211 = vpow.pop %v3210
        %v3212 = vmul.f32 %v3107, 1.442695
        %v3213 = vpow.pop %v3212
        %v3214 = vmul.f32 %v3108, 1.442695
        %v3215 = vpow.pop %v3214
        %v3216 = vmul.f32 %v3109, 1.442695
        %v3217 = vpow.pop %v3216
        %v3218 = vmul.f32 %v3110, 1.442695
        %v3219 = vpow.pop %v3218
        %v3220 = vmul.f32 %v3111, 1.442695
        %v3221 = vpow.pop %v3220
        %v3222 = vmul.f32 %v3112, 1.442695
        %v3223 = vpow.pop %v3222
        %v3224 = vmul.f32 %v3113, 1.442695
        %v3225 = vpow.pop %v3224
        %v3226 = vmul.f32 %v3114, 1.442695
        %v3227 = vpow.pop %v3226
        %v3228 = vmul.f32 %v3115, 1.442695
        %v3229 = vpow.pop %v3228
        %v3230 = vmul.f32 %v3116, 1.442695
        %v3231 = vpow.pop %v3230
        %v3232 = vmul.f32 %v3117, 1.442695
        %v3233 = vpow.pop %v3232
        %v3234 = vmul.f32 %v3118, 1.442695
        %v3235 = vpow.pop %v3234
        %v3236 = vmul.f32 %v3119, 1.442695
        %v3237 = vpow.pop %v3236
        %v3238 = vmul.f32 %v3120, 1.442695
        %v3239 = vpow.pop %v3238
        %v3240 = vmul.f32 %v3121, 1.442695
        %v3241 = vpow.pop %v3240
        %v3242 = vmul.f32 %v3122, 1.442695
        %v3243 = vpow.pop %v3242
        %v3244 = vmul.f32 %v3123, 1.442695
        %v3245 = vpow.pop %v3244
        %v3246 = vmul.f32 %v3124, 1.442695
        %v3247 = vpow.pop %v3246
        %v3248 = vmul.f32 %v3125, 1.442695
        %v3249 = vpow.pop %v3248
        %v3250 = vmul.f32 %v3126, 1.442695
        %v3251 = vpow.pop %v3250
        %v3252 = vmul.f32 %v3127, 1.442695
        %v3253 = vpow.pop %v3252
        %v3254 = vmul.f32 %v3128, 1.442695
        %v3255 = vpow.pop %v3254
        %v3256 = vmul.f32 %v3129, 1.442695
        %v3257 = vpow.pop %v3256
        %v3260 = vcombine.low %v2269, %v2271
        %v3262 = vunpack.c.l.s4 1966171168
        %v3263 = vunpack.c.0.s8 %v3262
        %v3264 = vlaneseq
        %v3265 = vshrl.u32 %v3264, 7
        %v3266 = vsub.s32 %v3263, %v3265
        %v3267 = vrot.slane %v3260, %v3266
        %v3269 = vunpack.c.l.s4 1966171168
        %v3270 = vunpack.c.0.s8 %v3269
        %v3271 = vlaneseq
        %v3272 = vshrl.u32 %v3271, 7
        %v3273 = vsub.s32 %v3270, %v3272
        %v3274 = vrot.slane %v3267, %v3273
        %3276 = vst.msk [vmem:[#allocation4] ss:$2 sm:$0x3] %vm2807, %v3274
        %v3277 = vld [vmem:[#allocation4] sm:$0xf]
        %v3280 = vunpack.c.l.s4 1983009808
        %v3281 = vunpack.c.0.s8 %v3280
        %v3282 = vlaneseq
        %v3283 = vshrl.u32 %v3282, 7
        %v3284 = vsub.s32 %v3281, %v3283
        %v3285 = vrot.slane %v3277, %v3284
        %v3286 = vcombine.high %v3285, %v3285
        %3289 = vmatprep.subr.mxu0 %v3133
        %3290 = vmatpush1.msra.mxu0 %v3131
        %3291 = vmatprep.subr.mxu0 %v3137
        %3292 = vmatpush1.msra.mxu0 %v3135
        %3293 = vmatprep.subr.mxu0 %v3141
        %3294 = vmatpush1.msra.mxu0 %v3139
        %3295 = vmatprep.subr.mxu0 %v3145
        %3296 = vmatpush1.msra.mxu0 %v3143
        %3297 = vmatprep.subr.mxu0 %v3149
        %3298 = vmatpush1.msra.mxu0 %v3147
        %3299 = vmatprep.subr.mxu0 %v3153
        %3300 = vmatpush1.msra.mxu0 %v3151
        %3301 = vmatprep.subr.mxu0 %v3157
        %3302 = vmatpush1.msra.mxu0 %v3155
        %3303 = vmatprep.subr.mxu0 %v3161
        %3304 = vmatpush1.msra.mxu0 %v3159
        %3305 = vmatprep.subr.mxu0 %v3165
        %3306 = vmatpush1.msra.mxu0 %v3163
        %3307 = vmatprep.subr.mxu0 %v3169
        %3308 = vmatpush1.msra.mxu0 %v3167
        %3309 = vmatprep.subr.mxu0 %v3173
        %3310 = vmatpush1.msra.mxu0 %v3171
        %3311 = vmatprep.subr.mxu0 %v3177
        %3312 = vmatpush1.msra.mxu0 %v3175
        %3313 = vmatprep.subr.mxu0 %v3181
        %3314 = vmatpush1.msra.mxu0 %v3179
        %3315 = vmatprep.subr.mxu0 %v3185
        %3316 = vmatpush1.msra.mxu0 %v3183
        %3317 = vmatprep.subr.mxu0 %v3189
        %3318 = vmatpush1.msra.mxu0 %v3187
        %3319 = vmatprep.subr.mxu0 %v3193
        %3320 = vmatpush1.msra.mxu0 %v3191
        %3321 = vmatprep.subr.mxu0 %v3197
        %3322 = vmatpush1.msra.mxu0 %v3195
        %3323 = vmatprep.subr.mxu0 %v3201
        %3324 = vmatpush1.msra.mxu0 %v3199
        %3325 = vmatprep.subr.mxu0 %v3205
        %3326 = vmatpush1.msra.mxu0 %v3203
        %3327 = vmatprep.subr.mxu0 %v3209
        %3328 = vmatpush1.msra.mxu0 %v3207
        %3329 = vmatprep.subr.mxu0 %v3213
        %3330 = vmatpush1.msra.mxu0 %v3211
        %3331 = vmatprep.subr.mxu0 %v3217
        %3332 = vmatpush1.msra.mxu0 %v3215
        %3333 = vmatprep.subr.mxu0 %v3221
        %3334 = vmatpush1.msra.mxu0 %v3219
        %3335 = vmatprep.subr.mxu0 %v3225
        %3336 = vmatpush1.msra.mxu0 %v3223
        %3337 = vmatprep.subr.mxu0 %v3229
        %3338 = vmatpush1.msra.mxu0 %v3227
        %3339 = vmatprep.subr.mxu0 %v3233
        %3340 = vmatpush1.msra.mxu0 %v3231
        %3341 = vmatprep.subr.mxu0 %v3237
        %3342 = vmatpush1.msra.mxu0 %v3235
        %3343 = vmatprep.subr.mxu0 %v3241
        %3344 = vmatpush1.msra.mxu0 %v3239
        %3345 = vmatprep.subr.mxu0 %v3245
        %3346 = vmatpush1.msra.mxu0 %v3243
        %3347 = vmatprep.subr.mxu0 %v3249
        %3348 = vmatpush1.msra.mxu0 %v3247
        %3349 = vmatprep.subr.mxu0 %v3253
        %3350 = vmatpush1.msra.mxu0 %v3251
        %3351 = vmatprep.subr.mxu0 %v3257
        %3352 = vmatpush1.msra.mxu0 %v3255
        %3353 = vmatprep.mubr.f32.mxu0 %v3286
        %3354 = vmatmul.mubr.f32.gmra.mrb[0].mxu0 %v3285
        %v3355 = vpop.f32.mrb[0].mxu0
        %v3356 = vadd.f32 0.0, %v3355
        %v3357 = vpop.f32.mrb[0].mxu0
        %v3358 = vadd.f32 0.0, %v3357
        %3359 = vdwg.mxu0
        %v3362 = vrot.slane %v3356, 1
        %v3363 = vrot.slane %v3358, 1
        %v3366 = vrcp.pop %v3362
        %v3367 = vmul.f32 %v3356, %v3366
        %v3368 = vrcp.pop %v3363
        %v3369 = vmul.f32 %v3358, %v3368
        %v3372 = vcombine.low %v3367, %v3369
        %v3374 = vunpack.c.l.s4 1966171168
        %v3375 = vunpack.c.0.s8 %v3374
        %v3376 = vlaneseq
        %v3377 = vshrl.u32 %v3376, 7
        %v3378 = vsub.s32 %v3375, %v3377
        %v3379 = vrot.slane %v3372, %v3378
        %v3381 = vunpack.c.l.s4 1966171168
        %v3382 = vunpack.c.0.s8 %v3381
        %v3383 = vlaneseq
        %v3384 = vshrl.u32 %v3383, 7
        %v3385 = vsub.s32 %v3382, %v3384
        %v3386 = vrot.slane %v3379, %v3385
        %3388 = vst.msk [vmem:[#allocation5] ss:$8 sm:$0x3] %vm2807, %v3386
        %3389 = vst.msk [vmem:[#allocation5] ss:$8 sm:$0x0] %vm2807, %v3386
        %3390 = vset.pattern.permute.xlu0 1
        %3391 = vperm.xlu0 %3390, %v2734
        %v3392 = vpop.permute.xlu0 %3391
        %v3394 = vmul.f32 %v2188, %v3392
        %v3395 = vmul.f32 %v2190, %v3392
        %3396 = vset.pattern.permute.xlu0 1
        %3397 = vperm.xlu0 %3396, %v2803
        %v3398 = vpop.permute.xlu0 %3397
        %v3400 = vmul.f32 %v2188, %v3398
        %v3401 = vmul.f32 %v2190, %v3398
        %v3402 = vmax.f32 %v3394, %v3400
        %v3403 = vmax.f32 %v3395, %v3401
        %3404 = vset.pattern.permute.xlu0 1
        %3405 = vperm.xlu0 %3404, %v2508
        %v3406 = vpop.permute.xlu0 %3405
        %3408 = vset.pattern.permute.xlu0 1
        %3409 = vperm.xlu0 %3408, %v2513
        %v3410 = vpop.permute.xlu0 %3409
        %3412 = vset.pattern.permute.xlu0 1
        %3413 = vperm.xlu0 %3412, %v2518
        %v3414 = vpop.permute.xlu0 %3413
        %3416 = vset.pattern.permute.xlu0 1
        %3417 = vperm.xlu0 %3416, %v2523
        %v3418 = vpop.permute.xlu0 %3417
        %3420 = vset.pattern.permute.xlu0 1
        %3421 = vperm.xlu0 %3420, %v2528
        %v3422 = vpop.permute.xlu0 %3421
        %3424 = vset.pattern.permute.xlu0 1
        %3425 = vperm.xlu0 %3424, %v2533
        %v3426 = vpop.permute.xlu0 %3425
        %3428 = vset.pattern.permute.xlu0 1
        %3429 = vperm.xlu0 %3428, %v2538
        %v3430 = vpop.permute.xlu0 %3429
        %3432 = vset.pattern.permute.xlu0 1
        %3433 = vperm.xlu0 %3432, %v2543
        %v3434 = vpop.permute.xlu0 %3433
        %3436 = vset.pattern.permute.xlu0 1
        %3437 = vperm.xlu0 %3436, %v2548
        %v3438 = vpop.permute.xlu0 %3437
        %3440 = vset.pattern.permute.xlu0 1
        %3441 = vperm.xlu0 %3440, %v2553
        %v3442 = vpop.permute.xlu0 %3441
        %3444 = vset.pattern.permute.xlu0 1
        %3445 = vperm.xlu0 %3444, %v2558
        %v3446 = vpop.permute.xlu0 %3445
        %3448 = vset.pattern.permute.xlu0 1
        %3449 = vperm.xlu0 %3448, %v2563
        %v3450 = vpop.permute.xlu0 %3449
        %3452 = vset.pattern.permute.xlu0 1
        %3453 = vperm.xlu0 %3452, %v2568
        %v3454 = vpop.permute.xlu0 %3453
        %3456 = vset.pattern.permute.xlu0 1
        %3457 = vperm.xlu0 %3456, %v2573
        %v3458 = vpop.permute.xlu0 %3457
        %3460 = vset.pattern.permute.xlu0 1
        %3461 = vperm.xlu0 %3460, %v2578
        %v3462 = vpop.permute.xlu0 %3461
        %3464 = vset.pattern.permute.xlu0 1
        %3465 = vperm.xlu0 %3464, %v2583
        %v3466 = vpop.permute.xlu0 %3465
        %3468 = vset.pattern.permute.xlu0 1
        %3469 = vperm.xlu0 %3468, %v2588
        %v3470 = vpop.permute.xlu0 %3469
        %3472 = vset.pattern.permute.xlu0 1
        %3473 = vperm.xlu0 %3472, %v2593
        %v3474 = vpop.permute.xlu0 %3473
        %3476 = vset.pattern.permute.xlu0 1
        %3477 = vperm.xlu0 %3476, %v2598
        %v3478 = vpop.permute.xlu0 %3477
        %3480 = vset.pattern.permute.xlu0 1
        %3481 = vperm.xlu0 %3480, %v2603
        %v3482 = vpop.permute.xlu0 %3481
        %3484 = vset.pattern.permute.xlu0 1
        %3485 = vperm.xlu0 %3484, %v2608
        %v3486 = vpop.permute.xlu0 %3485
        %3488 = vset.pattern.permute.xlu0 1
        %3489 = vperm.xlu0 %3488, %v2613
        %v3490 = vpop.permute.xlu0 %3489
        %3492 = vset.pattern.permute.xlu0 1
        %3493 = vperm.xlu0 %3492, %v2618
        %v3494 = vpop.permute.xlu0 %3493
        %3496 = vset.pattern.permute.xlu0 1
        %3497 = vperm.xlu0 %3496, %v2623
        %v3498 = vpop.permute.xlu0 %3497
        %3500 = vset.pattern.permute.xlu0 1
        %3501 = vperm.xlu0 %3500, %v2628
        %v3502 = vpop.permute.xlu0 %3501
        %3504 = vset.pattern.permute.xlu0 1
        %3505 = vperm.xlu0 %3504, %v2633
        %v3506 = vpop.permute.xlu0 %3505
        %3508 = vset.pattern.permute.xlu0 1
        %3509 = vperm.xlu0 %3508, %v2638
        %v3510 = vpop.permute.xlu0 %3509
        %3512 = vset.pattern.permute.xlu0 1
        %3513 = vperm.xlu0 %3512, %v2643
        %v3514 = vpop.permute.xlu0 %3513
        %3516 = vset.pattern.permute.xlu0 1
        %3517 = vperm.xlu0 %3516, %v2648
        %v3518 = vpop.permute.xlu0 %3517
        %3520 = vset.pattern.permute.xlu0 1
        %3521 = vperm.xlu0 %3520, %v2653
        %v3522 = vpop.permute.xlu0 %3521
        %3524 = vset.pattern.permute.xlu0 1
        %3525 = vperm.xlu0 %3524, %v2658
        %v3526 = vpop.permute.xlu0 %3525
        %3528 = vset.pattern.permute.xlu0 1
        %3529 = vperm.xlu0 %3528, %v2663
        %v3530 = vpop.permute.xlu0 %3529
        %v3532 = vlaneseq
        %v3533 = vshrl.u32 %v3532, 7
        %v3534 = vsub.s32 1, %v3533
        %v3535 = vrot.slane %v2188, %v3534
        %v3536 = vlaneseq
        %v3537 = vshrl.u32 %v3536, 7
        %v3538 = vsub.s32 1, %v3537
        %v3539 = vrot.slane %v2190, %v3538
        %v3540 = vmul.f32 %v3406, %v3535
        %v3541 = vmul.f32 %v3406, %v3539
        %v3542 = vmul.f32 %v3410, %v3535
        %v3543 = vmul.f32 %v3410, %v3539
        %v3544 = vmul.f32 %v3414, %v3535
        %v3545 = vmul.f32 %v3414, %v3539
        %v3546 = vmul.f32 %v3418, %v3535
        %v3547 = vmul.f32 %v3418, %v3539
        %v3548 = vmul.f32 %v3422, %v3535
        %v3549 = vmul.f32 %v3422, %v3539
        %v3550 = vmul.f32 %v3426, %v3535
        %v3551 = vmul.f32 %v3426, %v3539
        %v3552 = vmul.f32 %v3430, %v3535
        %v3553 = vmul.f32 %v3430, %v3539
        %v3554 = vmul.f32 %v3434, %v3535
        %v3555 = vmul.f32 %v3434, %v3539
        %v3556 = vmul.f32 %v3438, %v3535
        %v3557 = vmul.f32 %v3438, %v3539
        %v3558 = vmul.f32 %v3442, %v3535
        %v3559 = vmul.f32 %v3442, %v3539
        %v3560 = vmul.f32 %v3446, %v3535
        %v3561 = vmul.f32 %v3446, %v3539
        %v3562 = vmul.f32 %v3450, %v3535
        %v3563 = vmul.f32 %v3450, %v3539
        %v3564 = vmul.f32 %v3454, %v3535
        %v3565 = vmul.f32 %v3454, %v3539
        %v3566 = vmul.f32 %v3458, %v3535
        %v3567 = vmul.f32 %v3458, %v3539
        %v3568 = vmul.f32 %v3462, %v3535
        %v3569 = vmul.f32 %v3462, %v3539
        %v3570 = vmul.f32 %v3466, %v3535
        %v3571 = vmul.f32 %v3466, %v3539
        %v3572 = vmul.f32 %v3470, %v3535
        %v3573 = vmul.f32 %v3470, %v3539
        %v3574 = vmul.f32 %v3474, %v3535
        %v3575 = vmul.f32 %v3474, %v3539
        %v3576 = vmul.f32 %v3478, %v3535
        %v3577 = vmul.f32 %v3478, %v3539
        %v3578 = vmul.f32 %v3482, %v3535
        %v3579 = vmul.f32 %v3482, %v3539
        %v3580 = vmul.f32 %v3486, %v3535
        %v3581 = vmul.f32 %v3486, %v3539
        %v3582 = vmul.f32 %v3490, %v3535
        %v3583 = vmul.f32 %v3490, %v3539
        %v3584 = vmul.f32 %v3494, %v3535
        %v3585 = vmul.f32 %v3494, %v3539
        %v3586 = vmul.f32 %v3498, %v3535
        %v3587 = vmul.f32 %v3498, %v3539
        %v3588 = vmul.f32 %v3502, %v3535
        %v3589 = vmul.f32 %v3502, %v3539
        %v3590 = vmul.f32 %v3506, %v3535
        %v3591 = vmul.f32 %v3506, %v3539
        %v3592 = vmul.f32 %v3510, %v3535
        %v3593 = vmul.f32 %v3510, %v3539
        %v3594 = vmul.f32 %v3514, %v3535
        %v3595 = vmul.f32 %v3514, %v3539
        %v3596 = vmul.f32 %v3518, %v3535
        %v3597 = vmul.f32 %v3518, %v3539
        %v3598 = vmul.f32 %v3522, %v3535
        %v3599 = vmul.f32 %v3522, %v3539
        %v3600 = vmul.f32 %v3526, %v3535
        %v3601 = vmul.f32 %v3526, %v3539
        %v3602 = vmul.f32 %v3530, %v3535
        %v3603 = vmul.f32 %v3530, %v3539
        %v3604 = vlaneseq
        %v3605 = vshrl.u32 %v3604, 7
        %v3606 = vsub.s32 1, %v3605
        %v3607 = vrot.slane %v3402, %v3606
        %v3608 = vlaneseq
        %v3609 = vshrl.u32 %v3608, 7
        %v3610 = vsub.s32 1, %v3609
        %v3611 = vrot.slane %v3403, %v3610
        %v3612 = vsub.f32 %v3540, %v3607
        %v3613 = vsub.f32 %v3541, %v3611
        %v3614 = vsub.f32 %v3542, %v3607
        %v3615 = vsub.f32 %v3543, %v3611
        %v3616 = vsub.f32 %v3544, %v3607
        %v3617 = vsub.f32 %v3545, %v3611
        %v3618 = vsub.f32 %v3546, %v3607
        %v3619 = vsub.f32 %v3547, %v3611
        %v3620 = vsub.f32 %v3548, %v3607
        %v3621 = vsub.f32 %v3549, %v3611
        %v3622 = vsub.f32 %v3550, %v3607
        %v3623 = vsub.f32 %v3551, %v3611
        %v3624 = vsub.f32 %v3552, %v3607
        %v3625 = vsub.f32 %v3553, %v3611
        %v3626 = vsub.f32 %v3554, %v3607
        %v3627 = vsub.f32 %v3555, %v3611
        %v3628 = vsub.f32 %v3556, %v3607
        %v3629 = vsub.f32 %v3557, %v3611
        %v3630 = vsub.f32 %v3558, %v3607
        %v3631 = vsub.f32 %v3559, %v3611
        %v3632 = vsub.f32 %v3560, %v3607
        %v3633 = vsub.f32 %v3561, %v3611
        %v3634 = vsub.f32 %v3562, %v3607
        %v3635 = vsub.f32 %v3563, %v3611
        %v3636 = vsub.f32 %v3564, %v3607
        %v3637 = vsub.f32 %v3565, %v3611
        %v3638 = vsub.f32 %v3566, %v3607
        %v3639 = vsub.f32 %v3567, %v3611
        %v3640 = vsub.f32 %v3568, %v3607
        %v3641 = vsub.f32 %v3569, %v3611
        %v3642 = vsub.f32 %v3570, %v3607
        %v3643 = vsub.f32 %v3571, %v3611
        %v3644 = vsub.f32 %v3572, %v3607
        %v3645 = vsub.f32 %v3573, %v3611
        %v3646 = vsub.f32 %v3574, %v3607
        %v3647 = vsub.f32 %v3575, %v3611
        %v3648 = vsub.f32 %v3576, %v3607
        %v3649 = vsub.f32 %v3577, %v3611
        %v3650 = vsub.f32 %v3578, %v3607
        %v3651 = vsub.f32 %v3579, %v3611
        %v3652 = vsub.f32 %v3580, %v3607
        %v3653 = vsub.f32 %v3581, %v3611
        %v3654 = vsub.f32 %v3582, %v3607
        %v3655 = vsub.f32 %v3583, %v3611
        %v3656 = vsub.f32 %v3584, %v3607
        %v3657 = vsub.f32 %v3585, %v3611
        %v3658 = vsub.f32 %v3586, %v3607
        %v3659 = vsub.f32 %v3587, %v3611
        %v3660 = vsub.f32 %v3588, %v3607
        %v3661 = vsub.f32 %v3589, %v3611
        %v3662 = vsub.f32 %v3590, %v3607
        %v3663 = vsub.f32 %v3591, %v3611
        %v3664 = vsub.f32 %v3592, %v3607
        %v3665 = vsub.f32 %v3593, %v3611
        %v3666 = vsub.f32 %v3594, %v3607
        %v3667 = vsub.f32 %v3595, %v3611
        %v3668 = vsub.f32 %v3596, %v3607
        %v3669 = vsub.f32 %v3597, %v3611
        %v3670 = vsub.f32 %v3598, %v3607
        %v3671 = vsub.f32 %v3599, %v3611
        %v3672 = vsub.f32 %v3600, %v3607
        %v3673 = vsub.f32 %v3601, %v3611
        %v3674 = vsub.f32 %v3602, %v3607
        %v3675 = vsub.f32 %v3603, %v3611
        %v3676 = vmul.f32 %v3612, 1.442695
        %v3677 = vpow.pop %v3676
        %v3678 = vmul.f32 %v3613, 1.442695
        %v3679 = vpow.pop %v3678
        %v3680 = vmul.f32 %v3614, 1.442695
        %v3681 = vpow.pop %v3680
        %v3682 = vmul.f32 %v3615, 1.442695
        %v3683 = vpow.pop %v3682
        %v3684 = vmul.f32 %v3616, 1.442695
        %v3685 = vpow.pop %v3684
        %v3686 = vmul.f32 %v3617, 1.442695
        %v3687 = vpow.pop %v3686
        %v3688 = vmul.f32 %v3618, 1.442695
        %v3689 = vpow.pop %v3688
        %v3690 = vmul.f32 %v3619, 1.442695
        %v3691 = vpow.pop %v3690
        %v3692 = vmul.f32 %v3620, 1.442695
        %v3693 = vpow.pop %v3692
        %v3694 = vmul.f32 %v3621, 1.442695
        %v3695 = vpow.pop %v3694
        %v3696 = vmul.f32 %v3622, 1.442695
        %v3697 = vpow.pop %v3696
        %v3698 = vmul.f32 %v3623, 1.442695
        %v3699 = vpow.pop %v3698
        %v3700 = vmul.f32 %v3624, 1.442695
        %v3701 = vpow.pop %v3700
        %v3702 = vmul.f32 %v3625, 1.442695
        %v3703 = vpow.pop %v3702
        %v3704 = vmul.f32 %v3626, 1.442695
        %v3705 = vpow.pop %v3704
        %v3706 = vmul.f32 %v3627, 1.442695
        %v3707 = vpow.pop %v3706
        %v3708 = vmul.f32 %v3628, 1.442695
        %v3709 = vpow.pop %v3708
        %v3710 = vmul.f32 %v3629, 1.442695
        %v3711 = vpow.pop %v3710
        %v3712 = vmul.f32 %v3630, 1.442695
        %v3713 = vpow.pop %v3712
        %v3714 = vmul.f32 %v3631, 1.442695
        %v3715 = vpow.pop %v3714
        %v3716 = vmul.f32 %v3632, 1.442695
        %v3717 = vpow.pop %v3716
        %v3718 = vmul.f32 %v3633, 1.442695
        %v3719 = vpow.pop %v3718
        %v3720 = vmul.f32 %v3634, 1.442695
        %v3721 = vpow.pop %v3720
        %v3722 = vmul.f32 %v3635, 1.442695
        %v3723 = vpow.pop %v3722
        %v3724 = vmul.f32 %v3636, 1.442695
        %v3725 = vpow.pop %v3724
        %v3726 = vmul.f32 %v3637, 1.442695
        %v3727 = vpow.pop %v3726
        %v3728 = vmul.f32 %v3638, 1.442695
        %v3729 = vpow.pop %v3728
        %v3730 = vmul.f32 %v3639, 1.442695
        %v3731 = vpow.pop %v3730
        %v3732 = vmul.f32 %v3640, 1.442695
        %v3733 = vpow.pop %v3732
        %v3734 = vmul.f32 %v3641, 1.442695
        %v3735 = vpow.pop %v3734
        %v3736 = vmul.f32 %v3642, 1.442695
        %v3737 = vpow.pop %v3736
        %v3738 = vmul.f32 %v3643, 1.442695
        %v3739 = vpow.pop %v3738
        %v3740 = vmul.f32 %v3644, 1.442695
        %v3741 = vpow.pop %v3740
        %v3742 = vmul.f32 %v3645, 1.442695
        %v3743 = vpow.pop %v3742
        %v3744 = vmul.f32 %v3646, 1.442695
        %v3745 = vpow.pop %v3744
        %v3746 = vmul.f32 %v3647, 1.442695
        %v3747 = vpow.pop %v3746
        %v3748 = vmul.f32 %v3648, 1.442695
        %v3749 = vpow.pop %v3748
        %v3750 = vmul.f32 %v3649, 1.442695
        %v3751 = vpow.pop %v3750
        %v3752 = vmul.f32 %v3650, 1.442695
        %v3753 = vpow.pop %v3752
        %v3754 = vmul.f32 %v3651, 1.442695
        %v3755 = vpow.pop %v3754
        %v3756 = vmul.f32 %v3652, 1.442695
        %v3757 = vpow.pop %v3756
        %v3758 = vmul.f32 %v3653, 1.442695
        %v3759 = vpow.pop %v3758
        %v3760 = vmul.f32 %v3654, 1.442695
        %v3761 = vpow.pop %v3760
        %v3762 = vmul.f32 %v3655, 1.442695
        %v3763 = vpow.pop %v3762
        %v3764 = vmul.f32 %v3656, 1.442695
        %v3765 = vpow.pop %v3764
        %v3766 = vmul.f32 %v3657, 1.442695
        %v3767 = vpow.pop %v3766
        %v3768 = vmul.f32 %v3658, 1.442695
        %v3769 = vpow.pop %v3768
        %v3770 = vmul.f32 %v3659, 1.442695
        %v3771 = vpow.pop %v3770
        %v3772 = vmul.f32 %v3660, 1.442695
        %v3773 = vpow.pop %v3772
        %v3774 = vmul.f32 %v3661, 1.442695
        %v3775 = vpow.pop %v3774
        %v3776 = vmul.f32 %v3662, 1.442695
        %v3777 = vpow.pop %v3776
        %v3778 = vmul.f32 %v3663, 1.442695
        %v3779 = vpow.pop %v3778
        %v3780 = vmul.f32 %v3664, 1.442695
        %v3781 = vpow.pop %v3780
        %v3782 = vmul.f32 %v3665, 1.442695
        %v3783 = vpow.pop %v3782
        %v3784 = vmul.f32 %v3666, 1.442695
        %v3785 = vpow.pop %v3784
        %v3786 = vmul.f32 %v3667, 1.442695
        %v3787 = vpow.pop %v3786
        %v3788 = vmul.f32 %v3668, 1.442695
        %v3789 = vpow.pop %v3788
        %v3790 = vmul.f32 %v3669, 1.442695
        %v3791 = vpow.pop %v3790
        %v3792 = vmul.f32 %v3670, 1.442695
        %v3793 = vpow.pop %v3792
        %v3794 = vmul.f32 %v3671, 1.442695
        %v3795 = vpow.pop %v3794
        %v3796 = vmul.f32 %v3672, 1.442695
        %v3797 = vpow.pop %v3796
        %v3798 = vmul.f32 %v3673, 1.442695
        %v3799 = vpow.pop %v3798
        %v3800 = vmul.f32 %v3674, 1.442695
        %v3801 = vpow.pop %v3800
        %v3802 = vmul.f32 %v3675, 1.442695
        %v3803 = vpow.pop %v3802
        %v3804 = vcombine.high %v3267, %v3267
        %v3806 = vunpack.c.l.s4 1966171168
        %v3807 = vunpack.c.0.s8 %v3806
        %v3808 = vlaneseq
        %v3809 = vshrl.u32 %v3808, 7
        %v3810 = vsub.s32 %v3807, %v3809
        %v3811 = vrot.slane %v3804, %v3810
        %3813 = vst.msk [vmem:[#allocation4] ss:$2 sm:$0x3] %vm2807, %v3811
        %v3814 = vld [vmem:[#allocation4] sm:$0xf]
        %v3817 = vunpack.c.l.s4 1983009808
        %v3818 = vunpack.c.0.s8 %v3817
        %v3819 = vlaneseq
        %v3820 = vshrl.u32 %v3819, 7
        %v3821 = vsub.s32 %v3818, %v3820
        %v3822 = vrot.slane %v3814, %v3821
        %v3823 = vcombine.high %v3822, %v3822
        %3826 = vmatprep.subr.mxu0 %v3679
        %3827 = vmatpush1.msra.mxu0 %v3677
        %3828 = vmatprep.subr.mxu0 %v3683
        %3829 = vmatpush1.msra.mxu0 %v3681
        %3830 = vmatprep.subr.mxu0 %v3687
        %3831 = vmatpush1.msra.mxu0 %v3685
        %3832 = vmatprep.subr.mxu0 %v3691
        %3833 = vmatpush1.msra.mxu0 %v3689
        %3834 = vmatprep.subr.mxu0 %v3695
        %3835 = vmatpush1.msra.mxu0 %v3693
        %3836 = vmatprep.subr.mxu0 %v3699
        %3837 = vmatpush1.msra.mxu0 %v3697
        %3838 = vmatprep.subr.mxu0 %v3703
        %3839 = vmatpush1.msra.mxu0 %v3701
        %3840 = vmatprep.subr.mxu0 %v3707
        %3841 = vmatpush1.msra.mxu0 %v3705
        %3842 = vmatprep.subr.mxu0 %v3711
        %3843 = vmatpush1.msra.mxu0 %v3709
        %3844 = vmatprep.subr.mxu0 %v3715
        %3845 = vmatpush1.msra.mxu0 %v3713
        %3846 = vmatprep.subr.mxu0 %v3719
        %3847 = vmatpush1.msra.mxu0 %v3717
        %3848 = vmatprep.subr.mxu0 %v3723
        %3849 = vmatpush1.msra.mxu0 %v3721
        %3850 = vmatprep.subr.mxu0 %v3727
        %3851 = vmatpush1.msra.mxu0 %v3725
        %3852 = vmatprep.subr.mxu0 %v3731
        %3853 = vmatpush1.msra.mxu0 %v3729
        %3854 = vmatprep.subr.mxu0 %v3735
        %3855 = vmatpush1.msra.mxu0 %v3733
        %3856 = vmatprep.subr.mxu0 %v3739
        %3857 = vmatpush1.msra.mxu0 %v3737
        %3858 = vmatprep.subr.mxu0 %v3743
        %3859 = vmatpush1.msra.mxu0 %v3741
        %3860 = vmatprep.subr.mxu0 %v3747
        %3861 = vmatpush1.msra.mxu0 %v3745
        %3862 = vmatprep.subr.mxu0 %v3751
        %3863 = vmatpush1.msra.mxu0 %v3749
        %3864 = vmatprep.subr.mxu0 %v3755
        %3865 = vmatpush1.msra.mxu0 %v3753
        %3866 = vmatprep.subr.mxu0 %v3759
        %3867 = vmatpush1.msra.mxu0 %v3757
        %3868 = vmatprep.subr.mxu0 %v3763
        %3869 = vmatpush1.msra.mxu0 %v3761
        %3870 = vmatprep.subr.mxu0 %v3767
        %3871 = vmatpush1.msra.mxu0 %v3765
        %3872 = vmatprep.subr.mxu0 %v3771
        %3873 = vmatpush1.msra.mxu0 %v3769
        %3874 = vmatprep.subr.mxu0 %v3775
        %3875 = vmatpush1.msra.mxu0 %v3773
        %3876 = vmatprep.subr.mxu0 %v3779
        %3877 = vmatpush1.msra.mxu0 %v3777
        %3878 = vmatprep.subr.mxu0 %v3783
        %3879 = vmatpush1.msra.mxu0 %v3781
        %3880 = vmatprep.subr.mxu0 %v3787
        %3881 = vmatpush1.msra.mxu0 %v3785
        %3882 = vmatprep.subr.mxu0 %v3791
        %3883 = vmatpush1.msra.mxu0 %v3789
        %3884 = vmatprep.subr.mxu0 %v3795
        %3885 = vmatpush1.msra.mxu0 %v3793
        %3886 = vmatprep.subr.mxu0 %v3799
        %3887 = vmatpush1.msra.mxu0 %v3797
        %3888 = vmatprep.subr.mxu0 %v3803
        %3889 = vmatpush1.msra.mxu0 %v3801
        %3890 = vmatprep.mubr.f32.mxu0 %v3823
        %3891 = vmatmul.mubr.f32.gmra.mrb[0].mxu0 %v3822
        %v3892 = vpop.f32.mrb[0].mxu0
        %v3893 = vadd.f32 0.0, %v3892
        %v3894 = vpop.f32.mrb[0].mxu0
        %v3895 = vadd.f32 0.0, %v3894
        %3896 = vdwg.mxu0
        %v3899 = vrot.slane %v3893, 1
        %v3900 = vrot.slane %v3895, 1
        %v3903 = vrcp.pop %v3899
        %v3904 = vmul.f32 %v3893, %v3903
        %v3905 = vrcp.pop %v3900
        %v3906 = vmul.f32 %v3895, %v3905
        %v3909 = vcombine.low %v3904, %v3906
        %v3911 = vunpack.c.l.s4 1966171168
        %v3912 = vunpack.c.0.s8 %v3911
        %v3913 = vlaneseq
        %v3914 = vshrl.u32 %v3913, 7
        %v3915 = vsub.s32 %v3912, %v3914
        %v3916 = vrot.slane %v3909, %v3915
        %v3918 = vunpack.c.l.s4 1966171168
        %v3919 = vunpack.c.0.s8 %v3918
        %v3920 = vlaneseq
        %v3921 = vshrl.u32 %v3920, 7
        %v3922 = vsub.s32 %v3919, %v3921
        %v3923 = vrot.slane %v3916, %v3922
        %s3925 = scalar_lea.vmem [#allocation5], 1
        %3926 = vst.msk [vmem:[%s3925] ss:$8 sm:$0x3] %vm2807, %v3923
        %3927 = vst.msk [vmem:[%s3925] ss:$8 sm:$0x0] %vm2807, %v3923
        %3928 = vset.pattern.permute.xlu0 2
        %3929 = vperm.xlu0 %3928, %v2734
        %v3930 = vpop.permute.xlu0 %3929
        %v3932 = vmul.f32 %v2188, %v3930
        %v3933 = vmul.f32 %v2190, %v3930
        %3934 = vset.pattern.permute.xlu0 2
        %3935 = vperm.xlu0 %3934, %v2803
        %v3936 = vpop.permute.xlu0 %3935
        %v3938 = vmul.f32 %v2188, %v3936
        %v3939 = vmul.f32 %v2190, %v3936
        %v3940 = vmax.f32 %v3932, %v3938
        %v3941 = vmax.f32 %v3933, %v3939
        %3942 = vset.pattern.permute.xlu0 2
        %3943 = vperm.xlu0 %3942, %v2508
        %v3944 = vpop.permute.xlu0 %3943
        %3946 = vset.pattern.permute.xlu0 2
        %3947 = vperm.xlu0 %3946, %v2513
        %v3948 = vpop.permute.xlu0 %3947
        %3950 = vset.pattern.permute.xlu0 2
        %3951 = vperm.xlu0 %3950, %v2518
        %v3952 = vpop.permute.xlu0 %3951
        %3954 = vset.pattern.permute.xlu0 2
        %3955 = vperm.xlu0 %3954, %v2523
        %v3956 = vpop.permute.xlu0 %3955
        %3958 = vset.pattern.permute.xlu0 2
        %3959 = vperm.xlu0 %3958, %v2528
        %v3960 = vpop.permute.xlu0 %3959
        %3962 = vset.pattern.permute.xlu0 2
        %3963 = vperm.xlu0 %3962, %v2533
        %v3964 = vpop.permute.xlu0 %3963
        %3966 = vset.pattern.permute.xlu0 2
        %3967 = vperm.xlu0 %3966, %v2538
        %v3968 = vpop.permute.xlu0 %3967
        %3970 = vset.pattern.permute.xlu0 2
        %3971 = vperm.xlu0 %3970, %v2543
        %v3972 = vpop.permute.xlu0 %3971
        %3974 = vset.pattern.permute.xlu0 2
        %3975 = vperm.xlu0 %3974, %v2548
        %v3976 = vpop.permute.xlu0 %3975
        %3978 = vset.pattern.permute.xlu0 2
        %3979 = vperm.xlu0 %3978, %v2553
        %v3980 = vpop.permute.xlu0 %3979
        %3982 = vset.pattern.permute.xlu0 2
        %3983 = vperm.xlu0 %3982, %v2558
        %v3984 = vpop.permute.xlu0 %3983
        %3986 = vset.pattern.permute.xlu0 2
        %3987 = vperm.xlu0 %3986, %v2563
        %v3988 = vpop.permute.xlu0 %3987
        %3990 = vset.pattern.permute.xlu0 2
        %3991 = vperm.xlu0 %3990, %v2568
        %v3992 = vpop.permute.xlu0 %3991
        %3994 = vset.pattern.permute.xlu0 2
        %3995 = vperm.xlu0 %3994, %v2573
        %v3996 = vpop.permute.xlu0 %3995
        %3998 = vset.pattern.permute.xlu0 2
        %3999 = vperm.xlu0 %3998, %v2578
        %v4000 = vpop.permute.xlu0 %3999
        %4002 = vset.pattern.permute.xlu0 2
        %4003 = vperm.xlu0 %4002, %v2583
        %v4004 = vpop.permute.xlu0 %4003
        %4006 = vset.pattern.permute.xlu0 2
        %4007 = vperm.xlu0 %4006, %v2588
        %v4008 = vpop.permute.xlu0 %4007
        %4010 = vset.pattern.permute.xlu0 2
        %4011 = vperm.xlu0 %4010, %v2593
        %v4012 = vpop.permute.xlu0 %4011
        %4014 = vset.pattern.permute.xlu0 2
        %4015 = vperm.xlu0 %4014, %v2598
        %v4016 = vpop.permute.xlu0 %4015
        %4018 = vset.pattern.permute.xlu0 2
        %4019 = vperm.xlu0 %4018, %v2603
        %v4020 = vpop.permute.xlu0 %4019
        %4022 = vset.pattern.permute.xlu0 2
        %4023 = vperm.xlu0 %4022, %v2608
        %v4024 = vpop.permute.xlu0 %4023
        %4026 = vset.pattern.permute.xlu0 2
        %4027 = vperm.xlu0 %4026, %v2613
        %v4028 = vpop.permute.xlu0 %4027
        %4030 = vset.pattern.permute.xlu0 2
        %4031 = vperm.xlu0 %4030, %v2618
        %v4032 = vpop.permute.xlu0 %4031
        %4034 = vset.pattern.permute.xlu0 2
        %4035 = vperm.xlu0 %4034, %v2623
        %v4036 = vpop.permute.xlu0 %4035
        %4038 = vset.pattern.permute.xlu0 2
        %4039 = vperm.xlu0 %4038, %v2628
        %v4040 = vpop.permute.xlu0 %4039
        %4042 = vset.pattern.permute.xlu0 2
        %4043 = vperm.xlu0 %4042, %v2633
        %v4044 = vpop.permute.xlu0 %4043
        %4046 = vset.pattern.permute.xlu0 2
        %4047 = vperm.xlu0 %4046, %v2638
        %v4048 = vpop.permute.xlu0 %4047
        %4050 = vset.pattern.permute.xlu0 2
        %4051 = vperm.xlu0 %4050, %v2643
        %v4052 = vpop.permute.xlu0 %4051
        %4054 = vset.pattern.permute.xlu0 2
        %4055 = vperm.xlu0 %4054, %v2648
        %v4056 = vpop.permute.xlu0 %4055
        %4058 = vset.pattern.permute.xlu0 2
        %4059 = vperm.xlu0 %4058, %v2653
        %v4060 = vpop.permute.xlu0 %4059
        %4062 = vset.pattern.permute.xlu0 2
        %4063 = vperm.xlu0 %4062, %v2658
        %v4064 = vpop.permute.xlu0 %4063
        %4066 = vset.pattern.permute.xlu0 2
        %4067 = vperm.xlu0 %4066, %v2663
        %v4068 = vpop.permute.xlu0 %4067
        %v4070 = vlaneseq
        %v4071 = vshrl.u32 %v4070, 7
        %v4072 = vsub.s32 2, %v4071
        %v4073 = vrot.slane %v2188, %v4072
        %v4074 = vlaneseq
        %v4075 = vshrl.u32 %v4074, 7
        %v4076 = vsub.s32 2, %v4075
        %v4077 = vrot.slane %v2190, %v4076
        %v4078 = vmul.f32 %v3944, %v4073
        %v4079 = vmul.f32 %v3944, %v4077
        %v4080 = vmul.f32 %v3948, %v4073
        %v4081 = vmul.f32 %v3948, %v4077
        %v4082 = vmul.f32 %v3952, %v4073
        %v4083 = vmul.f32 %v3952, %v4077
        %v4084 = vmul.f32 %v3956, %v4073
        %v4085 = vmul.f32 %v3956, %v4077
        %v4086 = vmul.f32 %v3960, %v4073
        %v4087 = vmul.f32 %v3960, %v4077
        %v4088 = vmul.f32 %v3964, %v4073
        %v4089 = vmul.f32 %v3964, %v4077
        %v4090 = vmul.f32 %v3968, %v4073
        %v4091 = vmul.f32 %v3968, %v4077
        %v4092 = vmul.f32 %v3972, %v4073
        %v4093 = vmul.f32 %v3972, %v4077
        %v4094 = vmul.f32 %v3976, %v4073
        %v4095 = vmul.f32 %v3976, %v4077
        %v4096 = vmul.f32 %v3980, %v4073
        %v4097 = vmul.f32 %v3980, %v4077
        %v4098 = vmul.f32 %v3984, %v4073
        %v4099 = vmul.f32 %v3984, %v4077
        %v4100 = vmul.f32 %v3988, %v4073
        %v4101 = vmul.f32 %v3988, %v4077
        %v4102 = vmul.f32 %v3992, %v4073
        %v4103 = vmul.f32 %v3992, %v4077
        %v4104 = vmul.f32 %v3996, %v4073
        %v4105 = vmul.f32 %v3996, %v4077
        %v4106 = vmul.f32 %v4000, %v4073
        %v4107 = vmul.f32 %v4000, %v4077
        %v4108 = vmul.f32 %v4004, %v4073
        %v4109 = vmul.f32 %v4004, %v4077
        %v4110 = vmul.f32 %v4008, %v4073
        %v4111 = vmul.f32 %v4008, %v4077
        %v4112 = vmul.f32 %v4012, %v4073
        %v4113 = vmul.f32 %v4012, %v4077
        %v4114 = vmul.f32 %v4016, %v4073
        %v4115 = vmul.f32 %v4016, %v4077
        %v4116 = vmul.f32 %v4020, %v4073
        %v4117 = vmul.f32 %v4020, %v4077
        %v4118 = vmul.f32 %v4024, %v4073
        %v4119 = vmul.f32 %v4024, %v4077
        %v4120 = vmul.f32 %v4028, %v4073
        %v4121 = vmul.f32 %v4028, %v4077
        %v4122 = vmul.f32 %v4032, %v4073
        %v4123 = vmul.f32 %v4032, %v4077
        %v4124 = vmul.f32 %v4036, %v4073
        %v4125 = vmul.f32 %v4036, %v4077
        %v4126 = vmul.f32 %v4040, %v4073
        %v4127 = vmul.f32 %v4040, %v4077
        %v4128 = vmul.f32 %v4044, %v4073
        %v4129 = vmul.f32 %v4044, %v4077
        %v4130 = vmul.f32 %v4048, %v4073
        %v4131 = vmul.f32 %v4048, %v4077
        %v4132 = vmul.f32 %v4052, %v4073
        %v4133 = vmul.f32 %v4052, %v4077
        %v4134 = vmul.f32 %v4056, %v4073
        %v4135 = vmul.f32 %v4056, %v4077
        %v4136 = vmul.f32 %v4060, %v4073
        %v4137 = vmul.f32 %v4060, %v4077
        %v4138 = vmul.f32 %v4064, %v4073
        %v4139 = vmul.f32 %v4064, %v4077
        %v4140 = vmul.f32 %v4068, %v4073
        %v4141 = vmul.f32 %v4068, %v4077
        %v4142 = vlaneseq
        %v4143 = vshrl.u32 %v4142, 7
        %v4144 = vsub.s32 2, %v4143
        %v4145 = vrot.slane %v3940, %v4144
        %v4146 = vlaneseq
        %v4147 = vshrl.u32 %v4146, 7
        %v4148 = vsub.s32 2, %v4147
        %v4149 = vrot.slane %v3941, %v4148
        %v4150 = vsub.f32 %v4078, %v4145
        %v4151 = vsub.f32 %v4079, %v4149
        %v4152 = vsub.f32 %v4080, %v4145
        %v4153 = vsub.f32 %v4081, %v4149
        %v4154 = vsub.f32 %v4082, %v4145
        %v4155 = vsub.f32 %v4083, %v4149
        %v4156 = vsub.f32 %v4084, %v4145
        %v4157 = vsub.f32 %v4085, %v4149
        %v4158 = vsub.f32 %v4086, %v4145
        %v4159 = vsub.f32 %v4087, %v4149
        %v4160 = vsub.f32 %v4088, %v4145
        %v4161 = vsub.f32 %v4089, %v4149
        %v4162 = vsub.f32 %v4090, %v4145
        %v4163 = vsub.f32 %v4091, %v4149
        %v4164 = vsub.f32 %v4092, %v4145
        %v4165 = vsub.f32 %v4093, %v4149
        %v4166 = vsub.f32 %v4094, %v4145
        %v4167 = vsub.f32 %v4095, %v4149
        %v4168 = vsub.f32 %v4096, %v4145
        %v4169 = vsub.f32 %v4097, %v4149
        %v4170 = vsub.f32 %v4098, %v4145
        %v4171 = vsub.f32 %v4099, %v4149
        %v4172 = vsub.f32 %v4100, %v4145
        %v4173 = vsub.f32 %v4101, %v4149
        %v4174 = vsub.f32 %v4102, %v4145
        %v4175 = vsub.f32 %v4103, %v4149
        %v4176 = vsub.f32 %v4104, %v4145
        %v4177 = vsub.f32 %v4105, %v4149
        %v4178 = vsub.f32 %v4106, %v4145
        %v4179 = vsub.f32 %v4107, %v4149
        %v4180 = vsub.f32 %v4108, %v4145
        %v4181 = vsub.f32 %v4109, %v4149
        %v4182 = vsub.f32 %v4110, %v4145
        %v4183 = vsub.f32 %v4111, %v4149
        %v4184 = vsub.f32 %v4112, %v4145
        %v4185 = vsub.f32 %v4113, %v4149
        %v4186 = vsub.f32 %v4114, %v4145
        %v4187 = vsub.f32 %v4115, %v4149
        %v4188 = vsub.f32 %v4116, %v4145
        %v4189 = vsub.f32 %v4117, %v4149
        %v4190 = vsub.f32 %v4118, %v4145
        %v4191 = vsub.f32 %v4119, %v4149
        %v4192 = vsub.f32 %v4120, %v4145
        %v4193 = vsub.f32 %v4121, %v4149
        %v4194 = vsub.f32 %v4122, %v4145
        %v4195 = vsub.f32 %v4123, %v4149
        %v4196 = vsub.f32 %v4124, %v4145
        %v4197 = vsub.f32 %v4125, %v4149
        %v4198 = vsub.f32 %v4126, %v4145
        %v4199 = vsub.f32 %v4127, %v4149
        %v4200 = vsub.f32 %v4128, %v4145
        %v4201 = vsub.f32 %v4129, %v4149
        %v4202 = vsub.f32 %v4130, %v4145
        %v4203 = vsub.f32 %v4131, %v4149
        %v4204 = vsub.f32 %v4132, %v4145
        %v4205 = vsub.f32 %v4133, %v4149
        %v4206 = vsub.f32 %v4134, %v4145
        %v4207 = vsub.f32 %v4135, %v4149
        %v4208 = vsub.f32 %v4136, %v4145
        %v4209 = vsub.f32 %v4137, %v4149
        %v4210 = vsub.f32 %v4138, %v4145
        %v4211 = vsub.f32 %v4139, %v4149
        %v4212 = vsub.f32 %v4140, %v4145
        %v4213 = vsub.f32 %v4141, %v4149
        %v4214 = vmul.f32 %v4150, 1.442695
        %v4215 = vpow.pop %v4214
        %v4216 = vmul.f32 %v4151, 1.442695
        %v4217 = vpow.pop %v4216
        %v4218 = vmul.f32 %v4152, 1.442695
        %v4219 = vpow.pop %v4218
        %v4220 = vmul.f32 %v4153, 1.442695
        %v4221 = vpow.pop %v4220
        %v4222 = vmul.f32 %v4154, 1.442695
        %v4223 = vpow.pop %v4222
        %v4224 = vmul.f32 %v4155, 1.442695
        %v4225 = vpow.pop %v4224
        %v4226 = vmul.f32 %v4156, 1.442695
        %v4227 = vpow.pop %v4226
        %v4228 = vmul.f32 %v4157, 1.442695
        %v4229 = vpow.pop %v4228
        %v4230 = vmul.f32 %v4158, 1.442695
        %v4231 = vpow.pop %v4230
        %v4232 = vmul.f32 %v4159, 1.442695
        %v4233 = vpow.pop %v4232
        %v4234 = vmul.f32 %v4160, 1.442695
        %v4235 = vpow.pop %v4234
        %v4236 = vmul.f32 %v4161, 1.442695
        %v4237 = vpow.pop %v4236
        %v4238 = vmul.f32 %v4162, 1.442695
        %v4239 = vpow.pop %v4238
        %v4240 = vmul.f32 %v4163, 1.442695
        %v4241 = vpow.pop %v4240
        %v4242 = vmul.f32 %v4164, 1.442695
        %v4243 = vpow.pop %v4242
        %v4244 = vmul.f32 %v4165, 1.442695
        %v4245 = vpow.pop %v4244
        %v4246 = vmul.f32 %v4166, 1.442695
        %v4247 = vpow.pop %v4246
        %v4248 = vmul.f32 %v4167, 1.442695
        %v4249 = vpow.pop %v4248
        %v4250 = vmul.f32 %v4168, 1.442695
        %v4251 = vpow.pop %v4250
        %v4252 = vmul.f32 %v4169, 1.442695
        %v4253 = vpow.pop %v4252
        %v4254 = vmul.f32 %v4170, 1.442695
        %v4255 = vpow.pop %v4254
        %v4256 = vmul.f32 %v4171, 1.442695
        %v4257 = vpow.pop %v4256
        %v4258 = vmul.f32 %v4172, 1.442695
        %v4259 = vpow.pop %v4258
        %v4260 = vmul.f32 %v4173, 1.442695
        %v4261 = vpow.pop %v4260
        %v4262 = vmul.f32 %v4174, 1.442695
        %v4263 = vpow.pop %v4262
        %v4264 = vmul.f32 %v4175, 1.442695
        %v4265 = vpow.pop %v4264
        %v4266 = vmul.f32 %v4176, 1.442695
        %v4267 = vpow.pop %v4266
        %v4268 = vmul.f32 %v4177, 1.442695
        %v4269 = vpow.pop %v4268
        %v4270 = vmul.f32 %v4178, 1.442695
        %v4271 = vpow.pop %v4270
        %v4272 = vmul.f32 %v4179, 1.442695
        %v4273 = vpow.pop %v4272
        %v4274 = vmul.f32 %v4180, 1.442695
        %v4275 = vpow.pop %v4274
        %v4276 = vmul.f32 %v4181, 1.442695
        %v4277 = vpow.pop %v4276
        %v4278 = vmul.f32 %v4182, 1.442695
        %v4279 = vpow.pop %v4278
        %v4280 = vmul.f32 %v4183, 1.442695
        %v4281 = vpow.pop %v4280
        %v4282 = vmul.f32 %v4184, 1.442695
        %v4283 = vpow.pop %v4282
        %v4284 = vmul.f32 %v4185, 1.442695
        %v4285 = vpow.pop %v4284
        %v4286 = vmul.f32 %v4186, 1.442695
        %v4287 = vpow.pop %v4286
        %v4288 = vmul.f32 %v4187, 1.442695
        %v4289 = vpow.pop %v4288
        %v4290 = vmul.f32 %v4188, 1.442695
        %v4291 = vpow.pop %v4290
        %v4292 = vmul.f32 %v4189, 1.442695
        %v4293 = vpow.pop %v4292
        %v4294 = vmul.f32 %v4190, 1.442695
        %v4295 = vpow.pop %v4294
        %v4296 = vmul.f32 %v4191, 1.442695
        %v4297 = vpow.pop %v4296
        %v4298 = vmul.f32 %v4192, 1.442695
        %v4299 = vpow.pop %v4298
        %v4300 = vmul.f32 %v4193, 1.442695
        %v4301 = vpow.pop %v4300
        %v4302 = vmul.f32 %v4194, 1.442695
        %v4303 = vpow.pop %v4302
        %v4304 = vmul.f32 %v4195, 1.442695
        %v4305 = vpow.pop %v4304
        %v4306 = vmul.f32 %v4196, 1.442695
        %v4307 = vpow.pop %v4306
        %v4308 = vmul.f32 %v4197, 1.442695
        %v4309 = vpow.pop %v4308
        %v4310 = vmul.f32 %v4198, 1.442695
        %v4311 = vpow.pop %v4310
        %v4312 = vmul.f32 %v4199, 1.442695
        %v4313 = vpow.pop %v4312
        %v4314 = vmul.f32 %v4200, 1.442695
        %v4315 = vpow.pop %v4314
        %v4316 = vmul.f32 %v4201, 1.442695
        %v4317 = vpow.pop %v4316
        %v4318 = vmul.f32 %v4202, 1.442695
        %v4319 = vpow.pop %v4318
        %v4320 = vmul.f32 %v4203, 1.442695
        %v4321 = vpow.pop %v4320
        %v4322 = vmul.f32 %v4204, 1.442695
        %v4323 = vpow.pop %v4322
        %v4324 = vmul.f32 %v4205, 1.442695
        %v4325 = vpow.pop %v4324
        %v4326 = vmul.f32 %v4206, 1.442695
        %v4327 = vpow.pop %v4326
        %v4328 = vmul.f32 %v4207, 1.442695
        %v4329 = vpow.pop %v4328
        %v4330 = vmul.f32 %v4208, 1.442695
        %v4331 = vpow.pop %v4330
        %v4332 = vmul.f32 %v4209, 1.442695
        %v4333 = vpow.pop %v4332
        %v4334 = vmul.f32 %v4210, 1.442695
        %v4335 = vpow.pop %v4334
        %v4336 = vmul.f32 %v4211, 1.442695
        %v4337 = vpow.pop %v4336
        %v4338 = vmul.f32 %v4212, 1.442695
        %v4339 = vpow.pop %v4338
        %v4340 = vmul.f32 %v4213, 1.442695
        %v4341 = vpow.pop %v4340
        %v4342 = vcombine.high %v3274, %v3274
        %4344 = vst.msk [vmem:[#allocation4] ss:$2 sm:$0x3] %vm2807, %v4342
        %v4345 = vld [vmem:[#allocation4] sm:$0xf]
        %v4348 = vunpack.c.l.s4 1983009808
        %v4349 = vunpack.c.0.s8 %v4348
        %v4350 = vlaneseq
        %v4351 = vshrl.u32 %v4350, 7
        %v4352 = vsub.s32 %v4349, %v4351
        %v4353 = vrot.slane %v4345, %v4352
        %v4354 = vcombine.high %v4353, %v4353
        %4357 = vmatprep.subr.mxu0 %v4217
        %4358 = vmatpush1.msra.mxu0 %v4215
        %4359 = vmatprep.subr.mxu0 %v4221
        %4360 = vmatpush1.msra.mxu0 %v4219
        %4361 = vmatprep.subr.mxu0 %v4225
        %4362 = vmatpush1.msra.mxu0 %v4223
        %4363 = vmatprep.subr.mxu0 %v4229
        %4364 = vmatpush1.msra.mxu0 %v4227
        %4365 = vmatprep.subr.mxu0 %v4233
        %4366 = vmatpush1.msra.mxu0 %v4231
        %4367 = vmatprep.subr.mxu0 %v4237
        %4368 = vmatpush1.msra.mxu0 %v4235
        %4369 = vmatprep.subr.mxu0 %v4241
        %4370 = vmatpush1.msra.mxu0 %v4239
        %4371 = vmatprep.subr.mxu0 %v4245
        %4372 = vmatpush1.msra.mxu0 %v4243
        %4373 = vmatprep.subr.mxu0 %v4249
        %4374 = vmatpush1.msra.mxu0 %v4247
        %4375 = vmatprep.subr.mxu0 %v4253
        %4376 = vmatpush1.msra.mxu0 %v4251
        %4377 = vmatprep.subr.mxu0 %v4257
        %4378 = vmatpush1.msra.mxu0 %v4255
        %4379 = vmatprep.subr.mxu0 %v4261
        %4380 = vmatpush1.msra.mxu0 %v4259
        %4381 = vmatprep.subr.mxu0 %v4265
        %4382 = vmatpush1.msra.mxu0 %v4263
        %4383 = vmatprep.subr.mxu0 %v4269
        %4384 = vmatpush1.msra.mxu0 %v4267
        %4385 = vmatprep.subr.mxu0 %v4273
        %4386 = vmatpush1.msra.mxu0 %v4271
        %4387 = vmatprep.subr.mxu0 %v4277
        %4388 = vmatpush1.msra.mxu0 %v4275
        %4389 = vmatprep.subr.mxu0 %v4281
        %4390 = vmatpush1.msra.mxu0 %v4279
        %4391 = vmatprep.subr.mxu0 %v4285
        %4392 = vmatpush1.msra.mxu0 %v4283
        %4393 = vmatprep.subr.mxu0 %v4289
        %4394 = vmatpush1.msra.mxu0 %v4287
        %4395 = vmatprep.subr.mxu0 %v4293
        %4396 = vmatpush1.msra.mxu0 %v4291
        %4397 = vmatprep.subr.mxu0 %v4297
        %4398 = vmatpush1.msra.mxu0 %v4295
        %4399 = vmatprep.subr.mxu0 %v4301
        %4400 = vmatpush1.msra.mxu0 %v4299
        %4401 = vmatprep.subr.mxu0 %v4305
        %4402 = vmatpush1.msra.mxu0 %v4303
        %4403 = vmatprep.subr.mxu0 %v4309
        %4404 = vmatpush1.msra.mxu0 %v4307
        %4405 = vmatprep.subr.mxu0 %v4313
        %4406 = vmatpush1.msra.mxu0 %v4311
        %4407 = vmatprep.subr.mxu0 %v4317
        %4408 = vmatpush1.msra.mxu0 %v4315
        %4409 = vmatprep.subr.mxu0 %v4321
        %4410 = vmatpush1.msra.mxu0 %v4319
        %4411 = vmatprep.subr.mxu0 %v4325
        %4412 = vmatpush1.msra.mxu0 %v4323
        %4413 = vmatprep.subr.mxu0 %v4329
        %4414 = vmatpush1.msra.mxu0 %v4327
        %4415 = vmatprep.subr.mxu0 %v4333
        %4416 = vmatpush1.msra.mxu0 %v4331
        %4417 = vmatprep.subr.mxu0 %v4337
        %4418 = vmatpush1.msra.mxu0 %v4335
        %4419 = vmatprep.subr.mxu0 %v4341
        %4420 = vmatpush1.msra.mxu0 %v4339
        %4421 = vmatprep.mubr.f32.mxu0 %v4354
        %4422 = vmatmul.mubr.f32.gmra.mrb[0].mxu0 %v4353
        %v4423 = vpop.f32.mrb[0].mxu0
        %v4424 = vadd.f32 0.0, %v4423
        %v4425 = vpop.f32.mrb[0].mxu0
        %v4426 = vadd.f32 0.0, %v4425
        %4427 = vdwg.mxu0
        %v4430 = vrot.slane %v4424, 1
        %v4431 = vrot.slane %v4426, 1
        %v4434 = vrcp.pop %v4430
        %v4435 = vmul.f32 %v4424, %v4434
        %v4436 = vrcp.pop %v4431
        %v4437 = vmul.f32 %v4426, %v4436
        %v4440 = vcombine.low %v4435, %v4437
        %v4442 = vunpack.c.l.s4 1966171168
        %v4443 = vunpack.c.0.s8 %v4442
        %v4444 = vlaneseq
        %v4445 = vshrl.u32 %v4444, 7
        %v4446 = vsub.s32 %v4443, %v4445
        %v4447 = vrot.slane %v4440, %v4446
        %v4449 = vunpack.c.l.s4 1966171168
        %v4450 = vunpack.c.0.s8 %v4449
        %v4451 = vlaneseq
        %v4452 = vshrl.u32 %v4451, 7
        %v4453 = vsub.s32 %v4450, %v4452
        %v4454 = vrot.slane %v4447, %v4453
        %s4456 = scalar_lea.vmem [#allocation5], 2
        %4457 = vst.msk [vmem:[%s4456] ss:$8 sm:$0x3] %vm2807, %v4454
        %4458 = vst.msk [vmem:[%s4456] ss:$8 sm:$0x0] %vm2807, %v4454
        %4459 = vset.pattern.permute.xlu0 3
        %4460 = vperm.xlu0 %4459, %v2734
        %v4461 = vpop.permute.xlu0 %4460
        %v4463 = vmul.f32 %v2188, %v4461
        %v4464 = vmul.f32 %v2190, %v4461
        %4465 = vset.pattern.permute.xlu0 3
        %4466 = vperm.xlu0 %4465, %v2803
        %v4467 = vpop.permute.xlu0 %4466
        %v4469 = vmul.f32 %v2188, %v4467
        %v4470 = vmul.f32 %v2190, %v4467
        %v4471 = vmax.f32 %v4463, %v4469
        %v4472 = vmax.f32 %v4464, %v4470
        %4473 = vset.pattern.permute.xlu0 3
        %4474 = vperm.xlu0 %4473, %v2508
        %v4475 = vpop.permute.xlu0 %4474
        %4477 = vset.pattern.permute.xlu0 3
        %4478 = vperm.xlu0 %4477, %v2513
        %v4479 = vpop.permute.xlu0 %4478
        %4481 = vset.pattern.permute.xlu0 3
        %4482 = vperm.xlu0 %4481, %v2518
        %v4483 = vpop.permute.xlu0 %4482
        %4485 = vset.pattern.permute.xlu0 3
        %4486 = vperm.xlu0 %4485, %v2523
        %v4487 = vpop.permute.xlu0 %4486
        %4489 = vset.pattern.permute.xlu0 3
        %4490 = vperm.xlu0 %4489, %v2528
        %v4491 = vpop.permute.xlu0 %4490
        %4493 = vset.pattern.permute.xlu0 3
        %4494 = vperm.xlu0 %4493, %v2533
        %v4495 = vpop.permute.xlu0 %4494
        %4497 = vset.pattern.permute.xlu0 3
        %4498 = vperm.xlu0 %4497, %v2538
        %v4499 = vpop.permute.xlu0 %4498
        %4501 = vset.pattern.permute.xlu0 3
        %4502 = vperm.xlu0 %4501, %v2543
        %v4503 = vpop.permute.xlu0 %4502
        %4505 = vset.pattern.permute.xlu0 3
        %4506 = vperm.xlu0 %4505, %v2548
        %v4507 = vpop.permute.xlu0 %4506
        %4509 = vset.pattern.permute.xlu0 3
        %4510 = vperm.xlu0 %4509, %v2553
        %v4511 = vpop.permute.xlu0 %4510
        %4513 = vset.pattern.permute.xlu0 3
        %4514 = vperm.xlu0 %4513, %v2558
        %v4515 = vpop.permute.xlu0 %4514
        %4517 = vset.pattern.permute.xlu0 3
        %4518 = vperm.xlu0 %4517, %v2563
        %v4519 = vpop.permute.xlu0 %4518
        %4521 = vset.pattern.permute.xlu0 3
        %4522 = vperm.xlu0 %4521, %v2568
        %v4523 = vpop.permute.xlu0 %4522
        %4525 = vset.pattern.permute.xlu0 3
        %4526 = vperm.xlu0 %4525, %v2573
        %v4527 = vpop.permute.xlu0 %4526
        %4529 = vset.pattern.permute.xlu0 3
        %4530 = vperm.xlu0 %4529, %v2578
        %v4531 = vpop.permute.xlu0 %4530
        %4533 = vset.pattern.permute.xlu0 3
        %4534 = vperm.xlu0 %4533, %v2583
        %v4535 = vpop.permute.xlu0 %4534
        %4537 = vset.pattern.permute.xlu0 3
        %4538 = vperm.xlu0 %4537, %v2588
        %v4539 = vpop.permute.xlu0 %4538
        %4541 = vset.pattern.permute.xlu0 3
        %4542 = vperm.xlu0 %4541, %v2593
        %v4543 = vpop.permute.xlu0 %4542
        %4545 = vset.pattern.permute.xlu0 3
        %4546 = vperm.xlu0 %4545, %v2598
        %v4547 = vpop.permute.xlu0 %4546
        %4549 = vset.pattern.permute.xlu0 3
        %4550 = vperm.xlu0 %4549, %v2603
        %v4551 = vpop.permute.xlu0 %4550
        %4553 = vset.pattern.permute.xlu0 3
        %4554 = vperm.xlu0 %4553, %v2608
        %v4555 = vpop.permute.xlu0 %4554
        %4557 = vset.pattern.permute.xlu0 3
        %4558 = vperm.xlu0 %4557, %v2613
        %v4559 = vpop.permute.xlu0 %4558
        %4561 = vset.pattern.permute.xlu0 3
        %4562 = vperm.xlu0 %4561, %v2618
        %v4563 = vpop.permute.xlu0 %4562
        %4565 = vset.pattern.permute.xlu0 3
        %4566 = vperm.xlu0 %4565, %v2623
        %v4567 = vpop.permute.xlu0 %4566
        %4569 = vset.pattern.permute.xlu0 3
        %4570 = vperm.xlu0 %4569, %v2628
        %v4571 = vpop.permute.xlu0 %4570
        %4573 = vset.pattern.permute.xlu0 3
        %4574 = vperm.xlu0 %4573, %v2633
        %v4575 = vpop.permute.xlu0 %4574
        %4577 = vset.pattern.permute.xlu0 3
        %4578 = vperm.xlu0 %4577, %v2638
        %v4579 = vpop.permute.xlu0 %4578
        %4581 = vset.pattern.permute.xlu0 3
        %4582 = vperm.xlu0 %4581, %v2643
        %v4583 = vpop.permute.xlu0 %4582
        %4585 = vset.pattern.permute.xlu0 3
        %4586 = vperm.xlu0 %4585, %v2648
        %v4587 = vpop.permute.xlu0 %4586
        %4589 = vset.pattern.permute.xlu0 3
        %4590 = vperm.xlu0 %4589, %v2653
        %v4591 = vpop.permute.xlu0 %4590
        %4593 = vset.pattern.permute.xlu0 3
        %4594 = vperm.xlu0 %4593, %v2658
        %v4595 = vpop.permute.xlu0 %4594
        %4597 = vset.pattern.permute.xlu0 3
        %4598 = vperm.xlu0 %4597, %v2663
        %v4599 = vpop.permute.xlu0 %4598
        %v4601 = vlaneseq
        %v4602 = vshrl.u32 %v4601, 7
        %v4603 = vsub.s32 3, %v4602
        %v4604 = vrot.slane %v2188, %v4603
        %v4605 = vlaneseq
        %v4606 = vshrl.u32 %v4605, 7
        %v4607 = vsub.s32 3, %v4606
        %v4608 = vrot.slane %v2190, %v4607
        %v4609 = vmul.f32 %v4475, %v4604
        %v4610 = vmul.f32 %v4475, %v4608
        %v4611 = vmul.f32 %v4479, %v4604
        %v4612 = vmul.f32 %v4479, %v4608
        %v4613 = vmul.f32 %v4483, %v4604
        %v4614 = vmul.f32 %v4483, %v4608
        %v4615 = vmul.f32 %v4487, %v4604
        %v4616 = vmul.f32 %v4487, %v4608
        %v4617 = vmul.f32 %v4491, %v4604
        %v4618 = vmul.f32 %v4491, %v4608
        %v4619 = vmul.f32 %v4495, %v4604
        %v4620 = vmul.f32 %v4495, %v4608
        %v4621 = vmul.f32 %v4499, %v4604
        %v4622 = vmul.f32 %v4499, %v4608
        %v4623 = vmul.f32 %v4503, %v4604
        %v4624 = vmul.f32 %v4503, %v4608
        %v4625 = vmul.f32 %v4507, %v4604
        %v4626 = vmul.f32 %v4507, %v4608
        %v4627 = vmul.f32 %v4511, %v4604
        %v4628 = vmul.f32 %v4511, %v4608
        %v4629 = vmul.f32 %v4515, %v4604
        %v4630 = vmul.f32 %v4515, %v4608
        %v4631 = vmul.f32 %v4519, %v4604
        %v4632 = vmul.f32 %v4519, %v4608
        %v4633 = vmul.f32 %v4523, %v4604
        %v4634 = vmul.f32 %v4523, %v4608
        %v4635 = vmul.f32 %v4527, %v4604
        %v4636 = vmul.f32 %v4527, %v4608
        %v4637 = vmul.f32 %v4531, %v4604
        %v4638 = vmul.f32 %v4531, %v4608
        %v4639 = vmul.f32 %v4535, %v4604
        %v4640 = vmul.f32 %v4535, %v4608
        %v4641 = vmul.f32 %v4539, %v4604
        %v4642 = vmul.f32 %v4539, %v4608
        %v4643 = vmul.f32 %v4543, %v4604
        %v4644 = vmul.f32 %v4543, %v4608
        %v4645 = vmul.f32 %v4547, %v4604
        %v4646 = vmul.f32 %v4547, %v4608
        %v4647 = vmul.f32 %v4551, %v4604
        %v4648 = vmul.f32 %v4551, %v4608
        %v4649 = vmul.f32 %v4555, %v4604
        %v4650 = vmul.f32 %v4555, %v4608
        %v4651 = vmul.f32 %v4559, %v4604
        %v4652 = vmul.f32 %v4559, %v4608
        %v4653 = vmul.f32 %v4563, %v4604
        %v4654 = vmul.f32 %v4563, %v4608
        %v4655 = vmul.f32 %v4567, %v4604
        %v4656 = vmul.f32 %v4567, %v4608
        %v4657 = vmul.f32 %v4571, %v4604
        %v4658 = vmul.f32 %v4571, %v4608
        %v4659 = vmul.f32 %v4575, %v4604
        %v4660 = vmul.f32 %v4575, %v4608
        %v4661 = vmul.f32 %v4579, %v4604
        %v4662 = vmul.f32 %v4579, %v4608
        %v4663 = vmul.f32 %v4583, %v4604
        %v4664 = vmul.f32 %v4583, %v4608
        %v4665 = vmul.f32 %v4587, %v4604
        %v4666 = vmul.f32 %v4587, %v4608
        %v4667 = vmul.f32 %v4591, %v4604
        %v4668 = vmul.f32 %v4591, %v4608
        %v4669 = vmul.f32 %v4595, %v4604
        %v4670 = vmul.f32 %v4595, %v4608
        %v4671 = vmul.f32 %v4599, %v4604
        %v4672 = vmul.f32 %v4599, %v4608
        %v4673 = vlaneseq
        %v4674 = vshrl.u32 %v4673, 7
        %v4675 = vsub.s32 3, %v4674
        %v4676 = vrot.slane %v4471, %v4675
        %v4677 = vlaneseq
        %v4678 = vshrl.u32 %v4677, 7
        %v4679 = vsub.s32 3, %v4678
        %v4680 = vrot.slane %v4472, %v4679
        %v4681 = vsub.f32 %v4609, %v4676
        %v4682 = vsub.f32 %v4610, %v4680
        %v4683 = vsub.f32 %v4611, %v4676
        %v4684 = vsub.f32 %v4612, %v4680
        %v4685 = vsub.f32 %v4613, %v4676
        %v4686 = vsub.f32 %v4614, %v4680
        %v4687 = vsub.f32 %v4615, %v4676
        %v4688 = vsub.f32 %v4616, %v4680
        %v4689 = vsub.f32 %v4617, %v4676
        %v4690 = vsub.f32 %v4618, %v4680
        %v4691 = vsub.f32 %v4619, %v4676
        %v4692 = vsub.f32 %v4620, %v4680
        %v4693 = vsub.f32 %v4621, %v4676
        %v4694 = vsub.f32 %v4622, %v4680
        %v4695 = vsub.f32 %v4623, %v4676
        %v4696 = vsub.f32 %v4624, %v4680
        %v4697 = vsub.f32 %v4625, %v4676
        %v4698 = vsub.f32 %v4626, %v4680
        %v4699 = vsub.f32 %v4627, %v4676
        %v4700 = vsub.f32 %v4628, %v4680
        %v4701 = vsub.f32 %v4629, %v4676
        %v4702 = vsub.f32 %v4630, %v4680
        %v4703 = vsub.f32 %v4631, %v4676
        %v4704 = vsub.f32 %v4632, %v4680
        %v4705 = vsub.f32 %v4633, %v4676
        %v4706 = vsub.f32 %v4634, %v4680
        %v4707 = vsub.f32 %v4635, %v4676
        %v4708 = vsub.f32 %v4636, %v4680
        %v4709 = vsub.f32 %v4637, %v4676
        %v4710 = vsub.f32 %v4638, %v4680
        %v4711 = vsub.f32 %v4639, %v4676
        %v4712 = vsub.f32 %v4640, %v4680
        %v4713 = vsub.f32 %v4641, %v4676
        %v4714 = vsub.f32 %v4642, %v4680
        %v4715 = vsub.f32 %v4643, %v4676
        %v4716 = vsub.f32 %v4644, %v4680
        %v4717 = vsub.f32 %v4645, %v4676
        %v4718 = vsub.f32 %v4646, %v4680
        %v4719 = vsub.f32 %v4647, %v4676
        %v4720 = vsub.f32 %v4648, %v4680
        %v4721 = vsub.f32 %v4649, %v4676
        %v4722 = vsub.f32 %v4650, %v4680
        %v4723 = vsub.f32 %v4651, %v4676
        %v4724 = vsub.f32 %v4652, %v4680
        %v4725 = vsub.f32 %v4653, %v4676
        %v4726 = vsub.f32 %v4654, %v4680
        %v4727 = vsub.f32 %v4655, %v4676
        %v4728 = vsub.f32 %v4656, %v4680
        %v4729 = vsub.f32 %v4657, %v4676
        %v4730 = vsub.f32 %v4658, %v4680
        %v4731 = vsub.f32 %v4659, %v4676
        %v4732 = vsub.f32 %v4660, %v4680
        %v4733 = vsub.f32 %v4661, %v4676
        %v4734 = vsub.f32 %v4662, %v4680
        %v4735 = vsub.f32 %v4663, %v4676
        %v4736 = vsub.f32 %v4664, %v4680
        %v4737 = vsub.f32 %v4665, %v4676
        %v4738 = vsub.f32 %v4666, %v4680
        %v4739 = vsub.f32 %v4667, %v4676
        %v4740 = vsub.f32 %v4668, %v4680
        %v4741 = vsub.f32 %v4669, %v4676
        %v4742 = vsub.f32 %v4670, %v4680
        %v4743 = vsub.f32 %v4671, %v4676
        %v4744 = vsub.f32 %v4672, %v4680
        %v4745 = vmul.f32 %v4681, 1.442695
        %v4746 = vpow.pop %v4745
        %v4747 = vmul.f32 %v4682, 1.442695
        %v4748 = vpow.pop %v4747
        %v4749 = vmul.f32 %v4683, 1.442695
        %v4750 = vpow.pop %v4749
        %v4751 = vmul.f32 %v4684, 1.442695
        %v4752 = vpow.pop %v4751
        %v4753 = vmul.f32 %v4685, 1.442695
        %v4754 = vpow.pop %v4753
        %v4755 = vmul.f32 %v4686, 1.442695
        %v4756 = vpow.pop %v4755
        %v4757 = vmul.f32 %v4687, 1.442695
        %v4758 = vpow.pop %v4757
        %v4759 = vmul.f32 %v4688, 1.442695
        %v4760 = vpow.pop %v4759
        %v4761 = vmul.f32 %v4689, 1.442695
        %v4762 = vpow.pop %v4761
        %v4763 = vmul.f32 %v4690, 1.442695
        %v4764 = vpow.pop %v4763
        %v4765 = vmul.f32 %v4691, 1.442695
        %v4766 = vpow.pop %v4765
        %v4767 = vmul.f32 %v4692, 1.442695
        %v4768 = vpow.pop %v4767
        %v4769 = vmul.f32 %v4693, 1.442695
        %v4770 = vpow.pop %v4769
        %v4771 = vmul.f32 %v4694, 1.442695
        %v4772 = vpow.pop %v4771
        %v4773 = vmul.f32 %v4695, 1.442695
        %v4774 = vpow.pop %v4773
        %v4775 = vmul.f32 %v4696, 1.442695
        %v4776 = vpow.pop %v4775
        %v4777 = vmul.f32 %v4697, 1.442695
        %v4778 = vpow.pop %v4777
        %v4779 = vmul.f32 %v4698, 1.442695
        %v4780 = vpow.pop %v4779
        %v4781 = vmul.f32 %v4699, 1.442695
        %v4782 = vpow.pop %v4781
        %v4783 = vmul.f32 %v4700, 1.442695
        %v4784 = vpow.pop %v4783
        %v4785 = vmul.f32 %v4701, 1.442695
        %v4786 = vpow.pop %v4785
        %v4787 = vmul.f32 %v4702, 1.442695
        %v4788 = vpow.pop %v4787
        %v4789 = vmul.f32 %v4703, 1.442695
        %v4790 = vpow.pop %v4789
        %v4791 = vmul.f32 %v4704, 1.442695
        %v4792 = vpow.pop %v4791
        %v4793 = vmul.f32 %v4705, 1.442695
        %v4794 = vpow.pop %v4793
        %v4795 = vmul.f32 %v4706, 1.442695
        %v4796 = vpow.pop %v4795
        %v4797 = vmul.f32 %v4707, 1.442695
        %v4798 = vpow.pop %v4797
        %v4799 = vmul.f32 %v4708, 1.442695
        %v4800 = vpow.pop %v4799
        %v4801 = vmul.f32 %v4709, 1.442695
        %v4802 = vpow.pop %v4801
        %v4803 = vmul.f32 %v4710, 1.442695
        %v4804 = vpow.pop %v4803
        %v4805 = vmul.f32 %v4711, 1.442695
        %v4806 = vpow.pop %v4805
        %v4807 = vmul.f32 %v4712, 1.442695
        %v4808 = vpow.pop %v4807
        %v4809 = vmul.f32 %v4713, 1.442695
        %v4810 = vpow.pop %v4809
        %v4811 = vmul.f32 %v4714, 1.442695
        %v4812 = vpow.pop %v4811
        %v4813 = vmul.f32 %v4715, 1.442695
        %v4814 = vpow.pop %v4813
        %v4815 = vmul.f32 %v4716, 1.442695
        %v4816 = vpow.pop %v4815
        %v4817 = vmul.f32 %v4717, 1.442695
        %v4818 = vpow.pop %v4817
        %v4819 = vmul.f32 %v4718, 1.442695
        %v4820 = vpow.pop %v4819
        %v4821 = vmul.f32 %v4719, 1.442695
        %v4822 = vpow.pop %v4821
        %v4823 = vmul.f32 %v4720, 1.442695
        %v4824 = vpow.pop %v4823
        %v4825 = vmul.f32 %v4721, 1.442695
        %v4826 = vpow.pop %v4825
        %v4827 = vmul.f32 %v4722, 1.442695
        %v4828 = vpow.pop %v4827
        %v4829 = vmul.f32 %v4723, 1.442695
        %v4830 = vpow.pop %v4829
        %v4831 = vmul.f32 %v4724, 1.442695
        %v4832 = vpow.pop %v4831
        %v4833 = vmul.f32 %v4725, 1.442695
        %v4834 = vpow.pop %v4833
        %v4835 = vmul.f32 %v4726, 1.442695
        %v4836 = vpow.pop %v4835
        %v4837 = vmul.f32 %v4727, 1.442695
        %v4838 = vpow.pop %v4837
        %v4839 = vmul.f32 %v4728, 1.442695
        %v4840 = vpow.pop %v4839
        %v4841 = vmul.f32 %v4729, 1.442695
        %v4842 = vpow.pop %v4841
        %v4843 = vmul.f32 %v4730, 1.442695
        %v4844 = vpow.pop %v4843
        %v4845 = vmul.f32 %v4731, 1.442695
        %v4846 = vpow.pop %v4845
        %v4847 = vmul.f32 %v4732, 1.442695
        %v4848 = vpow.pop %v4847
        %v4849 = vmul.f32 %v4733, 1.442695
        %v4850 = vpow.pop %v4849
        %v4851 = vmul.f32 %v4734, 1.442695
        %v4852 = vpow.pop %v4851
        %v4853 = vmul.f32 %v4735, 1.442695
        %v4854 = vpow.pop %v4853
        %v4855 = vmul.f32 %v4736, 1.442695
        %v4856 = vpow.pop %v4855
        %v4857 = vmul.f32 %v4737, 1.442695
        %v4858 = vpow.pop %v4857
        %v4859 = vmul.f32 %v4738, 1.442695
        %v4860 = vpow.pop %v4859
        %v4861 = vmul.f32 %v4739, 1.442695
        %v4862 = vpow.pop %v4861
        %v4863 = vmul.f32 %v4740, 1.442695
        %v4864 = vpow.pop %v4863
        %v4865 = vmul.f32 %v4741, 1.442695
        %v4866 = vpow.pop %v4865
        %v4867 = vmul.f32 %v4742, 1.442695
        %v4868 = vpow.pop %v4867
        %v4869 = vmul.f32 %v4743, 1.442695
        %v4870 = vpow.pop %v4869
        %v4871 = vmul.f32 %v4744, 1.442695
        %v4872 = vpow.pop %v4871
        %v4873 = vcombine.high %v3811, %v3811
        %4875 = vst.msk [vmem:[#allocation4] ss:$2 sm:$0x3] %vm2807, %v4873
        %v4876 = vld [vmem:[#allocation4] sm:$0xf]
        %v4879 = vunpack.c.l.s4 1983009808
        %v4880 = vunpack.c.0.s8 %v4879
        %v4881 = vlaneseq
        %v4882 = vshrl.u32 %v4881, 7
        %v4883 = vsub.s32 %v4880, %v4882
        %v4884 = vrot.slane %v4876, %v4883
        %v4885 = vcombine.high %v4884, %v4884
        %4888 = vmatprep.subr.mxu0 %v4748
        %4889 = vmatpush1.msra.mxu0 %v4746
        %4890 = vmatprep.subr.mxu0 %v4752
        %4891 = vmatpush1.msra.mxu0 %v4750
        %4892 = vmatprep.subr.mxu0 %v4756
        %4893 = vmatpush1.msra.mxu0 %v4754
        %4894 = vmatprep.subr.mxu0 %v4760
        %4895 = vmatpush1.msra.mxu0 %v4758
        %4896 = vmatprep.subr.mxu0 %v4764
        %4897 = vmatpush1.msra.mxu0 %v4762
        %4898 = vmatprep.subr.mxu0 %v4768
        %4899 = vmatpush1.msra.mxu0 %v4766
        %4900 = vmatprep.subr.mxu0 %v4772
        %4901 = vmatpush1.msra.mxu0 %v4770
        %4902 = vmatprep.subr.mxu0 %v4776
        %4903 = vmatpush1.msra.mxu0 %v4774
        %4904 = vmatprep.subr.mxu0 %v4780
        %4905 = vmatpush1.msra.mxu0 %v4778
        %4906 = vmatprep.subr.mxu0 %v4784
        %4907 = vmatpush1.msra.mxu0 %v4782
        %4908 = vmatprep.subr.mxu0 %v4788
        %4909 = vmatpush1.msra.mxu0 %v4786
        %4910 = vmatprep.subr.mxu0 %v4792
        %4911 = vmatpush1.msra.mxu0 %v4790
        %4912 = vmatprep.subr.mxu0 %v4796
        %4913 = vmatpush1.msra.mxu0 %v4794
        %4914 = vmatprep.subr.mxu0 %v4800
        %4915 = vmatpush1.msra.mxu0 %v4798
        %4916 = vmatprep.subr.mxu0 %v4804
        %4917 = vmatpush1.msra.mxu0 %v4802
        %4918 = vmatprep.subr.mxu0 %v4808
        %4919 = vmatpush1.msra.mxu0 %v4806
        %4920 = vmatprep.subr.mxu0 %v4812
        %4921 = vmatpush1.msra.mxu0 %v4810
        %4922 = vmatprep.subr.mxu0 %v4816
        %4923 = vmatpush1.msra.mxu0 %v4814
        %4924 = vmatprep.subr.mxu0 %v4820
        %4925 = vmatpush1.msra.mxu0 %v4818
        %4926 = vmatprep.subr.mxu0 %v4824
        %4927 = vmatpush1.msra.mxu0 %v4822
        %4928 = vmatprep.subr.mxu0 %v4828
        %4929 = vmatpush1.msra.mxu0 %v4826
        %4930 = vmatprep.subr.mxu0 %v4832
        %4931 = vmatpush1.msra.mxu0 %v4830
        %4932 = vmatprep.subr.mxu0 %v4836
        %4933 = vmatpush1.msra.mxu0 %v4834
        %4934 = vmatprep.subr.mxu0 %v4840
        %4935 = vmatpush1.msra.mxu0 %v4838
        %4936 = vmatprep.subr.mxu0 %v4844
        %4937 = vmatpush1.msra.mxu0 %v4842
        %4938 = vmatprep.subr.mxu0 %v4848
        %4939 = vmatpush1.msra.mxu0 %v4846
        %4940 = vmatprep.subr.mxu0 %v4852
        %4941 = vmatpush1.msra.mxu0 %v4850
        %4942 = vmatprep.subr.mxu0 %v4856
        %4943 = vmatpush1.msra.mxu0 %v4854
        %4944 = vmatprep.subr.mxu0 %v4860
        %4945 = vmatpush1.msra.mxu0 %v4858
        %4946 = vmatprep.subr.mxu0 %v4864
        %4947 = vmatpush1.msra.mxu0 %v4862
        %4948 = vmatprep.subr.mxu0 %v4868
        %4949 = vmatpush1.msra.mxu0 %v4866
        %4950 = vmatprep.subr.mxu0 %v4872
        %4951 = vmatpush1.msra.mxu0 %v4870
        %4952 = vmatprep.mubr.f32.mxu0 %v4885
        %4953 = vmatmul.mubr.f32.gmra.mrb[0].mxu0 %v4884
        %v4954 = vpop.f32.mrb[0].mxu0
        %v4955 = vadd.f32 0.0, %v4954
        %v4956 = vpop.f32.mrb[0].mxu0
        %v4957 = vadd.f32 0.0, %v4956
        %4958 = vdwg.mxu0
        %v4961 = vrot.slane %v4955, 1
        %v4962 = vrot.slane %v4957, 1
        %v4965 = vrcp.pop %v4961
        %v4966 = vmul.f32 %v4955, %v4965
        %v4967 = vrcp.pop %v4962
        %v4968 = vmul.f32 %v4957, %v4967
        %v4971 = vcombine.low %v4966, %v4968
        %v4973 = vunpack.c.l.s4 1966171168
        %v4974 = vunpack.c.0.s8 %v4973
        %v4975 = vlaneseq
        %v4976 = vshrl.u32 %v4975, 7
        %v4977 = vsub.s32 %v4974, %v4976
        %v4978 = vrot.slane %v4971, %v4977
        %v4980 = vunpack.c.l.s4 1966171168
        %v4981 = vunpack.c.0.s8 %v4980
        %v4982 = vlaneseq
        %v4983 = vshrl.u32 %v4982, 7
        %v4984 = vsub.s32 %v4981, %v4983
        %v4985 = vrot.slane %v4978, %v4984
        %s4987 = scalar_lea.vmem [#allocation5], 3
        %4988 = vst.msk [vmem:[%s4987] ss:$8 sm:$0x3] %vm2807, %v4985
        %4989 = vst.msk [vmem:[%s4987] ss:$8 sm:$0x0] %vm2807, %v4985
        %4990 = vset.pattern.permute.xlu0 4
        %4991 = vperm.xlu0 %4990, %v2734
        %v4992 = vpop.permute.xlu0 %4991
        %v4994 = vmul.f32 %v2188, %v4992
        %v4995 = vmul.f32 %v2190, %v4992
        %4996 = vset.pattern.permute.xlu0 4
        %4997 = vperm.xlu0 %4996, %v2803
        %v4998 = vpop.permute.xlu0 %4997
        %v5000 = vmul.f32 %v2188, %v4998
        %v5001 = vmul.f32 %v2190, %v4998
        %v5002 = vmax.f32 %v4994, %v5000
        %v5003 = vmax.f32 %v4995, %v5001
        %5004 = vset.pattern.permute.xlu0 4
        %5005 = vperm.xlu0 %5004, %v2508
        %v5006 = vpop.permute.xlu0 %5005
        %5008 = vset.pattern.permute.xlu0 4
        %5009 = vperm.xlu0 %5008, %v2513
        %v5010 = vpop.permute.xlu0 %5009
        %5012 = vset.pattern.permute.xlu0 4
        %5013 = vperm.xlu0 %5012, %v2518
        %v5014 = vpop.permute.xlu0 %5013
        %5016 = vset.pattern.permute.xlu0 4
        %5017 = vperm.xlu0 %5016, %v2523
        %v5018 = vpop.permute.xlu0 %5017
        %5020 = vset.pattern.permute.xlu0 4
        %5021 = vperm.xlu0 %5020, %v2528
        %v5022 = vpop.permute.xlu0 %5021
        %5024 = vset.pattern.permute.xlu0 4
        %5025 = vperm.xlu0 %5024, %v2533
        %v5026 = vpop.permute.xlu0 %5025
        %5028 = vset.pattern.permute.xlu0 4
        %5029 = vperm.xlu0 %5028, %v2538
        %v5030 = vpop.permute.xlu0 %5029
        %5032 = vset.pattern.permute.xlu0 4
        %5033 = vperm.xlu0 %5032, %v2543
        %v5034 = vpop.permute.xlu0 %5033
        %5036 = vset.pattern.permute.xlu0 4
        %5037 = vperm.xlu0 %5036, %v2548
        %v5038 = vpop.permute.xlu0 %5037
        %5040 = vset.pattern.permute.xlu0 4
        %5041 = vperm.xlu0 %5040, %v2553
        %v5042 = vpop.permute.xlu0 %5041
        %5044 = vset.pattern.permute.xlu0 4
        %5045 = vperm.xlu0 %5044, %v2558
        %v5046 = vpop.permute.xlu0 %5045
        %5048 = vset.pattern.permute.xlu0 4
        %5049 = vperm.xlu0 %5048, %v2563
        %v5050 = vpop.permute.xlu0 %5049
        %5052 = vset.pattern.permute.xlu0 4
        %5053 = vperm.xlu0 %5052, %v2568
        %v5054 = vpop.permute.xlu0 %5053
        %5056 = vset.pattern.permute.xlu0 4
        %5057 = vperm.xlu0 %5056, %v2573
        %v5058 = vpop.permute.xlu0 %5057
        %5060 = vset.pattern.permute.xlu0 4
        %5061 = vperm.xlu0 %5060, %v2578
        %v5062 = vpop.permute.xlu0 %5061
        %5064 = vset.pattern.permute.xlu0 4
        %5065 = vperm.xlu0 %5064, %v2583
        %v5066 = vpop.permute.xlu0 %5065
        %5068 = vset.pattern.permute.xlu0 4
        %5069 = vperm.xlu0 %5068, %v2588
        %v5070 = vpop.permute.xlu0 %5069
        %5072 = vset.pattern.permute.xlu0 4
        %5073 = vperm.xlu0 %5072, %v2593
        %v5074 = vpop.permute.xlu0 %5073
        %5076 = vset.pattern.permute.xlu0 4
        %5077 = vperm.xlu0 %5076, %v2598
        %v5078 = vpop.permute.xlu0 %5077
        %5080 = vset.pattern.permute.xlu0 4
        %5081 = vperm.xlu0 %5080, %v2603
        %v5082 = vpop.permute.xlu0 %5081
        %5084 = vset.pattern.permute.xlu0 4
        %5085 = vperm.xlu0 %5084, %v2608
        %v5086 = vpop.permute.xlu0 %5085
        %5088 = vset.pattern.permute.xlu0 4
        %5089 = vperm.xlu0 %5088, %v2613
        %v5090 = vpop.permute.xlu0 %5089
        %5092 = vset.pattern.permute.xlu0 4
        %5093 = vperm.xlu0 %5092, %v2618
        %v5094 = vpop.permute.xlu0 %5093
        %5096 = vset.pattern.permute.xlu0 4
        %5097 = vperm.xlu0 %5096, %v2623
        %v5098 = vpop.permute.xlu0 %5097
        %5100 = vset.pattern.permute.xlu0 4
        %5101 = vperm.xlu0 %5100, %v2628
        %v5102 = vpop.permute.xlu0 %5101
        %5104 = vset.pattern.permute.xlu0 4
        %5105 = vperm.xlu0 %5104, %v2633
        %v5106 = vpop.permute.xlu0 %5105
        %5108 = vset.pattern.permute.xlu0 4
        %5109 = vperm.xlu0 %5108, %v2638
        %v5110 = vpop.permute.xlu0 %5109
        %5112 = vset.pattern.permute.xlu0 4
        %5113 = vperm.xlu0 %5112, %v2643
        %v5114 = vpop.permute.xlu0 %5113
        %5116 = vset.pattern.permute.xlu0 4
        %5117 = vperm.xlu0 %5116, %v2648
        %v5118 = vpop.permute.xlu0 %5117
        %5120 = vset.pattern.permute.xlu0 4
        %5121 = vperm.xlu0 %5120, %v2653
        %v5122 = vpop.permute.xlu0 %5121
        %5124 = vset.pattern.permute.xlu0 4
        %5125 = vperm.xlu0 %5124, %v2658
        %v5126 = vpop.permute.xlu0 %5125
        %5128 = vset.pattern.permute.xlu0 4
        %5129 = vperm.xlu0 %5128, %v2663
        %v5130 = vpop.permute.xlu0 %5129
        %v5132 = vlaneseq
        %v5133 = vshrl.u32 %v5132, 7
        %v5134 = vsub.s32 4, %v5133
        %v5135 = vrot.slane %v2188, %v5134
        %v5136 = vlaneseq
        %v5137 = vshrl.u32 %v5136, 7
        %v5138 = vsub.s32 4, %v5137
        %v5139 = vrot.slane %v2190, %v5138
        %v5140 = vmul.f32 %v5006, %v5135
        %v5141 = vmul.f32 %v5006, %v5139
        %v5142 = vmul.f32 %v5010, %v5135
        %v5143 = vmul.f32 %v5010, %v5139
        %v5144 = vmul.f32 %v5014, %v5135
        %v5145 = vmul.f32 %v5014, %v5139
        %v5146 = vmul.f32 %v5018, %v5135
        %v5147 = vmul.f32 %v5018, %v5139
        %v5148 = vmul.f32 %v5022, %v5135
        %v5149 = vmul.f32 %v5022, %v5139
        %v5150 = vmul.f32 %v5026, %v5135
        %v5151 = vmul.f32 %v5026, %v5139
        %v5152 = vmul.f32 %v5030, %v5135
        %v5153 = vmul.f32 %v5030, %v5139
        %v5154 = vmul.f32 %v5034, %v5135
        %v5155 = vmul.f32 %v5034, %v5139
        %v5156 = vmul.f32 %v5038, %v5135
        %v5157 = vmul.f32 %v5038, %v5139
        %v5158 = vmul.f32 %v5042, %v5135
        %v5159 = vmul.f32 %v5042, %v5139
        %v5160 = vmul.f32 %v5046, %v5135
        %v5161 = vmul.f32 %v5046, %v5139
        %v5162 = vmul.f32 %v5050, %v5135
        %v5163 = vmul.f32 %v5050, %v5139
        %v5164 = vmul.f32 %v5054, %v5135
        %v5165 = vmul.f32 %v5054, %v5139
        %v5166 = vmul.f32 %v5058, %v5135
        %v5167 = vmul.f32 %v5058, %v5139
        %v5168 = vmul.f32 %v5062, %v5135
        %v5169 = vmul.f32 %v5062, %v5139
        %v5170 = vmul.f32 %v5066, %v5135
        %v5171 = vmul.f32 %v5066, %v5139
        %v5172 = vmul.f32 %v5070, %v5135
        %v5173 = vmul.f32 %v5070, %v5139
        %v5174 = vmul.f32 %v5074, %v5135
        %v5175 = vmul.f32 %v5074, %v5139
        %v5176 = vmul.f32 %v5078, %v5135
        %v5177 = vmul.f32 %v5078, %v5139
        %v5178 = vmul.f32 %v5082, %v5135
        %v5179 = vmul.f32 %v5082, %v5139
        %v5180 = vmul.f32 %v5086, %v5135
        %v5181 = vmul.f32 %v5086, %v5139
        %v5182 = vmul.f32 %v5090, %v5135
        %v5183 = vmul.f32 %v5090, %v5139
        %v5184 = vmul.f32 %v5094, %v5135
        %v5185 = vmul.f32 %v5094, %v5139
        %v5186 = vmul.f32 %v5098, %v5135
        %v5187 = vmul.f32 %v5098, %v5139
        %v5188 = vmul.f32 %v5102, %v5135
        %v5189 = vmul.f32 %v5102, %v5139
        %v5190 = vmul.f32 %v5106, %v5135
        %v5191 = vmul.f32 %v5106, %v5139
        %v5192 = vmul.f32 %v5110, %v5135
        %v5193 = vmul.f32 %v5110, %v5139
        %v5194 = vmul.f32 %v5114, %v5135
        %v5195 = vmul.f32 %v5114, %v5139
        %v5196 = vmul.f32 %v5118, %v5135
        %v5197 = vmul.f32 %v5118, %v5139
        %v5198 = vmul.f32 %v5122, %v5135
        %v5199 = vmul.f32 %v5122, %v5139
        %v5200 = vmul.f32 %v5126, %v5135
        %v5201 = vmul.f32 %v5126, %v5139
        %v5202 = vmul.f32 %v5130, %v5135
        %v5203 = vmul.f32 %v5130, %v5139
        %v5204 = vlaneseq
        %v5205 = vshrl.u32 %v5204, 7
        %v5206 = vsub.s32 4, %v5205
        %v5207 = vrot.slane %v5002, %v5206
        %v5208 = vlaneseq
        %v5209 = vshrl.u32 %v5208, 7
        %v5210 = vsub.s32 4, %v5209
        %v5211 = vrot.slane %v5003, %v5210
        %v5212 = vsub.f32 %v5140, %v5207
        %v5213 = vsub.f32 %v5141, %v5211
        %v5214 = vsub.f32 %v5142, %v5207
        %v5215 = vsub.f32 %v5143, %v5211
        %v5216 = vsub.f32 %v5144, %v5207
        %v5217 = vsub.f32 %v5145, %v5211
        %v5218 = vsub.f32 %v5146, %v5207
        %v5219 = vsub.f32 %v5147, %v5211
        %v5220 = vsub.f32 %v5148, %v5207
        %v5221 = vsub.f32 %v5149, %v5211
        %v5222 = vsub.f32 %v5150, %v5207
        %v5223 = vsub.f32 %v5151, %v5211
        %v5224 = vsub.f32 %v5152, %v5207
        %v5225 = vsub.f32 %v5153, %v5211
        %v5226 = vsub.f32 %v5154, %v5207
        %v5227 = vsub.f32 %v5155, %v5211
        %v5228 = vsub.f32 %v5156, %v5207
        %v5229 = vsub.f32 %v5157, %v5211
        %v5230 = vsub.f32 %v5158, %v5207
        %v5231 = vsub.f32 %v5159, %v5211
        %v5232 = vsub.f32 %v5160, %v5207
        %v5233 = vsub.f32 %v5161, %v5211
        %v5234 = vsub.f32 %v5162, %v5207
        %v5235 = vsub.f32 %v5163, %v5211
        %v5236 = vsub.f32 %v5164, %v5207
        %v5237 = vsub.f32 %v5165, %v5211
        %v5238 = vsub.f32 %v5166, %v5207
        %v5239 = vsub.f32 %v5167, %v5211
        %v5240 = vsub.f32 %v5168, %v5207
        %v5241 = vsub.f32 %v5169, %v5211
        %v5242 = vsub.f32 %v5170, %v5207
        %v5243 = vsub.f32 %v5171, %v5211
        %v5244 = vsub.f32 %v5172, %v5207
        %v5245 = vsub.f32 %v5173, %v5211
        %v5246 = vsub.f32 %v5174, %v5207
        %v5247 = vsub.f32 %v5175, %v5211
        %v5248 = vsub.f32 %v5176, %v5207
        %v5249 = vsub.f32 %v5177, %v5211
        %v5250 = vsub.f32 %v5178, %v5207
        %v5251 = vsub.f32 %v5179, %v5211
        %v5252 = vsub.f32 %v5180, %v5207
        %v5253 = vsub.f32 %v5181, %v5211
        %v5254 = vsub.f32 %v5182, %v5207
        %v5255 = vsub.f32 %v5183, %v5211
        %v5256 = vsub.f32 %v5184, %v5207
        %v5257 = vsub.f32 %v5185, %v5211
        %v5258 = vsub.f32 %v5186, %v5207
        %v5259 = vsub.f32 %v5187, %v5211
        %v5260 = vsub.f32 %v5188, %v5207
        %v5261 = vsub.f32 %v5189, %v5211
        %v5262 = vsub.f32 %v5190, %v5207
        %v5263 = vsub.f32 %v5191, %v5211
        %v5264 = vsub.f32 %v5192, %v5207
        %v5265 = vsub.f32 %v5193, %v5211
        %v5266 = vsub.f32 %v5194, %v5207
        %v5267 = vsub.f32 %v5195, %v5211
        %v5268 = vsub.f32 %v5196, %v5207
        %v5269 = vsub.f32 %v5197, %v5211
        %v5270 = vsub.f32 %v5198, %v5207
        %v5271 = vsub.f32 %v5199, %v5211
        %v5272 = vsub.f32 %v5200, %v5207
        %v5273 = vsub.f32 %v5201, %v5211
        %v5274 = vsub.f32 %v5202, %v5207
        %v5275 = vsub.f32 %v5203, %v5211
        %v5276 = vmul.f32 %v5212, 1.442695
        %v5277 = vpow.pop %v5276
        %v5278 = vmul.f32 %v5213, 1.442695
        %v5279 = vpow.pop %v5278
        %v5280 = vmul.f32 %v5214, 1.442695
        %v5281 = vpow.pop %v5280
        %v5282 = vmul.f32 %v5215, 1.442695
        %v5283 = vpow.pop %v5282
        %v5284 = vmul.f32 %v5216, 1.442695
        %v5285 = vpow.pop %v5284
        %v5286 = vmul.f32 %v5217, 1.442695
        %v5287 = vpow.pop %v5286
        %v5288 = vmul.f32 %v5218, 1.442695
        %v5289 = vpow.pop %v5288
        %v5290 = vmul.f32 %v5219, 1.442695
        %v5291 = vpow.pop %v5290
        %v5292 = vmul.f32 %v5220, 1.442695
        %v5293 = vpow.pop %v5292
        %v5294 = vmul.f32 %v5221, 1.442695
        %v5295 = vpow.pop %v5294
        %v5296 = vmul.f32 %v5222, 1.442695
        %v5297 = vpow.pop %v5296
        %v5298 = vmul.f32 %v5223, 1.442695
        %v5299 = vpow.pop %v5298
        %v5300 = vmul.f32 %v5224, 1.442695
        %v5301 = vpow.pop %v5300
        %v5302 = vmul.f32 %v5225, 1.442695
        %v5303 = vpow.pop %v5302
        %v5304 = vmul.f32 %v5226, 1.442695
        %v5305 = vpow.pop %v5304
        %v5306 = vmul.f32 %v5227, 1.442695
        %v5307 = vpow.pop %v5306
        %v5308 = vmul.f32 %v5228, 1.442695
        %v5309 = vpow.pop %v5308
        %v5310 = vmul.f32 %v5229, 1.442695
        %v5311 = vpow.pop %v5310
        %v5312 = vmul.f32 %v5230, 1.442695
        %v5313 = vpow.pop %v5312
        %v5314 = vmul.f32 %v5231, 1.442695
        %v5315 = vpow.pop %v5314
        %v5316 = vmul.f32 %v5232, 1.442695
        %v5317 = vpow.pop %v5316
        %v5318 = vmul.f32 %v5233, 1.442695
        %v5319 = vpow.pop %v5318
        %v5320 = vmul.f32 %v5234, 1.442695
        %v5321 = vpow.pop %v5320
        %v5322 = vmul.f32 %v5235, 1.442695
        %v5323 = vpow.pop %v5322
        %v5324 = vmul.f32 %v5236, 1.442695
        %v5325 = vpow.pop %v5324
        %v5326 = vmul.f32 %v5237, 1.442695
        %v5327 = vpow.pop %v5326
        %v5328 = vmul.f32 %v5238, 1.442695
        %v5329 = vpow.pop %v5328
        %v5330 = vmul.f32 %v5239, 1.442695
        %v5331 = vpow.pop %v5330
        %v5332 = vmul.f32 %v5240, 1.442695
        %v5333 = vpow.pop %v5332
        %v5334 = vmul.f32 %v5241, 1.442695
        %v5335 = vpow.pop %v5334
        %v5336 = vmul.f32 %v5242, 1.442695
        %v5337 = vpow.pop %v5336
        %v5338 = vmul.f32 %v5243, 1.442695
        %v5339 = vpow.pop %v5338
        %v5340 = vmul.f32 %v5244, 1.442695
        %v5341 = vpow.pop %v5340
        %v5342 = vmul.f32 %v5245, 1.442695
        %v5343 = vpow.pop %v5342
        %v5344 = vmul.f32 %v5246, 1.442695
        %v5345 = vpow.pop %v5344
        %v5346 = vmul.f32 %v5247, 1.442695
        %v5347 = vpow.pop %v5346
        %v5348 = vmul.f32 %v5248, 1.442695
        %v5349 = vpow.pop %v5348
        %v5350 = vmul.f32 %v5249, 1.442695
        %v5351 = vpow.pop %v5350
        %v5352 = vmul.f32 %v5250, 1.442695
        %v5353 = vpow.pop %v5352
        %v5354 = vmul.f32 %v5251, 1.442695
        %v5355 = vpow.pop %v5354
        %v5356 = vmul.f32 %v5252, 1.442695
        %v5357 = vpow.pop %v5356
        %v5358 = vmul.f32 %v5253, 1.442695
        %v5359 = vpow.pop %v5358
        %v5360 = vmul.f32 %v5254, 1.442695
        %v5361 = vpow.pop %v5360
        %v5362 = vmul.f32 %v5255, 1.442695
        %v5363 = vpow.pop %v5362
        %v5364 = vmul.f32 %v5256, 1.442695
        %v5365 = vpow.pop %v5364
        %v5366 = vmul.f32 %v5257, 1.442695
        %v5367 = vpow.pop %v5366
        %v5368 = vmul.f32 %v5258, 1.442695
        %v5369 = vpow.pop %v5368
        %v5370 = vmul.f32 %v5259, 1.442695
        %v5371 = vpow.pop %v5370
        %v5372 = vmul.f32 %v5260, 1.442695
        %v5373 = vpow.pop %v5372
        %v5374 = vmul.f32 %v5261, 1.442695
        %v5375 = vpow.pop %v5374
        %v5376 = vmul.f32 %v5262, 1.442695
        %v5377 = vpow.pop %v5376
        %v5378 = vmul.f32 %v5263, 1.442695
        %v5379 = vpow.pop %v5378
        %v5380 = vmul.f32 %v5264, 1.442695
        %v5381 = vpow.pop %v5380
        %v5382 = vmul.f32 %v5265, 1.442695
        %v5383 = vpow.pop %v5382
        %v5384 = vmul.f32 %v5266, 1.442695
        %v5385 = vpow.pop %v5384
        %v5386 = vmul.f32 %v5267, 1.442695
        %v5387 = vpow.pop %v5386
        %v5388 = vmul.f32 %v5268, 1.442695
        %v5389 = vpow.pop %v5388
        %v5390 = vmul.f32 %v5269, 1.442695
        %v5391 = vpow.pop %v5390
        %v5392 = vmul.f32 %v5270, 1.442695
        %v5393 = vpow.pop %v5392
        %v5394 = vmul.f32 %v5271, 1.442695
        %v5395 = vpow.pop %v5394
        %v5396 = vmul.f32 %v5272, 1.442695
        %v5397 = vpow.pop %v5396
        %v5398 = vmul.f32 %v5273, 1.442695
        %v5399 = vpow.pop %v5398
        %v5400 = vmul.f32 %v5274, 1.442695
        %v5401 = vpow.pop %v5400
        %v5402 = vmul.f32 %v5275, 1.442695
        %v5403 = vpow.pop %v5402
        %v5404 = vcombine.high %v2269, %v2271
        %v5406 = vunpack.c.l.s4 1966171168
        %v5407 = vunpack.c.0.s8 %v5406
        %v5408 = vlaneseq
        %v5409 = vshrl.u32 %v5408, 7
        %v5410 = vsub.s32 %v5407, %v5409
        %v5411 = vrot.slane %v5404, %v5410
        %v5413 = vunpack.c.l.s4 1966171168
        %v5414 = vunpack.c.0.s8 %v5413
        %v5415 = vlaneseq
        %v5416 = vshrl.u32 %v5415, 7
        %v5417 = vsub.s32 %v5414, %v5416
        %v5418 = vrot.slane %v5411, %v5417
        %5420 = vst.msk [vmem:[#allocation4] ss:$2 sm:$0x3] %vm2807, %v5418
        %v5421 = vld [vmem:[#allocation4] sm:$0xf]
        %v5424 = vunpack.c.l.s4 1983009808
        %v5425 = vunpack.c.0.s8 %v5424
        %v5426 = vlaneseq
        %v5427 = vshrl.u32 %v5426, 7
        %v5428 = vsub.s32 %v5425, %v5427
        %v5429 = vrot.slane %v5421, %v5428
        %v5430 = vcombine.high %v5429, %v5429
        %5433 = vmatprep.subr.mxu0 %v5279
        %5434 = vmatpush1.msra.mxu0 %v5277
        %5435 = vmatprep.subr.mxu0 %v5283
        %5436 = vmatpush1.msra.mxu0 %v5281
        %5437 = vmatprep.subr.mxu0 %v5287
        %5438 = vmatpush1.msra.mxu0 %v5285
        %5439 = vmatprep.subr.mxu0 %v5291
        %5440 = vmatpush1.msra.mxu0 %v5289
        %5441 = vmatprep.subr.mxu0 %v5295
        %5442 = vmatpush1.msra.mxu0 %v5293
        %5443 = vmatprep.subr.mxu0 %v5299
        %5444 = vmatpush1.msra.mxu0 %v5297
        %5445 = vmatprep.subr.mxu0 %v5303
        %5446 = vmatpush1.msra.mxu0 %v5301
        %5447 = vmatprep.subr.mxu0 %v5307
        %5448 = vmatpush1.msra.mxu0 %v5305
        %5449 = vmatprep.subr.mxu0 %v5311
        %5450 = vmatpush1.msra.mxu0 %v5309
        %5451 = vmatprep.subr.mxu0 %v5315
        %5452 = vmatpush1.msra.mxu0 %v5313
        %5453 = vmatprep.subr.mxu0 %v5319
        %5454 = vmatpush1.msra.mxu0 %v5317
        %5455 = vmatprep.subr.mxu0 %v5323
        %5456 = vmatpush1.msra.mxu0 %v5321
        %5457 = vmatprep.subr.mxu0 %v5327
        %5458 = vmatpush1.msra.mxu0 %v5325
        %5459 = vmatprep.subr.mxu0 %v5331
        %5460 = vmatpush1.msra.mxu0 %v5329
        %5461 = vmatprep.subr.mxu0 %v5335
        %5462 = vmatpush1.msra.mxu0 %v5333
        %5463 = vmatprep.subr.mxu0 %v5339
        %5464 = vmatpush1.msra.mxu0 %v5337
        %5465 = vmatprep.subr.mxu0 %v5343
        %5466 = vmatpush1.msra.mxu0 %v5341
        %5467 = vmatprep.subr.mxu0 %v5347
        %5468 = vmatpush1.msra.mxu0 %v5345
        %5469 = vmatprep.subr.mxu0 %v5351
        %5470 = vmatpush1.msra.mxu0 %v5349
        %5471 = vmatprep.subr.mxu0 %v5355
        %5472 = vmatpush1.msra.mxu0 %v5353
        %5473 = vmatprep.subr.mxu0 %v5359
        %5474 = vmatpush1.msra.mxu0 %v5357
        %5475 = vmatprep.subr.mxu0 %v5363
        %5476 = vmatpush1.msra.mxu0 %v5361
        %5477 = vmatprep.subr.mxu0 %v5367
        %5478 = vmatpush1.msra.mxu0 %v5365
        %5479 = vmatprep.subr.mxu0 %v5371
        %5480 = vmatpush1.msra.mxu0 %v5369
        %5481 = vmatprep.subr.mxu0 %v5375
        %5482 = vmatpush1.msra.mxu0 %v5373
        %5483 = vmatprep.subr.mxu0 %v5379
        %5484 = vmatpush1.msra.mxu0 %v5377
        %5485 = vmatprep.subr.mxu0 %v5383
        %5486 = vmatpush1.msra.mxu0 %v5381
        %5487 = vmatprep.subr.mxu0 %v5387
        %5488 = vmatpush1.msra.mxu0 %v5385
        %5489 = vmatprep.subr.mxu0 %v5391
        %5490 = vmatpush1.msra.mxu0 %v5389
        %5491 = vmatprep.subr.mxu0 %v5395
        %5492 = vmatpush1.msra.mxu0 %v5393
        %5493 = vmatprep.subr.mxu0 %v5399
        %5494 = vmatpush1.msra.mxu0 %v5397
        %5495 = vmatprep.subr.mxu0 %v5403
        %5496 = vmatpush1.msra.mxu0 %v5401
        %5497 = vmatprep.mubr.f32.mxu0 %v5430
        %5498 = vmatmul.mubr.f32.gmra.mrb[0].mxu0 %v5429
        %v5499 = vpop.f32.mrb[0].mxu0
        %v5500 = vadd.f32 0.0, %v5499
        %v5501 = vpop.f32.mrb[0].mxu0
        %v5502 = vadd.f32 0.0, %v5501
        %5503 = vdwg.mxu0
        %v5506 = vrot.slane %v5500, 1
        %v5507 = vrot.slane %v5502, 1
        %v5510 = vrcp.pop %v5506
        %v5511 = vmul.f32 %v5500, %v5510
        %v5512 = vrcp.pop %v5507
        %v5513 = vmul.f32 %v5502, %v5512
        %v5516 = vcombine.low %v5511, %v5513
        %v5518 = vunpack.c.l.s4 1966171168
        %v5519 = vunpack.c.0.s8 %v5518
        %v5520 = vlaneseq
        %v5521 = vshrl.u32 %v5520, 7
        %v5522 = vsub.s32 %v5519, %v5521
        %v5523 = vrot.slane %v5516, %v5522
        %v5525 = vunpack.c.l.s4 1966171168
        %v5526 = vunpack.c.0.s8 %v5525
        %v5527 = vlaneseq
        %v5528 = vshrl.u32 %v5527, 7
        %v5529 = vsub.s32 %v5526, %v5528
        %v5530 = vrot.slane %v5523, %v5529
        %s5532 = scalar_lea.vmem [#allocation5], 4
        %5533 = vst.msk [vmem:[%s5532] ss:$8 sm:$0x3] %vm2807, %v5530
        %5534 = vst.msk [vmem:[%s5532] ss:$8 sm:$0x0] %vm2807, %v5530
        %5535 = vset.pattern.permute.xlu0 5
        %5536 = vperm.xlu0 %5535, %v2734
        %v5537 = vpop.permute.xlu0 %5536
        %v5539 = vmul.f32 %v2188, %v5537
        %v5540 = vmul.f32 %v2190, %v5537
        %5541 = vset.pattern.permute.xlu0 5
        %5542 = vperm.xlu0 %5541, %v2803
        %v5543 = vpop.permute.xlu0 %5542
        %v5545 = vmul.f32 %v2188, %v5543
        %v5546 = vmul.f32 %v2190, %v5543
        %v5547 = vmax.f32 %v5539, %v5545
        %v5548 = vmax.f32 %v5540, %v5546
        %5549 = vset.pattern.permute.xlu0 5
        %5550 = vperm.xlu0 %5549, %v2508
        %v5551 = vpop.permute.xlu0 %5550
        %5553 = vset.pattern.permute.xlu0 5
        %5554 = vperm.xlu0 %5553, %v2513
        %v5555 = vpop.permute.xlu0 %5554
        %5557 = vset.pattern.permute.xlu0 5
        %5558 = vperm.xlu0 %5557, %v2518
        %v5559 = vpop.permute.xlu0 %5558
        %5561 = vset.pattern.permute.xlu0 5
        %5562 = vperm.xlu0 %5561, %v2523
        %v5563 = vpop.permute.xlu0 %5562
        %5565 = vset.pattern.permute.xlu0 5
        %5566 = vperm.xlu0 %5565, %v2528
        %v5567 = vpop.permute.xlu0 %5566
        %5569 = vset.pattern.permute.xlu0 5
        %5570 = vperm.xlu0 %5569, %v2533
        %v5571 = vpop.permute.xlu0 %5570
        %5573 = vset.pattern.permute.xlu0 5
        %5574 = vperm.xlu0 %5573, %v2538
        %v5575 = vpop.permute.xlu0 %5574
        %5577 = vset.pattern.permute.xlu0 5
        %5578 = vperm.xlu0 %5577, %v2543
        %v5579 = vpop.permute.xlu0 %5578
        %5581 = vset.pattern.permute.xlu0 5
        %5582 = vperm.xlu0 %5581, %v2548
        %v5583 = vpop.permute.xlu0 %5582
        %5585 = vset.pattern.permute.xlu0 5
        %5586 = vperm.xlu0 %5585, %v2553
        %v5587 = vpop.permute.xlu0 %5586
        %5589 = vset.pattern.permute.xlu0 5
        %5590 = vperm.xlu0 %5589, %v2558
        %v5591 = vpop.permute.xlu0 %5590
        %5593 = vset.pattern.permute.xlu0 5
        %5594 = vperm.xlu0 %5593, %v2563
        %v5595 = vpop.permute.xlu0 %5594
        %5597 = vset.pattern.permute.xlu0 5
        %5598 = vperm.xlu0 %5597, %v2568
        %v5599 = vpop.permute.xlu0 %5598
        %5601 = vset.pattern.permute.xlu0 5
        %5602 = vperm.xlu0 %5601, %v2573
        %v5603 = vpop.permute.xlu0 %5602
        %5605 = vset.pattern.permute.xlu0 5
        %5606 = vperm.xlu0 %5605, %v2578
        %v5607 = vpop.permute.xlu0 %5606
        %5609 = vset.pattern.permute.xlu0 5
        %5610 = vperm.xlu0 %5609, %v2583
        %v5611 = vpop.permute.xlu0 %5610
        %5613 = vset.pattern.permute.xlu0 5
        %5614 = vperm.xlu0 %5613, %v2588
        %v5615 = vpop.permute.xlu0 %5614
        %5617 = vset.pattern.permute.xlu0 5
        %5618 = vperm.xlu0 %5617, %v2593
        %v5619 = vpop.permute.xlu0 %5618
        %5621 = vset.pattern.permute.xlu0 5
        %5622 = vperm.xlu0 %5621, %v2598
        %v5623 = vpop.permute.xlu0 %5622
        %5625 = vset.pattern.permute.xlu0 5
        %5626 = vperm.xlu0 %5625, %v2603
        %v5627 = vpop.permute.xlu0 %5626
        %5629 = vset.pattern.permute.xlu0 5
        %5630 = vperm.xlu0 %5629, %v2608
        %v5631 = vpop.permute.xlu0 %5630
        %5633 = vset.pattern.permute.xlu0 5
        %5634 = vperm.xlu0 %5633, %v2613
        %v5635 = vpop.permute.xlu0 %5634
        %5637 = vset.pattern.permute.xlu0 5
        %5638 = vperm.xlu0 %5637, %v2618
        %v5639 = vpop.permute.xlu0 %5638
        %5641 = vset.pattern.permute.xlu0 5
        %5642 = vperm.xlu0 %5641, %v2623
        %v5643 = vpop.permute.xlu0 %5642
        %5645 = vset.pattern.permute.xlu0 5
        %5646 = vperm.xlu0 %5645, %v2628
        %v5647 = vpop.permute.xlu0 %5646
        %5649 = vset.pattern.permute.xlu0 5
        %5650 = vperm.xlu0 %5649, %v2633
        %v5651 = vpop.permute.xlu0 %5650
        %5653 = vset.pattern.permute.xlu0 5
        %5654 = vperm.xlu0 %5653, %v2638
        %v5655 = vpop.permute.xlu0 %5654
        %5657 = vset.pattern.permute.xlu0 5
        %5658 = vperm.xlu0 %5657, %v2643
        %v5659 = vpop.permute.xlu0 %5658
        %5661 = vset.pattern.permute.xlu0 5
        %5662 = vperm.xlu0 %5661, %v2648
        %v5663 = vpop.permute.xlu0 %5662
        %5665 = vset.pattern.permute.xlu0 5
        %5666 = vperm.xlu0 %5665, %v2653
        %v5667 = vpop.permute.xlu0 %5666
        %5669 = vset.pattern.permute.xlu0 5
        %5670 = vperm.xlu0 %5669, %v2658
        %v5671 = vpop.permute.xlu0 %5670
        %5673 = vset.pattern.permute.xlu0 5
        %5674 = vperm.xlu0 %5673, %v2663
        %v5675 = vpop.permute.xlu0 %5674
        %v5677 = vlaneseq
        %v5678 = vshrl.u32 %v5677, 7
        %v5679 = vsub.s32 5, %v5678
        %v5680 = vrot.slane %v2188, %v5679
        %v5681 = vlaneseq
        %v5682 = vshrl.u32 %v5681, 7
        %v5683 = vsub.s32 5, %v5682
        %v5684 = vrot.slane %v2190, %v5683
        %v5685 = vmul.f32 %v5551, %v5680
        %v5686 = vmul.f32 %v5551, %v5684
        %v5687 = vmul.f32 %v5555, %v5680
        %v5688 = vmul.f32 %v5555, %v5684
        %v5689 = vmul.f32 %v5559, %v5680
        %v5690 = vmul.f32 %v5559, %v5684
        %v5691 = vmul.f32 %v5563, %v5680
        %v5692 = vmul.f32 %v5563, %v5684
        %v5693 = vmul.f32 %v5567, %v5680
        %v5694 = vmul.f32 %v5567, %v5684
        %v5695 = vmul.f32 %v5571, %v5680
        %v5696 = vmul.f32 %v5571, %v5684
        %v5697 = vmul.f32 %v5575, %v5680
        %v5698 = vmul.f32 %v5575, %v5684
        %v5699 = vmul.f32 %v5579, %v5680
        %v5700 = vmul.f32 %v5579, %v5684
        %v5701 = vmul.f32 %v5583, %v5680
        %v5702 = vmul.f32 %v5583, %v5684
        %v5703 = vmul.f32 %v5587, %v5680
        %v5704 = vmul.f32 %v5587, %v5684
        %v5705 = vmul.f32 %v5591, %v5680
        %v5706 = vmul.f32 %v5591, %v5684
        %v5707 = vmul.f32 %v5595, %v5680
        %v5708 = vmul.f32 %v5595, %v5684
        %v5709 = vmul.f32 %v5599, %v5680
        %v5710 = vmul.f32 %v5599, %v5684
        %v5711 = vmul.f32 %v5603, %v5680
        %v5712 = vmul.f32 %v5603, %v5684
        %v5713 = vmul.f32 %v5607, %v5680
        %v5714 = vmul.f32 %v5607, %v5684
        %v5715 = vmul.f32 %v5611, %v5680
        %v5716 = vmul.f32 %v5611, %v5684
        %v5717 = vmul.f32 %v5615, %v5680
        %v5718 = vmul.f32 %v5615, %v5684
        %v5719 = vmul.f32 %v5619, %v5680
        %v5720 = vmul.f32 %v5619, %v5684
        %v5721 = vmul.f32 %v5623, %v5680
        %v5722 = vmul.f32 %v5623, %v5684
        %v5723 = vmul.f32 %v5627, %v5680
        %v5724 = vmul.f32 %v5627, %v5684
        %v5725 = vmul.f32 %v5631, %v5680
        %v5726 = vmul.f32 %v5631, %v5684
        %v5727 = vmul.f32 %v5635, %v5680
        %v5728 = vmul.f32 %v5635, %v5684
        %v5729 = vmul.f32 %v5639, %v5680
        %v5730 = vmul.f32 %v5639, %v5684
        %v5731 = vmul.f32 %v5643, %v5680
        %v5732 = vmul.f32 %v5643, %v5684
        %v5733 = vmul.f32 %v5647, %v5680
        %v5734 = vmul.f32 %v5647, %v5684
        %v5735 = vmul.f32 %v5651, %v5680
        %v5736 = vmul.f32 %v5651, %v5684
        %v5737 = vmul.f32 %v5655, %v5680
        %v5738 = vmul.f32 %v5655, %v5684
        %v5739 = vmul.f32 %v5659, %v5680
        %v5740 = vmul.f32 %v5659, %v5684
        %v5741 = vmul.f32 %v5663, %v5680
        %v5742 = vmul.f32 %v5663, %v5684
        %v5743 = vmul.f32 %v5667, %v5680
        %v5744 = vmul.f32 %v5667, %v5684
        %v5745 = vmul.f32 %v5671, %v5680
        %v5746 = vmul.f32 %v5671, %v5684
        %v5747 = vmul.f32 %v5675, %v5680
        %v5748 = vmul.f32 %v5675, %v5684
        %v5749 = vlaneseq
        %v5750 = vshrl.u32 %v5749, 7
        %v5751 = vsub.s32 5, %v5750
        %v5752 = vrot.slane %v5547, %v5751
        %v5753 = vlaneseq
        %v5754 = vshrl.u32 %v5753, 7
        %v5755 = vsub.s32 5, %v5754
        %v5756 = vrot.slane %v5548, %v5755
        %v5757 = vsub.f32 %v5685, %v5752
        %v5758 = vsub.f32 %v5686, %v5756
        %v5759 = vsub.f32 %v5687, %v5752
        %v5760 = vsub.f32 %v5688, %v5756
        %v5761 = vsub.f32 %v5689, %v5752
        %v5762 = vsub.f32 %v5690, %v5756
        %v5763 = vsub.f32 %v5691, %v5752
        %v5764 = vsub.f32 %v5692, %v5756
        %v5765 = vsub.f32 %v5693, %v5752
        %v5766 = vsub.f32 %v5694, %v5756
        %v5767 = vsub.f32 %v5695, %v5752
        %v5768 = vsub.f32 %v5696, %v5756
        %v5769 = vsub.f32 %v5697, %v5752
        %v5770 = vsub.f32 %v5698, %v5756
        %v5771 = vsub.f32 %v5699, %v5752
        %v5772 = vsub.f32 %v5700, %v5756
        %v5773 = vsub.f32 %v5701, %v5752
        %v5774 = vsub.f32 %v5702, %v5756
        %v5775 = vsub.f32 %v5703, %v5752
        %v5776 = vsub.f32 %v5704, %v5756
        %v5777 = vsub.f32 %v5705, %v5752
        %v5778 = vsub.f32 %v5706, %v5756
        %v5779 = vsub.f32 %v5707, %v5752
        %v5780 = vsub.f32 %v5708, %v5756
        %v5781 = vsub.f32 %v5709, %v5752
        %v5782 = vsub.f32 %v5710, %v5756
        %v5783 = vsub.f32 %v5711, %v5752
        %v5784 = vsub.f32 %v5712, %v5756
        %v5785 = vsub.f32 %v5713, %v5752
        %v5786 = vsub.f32 %v5714, %v5756
        %v5787 = vsub.f32 %v5715, %v5752
        %v5788 = vsub.f32 %v5716, %v5756
        %v5789 = vsub.f32 %v5717, %v5752
        %v5790 = vsub.f32 %v5718, %v5756
        %v5791 = vsub.f32 %v5719, %v5752
        %v5792 = vsub.f32 %v5720, %v5756
        %v5793 = vsub.f32 %v5721, %v5752
        %v5794 = vsub.f32 %v5722, %v5756
        %v5795 = vsub.f32 %v5723, %v5752
        %v5796 = vsub.f32 %v5724, %v5756
        %v5797 = vsub.f32 %v5725, %v5752
        %v5798 = vsub.f32 %v5726, %v5756
        %v5799 = vsub.f32 %v5727, %v5752
        %v5800 = vsub.f32 %v5728, %v5756
        %v5801 = vsub.f32 %v5729, %v5752
        %v5802 = vsub.f32 %v5730, %v5756
        %v5803 = vsub.f32 %v5731, %v5752
        %v5804 = vsub.f32 %v5732, %v5756
        %v5805 = vsub.f32 %v5733, %v5752
        %v5806 = vsub.f32 %v5734, %v5756
        %v5807 = vsub.f32 %v5735, %v5752
        %v5808 = vsub.f32 %v5736, %v5756
        %v5809 = vsub.f32 %v5737, %v5752
        %v5810 = vsub.f32 %v5738, %v5756
        %v5811 = vsub.f32 %v5739, %v5752
        %v5812 = vsub.f32 %v5740, %v5756
        %v5813 = vsub.f32 %v5741, %v5752
        %v5814 = vsub.f32 %v5742, %v5756
        %v5815 = vsub.f32 %v5743, %v5752
        %v5816 = vsub.f32 %v5744, %v5756
        %v5817 = vsub.f32 %v5745, %v5752
        %v5818 = vsub.f32 %v5746, %v5756
        %v5819 = vsub.f32 %v5747, %v5752
        %v5820 = vsub.f32 %v5748, %v5756
        %v5821 = vmul.f32 %v5757, 1.442695
        %v5822 = vpow.pop %v5821
        %v5823 = vmul.f32 %v5758, 1.442695
        %v5824 = vpow.pop %v5823
        %v5825 = vmul.f32 %v5759, 1.442695
        %v5826 = vpow.pop %v5825
        %v5827 = vmul.f32 %v5760, 1.442695
        %v5828 = vpow.pop %v5827
        %v5829 = vmul.f32 %v5761, 1.442695
        %v5830 = vpow.pop %v5829
        %v5831 = vmul.f32 %v5762, 1.442695
        %v5832 = vpow.pop %v5831
        %v5833 = vmul.f32 %v5763, 1.442695
        %v5834 = vpow.pop %v5833
        %v5835 = vmul.f32 %v5764, 1.442695
        %v5836 = vpow.pop %v5835
        %v5837 = vmul.f32 %v5765, 1.442695
        %v5838 = vpow.pop %v5837
        %v5839 = vmul.f32 %v5766, 1.442695
        %v5840 = vpow.pop %v5839
        %v5841 = vmul.f32 %v5767, 1.442695
        %v5842 = vpow.pop %v5841
        %v5843 = vmul.f32 %v5768, 1.442695
        %v5844 = vpow.pop %v5843
        %v5845 = vmul.f32 %v5769, 1.442695
        %v5846 = vpow.pop %v5845
        %v5847 = vmul.f32 %v5770, 1.442695
        %v5848 = vpow.pop %v5847
        %v5849 = vmul.f32 %v5771, 1.442695
        %v5850 = vpow.pop %v5849
        %v5851 = vmul.f32 %v5772, 1.442695
        %v5852 = vpow.pop %v5851
        %v5853 = vmul.f32 %v5773, 1.442695
        %v5854 = vpow.pop %v5853
        %v5855 = vmul.f32 %v5774, 1.442695
        %v5856 = vpow.pop %v5855
        %v5857 = vmul.f32 %v5775, 1.442695
        %v5858 = vpow.pop %v5857
        %v5859 = vmul.f32 %v5776, 1.442695
        %v5860 = vpow.pop %v5859
        %v5861 = vmul.f32 %v5777, 1.442695
        %v5862 = vpow.pop %v5861
        %v5863 = vmul.f32 %v5778, 1.442695
        %v5864 = vpow.pop %v5863
        %v5865 = vmul.f32 %v5779, 1.442695
        %v5866 = vpow.pop %v5865
        %v5867 = vmul.f32 %v5780, 1.442695
        %v5868 = vpow.pop %v5867
        %v5869 = vmul.f32 %v5781, 1.442695
        %v5870 = vpow.pop %v5869
        %v5871 = vmul.f32 %v5782, 1.442695
        %v5872 = vpow.pop %v5871
        %v5873 = vmul.f32 %v5783, 1.442695
        %v5874 = vpow.pop %v5873
        %v5875 = vmul.f32 %v5784, 1.442695
        %v5876 = vpow.pop %v5875
        %v5877 = vmul.f32 %v5785, 1.442695
        %v5878 = vpow.pop %v5877
        %v5879 = vmul.f32 %v5786, 1.442695
        %v5880 = vpow.pop %v5879
        %v5881 = vmul.f32 %v5787, 1.442695
        %v5882 = vpow.pop %v5881
        %v5883 = vmul.f32 %v5788, 1.442695
        %v5884 = vpow.pop %v5883
        %v5885 = vmul.f32 %v5789, 1.442695
        %v5886 = vpow.pop %v5885
        %v5887 = vmul.f32 %v5790, 1.442695
        %v5888 = vpow.pop %v5887
        %v5889 = vmul.f32 %v5791, 1.442695
        %v5890 = vpow.pop %v5889
        %v5891 = vmul.f32 %v5792, 1.442695
        %v5892 = vpow.pop %v5891
        %v5893 = vmul.f32 %v5793, 1.442695
        %v5894 = vpow.pop %v5893
        %v5895 = vmul.f32 %v5794, 1.442695
        %v5896 = vpow.pop %v5895
        %v5897 = vmul.f32 %v5795, 1.442695
        %v5898 = vpow.pop %v5897
        %v5899 = vmul.f32 %v5796, 1.442695
        %v5900 = vpow.pop %v5899
        %v5901 = vmul.f32 %v5797, 1.442695
        %v5902 = vpow.pop %v5901
        %v5903 = vmul.f32 %v5798, 1.442695
        %v5904 = vpow.pop %v5903
        %v5905 = vmul.f32 %v5799, 1.442695
        %v5906 = vpow.pop %v5905
        %v5907 = vmul.f32 %v5800, 1.442695
        %v5908 = vpow.pop %v5907
        %v5909 = vmul.f32 %v5801, 1.442695
        %v5910 = vpow.pop %v5909
        %v5911 = vmul.f32 %v5802, 1.442695
        %v5912 = vpow.pop %v5911
        %v5913 = vmul.f32 %v5803, 1.442695
        %v5914 = vpow.pop %v5913
        %v5915 = vmul.f32 %v5804, 1.442695
        %v5916 = vpow.pop %v5915
        %v5917 = vmul.f32 %v5805, 1.442695
        %v5918 = vpow.pop %v5917
        %v5919 = vmul.f32 %v5806, 1.442695
        %v5920 = vpow.pop %v5919
        %v5921 = vmul.f32 %v5807, 1.442695
        %v5922 = vpow.pop %v5921
        %v5923 = vmul.f32 %v5808, 1.442695
        %v5924 = vpow.pop %v5923
        %v5925 = vmul.f32 %v5809, 1.442695
        %v5926 = vpow.pop %v5925
        %v5927 = vmul.f32 %v5810, 1.442695
        %v5928 = vpow.pop %v5927
        %v5929 = vmul.f32 %v5811, 1.442695
        %v5930 = vpow.pop %v5929
        %v5931 = vmul.f32 %v5812, 1.442695
        %v5932 = vpow.pop %v5931
        %v5933 = vmul.f32 %v5813, 1.442695
        %v5934 = vpow.pop %v5933
        %v5935 = vmul.f32 %v5814, 1.442695
        %v5936 = vpow.pop %v5935
        %v5937 = vmul.f32 %v5815, 1.442695
        %v5938 = vpow.pop %v5937
        %v5939 = vmul.f32 %v5816, 1.442695
        %v5940 = vpow.pop %v5939
        %v5941 = vmul.f32 %v5817, 1.442695
        %v5942 = vpow.pop %v5941
        %v5943 = vmul.f32 %v5818, 1.442695
        %v5944 = vpow.pop %v5943
        %v5945 = vmul.f32 %v5819, 1.442695
        %v5946 = vpow.pop %v5945
        %v5947 = vmul.f32 %v5820, 1.442695
        %v5948 = vpow.pop %v5947
        %v5949 = vcombine.high %v5411, %v5411
        %v5951 = vunpack.c.l.s4 1966171168
        %v5952 = vunpack.c.0.s8 %v5951
        %v5953 = vlaneseq
        %v5954 = vshrl.u32 %v5953, 7
        %v5955 = vsub.s32 %v5952, %v5954
        %v5956 = vrot.slane %v5949, %v5955
        %5958 = vst.msk [vmem:[#allocation4] ss:$2 sm:$0x3] %vm2807, %v5956
        %v5959 = vld [vmem:[#allocation4] sm:$0xf]
        %v5962 = vunpack.c.l.s4 1983009808
        %v5963 = vunpack.c.0.s8 %v5962
        %v5964 = vlaneseq
        %v5965 = vshrl.u32 %v5964, 7
        %v5966 = vsub.s32 %v5963, %v5965
        %v5967 = vrot.slane %v5959, %v5966
        %v5968 = vcombine.high %v5967, %v5967
        %5971 = vmatprep.subr.mxu0 %v5824
        %5972 = vmatpush1.msra.mxu0 %v5822
        %5973 = vmatprep.subr.mxu0 %v5828
        %5974 = vmatpush1.msra.mxu0 %v5826
        %5975 = vmatprep.subr.mxu0 %v5832
        %5976 = vmatpush1.msra.mxu0 %v5830
        %5977 = vmatprep.subr.mxu0 %v5836
        %5978 = vmatpush1.msra.mxu0 %v5834
        %5979 = vmatprep.subr.mxu0 %v5840
        %5980 = vmatpush1.msra.mxu0 %v5838
        %5981 = vmatprep.subr.mxu0 %v5844
        %5982 = vmatpush1.msra.mxu0 %v5842
        %5983 = vmatprep.subr.mxu0 %v5848
        %5984 = vmatpush1.msra.mxu0 %v5846
        %5985 = vmatprep.subr.mxu0 %v5852
        %5986 = vmatpush1.msra.mxu0 %v5850
        %5987 = vmatprep.subr.mxu0 %v5856
        %5988 = vmatpush1.msra.mxu0 %v5854
        %5989 = vmatprep.subr.mxu0 %v5860
        %5990 = vmatpush1.msra.mxu0 %v5858
        %5991 = vmatprep.subr.mxu0 %v5864
        %5992 = vmatpush1.msra.mxu0 %v5862
        %5993 = vmatprep.subr.mxu0 %v5868
        %5994 = vmatpush1.msra.mxu0 %v5866
        %5995 = vmatprep.subr.mxu0 %v5872
        %5996 = vmatpush1.msra.mxu0 %v5870
        %5997 = vmatprep.subr.mxu0 %v5876
        %5998 = vmatpush1.msra.mxu0 %v5874
        %5999 = vmatprep.subr.mxu0 %v5880
        %6000 = vmatpush1.msra.mxu0 %v5878
        %6001 = vmatprep.subr.mxu0 %v5884
        %6002 = vmatpush1.msra.mxu0 %v5882
        %6003 = vmatprep.subr.mxu0 %v5888
        %6004 = vmatpush1.msra.mxu0 %v5886
        %6005 = vmatprep.subr.mxu0 %v5892
        %6006 = vmatpush1.msra.mxu0 %v5890
        %6007 = vmatprep.subr.mxu0 %v5896
        %6008 = vmatpush1.msra.mxu0 %v5894
        %6009 = vmatprep.subr.mxu0 %v5900
        %6010 = vmatpush1.msra.mxu0 %v5898
        %6011 = vmatprep.subr.mxu0 %v5904
        %6012 = vmatpush1.msra.mxu0 %v5902
        %6013 = vmatprep.subr.mxu0 %v5908
        %6014 = vmatpush1.msra.mxu0 %v5906
        %6015 = vmatprep.subr.mxu0 %v5912
        %6016 = vmatpush1.msra.mxu0 %v5910
        %6017 = vmatprep.subr.mxu0 %v5916
        %6018 = vmatpush1.msra.mxu0 %v5914
        %6019 = vmatprep.subr.mxu0 %v5920
        %6020 = vmatpush1.msra.mxu0 %v5918
        %6021 = vmatprep.subr.mxu0 %v5924
        %6022 = vmatpush1.msra.mxu0 %v5922
        %6023 = vmatprep.subr.mxu0 %v5928
        %6024 = vmatpush1.msra.mxu0 %v5926
        %6025 = vmatprep.subr.mxu0 %v5932
        %6026 = vmatpush1.msra.mxu0 %v5930
        %6027 = vmatprep.subr.mxu0 %v5936
        %6028 = vmatpush1.msra.mxu0 %v5934
        %6029 = vmatprep.subr.mxu0 %v5940
        %6030 = vmatpush1.msra.mxu0 %v5938
        %6031 = vmatprep.subr.mxu0 %v5944
        %6032 = vmatpush1.msra.mxu0 %v5942
        %6033 = vmatprep.subr.mxu0 %v5948
        %6034 = vmatpush1.msra.mxu0 %v5946
        %6035 = vmatprep.mubr.f32.mxu0 %v5968
        %6036 = vmatmul.mubr.f32.gmra.mrb[0].mxu0 %v5967
        %v6037 = vpop.f32.mrb[0].mxu0
        %v6038 = vadd.f32 0.0, %v6037
        %v6039 = vpop.f32.mrb[0].mxu0
        %v6040 = vadd.f32 0.0, %v6039
        %6041 = vdwg.mxu0
        %v6044 = vrot.slane %v6038, 1
        %v6045 = vrot.slane %v6040, 1
        %v6048 = vrcp.pop %v6044
        %v6049 = vmul.f32 %v6038, %v6048
        %v6050 = vrcp.pop %v6045
        %v6051 = vmul.f32 %v6040, %v6050
        %v6054 = vcombine.low %v6049, %v6051
        %v6056 = vunpack.c.l.s4 1966171168
        %v6057 = vunpack.c.0.s8 %v6056
        %v6058 = vlaneseq
        %v6059 = vshrl.u32 %v6058, 7
        %v6060 = vsub.s32 %v6057, %v6059
        %v6061 = vrot.slane %v6054, %v6060
        %v6063 = vunpack.c.l.s4 1966171168
        %v6064 = vunpack.c.0.s8 %v6063
        %v6065 = vlaneseq
        %v6066 = vshrl.u32 %v6065, 7
        %v6067 = vsub.s32 %v6064, %v6066
        %v6068 = vrot.slane %v6061, %v6067
        %s6070 = scalar_lea.vmem [#allocation5], 5
        %6071 = vst.msk [vmem:[%s6070] ss:$8 sm:$0x3] %vm2807, %v6068
        %6072 = vst.msk [vmem:[%s6070] ss:$8 sm:$0x0] %vm2807, %v6068
        %6073 = vset.pattern.permute.xlu0 6
        %6074 = vperm.xlu0 %6073, %v2734
        %v6075 = vpop.permute.xlu0 %6074
        %v6077 = vmul.f32 %v2188, %v6075
        %v6078 = vmul.f32 %v2190, %v6075
        %6079 = vset.pattern.permute.xlu0 6
        %6080 = vperm.xlu0 %6079, %v2803
        %v6081 = vpop.permute.xlu0 %6080
        %v6083 = vmul.f32 %v2188, %v6081
        %v6084 = vmul.f32 %v2190, %v6081
        %v6085 = vmax.f32 %v6077, %v6083
        %v6086 = vmax.f32 %v6078, %v6084
        %6087 = vset.pattern.permute.xlu0 6
        %6088 = vperm.xlu0 %6087, %v2508
        %v6089 = vpop.permute.xlu0 %6088
        %6091 = vset.pattern.permute.xlu0 6
        %6092 = vperm.xlu0 %6091, %v2513
        %v6093 = vpop.permute.xlu0 %6092
        %6095 = vset.pattern.permute.xlu0 6
        %6096 = vperm.xlu0 %6095, %v2518
        %v6097 = vpop.permute.xlu0 %6096
        %6099 = vset.pattern.permute.xlu0 6
        %6100 = vperm.xlu0 %6099, %v2523
        %v6101 = vpop.permute.xlu0 %6100
        %6103 = vset.pattern.permute.xlu0 6
        %6104 = vperm.xlu0 %6103, %v2528
        %v6105 = vpop.permute.xlu0 %6104
        %6107 = vset.pattern.permute.xlu0 6
        %6108 = vperm.xlu0 %6107, %v2533
        %v6109 = vpop.permute.xlu0 %6108
        %6111 = vset.pattern.permute.xlu0 6
        %6112 = vperm.xlu0 %6111, %v2538
        %v6113 = vpop.permute.xlu0 %6112
        %6115 = vset.pattern.permute.xlu0 6
        %6116 = vperm.xlu0 %6115, %v2543
        %v6117 = vpop.permute.xlu0 %6116
        %6119 = vset.pattern.permute.xlu0 6
        %6120 = vperm.xlu0 %6119, %v2548
        %v6121 = vpop.permute.xlu0 %6120
        %6123 = vset.pattern.permute.xlu0 6
        %6124 = vperm.xlu0 %6123, %v2553
        %v6125 = vpop.permute.xlu0 %6124
        %6127 = vset.pattern.permute.xlu0 6
        %6128 = vperm.xlu0 %6127, %v2558
        %v6129 = vpop.permute.xlu0 %6128
        %6131 = vset.pattern.permute.xlu0 6
        %6132 = vperm.xlu0 %6131, %v2563
        %v6133 = vpop.permute.xlu0 %6132
        %6135 = vset.pattern.permute.xlu0 6
        %6136 = vperm.xlu0 %6135, %v2568
        %v6137 = vpop.permute.xlu0 %6136
        %6139 = vset.pattern.permute.xlu0 6
        %6140 = vperm.xlu0 %6139, %v2573
        %v6141 = vpop.permute.xlu0 %6140
        %6143 = vset.pattern.permute.xlu0 6
        %6144 = vperm.xlu0 %6143, %v2578
        %v6145 = vpop.permute.xlu0 %6144
        %6147 = vset.pattern.permute.xlu0 6
        %6148 = vperm.xlu0 %6147, %v2583
        %v6149 = vpop.permute.xlu0 %6148
        %6151 = vset.pattern.permute.xlu0 6
        %6152 = vperm.xlu0 %6151, %v2588
        %v6153 = vpop.permute.xlu0 %6152
        %6155 = vset.pattern.permute.xlu0 6
        %6156 = vperm.xlu0 %6155, %v2593
        %v6157 = vpop.permute.xlu0 %6156
        %6159 = vset.pattern.permute.xlu0 6
        %6160 = vperm.xlu0 %6159, %v2598
        %v6161 = vpop.permute.xlu0 %6160
        %6163 = vset.pattern.permute.xlu0 6
        %6164 = vperm.xlu0 %6163, %v2603
        %v6165 = vpop.permute.xlu0 %6164
        %6167 = vset.pattern.permute.xlu0 6
        %6168 = vperm.xlu0 %6167, %v2608
        %v6169 = vpop.permute.xlu0 %6168
        %6171 = vset.pattern.permute.xlu0 6
        %6172 = vperm.xlu0 %6171, %v2613
        %v6173 = vpop.permute.xlu0 %6172
        %6175 = vset.pattern.permute.xlu0 6
        %6176 = vperm.xlu0 %6175, %v2618
        %v6177 = vpop.permute.xlu0 %6176
        %6179 = vset.pattern.permute.xlu0 6
        %6180 = vperm.xlu0 %6179, %v2623
        %v6181 = vpop.permute.xlu0 %6180
        %6183 = vset.pattern.permute.xlu0 6
        %6184 = vperm.xlu0 %6183, %v2628
        %v6185 = vpop.permute.xlu0 %6184
        %6187 = vset.pattern.permute.xlu0 6
        %6188 = vperm.xlu0 %6187, %v2633
        %v6189 = vpop.permute.xlu0 %6188
        %6191 = vset.pattern.permute.xlu0 6
        %6192 = vperm.xlu0 %6191, %v2638
        %v6193 = vpop.permute.xlu0 %6192
        %6195 = vset.pattern.permute.xlu0 6
        %6196 = vperm.xlu0 %6195, %v2643
        %v6197 = vpop.permute.xlu0 %6196
        %6199 = vset.pattern.permute.xlu0 6
        %6200 = vperm.xlu0 %6199, %v2648
        %v6201 = vpop.permute.xlu0 %6200
        %6203 = vset.pattern.permute.xlu0 6
        %6204 = vperm.xlu0 %6203, %v2653
        %v6205 = vpop.permute.xlu0 %6204
        %6207 = vset.pattern.permute.xlu0 6
        %6208 = vperm.xlu0 %6207, %v2658
        %v6209 = vpop.permute.xlu0 %6208
        %6211 = vset.pattern.permute.xlu0 6
        %6212 = vperm.xlu0 %6211, %v2663
        %v6213 = vpop.permute.xlu0 %6212
        %v6215 = vlaneseq
        %v6216 = vshrl.u32 %v6215, 7
        %v6217 = vsub.s32 6, %v6216
        %v6218 = vrot.slane %v2188, %v6217
        %v6219 = vlaneseq
        %v6220 = vshrl.u32 %v6219, 7
        %v6221 = vsub.s32 6, %v6220
        %v6222 = vrot.slane %v2190, %v6221
        %v6223 = vmul.f32 %v6089, %v6218
        %v6224 = vmul.f32 %v6089, %v6222
        %v6225 = vmul.f32 %v6093, %v6218
        %v6226 = vmul.f32 %v6093, %v6222
        %v6227 = vmul.f32 %v6097, %v6218
        %v6228 = vmul.f32 %v6097, %v6222
        %v6229 = vmul.f32 %v6101, %v6218
        %v6230 = vmul.f32 %v6101, %v6222
        %v6231 = vmul.f32 %v6105, %v6218
        %v6232 = vmul.f32 %v6105, %v6222
        %v6233 = vmul.f32 %v6109, %v6218
        %v6234 = vmul.f32 %v6109, %v6222
        %v6235 = vmul.f32 %v6113, %v6218
        %v6236 = vmul.f32 %v6113, %v6222
        %v6237 = vmul.f32 %v6117, %v6218
        %v6238 = vmul.f32 %v6117, %v6222
        %v6239 = vmul.f32 %v6121, %v6218
        %v6240 = vmul.f32 %v6121, %v6222
        %v6241 = vmul.f32 %v6125, %v6218
        %v6242 = vmul.f32 %v6125, %v6222
        %v6243 = vmul.f32 %v6129, %v6218
        %v6244 = vmul.f32 %v6129, %v6222
        %v6245 = vmul.f32 %v6133, %v6218
        %v6246 = vmul.f32 %v6133, %v6222
        %v6247 = vmul.f32 %v6137, %v6218
        %v6248 = vmul.f32 %v6137, %v6222
        %v6249 = vmul.f32 %v6141, %v6218
        %v6250 = vmul.f32 %v6141, %v6222
        %v6251 = vmul.f32 %v6145, %v6218
        %v6252 = vmul.f32 %v6145, %v6222
        %v6253 = vmul.f32 %v6149, %v6218
        %v6254 = vmul.f32 %v6149, %v6222
        %v6255 = vmul.f32 %v6153, %v6218
        %v6256 = vmul.f32 %v6153, %v6222
        %v6257 = vmul.f32 %v6157, %v6218
        %v6258 = vmul.f32 %v6157, %v6222
        %v6259 = vmul.f32 %v6161, %v6218
        %v6260 = vmul.f32 %v6161, %v6222
        %v6261 = vmul.f32 %v6165, %v6218
        %v6262 = vmul.f32 %v6165, %v6222
        %v6263 = vmul.f32 %v6169, %v6218
        %v6264 = vmul.f32 %v6169, %v6222
        %v6265 = vmul.f32 %v6173, %v6218
        %v6266 = vmul.f32 %v6173, %v6222
        %v6267 = vmul.f32 %v6177, %v6218
        %v6268 = vmul.f32 %v6177, %v6222
        %v6269 = vmul.f32 %v6181, %v6218
        %v6270 = vmul.f32 %v6181, %v6222
        %v6271 = vmul.f32 %v6185, %v6218
        %v6272 = vmul.f32 %v6185, %v6222
        %v6273 = vmul.f32 %v6189, %v6218
        %v6274 = vmul.f32 %v6189, %v6222
        %v6275 = vmul.f32 %v6193, %v6218
        %v6276 = vmul.f32 %v6193, %v6222
        %v6277 = vmul.f32 %v6197, %v6218
        %v6278 = vmul.f32 %v6197, %v6222
        %v6279 = vmul.f32 %v6201, %v6218
        %v6280 = vmul.f32 %v6201, %v6222
        %v6281 = vmul.f32 %v6205, %v6218
        %v6282 = vmul.f32 %v6205, %v6222
        %v6283 = vmul.f32 %v6209, %v6218
        %v6284 = vmul.f32 %v6209, %v6222
        %v6285 = vmul.f32 %v6213, %v6218
        %v6286 = vmul.f32 %v6213, %v6222
        %v6287 = vlaneseq
        %v6288 = vshrl.u32 %v6287, 7
        %v6289 = vsub.s32 6, %v6288
        %v6290 = vrot.slane %v6085, %v6289
        %v6291 = vlaneseq
        %v6292 = vshrl.u32 %v6291, 7
        %v6293 = vsub.s32 6, %v6292
        %v6294 = vrot.slane %v6086, %v6293
        %v6295 = vsub.f32 %v6223, %v6290
        %v6296 = vsub.f32 %v6224, %v6294
        %v6297 = vsub.f32 %v6225, %v6290
        %v6298 = vsub.f32 %v6226, %v6294
        %v6299 = vsub.f32 %v6227, %v6290
        %v6300 = vsub.f32 %v6228, %v6294
        %v6301 = vsub.f32 %v6229, %v6290
        %v6302 = vsub.f32 %v6230, %v6294
        %v6303 = vsub.f32 %v6231, %v6290
        %v6304 = vsub.f32 %v6232, %v6294
        %v6305 = vsub.f32 %v6233, %v6290
        %v6306 = vsub.f32 %v6234, %v6294
        %v6307 = vsub.f32 %v6235, %v6290
        %v6308 = vsub.f32 %v6236, %v6294
        %v6309 = vsub.f32 %v6237, %v6290
        %v6310 = vsub.f32 %v6238, %v6294
        %v6311 = vsub.f32 %v6239, %v6290
        %v6312 = vsub.f32 %v6240, %v6294
        %v6313 = vsub.f32 %v6241, %v6290
        %v6314 = vsub.f32 %v6242, %v6294
        %v6315 = vsub.f32 %v6243, %v6290
        %v6316 = vsub.f32 %v6244, %v6294
        %v6317 = vsub.f32 %v6245, %v6290
        %v6318 = vsub.f32 %v6246, %v6294
        %v6319 = vsub.f32 %v6247, %v6290
        %v6320 = vsub.f32 %v6248, %v6294
        %v6321 = vsub.f32 %v6249, %v6290
        %v6322 = vsub.f32 %v6250, %v6294
        %v6323 = vsub.f32 %v6251, %v6290
        %v6324 = vsub.f32 %v6252, %v6294
        %v6325 = vsub.f32 %v6253, %v6290
        %v6326 = vsub.f32 %v6254, %v6294
        %v6327 = vsub.f32 %v6255, %v6290
        %v6328 = vsub.f32 %v6256, %v6294
        %v6329 = vsub.f32 %v6257, %v6290
        %v6330 = vsub.f32 %v6258, %v6294
        %v6331 = vsub.f32 %v6259, %v6290
        %v6332 = vsub.f32 %v6260, %v6294
        %v6333 = vsub.f32 %v6261, %v6290
        %v6334 = vsub.f32 %v6262, %v6294
        %v6335 = vsub.f32 %v6263, %v6290
        %v6336 = vsub.f32 %v6264, %v6294
        %v6337 = vsub.f32 %v6265, %v6290
        %v6338 = vsub.f32 %v6266, %v6294
        %v6339 = vsub.f32 %v6267, %v6290
        %v6340 = vsub.f32 %v6268, %v6294
        %v6341 = vsub.f32 %v6269, %v6290
        %v6342 = vsub.f32 %v6270, %v6294
        %v6343 = vsub.f32 %v6271, %v6290
        %v6344 = vsub.f32 %v6272, %v6294
        %v6345 = vsub.f32 %v6273, %v6290
        %v6346 = vsub.f32 %v6274, %v6294
        %v6347 = vsub.f32 %v6275, %v6290
        %v6348 = vsub.f32 %v6276, %v6294
        %v6349 = vsub.f32 %v6277, %v6290
        %v6350 = vsub.f32 %v6278, %v6294
        %v6351 = vsub.f32 %v6279, %v6290
        %v6352 = vsub.f32 %v6280, %v6294
        %v6353 = vsub.f32 %v6281, %v6290
        %v6354 = vsub.f32 %v6282, %v6294
        %v6355 = vsub.f32 %v6283, %v6290
        %v6356 = vsub.f32 %v6284, %v6294
        %v6357 = vsub.f32 %v6285, %v6290
        %v6358 = vsub.f32 %v6286, %v6294
        %v6359 = vmul.f32 %v6295, 1.442695
        %v6360 = vpow.pop %v6359
        %v6361 = vmul.f32 %v6296, 1.442695
        %v6362 = vpow.pop %v6361
        %v6363 = vmul.f32 %v6297, 1.442695
        %v6364 = vpow.pop %v6363
        %v6365 = vmul.f32 %v6298, 1.442695
        %v6366 = vpow.pop %v6365
        %v6367 = vmul.f32 %v6299, 1.442695
        %v6368 = vpow.pop %v6367
        %v6369 = vmul.f32 %v6300, 1.442695
        %v6370 = vpow.pop %v6369
        %v6371 = vmul.f32 %v6301, 1.442695
        %v6372 = vpow.pop %v6371
        %v6373 = vmul.f32 %v6302, 1.442695
        %v6374 = vpow.pop %v6373
        %v6375 = vmul.f32 %v6303, 1.442695
        %v6376 = vpow.pop %v6375
        %v6377 = vmul.f32 %v6304, 1.442695
        %v6378 = vpow.pop %v6377
        %v6379 = vmul.f32 %v6305, 1.442695
        %v6380 = vpow.pop %v6379
        %v6381 = vmul.f32 %v6306, 1.442695
        %v6382 = vpow.pop %v6381
        %v6383 = vmul.f32 %v6307, 1.442695
        %v6384 = vpow.pop %v6383
        %v6385 = vmul.f32 %v6308, 1.442695
        %v6386 = vpow.pop %v6385
        %v6387 = vmul.f32 %v6309, 1.442695
        %v6388 = vpow.pop %v6387
        %v6389 = vmul.f32 %v6310, 1.442695
        %v6390 = vpow.pop %v6389
        %v6391 = vmul.f32 %v6311, 1.442695
        %v6392 = vpow.pop %v6391
        %v6393 = vmul.f32 %v6312, 1.442695
        %v6394 = vpow.pop %v6393
        %v6395 = vmul.f32 %v6313, 1.442695
        %v6396 = vpow.pop %v6395
        %v6397 = vmul.f32 %v6314, 1.442695
        %v6398 = vpow.pop %v6397
        %v6399 = vmul.f32 %v6315, 1.442695
        %v6400 = vpow.pop %v6399
        %v6401 = vmul.f32 %v6316, 1.442695
        %v6402 = vpow.pop %v6401
        %v6403 = vmul.f32 %v6317, 1.442695
        %v6404 = vpow.pop %v6403
        %v6405 = vmul.f32 %v6318, 1.442695
        %v6406 = vpow.pop %v6405
        %v6407 = vmul.f32 %v6319, 1.442695
        %v6408 = vpow.pop %v6407
        %v6409 = vmul.f32 %v6320, 1.442695
        %v6410 = vpow.pop %v6409
        %v6411 = vmul.f32 %v6321, 1.442695
        %v6412 = vpow.pop %v6411
        %v6413 = vmul.f32 %v6322, 1.442695
        %v6414 = vpow.pop %v6413
        %v6415 = vmul.f32 %v6323, 1.442695
        %v6416 = vpow.pop %v6415
        %v6417 = vmul.f32 %v6324, 1.442695
        %v6418 = vpow.pop %v6417
        %v6419 = vmul.f32 %v6325, 1.442695
        %v6420 = vpow.pop %v6419
        %v6421 = vmul.f32 %v6326, 1.442695
        %v6422 = vpow.pop %v6421
        %v6423 = vmul.f32 %v6327, 1.442695
        %v6424 = vpow.pop %v6423
        %v6425 = vmul.f32 %v6328, 1.442695
        %v6426 = vpow.pop %v6425
        %v6427 = vmul.f32 %v6329, 1.442695
        %v6428 = vpow.pop %v6427
        %v6429 = vmul.f32 %v6330, 1.442695
        %v6430 = vpow.pop %v6429
        %v6431 = vmul.f32 %v6331, 1.442695
        %v6432 = vpow.pop %v6431
        %v6433 = vmul.f32 %v6332, 1.442695
        %v6434 = vpow.pop %v6433
        %v6435 = vmul.f32 %v6333, 1.442695
        %v6436 = vpow.pop %v6435
        %v6437 = vmul.f32 %v6334, 1.442695
        %v6438 = vpow.pop %v6437
        %v6439 = vmul.f32 %v6335, 1.442695
        %v6440 = vpow.pop %v6439
        %v6441 = vmul.f32 %v6336, 1.442695
        %v6442 = vpow.pop %v6441
        %v6443 = vmul.f32 %v6337, 1.442695
        %v6444 = vpow.pop %v6443
        %v6445 = vmul.f32 %v6338, 1.442695
        %v6446 = vpow.pop %v6445
        %v6447 = vmul.f32 %v6339, 1.442695
        %v6448 = vpow.pop %v6447
        %v6449 = vmul.f32 %v6340, 1.442695
        %v6450 = vpow.pop %v6449
        %v6451 = vmul.f32 %v6341, 1.442695
        %v6452 = vpow.pop %v6451
        %v6453 = vmul.f32 %v6342, 1.442695
        %v6454 = vpow.pop %v6453
        %v6455 = vmul.f32 %v6343, 1.442695
        %v6456 = vpow.pop %v6455
        %v6457 = vmul.f32 %v6344, 1.442695
        %v6458 = vpow.pop %v6457
        %v6459 = vmul.f32 %v6345, 1.442695
        %v6460 = vpow.pop %v6459
        %v6461 = vmul.f32 %v6346, 1.442695
        %v6462 = vpow.pop %v6461
        %v6463 = vmul.f32 %v6347, 1.442695
        %v6464 = vpow.pop %v6463
        %v6465 = vmul.f32 %v6348, 1.442695
        %v6466 = vpow.pop %v6465
        %v6467 = vmul.f32 %v6349, 1.442695
        %v6468 = vpow.pop %v6467
        %v6469 = vmul.f32 %v6350, 1.442695
        %v6470 = vpow.pop %v6469
        %v6471 = vmul.f32 %v6351, 1.442695
        %v6472 = vpow.pop %v6471
        %v6473 = vmul.f32 %v6352, 1.442695
        %v6474 = vpow.pop %v6473
        %v6475 = vmul.f32 %v6353, 1.442695
        %v6476 = vpow.pop %v6475
        %v6477 = vmul.f32 %v6354, 1.442695
        %v6478 = vpow.pop %v6477
        %v6479 = vmul.f32 %v6355, 1.442695
        %v6480 = vpow.pop %v6479
        %v6481 = vmul.f32 %v6356, 1.442695
        %v6482 = vpow.pop %v6481
        %v6483 = vmul.f32 %v6357, 1.442695
        %v6484 = vpow.pop %v6483
        %v6485 = vmul.f32 %v6358, 1.442695
        %v6486 = vpow.pop %v6485
        %v6487 = vcombine.high %v5418, %v5418
        %6489 = vst.msk [vmem:[#allocation4] ss:$2 sm:$0x3] %vm2807, %v6487
        %v6490 = vld [vmem:[#allocation4] sm:$0xf]
        %v6493 = vunpack.c.l.s4 1983009808
        %v6494 = vunpack.c.0.s8 %v6493
        %v6495 = vlaneseq
        %v6496 = vshrl.u32 %v6495, 7
        %v6497 = vsub.s32 %v6494, %v6496
        %v6498 = vrot.slane %v6490, %v6497
        %v6499 = vcombine.high %v6498, %v6498
        %6502 = vmatprep.subr.mxu0 %v6362
        %6503 = vmatpush1.msra.mxu0 %v6360
        %6504 = vmatprep.subr.mxu0 %v6366
        %6505 = vmatpush1.msra.mxu0 %v6364
        %6506 = vmatprep.subr.mxu0 %v6370
        %6507 = vmatpush1.msra.mxu0 %v6368
        %6508 = vmatprep.subr.mxu0 %v6374
        %6509 = vmatpush1.msra.mxu0 %v6372
        %6510 = vmatprep.subr.mxu0 %v6378
        %6511 = vmatpush1.msra.mxu0 %v6376
        %6512 = vmatprep.subr.mxu0 %v6382
        %6513 = vmatpush1.msra.mxu0 %v6380
        %6514 = vmatprep.subr.mxu0 %v6386
        %6515 = vmatpush1.msra.mxu0 %v6384
        %6516 = vmatprep.subr.mxu0 %v6390
        %6517 = vmatpush1.msra.mxu0 %v6388
        %6518 = vmatprep.subr.mxu0 %v6394
        %6519 = vmatpush1.msra.mxu0 %v6392
        %6520 = vmatprep.subr.mxu0 %v6398
        %6521 = vmatpush1.msra.mxu0 %v6396
        %6522 = vmatprep.subr.mxu0 %v6402
        %6523 = vmatpush1.msra.mxu0 %v6400
        %6524 = vmatprep.subr.mxu0 %v6406
        %6525 = vmatpush1.msra.mxu0 %v6404
        %6526 = vmatprep.subr.mxu0 %v6410
        %6527 = vmatpush1.msra.mxu0 %v6408
        %6528 = vmatprep.subr.mxu0 %v6414
        %6529 = vmatpush1.msra.mxu0 %v6412
        %6530 = vmatprep.subr.mxu0 %v6418
        %6531 = vmatpush1.msra.mxu0 %v6416
        %6532 = vmatprep.subr.mxu0 %v6422
        %6533 = vmatpush1.msra.mxu0 %v6420
        %6534 = vmatprep.subr.mxu0 %v6426
        %6535 = vmatpush1.msra.mxu0 %v6424
        %6536 = vmatprep.subr.mxu0 %v6430
        %6537 = vmatpush1.msra.mxu0 %v6428
        %6538 = vmatprep.subr.mxu0 %v6434
        %6539 = vmatpush1.msra.mxu0 %v6432
        %6540 = vmatprep.subr.mxu0 %v6438
        %6541 = vmatpush1.msra.mxu0 %v6436
        %6542 = vmatprep.subr.mxu0 %v6442
        %6543 = vmatpush1.msra.mxu0 %v6440
        %6544 = vmatprep.subr.mxu0 %v6446
        %6545 = vmatpush1.msra.mxu0 %v6444
        %6546 = vmatprep.subr.mxu0 %v6450
        %6547 = vmatpush1.msra.mxu0 %v6448
        %6548 = vmatprep.subr.mxu0 %v6454
        %6549 = vmatpush1.msra.mxu0 %v6452
        %6550 = vmatprep.subr.mxu0 %v6458
        %6551 = vmatpush1.msra.mxu0 %v6456
        %6552 = vmatprep.subr.mxu0 %v6462
        %6553 = vmatpush1.msra.mxu0 %v6460
        %6554 = vmatprep.subr.mxu0 %v6466
        %6555 = vmatpush1.msra.mxu0 %v6464
        %6556 = vmatprep.subr.mxu0 %v6470
        %6557 = vmatpush1.msra.mxu0 %v6468
        %6558 = vmatprep.subr.mxu0 %v6474
        %6559 = vmatpush1.msra.mxu0 %v6472
        %6560 = vmatprep.subr.mxu0 %v6478
        %6561 = vmatpush1.msra.mxu0 %v6476
        %6562 = vmatprep.subr.mxu0 %v6482
        %6563 = vmatpush1.msra.mxu0 %v6480
        %6564 = vmatprep.subr.mxu0 %v6486
        %6565 = vmatpush1.msra.mxu0 %v6484
        %6566 = vmatprep.mubr.f32.mxu0 %v6499
        %6567 = vmatmul.mubr.f32.gmra.mrb[0].mxu0 %v6498
        %v6568 = vpop.f32.mrb[0].mxu0
        %v6569 = vadd.f32 0.0, %v6568
        %v6570 = vpop.f32.mrb[0].mxu0
        %v6571 = vadd.f32 0.0, %v6570
        %6572 = vdwg.mxu0
        %v6575 = vrot.slane %v6569, 1
        %v6576 = vrot.slane %v6571, 1
        %v6579 = vrcp.pop %v6575
        %v6580 = vmul.f32 %v6569, %v6579
        %v6581 = vrcp.pop %v6576
        %v6582 = vmul.f32 %v6571, %v6581
        %v6585 = vcombine.low %v6580, %v6582
        %v6587 = vunpack.c.l.s4 1966171168
        %v6588 = vunpack.c.0.s8 %v6587
        %v6589 = vlaneseq
        %v6590 = vshrl.u32 %v6589, 7
        %v6591 = vsub.s32 %v6588, %v6590
        %v6592 = vrot.slane %v6585, %v6591
        %v6594 = vunpack.c.l.s4 1966171168
        %v6595 = vunpack.c.0.s8 %v6594
        %v6596 = vlaneseq
        %v6597 = vshrl.u32 %v6596, 7
        %v6598 = vsub.s32 %v6595, %v6597
        %v6599 = vrot.slane %v6592, %v6598
        %s6601 = scalar_lea.vmem [#allocation5], 6
        %6602 = vst.msk [vmem:[%s6601] ss:$8 sm:$0x3] %vm2807, %v6599
        %6603 = vst.msk [vmem:[%s6601] ss:$8 sm:$0x0] %vm2807, %v6599
        %6604 = vset.pattern.permute.xlu0 7
        %6605 = vperm.xlu0 %6604, %v2734
        %v6606 = vpop.permute.xlu0 %6605
        %v6608 = vmul.f32 %v2188, %v6606
        %v6609 = vmul.f32 %v2190, %v6606
        %6610 = vset.pattern.permute.xlu0 7
        %6611 = vperm.xlu0 %6610, %v2803
        %v6612 = vpop.permute.xlu0 %6611
        %v6614 = vmul.f32 %v2188, %v6612
        %v6615 = vmul.f32 %v2190, %v6612
        %v6616 = vmax.f32 %v6608, %v6614
        %v6617 = vmax.f32 %v6609, %v6615
        %6618 = vset.pattern.permute.xlu0 7
        %6619 = vperm.xlu0 %6618, %v2508
        %v6620 = vpop.permute.xlu0 %6619
        %6622 = vset.pattern.permute.xlu0 7
        %6623 = vperm.xlu0 %6622, %v2513
        %v6624 = vpop.permute.xlu0 %6623
        %6626 = vset.pattern.permute.xlu0 7
        %6627 = vperm.xlu0 %6626, %v2518
        %v6628 = vpop.permute.xlu0 %6627
        %6630 = vset.pattern.permute.xlu0 7
        %6631 = vperm.xlu0 %6630, %v2523
        %v6632 = vpop.permute.xlu0 %6631
        %6634 = vset.pattern.permute.xlu0 7
        %6635 = vperm.xlu0 %6634, %v2528
        %v6636 = vpop.permute.xlu0 %6635
        %6638 = vset.pattern.permute.xlu0 7
        %6639 = vperm.xlu0 %6638, %v2533
        %v6640 = vpop.permute.xlu0 %6639
        %6642 = vset.pattern.permute.xlu0 7
        %6643 = vperm.xlu0 %6642, %v2538
        %v6644 = vpop.permute.xlu0 %6643
        %6646 = vset.pattern.permute.xlu0 7
        %6647 = vperm.xlu0 %6646, %v2543
        %v6648 = vpop.permute.xlu0 %6647
        %6650 = vset.pattern.permute.xlu0 7
        %6651 = vperm.xlu0 %6650, %v2548
        %v6652 = vpop.permute.xlu0 %6651
        %6654 = vset.pattern.permute.xlu0 7
        %6655 = vperm.xlu0 %6654, %v2553
        %v6656 = vpop.permute.xlu0 %6655
        %6658 = vset.pattern.permute.xlu0 7
        %6659 = vperm.xlu0 %6658, %v2558
        %v6660 = vpop.permute.xlu0 %6659
        %6662 = vset.pattern.permute.xlu0 7
        %6663 = vperm.xlu0 %6662, %v2563
        %v6664 = vpop.permute.xlu0 %6663
        %6666 = vset.pattern.permute.xlu0 7
        %6667 = vperm.xlu0 %6666, %v2568
        %v6668 = vpop.permute.xlu0 %6667
        %6670 = vset.pattern.permute.xlu0 7
        %6671 = vperm.xlu0 %6670, %v2573
        %v6672 = vpop.permute.xlu0 %6671
        %6674 = vset.pattern.permute.xlu0 7
        %6675 = vperm.xlu0 %6674, %v2578
        %v6676 = vpop.permute.xlu0 %6675
        %6678 = vset.pattern.permute.xlu0 7
        %6679 = vperm.xlu0 %6678, %v2583
        %v6680 = vpop.permute.xlu0 %6679
        %6682 = vset.pattern.permute.xlu0 7
        %6683 = vperm.xlu0 %6682, %v2588
        %v6684 = vpop.permute.xlu0 %6683
        %6686 = vset.pattern.permute.xlu0 7
        %6687 = vperm.xlu0 %6686, %v2593
        %v6688 = vpop.permute.xlu0 %6687
        %6690 = vset.pattern.permute.xlu0 7
        %6691 = vperm.xlu0 %6690, %v2598
        %v6692 = vpop.permute.xlu0 %6691
        %6694 = vset.pattern.permute.xlu0 7
        %6695 = vperm.xlu0 %6694, %v2603
        %v6696 = vpop.permute.xlu0 %6695
        %6698 = vset.pattern.permute.xlu0 7
        %6699 = vperm.xlu0 %6698, %v2608
        %v6700 = vpop.permute.xlu0 %6699
        %6702 = vset.pattern.permute.xlu0 7
        %6703 = vperm.xlu0 %6702, %v2613
        %v6704 = vpop.permute.xlu0 %6703
        %6706 = vset.pattern.permute.xlu0 7
        %6707 = vperm.xlu0 %6706, %v2618
        %v6708 = vpop.permute.xlu0 %6707
        %6710 = vset.pattern.permute.xlu0 7
        %6711 = vperm.xlu0 %6710, %v2623
        %v6712 = vpop.permute.xlu0 %6711
        %6714 = vset.pattern.permute.xlu0 7
        %6715 = vperm.xlu0 %6714, %v2628
        %v6716 = vpop.permute.xlu0 %6715
        %6718 = vset.pattern.permute.xlu0 7
        %6719 = vperm.xlu0 %6718, %v2633
        %v6720 = vpop.permute.xlu0 %6719
        %6722 = vset.pattern.permute.xlu0 7
        %6723 = vperm.xlu0 %6722, %v2638
        %v6724 = vpop.permute.xlu0 %6723
        %6726 = vset.pattern.permute.xlu0 7
        %6727 = vperm.xlu0 %6726, %v2643
        %v6728 = vpop.permute.xlu0 %6727
        %6730 = vset.pattern.permute.xlu0 7
        %6731 = vperm.xlu0 %6730, %v2648
        %v6732 = vpop.permute.xlu0 %6731
        %6734 = vset.pattern.permute.xlu0 7
        %6735 = vperm.xlu0 %6734, %v2653
        %v6736 = vpop.permute.xlu0 %6735
        %6738 = vset.pattern.permute.xlu0 7
        %6739 = vperm.xlu0 %6738, %v2658
        %v6740 = vpop.permute.xlu0 %6739
        %6742 = vset.pattern.permute.xlu0 7
        %6743 = vperm.xlu0 %6742, %v2663
        %v6744 = vpop.permute.xlu0 %6743
        %v6746 = vlaneseq
        %v6747 = vshrl.u32 %v6746, 7
        %v6748 = vsub.s32 7, %v6747
        %v6749 = vrot.slane %v2188, %v6748
        %v6750 = vlaneseq
        %v6751 = vshrl.u32 %v6750, 7
        %v6752 = vsub.s32 7, %v6751
        %v6753 = vrot.slane %v2190, %v6752
        %v6754 = vmul.f32 %v6620, %v6749
        %v6755 = vmul.f32 %v6620, %v6753
        %v6756 = vmul.f32 %v6624, %v6749
        %v6757 = vmul.f32 %v6624, %v6753
        %v6758 = vmul.f32 %v6628, %v6749
        %v6759 = vmul.f32 %v6628, %v6753
        %v6760 = vmul.f32 %v6632, %v6749
        %v6761 = vmul.f32 %v6632, %v6753
        %v6762 = vmul.f32 %v6636, %v6749
        %v6763 = vmul.f32 %v6636, %v6753
        %v6764 = vmul.f32 %v6640, %v6749
        %v6765 = vmul.f32 %v6640, %v6753
        %v6766 = vmul.f32 %v6644, %v6749
        %v6767 = vmul.f32 %v6644, %v6753
        %v6768 = vmul.f32 %v6648, %v6749
        %v6769 = vmul.f32 %v6648, %v6753
        %v6770 = vmul.f32 %v6652, %v6749
        %v6771 = vmul.f32 %v6652, %v6753
        %v6772 = vmul.f32 %v6656, %v6749
        %v6773 = vmul.f32 %v6656, %v6753
        %v6774 = vmul.f32 %v6660, %v6749
        %v6775 = vmul.f32 %v6660, %v6753
        %v6776 = vmul.f32 %v6664, %v6749
        %v6777 = vmul.f32 %v6664, %v6753
        %v6778 = vmul.f32 %v6668, %v6749
        %v6779 = vmul.f32 %v6668, %v6753
        %v6780 = vmul.f32 %v6672, %v6749
        %v6781 = vmul.f32 %v6672, %v6753
        %v6782 = vmul.f32 %v6676, %v6749
        %v6783 = vmul.f32 %v6676, %v6753
        %v6784 = vmul.f32 %v6680, %v6749
        %v6785 = vmul.f32 %v6680, %v6753
        %v6786 = vmul.f32 %v6684, %v6749
        %v6787 = vmul.f32 %v6684, %v6753
        %v6788 = vmul.f32 %v6688, %v6749
        %v6789 = vmul.f32 %v6688, %v6753
        %v6790 = vmul.f32 %v6692, %v6749
        %v6791 = vmul.f32 %v6692, %v6753
        %v6792 = vmul.f32 %v6696, %v6749
        %v6793 = vmul.f32 %v6696, %v6753
        %v6794 = vmul.f32 %v6700, %v6749
        %v6795 = vmul.f32 %v6700, %v6753
        %v6796 = vmul.f32 %v6704, %v6749
        %v6797 = vmul.f32 %v6704, %v6753
        %v6798 = vmul.f32 %v6708, %v6749
        %v6799 = vmul.f32 %v6708, %v6753
        %v6800 = vmul.f32 %v6712, %v6749
        %v6801 = vmul.f32 %v6712, %v6753
        %v6802 = vmul.f32 %v6716, %v6749
        %v6803 = vmul.f32 %v6716, %v6753
        %v6804 = vmul.f32 %v6720, %v6749
        %v6805 = vmul.f32 %v6720, %v6753
        %v6806 = vmul.f32 %v6724, %v6749
        %v6807 = vmul.f32 %v6724, %v6753
        %v6808 = vmul.f32 %v6728, %v6749
        %v6809 = vmul.f32 %v6728, %v6753
        %v6810 = vmul.f32 %v6732, %v6749
        %v6811 = vmul.f32 %v6732, %v6753
        %v6812 = vmul.f32 %v6736, %v6749
        %v6813 = vmul.f32 %v6736, %v6753
        %v6814 = vmul.f32 %v6740, %v6749
        %v6815 = vmul.f32 %v6740, %v6753
        %v6816 = vmul.f32 %v6744, %v6749
        %v6817 = vmul.f32 %v6744, %v6753
        %v6818 = vlaneseq
        %v6819 = vshrl.u32 %v6818, 7
        %v6820 = vsub.s32 7, %v6819
        %v6821 = vrot.slane %v6616, %v6820
        %v6822 = vlaneseq
        %v6823 = vshrl.u32 %v6822, 7
        %v6824 = vsub.s32 7, %v6823
        %v6825 = vrot.slane %v6617, %v6824
        %v6826 = vsub.f32 %v6754, %v6821
        %v6827 = vsub.f32 %v6755, %v6825
        %v6828 = vsub.f32 %v6756, %v6821
        %v6829 = vsub.f32 %v6757, %v6825
        %v6830 = vsub.f32 %v6758, %v6821
        %v6831 = vsub.f32 %v6759, %v6825
        %v6832 = vsub.f32 %v6760, %v6821
        %v6833 = vsub.f32 %v6761, %v6825
        %v6834 = vsub.f32 %v6762, %v6821
        %v6835 = vsub.f32 %v6763, %v6825
        %v6836 = vsub.f32 %v6764, %v6821
        %v6837 = vsub.f32 %v6765, %v6825
        %v6838 = vsub.f32 %v6766, %v6821
        %v6839 = vsub.f32 %v6767, %v6825
        %v6840 = vsub.f32 %v6768, %v6821
        %v6841 = vsub.f32 %v6769, %v6825
        %v6842 = vsub.f32 %v6770, %v6821
        %v6843 = vsub.f32 %v6771, %v6825
        %v6844 = vsub.f32 %v6772, %v6821
        %v6845 = vsub.f32 %v6773, %v6825
        %v6846 = vsub.f32 %v6774, %v6821
        %v6847 = vsub.f32 %v6775, %v6825
        %v6848 = vsub.f32 %v6776, %v6821
        %v6849 = vsub.f32 %v6777, %v6825
        %v6850 = vsub.f32 %v6778, %v6821
        %v6851 = vsub.f32 %v6779, %v6825
        %v6852 = vsub.f32 %v6780, %v6821
        %v6853 = vsub.f32 %v6781, %v6825
        %v6854 = vsub.f32 %v6782, %v6821
        %v6855 = vsub.f32 %v6783, %v6825
        %v6856 = vsub.f32 %v6784, %v6821
        %v6857 = vsub.f32 %v6785, %v6825
        %v6858 = vsub.f32 %v6786, %v6821
        %v6859 = vsub.f32 %v6787, %v6825
        %v6860 = vsub.f32 %v6788, %v6821
        %v6861 = vsub.f32 %v6789, %v6825
        %v6862 = vsub.f32 %v6790, %v6821
        %v6863 = vsub.f32 %v6791, %v6825
        %v6864 = vsub.f32 %v6792, %v6821
        %v6865 = vsub.f32 %v6793, %v6825
        %v6866 = vsub.f32 %v6794, %v6821
        %v6867 = vsub.f32 %v6795, %v6825
        %v6868 = vsub.f32 %v6796, %v6821
        %v6869 = vsub.f32 %v6797, %v6825
        %v6870 = vsub.f32 %v6798, %v6821
        %v6871 = vsub.f32 %v6799, %v6825
        %v6872 = vsub.f32 %v6800, %v6821
        %v6873 = vsub.f32 %v6801, %v6825
        %v6874 = vsub.f32 %v6802, %v6821
        %v6875 = vsub.f32 %v6803, %v6825
        %v6876 = vsub.f32 %v6804, %v6821
        %v6877 = vsub.f32 %v6805, %v6825
        %v6878 = vsub.f32 %v6806, %v6821
        %v6879 = vsub.f32 %v6807, %v6825
        %v6880 = vsub.f32 %v6808, %v6821
        %v6881 = vsub.f32 %v6809, %v6825
        %v6882 = vsub.f32 %v6810, %v6821
        %v6883 = vsub.f32 %v6811, %v6825
        %v6884 = vsub.f32 %v6812, %v6821
        %v6885 = vsub.f32 %v6813, %v6825
        %v6886 = vsub.f32 %v6814, %v6821
        %v6887 = vsub.f32 %v6815, %v6825
        %v6888 = vsub.f32 %v6816, %v6821
        %v6889 = vsub.f32 %v6817, %v6825
        %v6890 = vmul.f32 %v6826, 1.442695
        %v6891 = vpow.pop %v6890
        %v6892 = vmul.f32 %v6827, 1.442695
        %v6893 = vpow.pop %v6892
        %v6894 = vmul.f32 %v6828, 1.442695
        %v6895 = vpow.pop %v6894
        %v6896 = vmul.f32 %v6829, 1.442695
        %v6897 = vpow.pop %v6896
        %v6898 = vmul.f32 %v6830, 1.442695
        %v6899 = vpow.pop %v6898
        %v6900 = vmul.f32 %v6831, 1.442695
        %v6901 = vpow.pop %v6900
        %v6902 = vmul.f32 %v6832, 1.442695
        %v6903 = vpow.pop %v6902
        %v6904 = vmul.f32 %v6833, 1.442695
        %v6905 = vpow.pop %v6904
        %v6906 = vmul.f32 %v6834, 1.442695
        %v6907 = vpow.pop %v6906
        %v6908 = vmul.f32 %v6835, 1.442695
        %v6909 = vpow.pop %v6908
        %v6910 = vmul.f32 %v6836, 1.442695
        %v6911 = vpow.pop %v6910
        %v6912 = vmul.f32 %v6837, 1.442695
        %v6913 = vpow.pop %v6912
        %v6914 = vmul.f32 %v6838, 1.442695
        %v6915 = vpow.pop %v6914
        %v6916 = vmul.f32 %v6839, 1.442695
        %v6917 = vpow.pop %v6916
        %v6918 = vmul.f32 %v6840, 1.442695
        %v6919 = vpow.pop %v6918
        %v6920 = vmul.f32 %v6841, 1.442695
        %v6921 = vpow.pop %v6920
        %v6922 = vmul.f32 %v6842, 1.442695
        %v6923 = vpow.pop %v6922
        %v6924 = vmul.f32 %v6843, 1.442695
        %v6925 = vpow.pop %v6924
        %v6926 = vmul.f32 %v6844, 1.442695
        %v6927 = vpow.pop %v6926
        %v6928 = vmul.f32 %v6845, 1.442695
        %v6929 = vpow.pop %v6928
        %v6930 = vmul.f32 %v6846, 1.442695
        %v6931 = vpow.pop %v6930
        %v6932 = vmul.f32 %v6847, 1.442695
        %v6933 = vpow.pop %v6932
        %v6934 = vmul.f32 %v6848, 1.442695
        %v6935 = vpow.pop %v6934
        %v6936 = vmul.f32 %v6849, 1.442695
        %v6937 = vpow.pop %v6936
        %v6938 = vmul.f32 %v6850, 1.442695
        %v6939 = vpow.pop %v6938
        %v6940 = vmul.f32 %v6851, 1.442695
        %v6941 = vpow.pop %v6940
        %v6942 = vmul.f32 %v6852, 1.442695
        %v6943 = vpow.pop %v6942
        %v6944 = vmul.f32 %v6853, 1.442695
        %v6945 = vpow.pop %v6944
        %v6946 = vmul.f32 %v6854, 1.442695
        %v6947 = vpow.pop %v6946
        %v6948 = vmul.f32 %v6855, 1.442695
        %v6949 = vpow.pop %v6948
        %v6950 = vmul.f32 %v6856, 1.442695
        %v6951 = vpow.pop %v6950
        %v6952 = vmul.f32 %v6857, 1.442695
        %v6953 = vpow.pop %v6952
        %v6954 = vmul.f32 %v6858, 1.442695
        %v6955 = vpow.pop %v6954
        %v6956 = vmul.f32 %v6859, 1.442695
        %v6957 = vpow.pop %v6956
        %v6958 = vmul.f32 %v6860, 1.442695
        %v6959 = vpow.pop %v6958
        %v6960 = vmul.f32 %v6861, 1.442695
        %v6961 = vpow.pop %v6960
        %v6962 = vmul.f32 %v6862, 1.442695
        %v6963 = vpow.pop %v6962
        %v6964 = vmul.f32 %v6863, 1.442695
        %v6965 = vpow.pop %v6964
        %v6966 = vmul.f32 %v6864, 1.442695
        %v6967 = vpow.pop %v6966
        %v6968 = vmul.f32 %v6865, 1.442695
        %v6969 = vpow.pop %v6968
        %v6970 = vmul.f32 %v6866, 1.442695
        %v6971 = vpow.pop %v6970
        %v6972 = vmul.f32 %v6867, 1.442695
        %v6973 = vpow.pop %v6972
        %v6974 = vmul.f32 %v6868, 1.442695
        %v6975 = vpow.pop %v6974
        %v6976 = vmul.f32 %v6869, 1.442695
        %v6977 = vpow.pop %v6976
        %v6978 = vmul.f32 %v6870, 1.442695
        %v6979 = vpow.pop %v6978
        %v6980 = vmul.f32 %v6871, 1.442695
        %v6981 = vpow.pop %v6980
        %v6982 = vmul.f32 %v6872, 1.442695
        %v6983 = vpow.pop %v6982
        %v6984 = vmul.f32 %v6873, 1.442695
        %v6985 = vpow.pop %v6984
        %v6986 = vmul.f32 %v6874, 1.442695
        %v6987 = vpow.pop %v6986
        %v6988 = vmul.f32 %v6875, 1.442695
        %v6989 = vpow.pop %v6988
        %v6990 = vmul.f32 %v6876, 1.442695
        %v6991 = vpow.pop %v6990
        %v6992 = vmul.f32 %v6877, 1.442695
        %v6993 = vpow.pop %v6992
        %v6994 = vmul.f32 %v6878, 1.442695
        %v6995 = vpow.pop %v6994
        %v6996 = vmul.f32 %v6879, 1.442695
        %v6997 = vpow.pop %v6996
        %v6998 = vmul.f32 %v6880, 1.442695
        %v6999 = vpow.pop %v6998
        %v7000 = vmul.f32 %v6881, 1.442695
        %v7001 = vpow.pop %v7000
        %v7002 = vmul.f32 %v6882, 1.442695
        %v7003 = vpow.pop %v7002
        %v7004 = vmul.f32 %v6883, 1.442695
        %v7005 = vpow.pop %v7004
        %v7006 = vmul.f32 %v6884, 1.442695
        %v7007 = vpow.pop %v7006
        %v7008 = vmul.f32 %v6885, 1.442695
        %v7009 = vpow.pop %v7008
        %v7010 = vmul.f32 %v6886, 1.442695
        %v7011 = vpow.pop %v7010
        %v7012 = vmul.f32 %v6887, 1.442695
        %v7013 = vpow.pop %v7012
        %v7014 = vmul.f32 %v6888, 1.442695
        %v7015 = vpow.pop %v7014
        %v7016 = vmul.f32 %v6889, 1.442695
        %v7017 = vpow.pop %v7016
        %v7018 = vcombine.high %v5956, %v5956
        %7020 = vst.msk [vmem:[#allocation4] ss:$2 sm:$0x3] %vm2807, %v7018
        %v7021 = vld [vmem:[#allocation4] sm:$0xf]
        %v7024 = vunpack.c.l.s4 1983009808
        %v7025 = vunpack.c.0.s8 %v7024
        %v7026 = vlaneseq
        %v7027 = vshrl.u32 %v7026, 7
        %v7028 = vsub.s32 %v7025, %v7027
        %v7029 = vrot.slane %v7021, %v7028
        %v7030 = vcombine.high %v7029, %v7029
        %7033 = vmatprep.subr.mxu0 %v6893
        %7034 = vmatpush1.msra.mxu0 %v6891
        %7035 = vmatprep.subr.mxu0 %v6897
        %7036 = vmatpush1.msra.mxu0 %v6895
        %7037 = vmatprep.subr.mxu0 %v6901
        %7038 = vmatpush1.msra.mxu0 %v6899
        %7039 = vmatprep.subr.mxu0 %v6905
        %7040 = vmatpush1.msra.mxu0 %v6903
        %7041 = vmatprep.subr.mxu0 %v6909
        %7042 = vmatpush1.msra.mxu0 %v6907
        %7043 = vmatprep.subr.mxu0 %v6913
        %7044 = vmatpush1.msra.mxu0 %v6911
        %7045 = vmatprep.subr.mxu0 %v6917
        %7046 = vmatpush1.msra.mxu0 %v6915
        %7047 = vmatprep.subr.mxu0 %v6921
        %7048 = vmatpush1.msra.mxu0 %v6919
        %7049 = vmatprep.subr.mxu0 %v6925
        %7050 = vmatpush1.msra.mxu0 %v6923
        %7051 = vmatprep.subr.mxu0 %v6929
        %7052 = vmatpush1.msra.mxu0 %v6927
        %7053 = vmatprep.subr.mxu0 %v6933
        %7054 = vmatpush1.msra.mxu0 %v6931
        %7055 = vmatprep.subr.mxu0 %v6937
        %7056 = vmatpush1.msra.mxu0 %v6935
        %7057 = vmatprep.subr.mxu0 %v6941
        %7058 = vmatpush1.msra.mxu0 %v6939
        %7059 = vmatprep.subr.mxu0 %v6945
        %7060 = vmatpush1.msra.mxu0 %v6943
        %7061 = vmatprep.subr.mxu0 %v6949
        %7062 = vmatpush1.msra.mxu0 %v6947
        %7063 = vmatprep.subr.mxu0 %v6953
        %7064 = vmatpush1.msra.mxu0 %v6951
        %7065 = vmatprep.subr.mxu0 %v6957
        %7066 = vmatpush1.msra.mxu0 %v6955
        %7067 = vmatprep.subr.mxu0 %v6961
        %7068 = vmatpush1.msra.mxu0 %v6959
        %7069 = vmatprep.subr.mxu0 %v6965
        %7070 = vmatpush1.msra.mxu0 %v6963
        %7071 = vmatprep.subr.mxu0 %v6969
        %7072 = vmatpush1.msra.mxu0 %v6967
        %7073 = vmatprep.subr.mxu0 %v6973
        %7074 = vmatpush1.msra.mxu0 %v6971
        %7075 = vmatprep.subr.mxu0 %v6977
        %7076 = vmatpush1.msra.mxu0 %v6975
        %7077 = vmatprep.subr.mxu0 %v6981
        %7078 = vmatpush1.msra.mxu0 %v6979
        %7079 = vmatprep.subr.mxu0 %v6985
        %7080 = vmatpush1.msra.mxu0 %v6983
        %7081 = vmatprep.subr.mxu0 %v6989
        %7082 = vmatpush1.msra.mxu0 %v6987
        %7083 = vmatprep.subr.mxu0 %v6993
        %7084 = vmatpush1.msra.mxu0 %v6991
        %7085 = vmatprep.subr.mxu0 %v6997
        %7086 = vmatpush1.msra.mxu0 %v6995
        %7087 = vmatprep.subr.mxu0 %v7001
        %7088 = vmatpush1.msra.mxu0 %v6999
        %7089 = vmatprep.subr.mxu0 %v7005
        %7090 = vmatpush1.msra.mxu0 %v7003
        %7091 = vmatprep.subr.mxu0 %v7009
        %7092 = vmatpush1.msra.mxu0 %v7007
        %7093 = vmatprep.subr.mxu0 %v7013
        %7094 = vmatpush1.msra.mxu0 %v7011
        %7095 = vmatprep.subr.mxu0 %v7017
        %7096 = vmatpush1.msra.mxu0 %v7015
        %7097 = vmatprep.mubr.f32.mxu0 %v7030
        %7098 = vmatmul.mubr.f32.gmra.mrb[0].mxu0 %v7029
        %v7099 = vpop.f32.mrb[0].mxu0
        %v7100 = vadd.f32 0.0, %v7099
        %v7101 = vpop.f32.mrb[0].mxu0
        %v7102 = vadd.f32 0.0, %v7101
        %7103 = vdwg.mxu0
        %v7106 = vrot.slane %v7100, 1
        %v7107 = vrot.slane %v7102, 1
        %v7110 = vrcp.pop %v7106
        %v7111 = vmul.f32 %v7100, %v7110
        %v7112 = vrcp.pop %v7107
        %v7113 = vmul.f32 %v7102, %v7112
        %v7116 = vcombine.low %v7111, %v7113
        %v7118 = vunpack.c.l.s4 1966171168
        %v7119 = vunpack.c.0.s8 %v7118
        %v7120 = vlaneseq
        %v7121 = vshrl.u32 %v7120, 7
        %v7122 = vsub.s32 %v7119, %v7121
        %v7123 = vrot.slane %v7116, %v7122
        %v7125 = vunpack.c.l.s4 1966171168
        %v7126 = vunpack.c.0.s8 %v7125
        %v7127 = vlaneseq
        %v7128 = vshrl.u32 %v7127, 7
        %v7129 = vsub.s32 %v7126, %v7128
        %v7130 = vrot.slane %v7123, %v7129
        %s7132 = scalar_lea.vmem [#allocation5], 7
        %7133 = vst.msk [vmem:[%s7132] ss:$8 sm:$0x3] %vm2807, %v7130
        %7134 = vst.msk [vmem:[%s7132] ss:$8 sm:$0x0] %vm2807, %v7130
        %v7135 = vld [vmem:[%s20] sm:$0xff]
        %v7136 = vld [vmem:[#allocation5] sm:$0xff]
        %v7137 = vld [vmem:[#allocation5 + $0x8] sm:$0xff]
        %v7138 = vld [vmem:[%s21] sm:$0xff]
        %7140 = vset.pattern.permute.xlu0 0
        %7141 = vperm.xlu0 %7140, %v7138
        %v7142 = vpop.permute.xlu0 %7141
        %v7145 = vsel %vm830, %v7135, 0
        %7147 = vmatprep.subr.mxu0 %v7137
        %7148 = vmatpush1.msra.mxu0 %v7136
        %7149 = vmatprep.subr.mxu0 0.0
        %7150 = vmatpush1.msra.mxu0 0.0
        %7151 = vmatprep.subr.mxu0 0.0
        %7152 = vmatpush1.msra.mxu0 0.0
        %7153 = vmatprep.subr.mxu0 0.0
        %7154 = vmatpush1.msra.mxu0 0.0
        %7155 = vmatprep.subr.mxu0 0.0
        %7156 = vmatpush1.msra.mxu0 0.0
        %7157 = vmatprep.subr.mxu0 0.0
        %7158 = vmatpush1.msra.mxu0 0.0
        %7159 = vmatprep.subr.mxu0 0.0
        %7160 = vmatpush1.msra.mxu0 0.0
        %7161 = vmatprep.subr.mxu0 0.0
        %7162 = vmatpush1.msra.mxu0 0.0
        %7163 = vmatprep.subr.mxu0 0.0
        %7164 = vmatpush1.msra.mxu0 0.0
        %7165 = vmatprep.subr.mxu0 0.0
        %7166 = vmatpush1.msra.mxu0 0.0
        %7167 = vmatprep.subr.mxu0 0.0
        %7168 = vmatpush1.msra.mxu0 0.0
        %7169 = vmatprep.subr.mxu0 0.0
        %7170 = vmatpush1.msra.mxu0 0.0
        %7171 = vmatprep.subr.mxu0 0.0
        %7172 = vmatpush1.msra.mxu0 0.0
        %7173 = vmatprep.subr.mxu0 0.0
        %7174 = vmatpush1.msra.mxu0 0.0
        %7175 = vmatprep.subr.mxu0 0.0
        %7176 = vmatpush1.msra.mxu0 0.0
        %7177 = vmatprep.subr.mxu0 0.0
        %7178 = vmatpush1.msra.mxu0 0.0
        %7179 = vmatprep.subr.mxu0 0.0
        %7180 = vmatpush1.msra.mxu0 0.0
        %7181 = vmatprep.subr.mxu0 0.0
        %7182 = vmatpush1.msra.mxu0 0.0
        %7183 = vmatprep.subr.mxu0 0.0
        %7184 = vmatpush1.msra.mxu0 0.0
        %7185 = vmatprep.subr.mxu0 0.0
        %7186 = vmatpush1.msra.mxu0 0.0
        %7187 = vmatprep.subr.mxu0 0.0
        %7188 = vmatpush1.msra.mxu0 0.0
        %7189 = vmatprep.subr.mxu0 0.0
        %7190 = vmatpush1.msra.mxu0 0.0
        %7191 = vmatprep.subr.mxu0 0.0
        %7192 = vmatpush1.msra.mxu0 0.0
        %7193 = vmatprep.subr.mxu0 0.0
        %7194 = vmatpush1.msra.mxu0 0.0
        %7195 = vmatprep.subr.mxu0 0.0
        %7196 = vmatpush1.msra.mxu0 0.0
        %7197 = vmatprep.subr.mxu0 0.0
        %7198 = vmatpush1.msra.mxu0 0.0
        %7199 = vmatprep.subr.mxu0 0.0
        %7200 = vmatpush1.msra.mxu0 0.0
        %7201 = vmatprep.subr.mxu0 0.0
        %7202 = vmatpush1.msra.mxu0 0.0
        %7203 = vmatprep.subr.mxu0 0.0
        %7204 = vmatpush1.msra.mxu0 0.0
        %7205 = vmatprep.subr.mxu0 0.0
        %7206 = vmatpush1.msra.mxu0 0.0
        %7207 = vmatprep.subr.mxu0 0.0
        %7208 = vmatpush1.msra.mxu0 0.0
        %7209 = vmatprep.subr.mxu0 0.0
        %7210 = vmatpush1.msra.mxu0 0.0
        %7211 = vmatprep.mubr.f32.mxu0 0.0
        %7212 = vmatmul.mubr.f32.gmra.mrb[0].mxu0 %v7145
        %v7213 = vpop.f32.mrb[0].mxu0
        %v7214 = vadd.f32 %v7142, %v7213
        %v7215 = vpop.f32.mrb[0].mxu0
        %v7216 = vadd.f32 %v7142, %v7215
        %7217 = vdwg.mxu0
        %v7218 = vadd.f32 %v7214, %v1936
        %v7219 = vadd.f32 %v7216, %v1937
        %v7220 = vld [vmem:[%s23] sm:$0xff]
        %v7221 = vld [vmem:[%s23 + $0x8] sm:$0xff]
        %v7222 = vld [vmem:[%s23 + $0x10] sm:$0xff]
        %v7223 = vld [vmem:[%s23 + $0x18] sm:$0xff]
        %7224 = vst.msk [vmem:[#allocation2] sm:$0xff] %vm1017, 0.0
        %7225 = vst.msk [vmem:[#allocation2 + $0x10] sm:$0xff] %vm1019, 0.0
        %7228 = vrot.lane.b32.xlu0 %v7218, 17
        %v7229 = vpop.permute.xlu0 %7228
        %7230 = vrot.lane.b32.xlu0 %v7219, 17
        %v7231 = vpop.permute.xlu0 %7230
        %v7232 = vsel %vm1017, %v7229, %v7231
        %7236 = vst.msk [vmem:[#allocation2] sm:$0xff] %vm1031, %v7229
        %7237 = vst [vmem:[#allocation2 + $0x8] sm:$0xff] %v7232
        %7238 = vst.msk [vmem:[#allocation2 + $0x10] sm:$0xff] %vm1017, %v7231
        %v7239 = vld [vmem:[#allocation2] sm:$0xff]
        %v7240 = vld [vmem:[#allocation2 + $0x8] sm:$0xff]
        %v7241 = vmul.f32 %v7239, %v815
        %v7242 = vmul.f32 %v7240, %v816
        %7243 = vst [vmem:[#allocation3] sm:$0xff] %v7241
        %7244 = vst [vmem:[#allocation3 + $0x8] sm:$0xff] %v7242
        %v7245 = vld [vmem:[#allocation2] sm:$0xff]
        %v7246 = vld [vmem:[#allocation2 + $0x8] sm:$0xff]
        %v7247 = vld [vmem:[#allocation2 + $0x10] sm:$0xff]
        %7251 = vrot.lane.b32.xlu0 %v7245, 127
        %v7252 = vpop.permute.xlu0 %7251
        %7253 = vrot.lane.b32.xlu0 %v7246, 127
        %v7254 = vpop.permute.xlu0 %7253
        %7255 = vrot.lane.b32.xlu0 %v7247, 127
        %v7256 = vpop.permute.xlu0 %7255
        %v7257 = vsel %vm1053, %v7252, %v7254
        %v7258 = vsel %vm1053, %v7254, %v7256
        %7261 = vst [vmem:[#allocation3 + $0x10] sm:$0xff] %v7257
        %7262 = vst [vmem:[#allocation3 + $0x18] sm:$0xff] %v7258
        %v7263 = vld [vmem:[#allocation2] sm:$0xff]
        %v7264 = vld [vmem:[#allocation2 + $0x8] sm:$0xff]
        %v7265 = vld [vmem:[#allocation2 + $0x10] sm:$0xff]
        %v7266 = vmul.f32 %v7263, %v1066
        %v7267 = vmul.f32 %v7264, %v1070
        %v7268 = vmul.f32 %v7265, %v1068
        %7272 = vrot.lane.b32.xlu0 %v7266, 126
        %v7273 = vpop.permute.xlu0 %7272
        %7274 = vrot.lane.b32.xlu0 %v7267, 126
        %v7275 = vpop.permute.xlu0 %7274
        %7276 = vrot.lane.b32.xlu0 %v7268, 126
        %v7277 = vpop.permute.xlu0 %7276
        %v7278 = vsel %vm1086, %v7273, %v7275
        %v7279 = vsel %vm1086, %v7275, %v7277
        %7282 = vst [vmem:[#allocation3 + $0x20] sm:$0xff] %v7278
        %7283 = vst [vmem:[#allocation3 + $0x28] sm:$0xff] %v7279
        %v7284 = vld [vmem:[#allocation2] sm:$0xff]
        %v7285 = vld [vmem:[#allocation2 + $0x8] sm:$0xff]
        %v7286 = vld [vmem:[#allocation2 + $0x10] sm:$0xff]
        %v7287 = vmul.f32 %v7284, %v1099
        %v7288 = vmul.f32 %v7285, %v1103
        %v7289 = vmul.f32 %v7286, %v1101
        %7293 = vrot.lane.b32.xlu0 %v7287, 112
        %v7294 = vpop.permute.xlu0 %7293
        %7295 = vrot.lane.b32.xlu0 %v7288, 112
        %v7296 = vpop.permute.xlu0 %7295
        %7297 = vrot.lane.b32.xlu0 %v7289, 112
        %v7298 = vpop.permute.xlu0 %7297
        %v7299 = vsel %vm1119, %v7294, %v7296
        %v7300 = vsel %vm1119, %v7296, %v7298
        %7303 = vst [vmem:[#allocation3 + $0x30] sm:$0xff] %v7299
        %7304 = vst [vmem:[#allocation3 + $0x38] sm:$0xff] %v7300
        %v7305 = vld [vmem:[#allocation2] sm:$0xff]
        %v7306 = vld [vmem:[#allocation2 + $0x8] sm:$0xff]
        %v7307 = vld [vmem:[#allocation2 + $0x10] sm:$0xff]
        %7311 = vrot.lane.b32.xlu0 %v7305, 111
        %v7312 = vpop.permute.xlu0 %7311
        %7313 = vrot.lane.b32.xlu0 %v7306, 111
        %v7314 = vpop.permute.xlu0 %7313
        %7315 = vrot.lane.b32.xlu0 %v7307, 111
        %v7316 = vpop.permute.xlu0 %7315
        %v7317 = vsel %vm1138, %v7312, %v7314
        %v7318 = vsel %vm1138, %v7314, %v7316
        %7321 = vst [vmem:[#allocation3 + $0x40] sm:$0xff] %v7317
        %7322 = vst [vmem:[#allocation3 + $0x48] sm:$0xff] %v7318
        %v7323 = vld [vmem:[#allocation2] sm:$0xff]
        %v7324 = vld [vmem:[#allocation2 + $0x8] sm:$0xff]
        %v7325 = vld [vmem:[#allocation2 + $0x10] sm:$0xff]
        %v7326 = vmul.f32 %v7323, %v1149
        %v7327 = vmul.f32 %v7324, %v1153
        %v7328 = vmul.f32 %v7325, %v1151
        %7332 = vrot.lane.b32.xlu0 %v7326, 110
        %v7333 = vpop.permute.xlu0 %7332
        %7334 = vrot.lane.b32.xlu0 %v7327, 110
        %v7335 = vpop.permute.xlu0 %7334
        %7336 = vrot.lane.b32.xlu0 %v7328, 110
        %v7337 = vpop.permute.xlu0 %7336
        %v7338 = vsel %vm1169, %v7333, %v7335
        %v7339 = vsel %vm1169, %v7335, %v7337
        %7342 = vst [vmem:[#allocation3 + $0x50] sm:$0xff] %v7338
        %7343 = vst [vmem:[#allocation3 + $0x58] sm:$0xff] %v7339
        %v7344 = vld [vmem:[#allocation2] sm:$0xff]
        %v7345 = vld [vmem:[#allocation2 + $0x8] sm:$0xff]
        %v7346 = vld [vmem:[#allocation2 + $0x10] sm:$0xff]
        %v7347 = vmul.f32 %v7344, %v1180
        %v7348 = vmul.f32 %v7345, %v1184
        %v7349 = vmul.f32 %v7346, %v1182
        %7353 = vrot.lane.b32.xlu0 %v7347, 96
        %v7354 = vpop.permute.xlu0 %7353
        %7355 = vrot.lane.b32.xlu0 %v7348, 96
        %v7356 = vpop.permute.xlu0 %7355
        %7357 = vrot.lane.b32.xlu0 %v7349, 96
        %v7358 = vpop.permute.xlu0 %7357
        %v7359 = vsel %vm1200, %v7354, %v7356
        %v7360 = vsel %vm1200, %v7356, %v7358
        %7363 = vst [vmem:[#allocation3 + $0x60] sm:$0xff] %v7359
        %7364 = vst [vmem:[#allocation3 + $0x68] sm:$0xff] %v7360
        %v7365 = vld [vmem:[#allocation2] sm:$0xff]
        %v7366 = vld [vmem:[#allocation2 + $0x8] sm:$0xff]
        %v7367 = vld [vmem:[#allocation2 + $0x10] sm:$0xff]
        %7371 = vrot.lane.b32.xlu0 %v7365, 95
        %v7372 = vpop.permute.xlu0 %7371
        %7373 = vrot.lane.b32.xlu0 %v7366, 95
        %v7374 = vpop.permute.xlu0 %7373
        %7375 = vrot.lane.b32.xlu0 %v7367, 95
        %v7376 = vpop.permute.xlu0 %7375
        %v7377 = vsel %vm1219, %v7372, %v7374
        %v7378 = vsel %vm1219, %v7374, %v7376
        %7381 = vst [vmem:[#allocation3 + $0x70] sm:$0xff] %v7377
        %7382 = vst [vmem:[#allocation3 + $0x78] sm:$0xff] %v7378
        %v7383 = vld [vmem:[#allocation2] sm:$0xff]
        %v7384 = vld [vmem:[#allocation2 + $0x8] sm:$0xff]
        %v7385 = vld [vmem:[#allocation2 + $0x10] sm:$0xff]
        %v7386 = vmul.f32 %v7383, %v1230
        %v7387 = vmul.f32 %v7384, %v1234
        %v7388 = vmul.f32 %v7385, %v1232
        %7392 = vrot.lane.b32.xlu0 %v7386, 94
        %v7393 = vpop.permute.xlu0 %7392
        %7394 = vrot.lane.b32.xlu0 %v7387, 94
        %v7395 = vpop.permute.xlu0 %7394
        %7396 = vrot.lane.b32.xlu0 %v7388, 94
        %v7397 = vpop.permute.xlu0 %7396
        %v7398 = vsel %vm1250, %v7393, %v7395
        %v7399 = vsel %vm1250, %v7395, %v7397
        %7402 = vst [vmem:[#allocation3 + $0x80] sm:$0xff] %v7398
        %7403 = vst [vmem:[#allocation3 + $0x88] sm:$0xff] %v7399
        %v7404 = vld [vmem:[%s22] sm:$0xff]
        %v7405 = vld [vmem:[%s22 + $0x8] sm:$0xff]
        %v7406 = vld [vmem:[%s22 + $0x10] sm:$0xff]
        %v7407 = vld [vmem:[%s22 + $0x18] sm:$0xff]
        %v7408 = vld [vmem:[#allocation3] sm:$0xff]
        %v7409 = vld [vmem:[#allocation3 + $0x8] sm:$0xff]
        %v7410 = vld [vmem:[#allocation3 + $0x10] sm:$0xff]
        %v7411 = vld [vmem:[#allocation3 + $0x18] sm:$0xff]
        %v7412 = vld [vmem:[#allocation3 + $0x20] sm:$0xff]
        %v7413 = vld [vmem:[#allocation3 + $0x28] sm:$0xff]
        %v7414 = vld [vmem:[#allocation3 + $0x30] sm:$0xff]
        %v7415 = vld [vmem:[#allocation3 + $0x38] sm:$0xff]
        %v7416 = vld [vmem:[#allocation3 + $0x40] sm:$0xff]
        %v7417 = vld [vmem:[#allocation3 + $0x48] sm:$0xff]
        %v7418 = vld [vmem:[#allocation3 + $0x50] sm:$0xff]
        %v7419 = vld [vmem:[#allocation3 + $0x58] sm:$0xff]
        %v7420 = vld [vmem:[#allocation3 + $0x60] sm:$0xff]
        %v7421 = vld [vmem:[#allocation3 + $0x68] sm:$0xff]
        %v7422 = vld [vmem:[#allocation3 + $0x70] sm:$0xff]
        %v7423 = vld [vmem:[#allocation3 + $0x78] sm:$0xff]
        %v7424 = vld [vmem:[#allocation3 + $0x80] sm:$0xff]
        %v7425 = vld [vmem:[#allocation3 + $0x88] sm:$0xff]
        %7427 = vset.pattern.permute.xlu0 0
        %7428 = vperm.xlu0 %7427, %v7220
        %v7429 = vpop.permute.xlu0 %7428
        %7432 = vset.pattern.permute.xlu0 0
        %7433 = vperm.xlu0 %7432, %v7221
        %v7434 = vpop.permute.xlu0 %7433
        %7437 = vset.pattern.permute.xlu0 0
        %7438 = vperm.xlu0 %7437, %v7222
        %v7439 = vpop.permute.xlu0 %7438
        %7442 = vset.pattern.permute.xlu0 0
        %7443 = vperm.xlu0 %7442, %v7223
        %v7444 = vpop.permute.xlu0 %7443
        %v7447 = vsel %vm1281, %v7404, 0
        %v7450 = vsel %vm1281, %v7405, 0
        %v7453 = vsel %vm1281, %v7406, 0
        %v7456 = vsel %vm1281, %v7407, 0
        %7458 = vmatprep.subr.mxu0 %v7409
        %7459 = vmatpush1.msra.mxu0 %v7408
        %7460 = vmatprep.subr.mxu0 %v7411
        %7461 = vmatpush1.msra.mxu0 %v7410
        %7462 = vmatprep.subr.mxu0 %v7413
        %7463 = vmatpush1.msra.mxu0 %v7412
        %7464 = vmatprep.subr.mxu0 %v7415
        %7465 = vmatpush1.msra.mxu0 %v7414
        %7466 = vmatprep.subr.mxu0 %v7417
        %7467 = vmatpush1.msra.mxu0 %v7416
        %7468 = vmatprep.subr.mxu0 %v7419
        %7469 = vmatpush1.msra.mxu0 %v7418
        %7470 = vmatprep.subr.mxu0 %v7421
        %7471 = vmatpush1.msra.mxu0 %v7420
        %7472 = vmatprep.subr.mxu0 %v7423
        %7473 = vmatpush1.msra.mxu0 %v7422
        %7474 = vmatprep.subr.mxu0 %v7425
        %7475 = vmatpush1.msra.mxu0 %v7424
        %7476 = vmatprep.subr.mxu0 0.0
        %7477 = vmatpush1.msra.mxu0 0.0
        %7478 = vmatprep.subr.mxu0 0.0
        %7479 = vmatpush1.msra.mxu0 0.0
        %7480 = vmatprep.subr.mxu0 0.0
        %7481 = vmatpush1.msra.mxu0 0.0
        %7482 = vmatprep.subr.mxu0 0.0
        %7483 = vmatpush1.msra.mxu0 0.0
        %7484 = vmatprep.subr.mxu0 0.0
        %7485 = vmatpush1.msra.mxu0 0.0
        %7486 = vmatprep.subr.mxu0 0.0
        %7487 = vmatpush1.msra.mxu0 0.0
        %7488 = vmatprep.subr.mxu0 0.0
        %7489 = vmatpush1.msra.mxu0 0.0
        %7490 = vmatprep.subr.mxu0 0.0
        %7491 = vmatpush1.msra.mxu0 0.0
        %7492 = vmatprep.subr.mxu0 0.0
        %7493 = vmatpush1.msra.mxu0 0.0
        %7494 = vmatprep.subr.mxu0 0.0
        %7495 = vmatpush1.msra.mxu0 0.0
        %7496 = vmatprep.subr.mxu0 0.0
        %7497 = vmatpush1.msra.mxu0 0.0
        %7498 = vmatprep.subr.mxu0 0.0
        %7499 = vmatpush1.msra.mxu0 0.0
        %7500 = vmatprep.subr.mxu0 0.0
        %7501 = vmatpush1.msra.mxu0 0.0
        %7502 = vmatprep.subr.mxu0 0.0
        %7503 = vmatpush1.msra.mxu0 0.0
        %7504 = vmatprep.subr.mxu0 0.0
        %7505 = vmatpush1.msra.mxu0 0.0
        %7506 = vmatprep.subr.mxu0 0.0
        %7507 = vmatpush1.msra.mxu0 0.0
        %7508 = vmatprep.subr.mxu0 0.0
        %7509 = vmatpush1.msra.mxu0 0.0
        %7510 = vmatprep.subr.mxu0 0.0
        %7511 = vmatpush1.msra.mxu0 0.0
        %7512 = vmatprep.subr.mxu0 0.0
        %7513 = vmatpush1.msra.mxu0 0.0
        %7514 = vmatprep.subr.mxu0 0.0
        %7515 = vmatpush1.msra.mxu0 0.0
        %7516 = vmatprep.subr.mxu0 0.0
        %7517 = vmatpush1.msra.mxu0 0.0
        %7518 = vmatprep.subr.mxu0 0.0
        %7519 = vmatpush1.msra.mxu0 0.0
        %7520 = vmatprep.subr.mxu0 0.0
        %7521 = vmatpush1.msra.mxu0 0.0
        %7522 = vmatprep.mubr.f32.mxu0 0.0
        %7523 = vmatmul.mubr.f32.gmra.mrb[0].mxu0 %v7447
        %v7524 = vpop.f32.mrb[0].mxu0
        %v7525 = vadd.f32 %v7429, %v7524
        %v7526 = vpop.f32.mrb[0].mxu0
        %v7527 = vadd.f32 %v7429, %v7526
        %7528 = vmatprep.mubr.f32.mxu0 0.0
        %7529 = vmatmul.mubr.f32.gmra.mrb[0].mxu0 %v7450
        %v7530 = vpop.f32.mrb[0].mxu0
        %v7531 = vadd.f32 %v7434, %v7530
        %v7532 = vpop.f32.mrb[0].mxu0
        %v7533 = vadd.f32 %v7434, %v7532
        %7534 = vmatprep.mubr.f32.mxu0 0.0
        %7535 = vmatmul.mubr.f32.gmra.mrb[0].mxu0 %v7453
        %v7536 = vpop.f32.mrb[0].mxu0
        %v7537 = vadd.f32 %v7439, %v7536
        %v7538 = vpop.f32.mrb[0].mxu0
        %v7539 = vadd.f32 %v7439, %v7538
        %7540 = vmatprep.mubr.f32.mxu0 0.0
        %7541 = vmatmul.mubr.f32.gmra.mrb[0].mxu0 %v7456
        %v7542 = vpop.f32.mrb[0].mxu0
        %v7543 = vadd.f32 %v7444, %v7542
        %v7544 = vpop.f32.mrb[0].mxu0
        %v7545 = vadd.f32 %v7444, %v7544
        %7546 = vdwg.mxu0
        %7547 = vst [vmem:[%s772] sm:$0xff] %v7525
        %7548 = vst [vmem:[%s772 + $0x8] sm:$0xff] %v7527
        %7549 = vst [vmem:[%s772 + $0x10] sm:$0xff] %v7531
        %7550 = vst [vmem:[%s772 + $0x18] sm:$0xff] %v7533
        %7551 = vst [vmem:[%s772 + $0x20] sm:$0xff] %v7537
        %7552 = vst [vmem:[%s772 + $0x28] sm:$0xff] %v7539
        %7553 = vst [vmem:[%s772 + $0x30] sm:$0xff] %v7543
        %7554 = vst [vmem:[%s772 + $0x38] sm:$0xff] %v7545
        %s7555 = sand.u32 %s582, 1
        %s7556 = scalar_lea.sflag [#allocation7], %s7555
        %s7557 = sand.u32 %s582, 1
        %s7558 = smul.addr %s7557, 64
        %s7559 = scalar_lea.vmem [#allocation6], %s7558
        // Predicated region
        $region121: #{tpu_custom_call.1} parent=119 // pred_check
          %p7560 = pneg %p592
        $region122: #{tpu_custom_call.1} parent=119 // pred_check_branch
          %7562 = sbr.rel (%p7560) target = $region124
        $region123: #{tpu_custom_call.1} parent=119 // pred_region
          %s7564 = ssub.s32 1024, 1024
          %7565 = vsyncadd %s7556, %s7564
          %s7566 = smul.addr %s39, 8
          %s7567 = smul.addr %s7566, 128
          %s7568 = scalar_lea.hbm %s25, %s7567
          %s7569 = sshll.u32 %s7559, 4
          %s7570 = int_to_ptr.vmem [resolvable:$true] %s7569
          %7575 = dma.vmem_to_hbm [thread:$0]  %s7570, 1024, %s7568, %s7556, 256, 256, 16
        $region124: #{tpu_custom_call.1} parent=119 // pred_fallthru
          _
      $region120: #{tpu_custom_call.1} parent=5 // pred_fallthru
        _
      %p7576 = scmp.le.s32.totalorder 2, %s34
      // Predicated region
      $region125: #{tpu_custom_call.1} parent=5 // pred_check
        %p7577 = pneg %p7576
      $region126: #{tpu_custom_call.1} parent=5 // pred_check_branch
        %7579 = sbr.rel (%p7577) target = $region128
      $region127: #{tpu_custom_call.1} parent=5 // pred_region
        %s7580 = ssub.s32 %s34, 2
        // Predicated region
        $region129: #{tpu_custom_call.1} parent=127 // pred_check
          %p7581 = pneg %p598
        $region130: #{tpu_custom_call.1} parent=127 // pred_check_branch
          %7583 = sbr.rel (%p7581) target = $region132
        $region131: #{tpu_custom_call.1} parent=127 // pred_region
          %s7584 = sand.u32 %s583, 1
          %s7585 = scalar_lea.sflag [#allocation7], %s7584
          %s7586 = sand.u32 %s583, 1
          %s7587 = smul.addr %s7586, 64
          %s7588 = scalar_lea.vmem [#allocation6], %s7587
          %7589 = dma.done %s7585, 1024
        $region132: #{tpu_custom_call.1} parent=127 // pred_fallthru
          _
      $region128: #{tpu_custom_call.1} parent=5 // pred_fallthru
        _
    $region6: #{tpu_custom_call.1} parent=1 // loop_footer
      %s38 = sadd.s32 1, %s34
    $region7: #{tpu_custom_call.1} parent=1 // loop_footer_branch
      %33 = sbr.rel target = $region3
    $region8: #{tpu_custom_call.1} parent=1 // loop_exit
      _
    %7590 = vsyncpa [#allocation7], 1
    %s7591 = scalar_lea.sflag [#allocation7], 1
    %7592 = vsyncpa %s7591, 1

</llo_original>
